<compile_context>
chip_gen: v5e
topology: v5e:2x2
jax: 0.10.0
libtpu: 0.0.40
codegen_flags: <defaults>
</compile_context>

<pallas_src>
import jax
import jax.numpy as jnp
from jax.experimental import pallas as pl
from jax.experimental.pallas import tpu as pltpu

N_QUBITS = 4  # fixed by the module default (n_qubits=4)


# ---------------------------------------------------------------------------
# Kernel factory: one grid step == one chunk of K timesteps. h/c are carried
# in VMEM scratch across the (sequential) time-chunk grid axis.
# ---------------------------------------------------------------------------
def _make_qlstm_kernel(K, H, flat_seq):
    def kernel(xp_ref, h0_ref, c0_ref, wh_ref, qa_ref, qb_ref, wout_ref, bout_ref,
               seq_ref, h_out_ref, c_out_ref, h_sc, c_sc):
        c_idx = pl.program_id(1)

        @pl.when(c_idx == 0)
        def _():
            h_sc[...] = h0_ref[...]
            c_sc[...] = c0_ref[...]

        # Chunk-invariant loads, hoisted out of the unrolled step loop.
        wh = wh_ref[...]                 # (H, 4)     recurrent part of clayer_in
        qa = qa_ref[...]                 # (4, 1, 4)  gate-major VQC coefficients
        qb = qb_ref[...]                 # (4, 1, 4)
        wout = wout_ref[...]             # (4, H)     clayer_out weight rows
        w0 = wout[0:1][None]             # (1, 1, H)
        w1 = wout[1:2][None]
        w2 = wout[2:3][None]
        w3 = wout[3:4][None]
        b_out = bout_ref[...]            # (1, 1, H)

        h = h_sc[...]                    # (Bblk, H)
        c = c_sc[...]                    # (Bblk, H)

        for k in range(K):               # static unroll over the chunk
            # y_t = clayer_in(cat([h_t, x_t])); the x part (+ bias) is precomputed.
            y = xp_ref[:, k, :] + jnp.dot(h, wh, preferred_element_type=jnp.float32)
            cy = jnp.cos(y)[None]        # (1, Bblk, 4)
            sy = jnp.sin(y)[None]
            # pre-CNOT <Z_i> for all 4 gates at once (gate-major): (4, Bblk, 4)
            z = qa * cy - qb * sy
            z0 = z[..., 0:1]
            z1 = z[..., 1:2]
            z2 = z[..., 2:3]
            z3 = z[..., 3:4]
            # post-CNOT-ring measured expectations (per-gate columns, (4, Bblk, 1))
            t23 = z2 * z3
            q1 = z0 * z1
            q0 = z1 * t23
            q2 = q1 * z2
            q3 = q1 * t23
            # clayer_out as 4 rank-1 VPU updates instead of (B,4)@(4,H) matmuls
            pre = q0 * w0 + q1 * w1 + q2 * w2 + q3 * w3 + b_out   # (4, Bblk, H)
            s = jax.nn.sigmoid(pre[:3])  # forget / input / output in one launch
            g = jnp.tanh(pre[3])         # update gate
            c = s[0] * c + s[1] * g
            h = s[2] * jnp.tanh(c)
            if flat_seq:
                seq_ref[:, k * H:(k + 1) * H] = h    # lane-dense staging
            else:
                seq_ref[:, k, :] = h

        h_sc[...] = h
        c_sc[...] = c

        # Final-state outputs are resident; only the last chunk's value matters.
        @pl.when(c_idx == pl.num_programs(1) - 1)
        def _():
            h_out_ref[...] = h
            c_out_ref[...] = c

    return kernel


def _pick_time_chunk(T, cap=32):
    """Largest divisor of T that is a multiple of 8 and <= cap; else T."""
    best = None
    k = 8
    while k <= min(T, cap):
        if T % k == 0:
            best = k
        k += 8
    return best if best is not None else T


# ---------------------------------------------------------------------------
# Wrapper: parameter massaging + pallas_call
# ---------------------------------------------------------------------------
def qlstm_forward(x, params, init_states=None, *, time_chunk=None, batch_block=None):
    B, T, F = x.shape
    H = params["w_out_t"].shape[1]
    x = x.astype(jnp.float32)

    if init_states is None:
        h0 = jnp.zeros((B, H), jnp.float32)
        c0 = jnp.zeros((B, H), jnp.float32)
    else:
        h0 = init_states[0][0].astype(jnp.float32)
        c0 = init_states[1][0].astype(jnp.float32)

    K = _pick_time_chunk(T) if time_chunk is None else time_chunk
    assert T % K == 0, "time_chunk must divide T"
    assert K % 8 == 0 or K == T, "time_chunk must be a multiple of 8 (or equal T)"
    Bblk = B if batch_block is None else batch_block
    assert B % Bblk == 0 and (Bblk == B or Bblk % 8 == 0), \
        "batch_block must divide B and be a multiple of 8 (or equal B)"
    n_chunks = T // K
    # lane-dense output slab needs the per-chunk lane width to be 128-aligned
    flat_seq = (K * H) % 128 == 0 or K == T

    # clayer_in: Linear(H+F -> 4). v_t = cat([h_t, x_t]) -> h rows first.
    wh = params["w_in_t"][:H, :]                               # (H, 4)
    wx = params["w_in_t"][H:, :]                               # (F, 4)
    # Hoist the non-recurrent input projection (+ bias) out of the recurrent
    # kernel: one big XLA matmul over the whole sequence.
    xp = jnp.dot(x, wx, preferred_element_type=jnp.float32) + params["b_in"]  # (B, T, 4)

    # Closed-form VQC coefficients; reorder gates to [forget, input, output,
    # update] so sigmoid / tanh can each be applied once per step.
    qa = jnp.cos(params["phi"]) * jnp.cos(params["theta"])     # (4, 4) [f, i, u, o]
    qb = jnp.sin(params["phi"])
    order = jnp.array([0, 1, 3, 2], dtype=jnp.int32)           # -> [f, i, o, u]
    qa3 = qa[order][:, None, :]                                # (4, 1, 4)
    qb3 = qb[order][:, None, :]
    w_out = params["w_out_t"]                                  # (4, H)
    b_out3 = params["b_out"].reshape(1, 1, H)                  # (1, 1, H)

    if flat_seq:
        seq_shape = jax.ShapeDtypeStruct((B, T * H), jnp.float32)
        seq_spec = pl.BlockSpec((Bblk, K * H), lambda b, c: (b, c))
    else:
        seq_shape = jax.ShapeDtypeStruct((B, T, H), jnp.float32)
        seq_spec = pl.BlockSpec((Bblk, K, H), lambda b, c: (b, c, 0))

    grid_spec = pltpu.PrefetchScalarGridSpec(
        num_scalar_prefetch=0,
        grid=(B // Bblk, n_chunks),
        in_specs=[
            pl.BlockSpec((Bblk, K, N_QUBITS), lambda b, c: (b, c, 0)),   # xp chunk
            pl.BlockSpec((Bblk, H), lambda b, c: (b, 0)),                # h0
            pl.BlockSpec((Bblk, H), lambda b, c: (b, 0)),                # c0
            pl.BlockSpec((H, N_QUBITS), lambda b, c: (0, 0)),            # wh
            pl.BlockSpec((4, 1, N_QUBITS), lambda b, c: (0, 0, 0)),      # qa
            pl.BlockSpec((4, 1, N_QUBITS), lambda b, c: (0, 0, 0)),      # qb
            pl.BlockSpec((N_QUBITS, H), lambda b, c: (0, 0)),            # w_out
            pl.BlockSpec((1, 1, H), lambda b, c: (0, 0, 0)),             # b_out
        ],
        out_specs=[
            seq_spec,                                                    # hidden_seq
            pl.BlockSpec((Bblk, H), lambda b, c: (b, 0)),                # h_T
            pl.BlockSpec((Bblk, H), lambda b, c: (b, 0)),                # c_T
        ],
        scratch_shapes=[
            pltpu.VMEM((Bblk, H), jnp.float32),   # h carry
            pltpu.VMEM((Bblk, H), jnp.float32),   # c carry
        ],
    )

    seq, h_t, c_t = pl.pallas_call(
        _make_qlstm_kernel(K, H, flat_seq),
        out_shape=(
            seq_shape,
            jax.ShapeDtypeStruct((B, H), jnp.float32),
            jax.ShapeDtypeStruct((B, H), jnp.float32),
        ),
        grid_spec=grid_spec,
        compiler_params=pltpu.CompilerParams(
            dimension_semantics=("parallel", "arbitrary")),
    )(xp, h0, c0, wh, qa3, qb3, w_out, b_out3)

    if flat_seq:
        seq = seq.reshape(B, T, H)      # free (contiguous) reshape
    return seq, (h_t, c_t)


# ---------------------------------------------------------------------------
# Deterministic parameter init (shapes from QLSTM.__init__)
# ---------------------------------------------------------------------------
def init_params(key, input_size, hidden_size, n_qubits=N_QUBITS):
    ks = jax.random.split(key, 6)
    concat = input_size + hidden_size
    w_in = jax.random.normal(ks[0], (n_qubits, concat), jnp.float32) * 0.3   # torch (out,in)
    b_in = jax.random.normal(ks[1], (n_qubits,), jnp.float32) * 0.1
    w_out = jax.random.normal(ks[2], (hidden_size, n_qubits), jnp.float32) * 0.3
    b_out = jax.random.normal(ks[3], (hidden_size,), jnp.float32) * 0.1
    # 4 VQC gates [forget, input, update, output]: RY angles theta, RX angles phi
    theta = jax.random.uniform(ks[4], (4, n_qubits), jnp.float32, 0.0, 2.0 * jnp.pi)
    phi = jax.random.uniform(ks[5], (4, n_qubits), jnp.float32, 0.0, 2.0 * jnp.pi)
    return {"w_in_t": w_in.T, "b_in": b_in,
            "w_out_t": w_out.T, "b_out": b_out,
            "theta": theta, "phi": phi}


# ---------------------------------------------------------------------------
# Plain-JAX reference (same math, lax.scan) for a sanity check of the kernel
# ---------------------------------------------------------------------------
def qlstm_reference(x, params):
    B, T, F = x.shape
    H = params["w_out_t"].shape[1]
    wh = params["w_in_t"][:H]
    wx = params["w_in_t"][H:]
    qa = jnp.cos(params["phi"]) * jnp.cos(params["theta"])
    qb = jnp.sin(params["phi"])

    def vqc(y, g):
        z = qa[g][None, :] * jnp.cos(y) - qb[g][None, :] * jnp.sin(y)
        z0, z1, z2, z3 = z[:, 0], z[:, 1], z[:, 2], z[:, 3]
        q = jnp.stack([z1 * z2 * z3, z0 * z1, z0 * z1 * z2, z0 * z1 * z2 * z3], axis=1)
        return q @ params["w_out_t"] + params["b_out"][None, :]

    def step(carry, x_t):
        h, c = carry
        y = h @ wh + x_t @ wx + params["b_in"][None, :]
        f = jax.nn.sigmoid(vqc(y, 0))
        i = jax.nn.sigmoid(vqc(y, 1))
        g = jnp.tanh(vqc(y, 2))
        o = jax.nn.sigmoid(vqc(y, 3))
        c = f * c + i * g
        h = o * jnp.tanh(c)
        return (h, c), h

    h0 = jnp.zeros((B, H), jnp.float32)
    c0 = jnp.zeros((B, H), jnp.float32)
    (h, c), seq = jax.lax.scan(step, (h0, c0), jnp.transpose(x, (1, 0, 2)))
    return jnp.transpose(seq, (1, 0, 2)), (h, c)


if __name__ == "__main__":
    B, T = 2, 32
    input_size, hidden_size = 16, 32

    key = jax.random.PRNGKey(0)
    kx, kp = jax.random.split(key)
    x = jax.random.normal(kx, (B, T, input_size), jnp.float32)
    params = init_params(kp, input_size, hidden_size)

    # Chunked run: 4 time-chunks of 8 steps each (exercises the VMEM carry).
    hidden_seq, (h_t, c_t) = qlstm_forward(x, params, time_chunk=8)
    jax.block_until_ready((hidden_seq, h_t, c_t))

    assert hidden_seq.shape == (B, T, hidden_size)
    assert h_t.shape == (B, hidden_size) and c_t.shape == (B, hidden_size)

    ref_seq, (ref_h, ref_c) = qlstm_reference(x, params)
    assert jnp.allclose(hidden_seq, ref_seq, atol=1e-4, rtol=1e-4)
    assert jnp.allclose(h_t, ref_h, atol=1e-4, rtol=1e-4)
    assert jnp.allclose(c_t, ref_c, atol=1e-4, rtol=1e-4)

    # Default chunk selection (one big chunk here) must also match.
    hidden_seq2, (h_t2, c_t2) = qlstm_forward(x, params)
    jax.block_until_ready((hidden_seq2, h_t2, c_t2))
    assert jnp.allclose(hidden_seq2, ref_seq, atol=1e-4, rtol=1e-4)
    assert jnp.allclose(h_t2, ref_h, atol=1e-4, rtol=1e-4)
    assert jnp.allclose(c_t2, ref_c, atol=1e-4, rtol=1e-4)

    print("KERNEL_OK")
</pallas_src>

<mosaic_0001>
module attributes {stable_mosaic.version = 11 : i64} {
  func.func @kernel(%arg0: i32, %arg1: i32, %arg2: memref<2x8x4xf32, #tpu.memory_space<vmem>>, %arg3: memref<2x32xf32, #tpu.memory_space<vmem>>, %arg4: memref<2x32xf32, #tpu.memory_space<vmem>>, %arg5: memref<32x4xf32, #tpu.memory_space<vmem>>, %arg6: memref<4x1x4xf32, #tpu.memory_space<vmem>>, %arg7: memref<4x1x4xf32, #tpu.memory_space<vmem>>, %arg8: memref<4x32xf32, #tpu.memory_space<vmem>>, %arg9: memref<1x1x32xf32, #tpu.memory_space<vmem>>, %arg10: memref<2x256xf32, #tpu.memory_space<vmem>>, %arg11: memref<2x32xf32, #tpu.memory_space<vmem>>, %arg12: memref<2x32xf32, #tpu.memory_space<vmem>>, %arg13: memref<2x32xf32, #tpu.memory_space<vmem>>, %arg14: memref<2x32xf32, #tpu.memory_space<vmem>>) attributes {dimension_semantics = [#tpu.dimension_semantics<parallel>, #tpu.dimension_semantics<arbitrary>], iteration_bounds = array<i64: 1, 4>, scalar_prefetch = 0 : i64, scratch_operands = 2 : i64, tpu.core_type = #tpu.core_type<tc>, window_params = [{transform_indices = @transform_0, window_bounds = array<i64: 2, 8, 4>}, {transform_indices = @transform_1, window_bounds = array<i64: 2, 32>}, {transform_indices = @transform_2, window_bounds = array<i64: 2, 32>}, {pipeline_mode = #tpu.pipeline_mode<synchronous>, transform_indices = @transform_3, window_bounds = array<i64: 32, 4>}, {pipeline_mode = #tpu.pipeline_mode<synchronous>, transform_indices = @transform_4, window_bounds = array<i64: 4, 1, 4>}, {pipeline_mode = #tpu.pipeline_mode<synchronous>, transform_indices = @transform_5, window_bounds = array<i64: 4, 1, 4>}, {pipeline_mode = #tpu.pipeline_mode<synchronous>, transform_indices = @transform_6, window_bounds = array<i64: 4, 32>}, {pipeline_mode = #tpu.pipeline_mode<synchronous>, transform_indices = @transform_7, window_bounds = array<i64: 1, 1, 32>}, {transform_indices = @transform_8, window_bounds = array<i64: 2, 256>}, {transform_indices = @transform_9, window_bounds = array<i64: 2, 32>}, {transform_indices = @transform_10, window_bounds = array<i64: 2, 32>}]} {
    %c0_i32 = arith.constant 0 : i32
    %0 = arith.cmpi eq, %arg1, %c0_i32 : i32
    %1 = arith.extui %0 : i1 to i32
    %c0_i32_0 = arith.constant 0 : i32
    %2 = arith.cmpi ne, %1, %c0_i32_0 : i32
    scf.if %2 {
      %c0_63 = arith.constant 0 : index
      %c0_64 = arith.constant 0 : index
      %519 = vector.load %arg3[%c0_63, %c0_64] : memref<2x32xf32, #tpu.memory_space<vmem>>, vector<2x32xf32>
      %c0_65 = arith.constant 0 : index
      %c0_66 = arith.constant 0 : index
      %520 = vector.load %arg13[%c0_65, %c0_66] : memref<2x32xf32, #tpu.memory_space<vmem>>, vector<2x32xf32>
      tpu.vector_store %arg13[%c0_65, %c0_66], %519 {strides = array<i32>} : memref<2x32xf32, #tpu.memory_space<vmem>>, vector<2x32xf32>,
      %c0_67 = arith.constant 0 : index
      %c0_68 = arith.constant 0 : index
      %521 = vector.load %arg4[%c0_67, %c0_68] : memref<2x32xf32, #tpu.memory_space<vmem>>, vector<2x32xf32>
      %c0_69 = arith.constant 0 : index
      %c0_70 = arith.constant 0 : index
      %522 = vector.load %arg14[%c0_69, %c0_70] : memref<2x32xf32, #tpu.memory_space<vmem>>, vector<2x32xf32>
      tpu.vector_store %arg14[%c0_69, %c0_70], %521 {strides = array<i32>} : memref<2x32xf32, #tpu.memory_space<vmem>>, vector<2x32xf32>,
    } else {
    }
    %c0 = arith.constant 0 : index
    %c0_1 = arith.constant 0 : index
    %3 = vector.load %arg5[%c0, %c0_1] : memref<32x4xf32, #tpu.memory_space<vmem>>, vector<32x4xf32>
    %c0_2 = arith.constant 0 : index
    %c0_3 = arith.constant 0 : index
    %c0_4 = arith.constant 0 : index
    %4 = vector.load %arg6[%c0_2, %c0_3, %c0_4] : memref<4x1x4xf32, #tpu.memory_space<vmem>>, vector<4x1x4xf32>
    %c0_5 = arith.constant 0 : index
    %c0_6 = arith.constant 0 : index
    %c0_7 = arith.constant 0 : index
    %5 = vector.load %arg7[%c0_5, %c0_6, %c0_7] : memref<4x1x4xf32, #tpu.memory_space<vmem>>, vector<4x1x4xf32>
    %c0_8 = arith.constant 0 : index
    %c0_9 = arith.constant 0 : index
    %6 = vector.load %arg8[%c0_8, %c0_9] : memref<4x32xf32, #tpu.memory_space<vmem>>, vector<4x32xf32>
    %7 = vector.extract_strided_slice %6 {offsets = [0, 0], sizes = [1, 32], strides = [1, 1]} : vector<4x32xf32> to vector<1x32xf32>
    %8 = vector.shape_cast %7 : vector<1x32xf32> to vector<1x1x32xf32>
    %9 = vector.extract_strided_slice %6 {offsets = [1, 0], sizes = [1, 32], strides = [1, 1]} : vector<4x32xf32> to vector<1x32xf32>
    %10 = vector.shape_cast %9 : vector<1x32xf32> to vector<1x1x32xf32>
    %11 = vector.extract_strided_slice %6 {offsets = [2, 0], sizes = [1, 32], strides = [1, 1]} : vector<4x32xf32> to vector<1x32xf32>
    %12 = vector.shape_cast %11 : vector<1x32xf32> to vector<1x1x32xf32>
    %13 = vector.extract_strided_slice %6 {offsets = [3, 0], sizes = [1, 32], strides = [1, 1]} : vector<4x32xf32> to vector<1x32xf32>
    %14 = vector.shape_cast %13 : vector<1x32xf32> to vector<1x1x32xf32>
    %c0_10 = arith.constant 0 : index
    %c0_11 = arith.constant 0 : index
    %c0_12 = arith.constant 0 : index
    %15 = vector.load %arg9[%c0_10, %c0_11, %c0_12] : memref<1x1x32xf32, #tpu.memory_space<vmem>>, vector<1x1x32xf32>
    %c0_13 = arith.constant 0 : index
    %c0_14 = arith.constant 0 : index
    %16 = vector.load %arg13[%c0_13, %c0_14] : memref<2x32xf32, #tpu.memory_space<vmem>>, vector<2x32xf32>
    %c0_15 = arith.constant 0 : index
    %c0_16 = arith.constant 0 : index
    %17 = vector.load %arg14[%c0_15, %c0_16] : memref<2x32xf32, #tpu.memory_space<vmem>>, vector<2x32xf32>
    %c0_17 = arith.constant 0 : index
    %c0_18 = arith.constant 0 : index
    %c0_19 = arith.constant 0 : index
    %18 = vector.load %arg2[%c0_17, %c0_18, %c0_19] : memref<2x8x4xf32, #tpu.memory_space<vmem>>, vector<2x1x4xf32>
    %19 = vector.shape_cast %18 : vector<2x1x4xf32> to vector<2x4xf32>
    %cst = arith.constant dense<0.000000e+00> : vector<2x4xf32>
    %20 = tpu.matmul %16, %3, %cst {dimension_numbers = #tpu.dot_dimension_numbers<[1], [0], [0], [1], [0, 0, 1, 1], [], []>} : vector<2x32xf32>, vector<32x4xf32>, vector<2x4xf32> -> vector<2x4xf32>
    %21 = arith.addf %19, %20 : vector<2x4xf32>
    %22 = math.cos %21 : vector<2x4xf32>
    %23 = vector.shape_cast %22 : vector<2x4xf32> to vector<1x2x4xf32>
    %24 = math.sin %21 : vector<2x4xf32>
    %25 = vector.shape_cast %24 : vector<2x4xf32> to vector<1x2x4xf32>
    %26 = vector.broadcast %4 : vector<4x1x4xf32> to vector<4x2x4xf32>
    %27 = vector.broadcast %23 : vector<1x2x4xf32> to vector<4x2x4xf32>
    %28 = arith.mulf %26, %27 : vector<4x2x4xf32>
    %29 = vector.broadcast %5 : vector<4x1x4xf32> to vector<4x2x4xf32>
    %30 = vector.broadcast %25 : vector<1x2x4xf32> to vector<4x2x4xf32>
    %31 = arith.mulf %29, %30 : vector<4x2x4xf32>
    %32 = arith.subf %28, %31 : vector<4x2x4xf32>
    %33 = vector.extract_strided_slice %32 {offsets = [0, 0, 0], sizes = [4, 2, 1], strides = [1, 1, 1]} : vector<4x2x4xf32> to vector<4x2x1xf32>
    %34 = vector.extract_strided_slice %32 {offsets = [0, 0, 1], sizes = [4, 2, 1], strides = [1, 1, 1]} : vector<4x2x4xf32> to vector<4x2x1xf32>
    %35 = vector.extract_strided_slice %32 {offsets = [0, 0, 2], sizes = [4, 2, 1], strides = [1, 1, 1]} : vector<4x2x4xf32> to vector<4x2x1xf32>
    %36 = vector.extract_strided_slice %32 {offsets = [0, 0, 3], sizes = [4, 2, 1], strides = [1, 1, 1]} : vector<4x2x4xf32> to vector<4x2x1xf32>
    %37 = arith.mulf %35, %36 : vector<4x2x1xf32>
    %38 = arith.mulf %33, %34 : vector<4x2x1xf32>
    %39 = arith.mulf %34, %37 : vector<4x2x1xf32>
    %40 = arith.mulf %38, %35 : vector<4x2x1xf32>
    %41 = arith.mulf %38, %37 : vector<4x2x1xf32>
    %42 = vector.broadcast %39 : vector<4x2x1xf32> to vector<4x2x32xf32>
    %43 = vector.broadcast %8 : vector<1x1x32xf32> to vector<4x2x32xf32>
    %44 = arith.mulf %42, %43 : vector<4x2x32xf32>
    %45 = vector.broadcast %38 : vector<4x2x1xf32> to vector<4x2x32xf32>
    %46 = vector.broadcast %10 : vector<1x1x32xf32> to vector<4x2x32xf32>
    %47 = arith.mulf %45, %46 : vector<4x2x32xf32>
    %48 = arith.addf %44, %47 : vector<4x2x32xf32>
    %49 = vector.broadcast %40 : vector<4x2x1xf32> to vector<4x2x32xf32>
    %50 = vector.broadcast %12 : vector<1x1x32xf32> to vector<4x2x32xf32>
    %51 = arith.mulf %49, %50 : vector<4x2x32xf32>
    %52 = arith.addf %48, %51 : vector<4x2x32xf32>
    %53 = vector.broadcast %41 : vector<4x2x1xf32> to vector<4x2x32xf32>
    %54 = vector.broadcast %14 : vector<1x1x32xf32> to vector<4x2x32xf32>
    %55 = arith.mulf %53, %54 : vector<4x2x32xf32>
    %56 = arith.addf %52, %55 : vector<4x2x32xf32>
    %57 = vector.broadcast %15 : vector<1x1x32xf32> to vector<4x2x32xf32>
    %58 = arith.addf %56, %57 : vector<4x2x32xf32>
    %59 = vector.extract_strided_slice %58 {offsets = [0, 0, 0], sizes = [3, 2, 32], strides = [1, 1, 1]} : vector<4x2x32xf32> to vector<3x2x32xf32>
    %60 = arith.negf %59 : vector<3x2x32xf32>
    %61 = math.exp %60 : vector<3x2x32xf32>
    %cst_20 = arith.constant 1.000000e+00 : f32
    %62 = vector.broadcast %cst_20 : f32 to vector<3x2x32xf32>
    %63 = arith.addf %62, %61 : vector<3x2x32xf32>
    %64 = arith.divf %62, %63 : vector<3x2x32xf32>
    %65 = vector.extract_strided_slice %58 {offsets = [3, 0, 0], sizes = [1, 2, 32], strides = [1, 1, 1]} : vector<4x2x32xf32> to vector<1x2x32xf32>
    %66 = vector.shape_cast %65 : vector<1x2x32xf32> to vector<2x32xf32>
    %67 = math.tanh %66 : vector<2x32xf32>
    %68 = vector.extract_strided_slice %64 {offsets = [0, 0, 0], sizes = [1, 2, 32], strides = [1, 1, 1]} : vector<3x2x32xf32> to vector<1x2x32xf32>
    %69 = vector.shape_cast %68 : vector<1x2x32xf32> to vector<2x32xf32>
    %70 = arith.mulf %69, %17 : vector<2x32xf32>
    %71 = vector.extract_strided_slice %64 {offsets = [1, 0, 0], sizes = [1, 2, 32], strides = [1, 1, 1]} : vector<3x2x32xf32> to vector<1x2x32xf32>
    %72 = vector.shape_cast %71 : vector<1x2x32xf32> to vector<2x32xf32>
    %73 = arith.mulf %72, %67 : vector<2x32xf32>
    %74 = arith.addf %70, %73 : vector<2x32xf32>
    %75 = vector.extract_strided_slice %64 {offsets = [2, 0, 0], sizes = [1, 2, 32], strides = [1, 1, 1]} : vector<3x2x32xf32> to vector<1x2x32xf32>
    %76 = vector.shape_cast %75 : vector<1x2x32xf32> to vector<2x32xf32>
    %77 = math.tanh %74 : vector<2x32xf32>
    %78 = arith.mulf %76, %77 : vector<2x32xf32>
    %c0_21 = arith.constant 0 : index
    %c0_22 = arith.constant 0 : index
    %79 = vector.load %arg10[%c0_21, %c0_22] : memref<2x256xf32, #tpu.memory_space<vmem>>, vector<2x32xf32>
    tpu.vector_store %arg10[%c0_21, %c0_22], %78 {strides = array<i32>} : memref<2x256xf32, #tpu.memory_space<vmem>>, vector<2x32xf32>,
    %c0_23 = arith.constant 0 : index
    %c1 = arith.constant 1 : index
    %c0_24 = arith.constant 0 : index
    %80 = vector.load %arg2[%c0_23, %c1, %c0_24] : memref<2x8x4xf32, #tpu.memory_space<vmem>>, vector<2x1x4xf32>
    %81 = vector.shape_cast %80 : vector<2x1x4xf32> to vector<2x4xf32>
    %cst_25 = arith.constant dense<0.000000e+00> : vector<2x4xf32>
    %82 = tpu.matmul %78, %3, %cst_25 {dimension_numbers = #tpu.dot_dimension_numbers<[1], [0], [0], [1], [0, 0, 1, 1], [], []>} : vector<2x32xf32>, vector<32x4xf32>, vector<2x4xf32> -> vector<2x4xf32>
    %83 = arith.addf %81, %82 : vector<2x4xf32>
    %84 = math.cos %83 : vector<2x4xf32>
    %85 = vector.shape_cast %84 : vector<2x4xf32> to vector<1x2x4xf32>
    %86 = math.sin %83 : vector<2x4xf32>
    %87 = vector.shape_cast %86 : vector<2x4xf32> to vector<1x2x4xf32>
    %88 = vector.broadcast %4 : vector<4x1x4xf32> to vector<4x2x4xf32>
    %89 = vector.broadcast %85 : vector<1x2x4xf32> to vector<4x2x4xf32>
    %90 = arith.mulf %88, %89 : vector<4x2x4xf32>
    %91 = vector.broadcast %5 : vector<4x1x4xf32> to vector<4x2x4xf32>
    %92 = vector.broadcast %87 : vector<1x2x4xf32> to vector<4x2x4xf32>
    %93 = arith.mulf %91, %92 : vector<4x2x4xf32>
    %94 = arith.subf %90, %93 : vector<4x2x4xf32>
    %95 = vector.extract_strided_slice %94 {offsets = [0, 0, 0], sizes = [4, 2, 1], strides = [1, 1, 1]} : vector<4x2x4xf32> to vector<4x2x1xf32>
    %96 = vector.extract_strided_slice %94 {offsets = [0, 0, 1], sizes = [4, 2, 1], strides = [1, 1, 1]} : vector<4x2x4xf32> to vector<4x2x1xf32>
    %97 = vector.extract_strided_slice %94 {offsets = [0, 0, 2], sizes = [4, 2, 1], strides = [1, 1, 1]} : vector<4x2x4xf32> to vector<4x2x1xf32>
    %98 = vector.extract_strided_slice %94 {offsets = [0, 0, 3], sizes = [4, 2, 1], strides = [1, 1, 1]} : vector<4x2x4xf32> to vector<4x2x1xf32>
    %99 = arith.mulf %97, %98 : vector<4x2x1xf32>
    %100 = arith.mulf %95, %96 : vector<4x2x1xf32>
    %101 = arith.mulf %96, %99 : vector<4x2x1xf32>
    %102 = arith.mulf %100, %97 : vector<4x2x1xf32>
    %103 = arith.mulf %100, %99 : vector<4x2x1xf32>
    %104 = vector.broadcast %101 : vector<4x2x1xf32> to vector<4x2x32xf32>
    %105 = vector.broadcast %8 : vector<1x1x32xf32> to vector<4x2x32xf32>
    %106 = arith.mulf %104, %105 : vector<4x2x32xf32>
    %107 = vector.broadcast %100 : vector<4x2x1xf32> to vector<4x2x32xf32>
    %108 = vector.broadcast %10 : vector<1x1x32xf32> to vector<4x2x32xf32>
    %109 = arith.mulf %107, %108 : vector<4x2x32xf32>
    %110 = arith.addf %106, %109 : vector<4x2x32xf32>
    %111 = vector.broadcast %102 : vector<4x2x1xf32> to vector<4x2x32xf32>
    %112 = vector.broadcast %12 : vector<1x1x32xf32> to vector<4x2x32xf32>
    %113 = arith.mulf %111, %112 : vector<4x2x32xf32>
    %114 = arith.addf %110, %113 : vector<4x2x32xf32>
    %115 = vector.broadcast %103 : vector<4x2x1xf32> to vector<4x2x32xf32>
    %116 = vector.broadcast %14 : vector<1x1x32xf32> to vector<4x2x32xf32>
    %117 = arith.mulf %115, %116 : vector<4x2x32xf32>
    %118 = arith.addf %114, %117 : vector<4x2x32xf32>
    %119 = vector.broadcast %15 : vector<1x1x32xf32> to vector<4x2x32xf32>
    %120 = arith.addf %118, %119 : vector<4x2x32xf32>
    %121 = vector.extract_strided_slice %120 {offsets = [0, 0, 0], sizes = [3, 2, 32], strides = [1, 1, 1]} : vector<4x2x32xf32> to vector<3x2x32xf32>
    %122 = arith.negf %121 : vector<3x2x32xf32>
    %123 = math.exp %122 : vector<3x2x32xf32>
    %cst_26 = arith.constant 1.000000e+00 : f32
    %124 = vector.broadcast %cst_26 : f32 to vector<3x2x32xf32>
    %125 = arith.addf %124, %123 : vector<3x2x32xf32>
    %126 = arith.divf %124, %125 : vector<3x2x32xf32>
    %127 = vector.extract_strided_slice %120 {offsets = [3, 0, 0], sizes = [1, 2, 32], strides = [1, 1, 1]} : vector<4x2x32xf32> to vector<1x2x32xf32>
    %128 = vector.shape_cast %127 : vector<1x2x32xf32> to vector<2x32xf32>
    %129 = math.tanh %128 : vector<2x32xf32>
    %130 = vector.extract_strided_slice %126 {offsets = [0, 0, 0], sizes = [1, 2, 32], strides = [1, 1, 1]} : vector<3x2x32xf32> to vector<1x2x32xf32>
    %131 = vector.shape_cast %130 : vector<1x2x32xf32> to vector<2x32xf32>
    %132 = arith.mulf %131, %74 : vector<2x32xf32>
    %133 = vector.extract_strided_slice %126 {offsets = [1, 0, 0], sizes = [1, 2, 32], strides = [1, 1, 1]} : vector<3x2x32xf32> to vector<1x2x32xf32>
    %134 = vector.shape_cast %133 : vector<1x2x32xf32> to vector<2x32xf32>
    %135 = arith.mulf %134, %129 : vector<2x32xf32>
    %136 = arith.addf %132, %135 : vector<2x32xf32>
    %137 = vector.extract_strided_slice %126 {offsets = [2, 0, 0], sizes = [1, 2, 32], strides = [1, 1, 1]} : vector<3x2x32xf32> to vector<1x2x32xf32>
    %138 = vector.shape_cast %137 : vector<1x2x32xf32> to vector<2x32xf32>
    %139 = math.tanh %136 : vector<2x32xf32>
    %140 = arith.mulf %138, %139 : vector<2x32xf32>
    %c0_27 = arith.constant 0 : index
    %c32 = arith.constant 32 : index
    %141 = vector.load %arg10[%c0_27, %c32] : memref<2x256xf32, #tpu.memory_space<vmem>>, vector<2x32xf32>
    tpu.vector_store %arg10[%c0_27, %c32], %140 {strides = array<i32>} : memref<2x256xf32, #tpu.memory_space<vmem>>, vector<2x32xf32>,
    %c0_28 = arith.constant 0 : index
    %c2 = arith.constant 2 : index
    %c0_29 = arith.constant 0 : index
    %142 = vector.load %arg2[%c0_28, %c2, %c0_29] : memref<2x8x4xf32, #tpu.memory_space<vmem>>, vector<2x1x4xf32>
    %143 = vector.shape_cast %142 : vector<2x1x4xf32> to vector<2x4xf32>
    %cst_30 = arith.constant dense<0.000000e+00> : vector<2x4xf32>
    %144 = tpu.matmul %140, %3, %cst_30 {dimension_numbers = #tpu.dot_dimension_numbers<[1], [0], [0], [1], [0, 0, 1, 1], [], []>} : vector<2x32xf32>, vector<32x4xf32>, vector<2x4xf32> -> vector<2x4xf32>
    %145 = arith.addf %143, %144 : vector<2x4xf32>
    %146 = math.cos %145 : vector<2x4xf32>
    %147 = vector.shape_cast %146 : vector<2x4xf32> to vector<1x2x4xf32>
    %148 = math.sin %145 : vector<2x4xf32>
    %149 = vector.shape_cast %148 : vector<2x4xf32> to vector<1x2x4xf32>
    %150 = vector.broadcast %4 : vector<4x1x4xf32> to vector<4x2x4xf32>
    %151 = vector.broadcast %147 : vector<1x2x4xf32> to vector<4x2x4xf32>
    %152 = arith.mulf %150, %151 : vector<4x2x4xf32>
    %153 = vector.broadcast %5 : vector<4x1x4xf32> to vector<4x2x4xf32>
    %154 = vector.broadcast %149 : vector<1x2x4xf32> to vector<4x2x4xf32>
    %155 = arith.mulf %153, %154 : vector<4x2x4xf32>
    %156 = arith.subf %152, %155 : vector<4x2x4xf32>
    %157 = vector.extract_strided_slice %156 {offsets = [0, 0, 0], sizes = [4, 2, 1], strides = [1, 1, 1]} : vector<4x2x4xf32> to vector<4x2x1xf32>
    %158 = vector.extract_strided_slice %156 {offsets = [0, 0, 1], sizes = [4, 2, 1], strides = [1, 1, 1]} : vector<4x2x4xf32> to vector<4x2x1xf32>
    %159 = vector.extract_strided_slice %156 {offsets = [0, 0, 2], sizes = [4, 2, 1], strides = [1, 1, 1]} : vector<4x2x4xf32> to vector<4x2x1xf32>
    %160 = vector.extract_strided_slice %156 {offsets = [0, 0, 3], sizes = [4, 2, 1], strides = [1, 1, 1]} : vector<4x2x4xf32> to vector<4x2x1xf32>
    %161 = arith.mulf %159, %160 : vector<4x2x1xf32>
    %162 = arith.mulf %157, %158 : vector<4x2x1xf32>
    %163 = arith.mulf %158, %161 : vector<4x2x1xf32>
    %164 = arith.mulf %162, %159 : vector<4x2x1xf32>
    %165 = arith.mulf %162, %161 : vector<4x2x1xf32>
    %166 = vector.broadcast %163 : vector<4x2x1xf32> to vector<4x2x32xf32>
    %167 = vector.broadcast %8 : vector<1x1x32xf32> to vector<4x2x32xf32>
    %168 = arith.mulf %166, %167 : vector<4x2x32xf32>
    %169 = vector.broadcast %162 : vector<4x2x1xf32> to vector<4x2x32xf32>
    %170 = vector.broadcast %10 : vector<1x1x32xf32> to vector<4x2x32xf32>
    %171 = arith.mulf %169, %170 : vector<4x2x32xf32>
    %172 = arith.addf %168, %171 : vector<4x2x32xf32>
    %173 = vector.broadcast %164 : vector<4x2x1xf32> to vector<4x2x32xf32>
    %174 = vector.broadcast %12 : vector<1x1x32xf32> to vector<4x2x32xf32>
    %175 = arith.mulf %173, %174 : vector<4x2x32xf32>
    %176 = arith.addf %172, %175 : vector<4x2x32xf32>
    %177 = vector.broadcast %165 : vector<4x2x1xf32> to vector<4x2x32xf32>
    %178 = vector.broadcast %14 : vector<1x1x32xf32> to vector<4x2x32xf32>
    %179 = arith.mulf %177, %178 : vector<4x2x32xf32>
    %180 = arith.addf %176, %179 : vector<4x2x32xf32>
    %181 = vector.broadcast %15 : vector<1x1x32xf32> to vector<4x2x32xf32>
    %182 = arith.addf %180, %181 : vector<4x2x32xf32>
    %183 = vector.extract_strided_slice %182 {offsets = [0, 0, 0], sizes = [3, 2, 32], strides = [1, 1, 1]} : vector<4x2x32xf32> to vector<3x2x32xf32>
    %184 = arith.negf %183 : vector<3x2x32xf32>
    %185 = math.exp %184 : vector<3x2x32xf32>
    %cst_31 = arith.constant 1.000000e+00 : f32
    %186 = vector.broadcast %cst_31 : f32 to vector<3x2x32xf32>
    %187 = arith.addf %186, %185 : vector<3x2x32xf32>
    %188 = arith.divf %186, %187 : vector<3x2x32xf32>
    %189 = vector.extract_strided_slice %182 {offsets = [3, 0, 0], sizes = [1, 2, 32], strides = [1, 1, 1]} : vector<4x2x32xf32> to vector<1x2x32xf32>
    %190 = vector.shape_cast %189 : vector<1x2x32xf32> to vector<2x32xf32>
    %191 = math.tanh %190 : vector<2x32xf32>
    %192 = vector.extract_strided_slice %188 {offsets = [0, 0, 0], sizes = [1, 2, 32], strides = [1, 1, 1]} : vector<3x2x32xf32> to vector<1x2x32xf32>
    %193 = vector.shape_cast %192 : vector<1x2x32xf32> to vector<2x32xf32>
    %194 = arith.mulf %193, %136 : vector<2x32xf32>
    %195 = vector.extract_strided_slice %188 {offsets = [1, 0, 0], sizes = [1, 2, 32], strides = [1, 1, 1]} : vector<3x2x32xf32> to vector<1x2x32xf32>
    %196 = vector.shape_cast %195 : vector<1x2x32xf32> to vector<2x32xf32>
    %197 = arith.mulf %196, %191 : vector<2x32xf32>
    %198 = arith.addf %194, %197 : vector<2x32xf32>
    %199 = vector.extract_strided_slice %188 {offsets = [2, 0, 0], sizes = [1, 2, 32], strides = [1, 1, 1]} : vector<3x2x32xf32> to vector<1x2x32xf32>
    %200 = vector.shape_cast %199 : vector<1x2x32xf32> to vector<2x32xf32>
    %201 = math.tanh %198 : vector<2x32xf32>
    %202 = arith.mulf %200, %201 : vector<2x32xf32>
    %c0_32 = arith.constant 0 : index
    %c64 = arith.constant 64 : index
    %203 = vector.load %arg10[%c0_32, %c64] : memref<2x256xf32, #tpu.memory_space<vmem>>, vector<2x32xf32>
    tpu.vector_store %arg10[%c0_32, %c64], %202 {strides = array<i32>} : memref<2x256xf32, #tpu.memory_space<vmem>>, vector<2x32xf32>,
    %c0_33 = arith.constant 0 : index
    %c3 = arith.constant 3 : index
    %c0_34 = arith.constant 0 : index
    %204 = vector.load %arg2[%c0_33, %c3, %c0_34] : memref<2x8x4xf32, #tpu.memory_space<vmem>>, vector<2x1x4xf32>
    %205 = vector.shape_cast %204 : vector<2x1x4xf32> to vector<2x4xf32>
    %cst_35 = arith.constant dense<0.000000e+00> : vector<2x4xf32>
    %206 = tpu.matmul %202, %3, %cst_35 {dimension_numbers = #tpu.dot_dimension_numbers<[1], [0], [0], [1], [0, 0, 1, 1], [], []>} : vector<2x32xf32>, vector<32x4xf32>, vector<2x4xf32> -> vector<2x4xf32>
    %207 = arith.addf %205, %206 : vector<2x4xf32>
    %208 = math.cos %207 : vector<2x4xf32>
    %209 = vector.shape_cast %208 : vector<2x4xf32> to vector<1x2x4xf32>
    %210 = math.sin %207 : vector<2x4xf32>
    %211 = vector.shape_cast %210 : vector<2x4xf32> to vector<1x2x4xf32>
    %212 = vector.broadcast %4 : vector<4x1x4xf32> to vector<4x2x4xf32>
    %213 = vector.broadcast %209 : vector<1x2x4xf32> to vector<4x2x4xf32>
    %214 = arith.mulf %212, %213 : vector<4x2x4xf32>
    %215 = vector.broadcast %5 : vector<4x1x4xf32> to vector<4x2x4xf32>
    %216 = vector.broadcast %211 : vector<1x2x4xf32> to vector<4x2x4xf32>
    %217 = arith.mulf %215, %216 : vector<4x2x4xf32>
    %218 = arith.subf %214, %217 : vector<4x2x4xf32>
    %219 = vector.extract_strided_slice %218 {offsets = [0, 0, 0], sizes = [4, 2, 1], strides = [1, 1, 1]} : vector<4x2x4xf32> to vector<4x2x1xf32>
    %220 = vector.extract_strided_slice %218 {offsets = [0, 0, 1], sizes = [4, 2, 1], strides = [1, 1, 1]} : vector<4x2x4xf32> to vector<4x2x1xf32>
    %221 = vector.extract_strided_slice %218 {offsets = [0, 0, 2], sizes = [4, 2, 1], strides = [1, 1, 1]} : vector<4x2x4xf32> to vector<4x2x1xf32>
    %222 = vector.extract_strided_slice %218 {offsets = [0, 0, 3], sizes = [4, 2, 1], strides = [1, 1, 1]} : vector<4x2x4xf32> to vector<4x2x1xf32>
    %223 = arith.mulf %221, %222 : vector<4x2x1xf32>
    %224 = arith.mulf %219, %220 : vector<4x2x1xf32>
    %225 = arith.mulf %220, %223 : vector<4x2x1xf32>
    %226 = arith.mulf %224, %221 : vector<4x2x1xf32>
    %227 = arith.mulf %224, %223 : vector<4x2x1xf32>
    %228 = vector.broadcast %225 : vector<4x2x1xf32> to vector<4x2x32xf32>
    %229 = vector.broadcast %8 : vector<1x1x32xf32> to vector<4x2x32xf32>
    %230 = arith.mulf %228, %229 : vector<4x2x32xf32>
    %231 = vector.broadcast %224 : vector<4x2x1xf32> to vector<4x2x32xf32>
    %232 = vector.broadcast %10 : vector<1x1x32xf32> to vector<4x2x32xf32>
    %233 = arith.mulf %231, %232 : vector<4x2x32xf32>
    %234 = arith.addf %230, %233 : vector<4x2x32xf32>
    %235 = vector.broadcast %226 : vector<4x2x1xf32> to vector<4x2x32xf32>
    %236 = vector.broadcast %12 : vector<1x1x32xf32> to vector<4x2x32xf32>
    %237 = arith.mulf %235, %236 : vector<4x2x32xf32>
    %238 = arith.addf %234, %237 : vector<4x2x32xf32>
    %239 = vector.broadcast %227 : vector<4x2x1xf32> to vector<4x2x32xf32>
    %240 = vector.broadcast %14 : vector<1x1x32xf32> to vector<4x2x32xf32>
    %241 = arith.mulf %239, %240 : vector<4x2x32xf32>
    %242 = arith.addf %238, %241 : vector<4x2x32xf32>
    %243 = vector.broadcast %15 : vector<1x1x32xf32> to vector<4x2x32xf32>
    %244 = arith.addf %242, %243 : vector<4x2x32xf32>
    %245 = vector.extract_strided_slice %244 {offsets = [0, 0, 0], sizes = [3, 2, 32], strides = [1, 1, 1]} : vector<4x2x32xf32> to vector<3x2x32xf32>
    %246 = arith.negf %245 : vector<3x2x32xf32>
    %247 = math.exp %246 : vector<3x2x32xf32>
    %cst_36 = arith.constant 1.000000e+00 : f32
    %248 = vector.broadcast %cst_36 : f32 to vector<3x2x32xf32>
    %249 = arith.addf %248, %247 : vector<3x2x32xf32>
    %250 = arith.divf %248, %249 : vector<3x2x32xf32>
    %251 = vector.extract_strided_slice %244 {offsets = [3, 0, 0], sizes = [1, 2, 32], strides = [1, 1, 1]} : vector<4x2x32xf32> to vector<1x2x32xf32>
    %252 = vector.shape_cast %251 : vector<1x2x32xf32> to vector<2x32xf32>
    %253 = math.tanh %252 : vector<2x32xf32>
    %254 = vector.extract_strided_slice %250 {offsets = [0, 0, 0], sizes = [1, 2, 32], strides = [1, 1, 1]} : vector<3x2x32xf32> to vector<1x2x32xf32>
    %255 = vector.shape_cast %254 : vector<1x2x32xf32> to vector<2x32xf32>
    %256 = arith.mulf %255, %198 : vector<2x32xf32>
    %257 = vector.extract_strided_slice %250 {offsets = [1, 0, 0], sizes = [1, 2, 32], strides = [1, 1, 1]} : vector<3x2x32xf32> to vector<1x2x32xf32>
    %258 = vector.shape_cast %257 : vector<1x2x32xf32> to vector<2x32xf32>
    %259 = arith.mulf %258, %253 : vector<2x32xf32>
    %260 = arith.addf %256, %259 : vector<2x32xf32>
    %261 = vector.extract_strided_slice %250 {offsets = [2, 0, 0], sizes = [1, 2, 32], strides = [1, 1, 1]} : vector<3x2x32xf32> to vector<1x2x32xf32>
    %262 = vector.shape_cast %261 : vector<1x2x32xf32> to vector<2x32xf32>
    %263 = math.tanh %260 : vector<2x32xf32>
    %264 = arith.mulf %262, %263 : vector<2x32xf32>
    %c0_37 = arith.constant 0 : index
    %c96 = arith.constant 96 : index
    %265 = vector.load %arg10[%c0_37, %c96] : memref<2x256xf32, #tpu.memory_space<vmem>>, vector<2x32xf32>
    tpu.vector_store %arg10[%c0_37, %c96], %264 {strides = array<i32>} : memref<2x256xf32, #tpu.memory_space<vmem>>, vector<2x32xf32>,
    %c0_38 = arith.constant 0 : index
    %c4 = arith.constant 4 : index
    %c0_39 = arith.constant 0 : index
    %266 = vector.load %arg2[%c0_38, %c4, %c0_39] : memref<2x8x4xf32, #tpu.memory_space<vmem>>, vector<2x1x4xf32>
    %267 = vector.shape_cast %266 : vector<2x1x4xf32> to vector<2x4xf32>
    %cst_40 = arith.constant dense<0.000000e+00> : vector<2x4xf32>
    %268 = tpu.matmul %264, %3, %cst_40 {dimension_numbers = #tpu.dot_dimension_numbers<[1], [0], [0], [1], [0, 0, 1, 1], [], []>} : vector<2x32xf32>, vector<32x4xf32>, vector<2x4xf32> -> vector<2x4xf32>
    %269 = arith.addf %267, %268 : vector<2x4xf32>
    %270 = math.cos %269 : vector<2x4xf32>
    %271 = vector.shape_cast %270 : vector<2x4xf32> to vector<1x2x4xf32>
    %272 = math.sin %269 : vector<2x4xf32>
    %273 = vector.shape_cast %272 : vector<2x4xf32> to vector<1x2x4xf32>
    %274 = vector.broadcast %4 : vector<4x1x4xf32> to vector<4x2x4xf32>
    %275 = vector.broadcast %271 : vector<1x2x4xf32> to vector<4x2x4xf32>
    %276 = arith.mulf %274, %275 : vector<4x2x4xf32>
    %277 = vector.broadcast %5 : vector<4x1x4xf32> to vector<4x2x4xf32>
    %278 = vector.broadcast %273 : vector<1x2x4xf32> to vector<4x2x4xf32>
    %279 = arith.mulf %277, %278 : vector<4x2x4xf32>
    %280 = arith.subf %276, %279 : vector<4x2x4xf32>
    %281 = vector.extract_strided_slice %280 {offsets = [0, 0, 0], sizes = [4, 2, 1], strides = [1, 1, 1]} : vector<4x2x4xf32> to vector<4x2x1xf32>
    %282 = vector.extract_strided_slice %280 {offsets = [0, 0, 1], sizes = [4, 2, 1], strides = [1, 1, 1]} : vector<4x2x4xf32> to vector<4x2x1xf32>
    %283 = vector.extract_strided_slice %280 {offsets = [0, 0, 2], sizes = [4, 2, 1], strides = [1, 1, 1]} : vector<4x2x4xf32> to vector<4x2x1xf32>
    %284 = vector.extract_strided_slice %280 {offsets = [0, 0, 3], sizes = [4, 2, 1], strides = [1, 1, 1]} : vector<4x2x4xf32> to vector<4x2x1xf32>
    %285 = arith.mulf %283, %284 : vector<4x2x1xf32>
    %286 = arith.mulf %281, %282 : vector<4x2x1xf32>
    %287 = arith.mulf %282, %285 : vector<4x2x1xf32>
    %288 = arith.mulf %286, %283 : vector<4x2x1xf32>
    %289 = arith.mulf %286, %285 : vector<4x2x1xf32>
    %290 = vector.broadcast %287 : vector<4x2x1xf32> to vector<4x2x32xf32>
    %291 = vector.broadcast %8 : vector<1x1x32xf32> to vector<4x2x32xf32>
    %292 = arith.mulf %290, %291 : vector<4x2x32xf32>
    %293 = vector.broadcast %286 : vector<4x2x1xf32> to vector<4x2x32xf32>
    %294 = vector.broadcast %10 : vector<1x1x32xf32> to vector<4x2x32xf32>
    %295 = arith.mulf %293, %294 : vector<4x2x32xf32>
    %296 = arith.addf %292, %295 : vector<4x2x32xf32>
    %297 = vector.broadcast %288 : vector<4x2x1xf32> to vector<4x2x32xf32>
    %298 = vector.broadcast %12 : vector<1x1x32xf32> to vector<4x2x32xf32>
    %299 = arith.mulf %297, %298 : vector<4x2x32xf32>
    %300 = arith.addf %296, %299 : vector<4x2x32xf32>
    %301 = vector.broadcast %289 : vector<4x2x1xf32> to vector<4x2x32xf32>
    %302 = vector.broadcast %14 : vector<1x1x32xf32> to vector<4x2x32xf32>
    %303 = arith.mulf %301, %302 : vector<4x2x32xf32>
    %304 = arith.addf %300, %303 : vector<4x2x32xf32>
    %305 = vector.broadcast %15 : vector<1x1x32xf32> to vector<4x2x32xf32>
    %306 = arith.addf %304, %305 : vector<4x2x32xf32>
    %307 = vector.extract_strided_slice %306 {offsets = [0, 0, 0], sizes = [3, 2, 32], strides = [1, 1, 1]} : vector<4x2x32xf32> to vector<3x2x32xf32>
    %308 = arith.negf %307 : vector<3x2x32xf32>
    %309 = math.exp %308 : vector<3x2x32xf32>
    %cst_41 = arith.constant 1.000000e+00 : f32
    %310 = vector.broadcast %cst_41 : f32 to vector<3x2x32xf32>
    %311 = arith.addf %310, %309 : vector<3x2x32xf32>
    %312 = arith.divf %310, %311 : vector<3x2x32xf32>
    %313 = vector.extract_strided_slice %306 {offsets = [3, 0, 0], sizes = [1, 2, 32], strides = [1, 1, 1]} : vector<4x2x32xf32> to vector<1x2x32xf32>
    %314 = vector.shape_cast %313 : vector<1x2x32xf32> to vector<2x32xf32>
    %315 = math.tanh %314 : vector<2x32xf32>
    %316 = vector.extract_strided_slice %312 {offsets = [0, 0, 0], sizes = [1, 2, 32], strides = [1, 1, 1]} : vector<3x2x32xf32> to vector<1x2x32xf32>
    %317 = vector.shape_cast %316 : vector<1x2x32xf32> to vector<2x32xf32>
    %318 = arith.mulf %317, %260 : vector<2x32xf32>
    %319 = vector.extract_strided_slice %312 {offsets = [1, 0, 0], sizes = [1, 2, 32], strides = [1, 1, 1]} : vector<3x2x32xf32> to vector<1x2x32xf32>
    %320 = vector.shape_cast %319 : vector<1x2x32xf32> to vector<2x32xf32>
    %321 = arith.mulf %320, %315 : vector<2x32xf32>
    %322 = arith.addf %318, %321 : vector<2x32xf32>
    %323 = vector.extract_strided_slice %312 {offsets = [2, 0, 0], sizes = [1, 2, 32], strides = [1, 1, 1]} : vector<3x2x32xf32> to vector<1x2x32xf32>
    %324 = vector.shape_cast %323 : vector<1x2x32xf32> to vector<2x32xf32>
    %325 = math.tanh %322 : vector<2x32xf32>
    %326 = arith.mulf %324, %325 : vector<2x32xf32>
    %c0_42 = arith.constant 0 : index
    %c128 = arith.constant 128 : index
    %327 = vector.load %arg10[%c0_42, %c128] : memref<2x256xf32, #tpu.memory_space<vmem>>, vector<2x32xf32>
    tpu.vector_store %arg10[%c0_42, %c128], %326 {strides = array<i32>} : memref<2x256xf32, #tpu.memory_space<vmem>>, vector<2x32xf32>,
    %c0_43 = arith.constant 0 : index
    %c5 = arith.constant 5 : index
    %c0_44 = arith.constant 0 : index
    %328 = vector.load %arg2[%c0_43, %c5, %c0_44] : memref<2x8x4xf32, #tpu.memory_space<vmem>>, vector<2x1x4xf32>
    %329 = vector.shape_cast %328 : vector<2x1x4xf32> to vector<2x4xf32>
    %cst_45 = arith.constant dense<0.000000e+00> : vector<2x4xf32>
    %330 = tpu.matmul %326, %3, %cst_45 {dimension_numbers = #tpu.dot_dimension_numbers<[1], [0], [0], [1], [0, 0, 1, 1], [], []>} : vector<2x32xf32>, vector<32x4xf32>, vector<2x4xf32> -> vector<2x4xf32>
    %331 = arith.addf %329, %330 : vector<2x4xf32>
    %332 = math.cos %331 : vector<2x4xf32>
    %333 = vector.shape_cast %332 : vector<2x4xf32> to vector<1x2x4xf32>
    %334 = math.sin %331 : vector<2x4xf32>
    %335 = vector.shape_cast %334 : vector<2x4xf32> to vector<1x2x4xf32>
    %336 = vector.broadcast %4 : vector<4x1x4xf32> to vector<4x2x4xf32>
    %337 = vector.broadcast %333 : vector<1x2x4xf32> to vector<4x2x4xf32>
    %338 = arith.mulf %336, %337 : vector<4x2x4xf32>
    %339 = vector.broadcast %5 : vector<4x1x4xf32> to vector<4x2x4xf32>
    %340 = vector.broadcast %335 : vector<1x2x4xf32> to vector<4x2x4xf32>
    %341 = arith.mulf %339, %340 : vector<4x2x4xf32>
    %342 = arith.subf %338, %341 : vector<4x2x4xf32>
    %343 = vector.extract_strided_slice %342 {offsets = [0, 0, 0], sizes = [4, 2, 1], strides = [1, 1, 1]} : vector<4x2x4xf32> to vector<4x2x1xf32>
    %344 = vector.extract_strided_slice %342 {offsets = [0, 0, 1], sizes = [4, 2, 1], strides = [1, 1, 1]} : vector<4x2x4xf32> to vector<4x2x1xf32>
    %345 = vector.extract_strided_slice %342 {offsets = [0, 0, 2], sizes = [4, 2, 1], strides = [1, 1, 1]} : vector<4x2x4xf32> to vector<4x2x1xf32>
    %346 = vector.extract_strided_slice %342 {offsets = [0, 0, 3], sizes = [4, 2, 1], strides = [1, 1, 1]} : vector<4x2x4xf32> to vector<4x2x1xf32>
    %347 = arith.mulf %345, %346 : vector<4x2x1xf32>
    %348 = arith.mulf %343, %344 : vector<4x2x1xf32>
    %349 = arith.mulf %344, %347 : vector<4x2x1xf32>
    %350 = arith.mulf %348, %345 : vector<4x2x1xf32>
    %351 = arith.mulf %348, %347 : vector<4x2x1xf32>
    %352 = vector.broadcast %349 : vector<4x2x1xf32> to vector<4x2x32xf32>
    %353 = vector.broadcast %8 : vector<1x1x32xf32> to vector<4x2x32xf32>
    %354 = arith.mulf %352, %353 : vector<4x2x32xf32>
    %355 = vector.broadcast %348 : vector<4x2x1xf32> to vector<4x2x32xf32>
    %356 = vector.broadcast %10 : vector<1x1x32xf32> to vector<4x2x32xf32>
    %357 = arith.mulf %355, %356 : vector<4x2x32xf32>
    %358 = arith.addf %354, %357 : vector<4x2x32xf32>
    %359 = vector.broadcast %350 : vector<4x2x1xf32> to vector<4x2x32xf32>
    %360 = vector.broadcast %12 : vector<1x1x32xf32> to vector<4x2x32xf32>
    %361 = arith.mulf %359, %360 : vector<4x2x32xf32>
    %362 = arith.addf %358, %361 : vector<4x2x32xf32>
    %363 = vector.broadcast %351 : vector<4x2x1xf32> to vector<4x2x32xf32>
    %364 = vector.broadcast %14 : vector<1x1x32xf32> to vector<4x2x32xf32>
    %365 = arith.mulf %363, %364 : vector<4x2x32xf32>
    %366 = arith.addf %362, %365 : vector<4x2x32xf32>
    %367 = vector.broadcast %15 : vector<1x1x32xf32> to vector<4x2x32xf32>
    %368 = arith.addf %366, %367 : vector<4x2x32xf32>
    %369 = vector.extract_strided_slice %368 {offsets = [0, 0, 0], sizes = [3, 2, 32], strides = [1, 1, 1]} : vector<4x2x32xf32> to vector<3x2x32xf32>
    %370 = arith.negf %369 : vector<3x2x32xf32>
    %371 = math.exp %370 : vector<3x2x32xf32>
    %cst_46 = arith.constant 1.000000e+00 : f32
    %372 = vector.broadcast %cst_46 : f32 to vector<3x2x32xf32>
    %373 = arith.addf %372, %371 : vector<3x2x32xf32>
    %374 = arith.divf %372, %373 : vector<3x2x32xf32>
    %375 = vector.extract_strided_slice %368 {offsets = [3, 0, 0], sizes = [1, 2, 32], strides = [1, 1, 1]} : vector<4x2x32xf32> to vector<1x2x32xf32>
    %376 = vector.shape_cast %375 : vector<1x2x32xf32> to vector<2x32xf32>
    %377 = math.tanh %376 : vector<2x32xf32>
    %378 = vector.extract_strided_slice %374 {offsets = [0, 0, 0], sizes = [1, 2, 32], strides = [1, 1, 1]} : vector<3x2x32xf32> to vector<1x2x32xf32>
    %379 = vector.shape_cast %378 : vector<1x2x32xf32> to vector<2x32xf32>
    %380 = arith.mulf %379, %322 : vector<2x32xf32>
    %381 = vector.extract_strided_slice %374 {offsets = [1, 0, 0], sizes = [1, 2, 32], strides = [1, 1, 1]} : vector<3x2x32xf32> to vector<1x2x32xf32>
    %382 = vector.shape_cast %381 : vector<1x2x32xf32> to vector<2x32xf32>
    %383 = arith.mulf %382, %377 : vector<2x32xf32>
    %384 = arith.addf %380, %383 : vector<2x32xf32>
    %385 = vector.extract_strided_slice %374 {offsets = [2, 0, 0], sizes = [1, 2, 32], strides = [1, 1, 1]} : vector<3x2x32xf32> to vector<1x2x32xf32>
    %386 = vector.shape_cast %385 : vector<1x2x32xf32> to vector<2x32xf32>
    %387 = math.tanh %384 : vector<2x32xf32>
    %388 = arith.mulf %386, %387 : vector<2x32xf32>
    %c0_47 = arith.constant 0 : index
    %c160 = arith.constant 160 : index
    %389 = vector.load %arg10[%c0_47, %c160] : memref<2x256xf32, #tpu.memory_space<vmem>>, vector<2x32xf32>
    tpu.vector_store %arg10[%c0_47, %c160], %388 {strides = array<i32>} : memref<2x256xf32, #tpu.memory_space<vmem>>, vector<2x32xf32>,
    %c0_48 = arith.constant 0 : index
    %c6 = arith.constant 6 : index
    %c0_49 = arith.constant 0 : index
    %390 = vector.load %arg2[%c0_48, %c6, %c0_49] : memref<2x8x4xf32, #tpu.memory_space<vmem>>, vector<2x1x4xf32>
    %391 = vector.shape_cast %390 : vector<2x1x4xf32> to vector<2x4xf32>
    %cst_50 = arith.constant dense<0.000000e+00> : vector<2x4xf32>
    %392 = tpu.matmul %388, %3, %cst_50 {dimension_numbers = #tpu.dot_dimension_numbers<[1], [0], [0], [1], [0, 0, 1, 1], [], []>} : vector<2x32xf32>, vector<32x4xf32>, vector<2x4xf32> -> vector<2x4xf32>
    %393 = arith.addf %391, %392 : vector<2x4xf32>
    %394 = math.cos %393 : vector<2x4xf32>
    %395 = vector.shape_cast %394 : vector<2x4xf32> to vector<1x2x4xf32>
    %396 = math.sin %393 : vector<2x4xf32>
    %397 = vector.shape_cast %396 : vector<2x4xf32> to vector<1x2x4xf32>
    %398 = vector.broadcast %4 : vector<4x1x4xf32> to vector<4x2x4xf32>
    %399 = vector.broadcast %395 : vector<1x2x4xf32> to vector<4x2x4xf32>
    %400 = arith.mulf %398, %399 : vector<4x2x4xf32>
    %401 = vector.broadcast %5 : vector<4x1x4xf32> to vector<4x2x4xf32>
    %402 = vector.broadcast %397 : vector<1x2x4xf32> to vector<4x2x4xf32>
    %403 = arith.mulf %401, %402 : vector<4x2x4xf32>
    %404 = arith.subf %400, %403 : vector<4x2x4xf32>
    %405 = vector.extract_strided_slice %404 {offsets = [0, 0, 0], sizes = [4, 2, 1], strides = [1, 1, 1]} : vector<4x2x4xf32> to vector<4x2x1xf32>
    %406 = vector.extract_strided_slice %404 {offsets = [0, 0, 1], sizes = [4, 2, 1], strides = [1, 1, 1]} : vector<4x2x4xf32> to vector<4x2x1xf32>
    %407 = vector.extract_strided_slice %404 {offsets = [0, 0, 2], sizes = [4, 2, 1], strides = [1, 1, 1]} : vector<4x2x4xf32> to vector<4x2x1xf32>
    %408 = vector.extract_strided_slice %404 {offsets = [0, 0, 3], sizes = [4, 2, 1], strides = [1, 1, 1]} : vector<4x2x4xf32> to vector<4x2x1xf32>
    %409 = arith.mulf %407, %408 : vector<4x2x1xf32>
    %410 = arith.mulf %405, %406 : vector<4x2x1xf32>
    %411 = arith.mulf %406, %409 : vector<4x2x1xf32>
    %412 = arith.mulf %410, %407 : vector<4x2x1xf32>
    %413 = arith.mulf %410, %409 : vector<4x2x1xf32>
    %414 = vector.broadcast %411 : vector<4x2x1xf32> to vector<4x2x32xf32>
    %415 = vector.broadcast %8 : vector<1x1x32xf32> to vector<4x2x32xf32>
    %416 = arith.mulf %414, %415 : vector<4x2x32xf32>
    %417 = vector.broadcast %410 : vector<4x2x1xf32> to vector<4x2x32xf32>
    %418 = vector.broadcast %10 : vector<1x1x32xf32> to vector<4x2x32xf32>
    %419 = arith.mulf %417, %418 : vector<4x2x32xf32>
    %420 = arith.addf %416, %419 : vector<4x2x32xf32>
    %421 = vector.broadcast %412 : vector<4x2x1xf32> to vector<4x2x32xf32>
    %422 = vector.broadcast %12 : vector<1x1x32xf32> to vector<4x2x32xf32>
    %423 = arith.mulf %421, %422 : vector<4x2x32xf32>
    %424 = arith.addf %420, %423 : vector<4x2x32xf32>
    %425 = vector.broadcast %413 : vector<4x2x1xf32> to vector<4x2x32xf32>
    %426 = vector.broadcast %14 : vector<1x1x32xf32> to vector<4x2x32xf32>
    %427 = arith.mulf %425, %426 : vector<4x2x32xf32>
    %428 = arith.addf %424, %427 : vector<4x2x32xf32>
    %429 = vector.broadcast %15 : vector<1x1x32xf32> to vector<4x2x32xf32>
    %430 = arith.addf %428, %429 : vector<4x2x32xf32>
    %431 = vector.extract_strided_slice %430 {offsets = [0, 0, 0], sizes = [3, 2, 32], strides = [1, 1, 1]} : vector<4x2x32xf32> to vector<3x2x32xf32>
    %432 = arith.negf %431 : vector<3x2x32xf32>
    %433 = math.exp %432 : vector<3x2x32xf32>
    %cst_51 = arith.constant 1.000000e+00 : f32
    %434 = vector.broadcast %cst_51 : f32 to vector<3x2x32xf32>
    %435 = arith.addf %434, %433 : vector<3x2x32xf32>
    %436 = arith.divf %434, %435 : vector<3x2x32xf32>
    %437 = vector.extract_strided_slice %430 {offsets = [3, 0, 0], sizes = [1, 2, 32], strides = [1, 1, 1]} : vector<4x2x32xf32> to vector<1x2x32xf32>
    %438 = vector.shape_cast %437 : vector<1x2x32xf32> to vector<2x32xf32>
    %439 = math.tanh %438 : vector<2x32xf32>
    %440 = vector.extract_strided_slice %436 {offsets = [0, 0, 0], sizes = [1, 2, 32], strides = [1, 1, 1]} : vector<3x2x32xf32> to vector<1x2x32xf32>
    %441 = vector.shape_cast %440 : vector<1x2x32xf32> to vector<2x32xf32>
    %442 = arith.mulf %441, %384 : vector<2x32xf32>
    %443 = vector.extract_strided_slice %436 {offsets = [1, 0, 0], sizes = [1, 2, 32], strides = [1, 1, 1]} : vector<3x2x32xf32> to vector<1x2x32xf32>
    %444 = vector.shape_cast %443 : vector<1x2x32xf32> to vector<2x32xf32>
    %445 = arith.mulf %444, %439 : vector<2x32xf32>
    %446 = arith.addf %442, %445 : vector<2x32xf32>
    %447 = vector.extract_strided_slice %436 {offsets = [2, 0, 0], sizes = [1, 2, 32], strides = [1, 1, 1]} : vector<3x2x32xf32> to vector<1x2x32xf32>
    %448 = vector.shape_cast %447 : vector<1x2x32xf32> to vector<2x32xf32>
    %449 = math.tanh %446 : vector<2x32xf32>
    %450 = arith.mulf %448, %449 : vector<2x32xf32>
    %c0_52 = arith.constant 0 : index
    %c192 = arith.constant 192 : index
    %451 = vector.load %arg10[%c0_52, %c192] : memref<2x256xf32, #tpu.memory_space<vmem>>, vector<2x32xf32>
    tpu.vector_store %arg10[%c0_52, %c192], %450 {strides = array<i32>} : memref<2x256xf32, #tpu.memory_space<vmem>>, vector<2x32xf32>,
    %c0_53 = arith.constant 0 : index
    %c7 = arith.constant 7 : index
    %c0_54 = arith.constant 0 : index
    %452 = vector.load %arg2[%c0_53, %c7, %c0_54] : memref<2x8x4xf32, #tpu.memory_space<vmem>>, vector<2x1x4xf32>
    %453 = vector.shape_cast %452 : vector<2x1x4xf32> to vector<2x4xf32>
    %cst_55 = arith.constant dense<0.000000e+00> : vector<2x4xf32>
    %454 = tpu.matmul %450, %3, %cst_55 {dimension_numbers = #tpu.dot_dimension_numbers<[1], [0], [0], [1], [0, 0, 1, 1], [], []>} : vector<2x32xf32>, vector<32x4xf32>, vector<2x4xf32> -> vector<2x4xf32>
    %455 = arith.addf %453, %454 : vector<2x4xf32>
    %456 = math.cos %455 : vector<2x4xf32>
    %457 = vector.shape_cast %456 : vector<2x4xf32> to vector<1x2x4xf32>
    %458 = math.sin %455 : vector<2x4xf32>
    %459 = vector.shape_cast %458 : vector<2x4xf32> to vector<1x2x4xf32>
    %460 = vector.broadcast %4 : vector<4x1x4xf32> to vector<4x2x4xf32>
    %461 = vector.broadcast %457 : vector<1x2x4xf32> to vector<4x2x4xf32>
    %462 = arith.mulf %460, %461 : vector<4x2x4xf32>
    %463 = vector.broadcast %5 : vector<4x1x4xf32> to vector<4x2x4xf32>
    %464 = vector.broadcast %459 : vector<1x2x4xf32> to vector<4x2x4xf32>
    %465 = arith.mulf %463, %464 : vector<4x2x4xf32>
    %466 = arith.subf %462, %465 : vector<4x2x4xf32>
    %467 = vector.extract_strided_slice %466 {offsets = [0, 0, 0], sizes = [4, 2, 1], strides = [1, 1, 1]} : vector<4x2x4xf32> to vector<4x2x1xf32>
    %468 = vector.extract_strided_slice %466 {offsets = [0, 0, 1], sizes = [4, 2, 1], strides = [1, 1, 1]} : vector<4x2x4xf32> to vector<4x2x1xf32>
    %469 = vector.extract_strided_slice %466 {offsets = [0, 0, 2], sizes = [4, 2, 1], strides = [1, 1, 1]} : vector<4x2x4xf32> to vector<4x2x1xf32>
    %470 = vector.extract_strided_slice %466 {offsets = [0, 0, 3], sizes = [4, 2, 1], strides = [1, 1, 1]} : vector<4x2x4xf32> to vector<4x2x1xf32>
    %471 = arith.mulf %469, %470 : vector<4x2x1xf32>
    %472 = arith.mulf %467, %468 : vector<4x2x1xf32>
    %473 = arith.mulf %468, %471 : vector<4x2x1xf32>
    %474 = arith.mulf %472, %469 : vector<4x2x1xf32>
    %475 = arith.mulf %472, %471 : vector<4x2x1xf32>
    %476 = vector.broadcast %473 : vector<4x2x1xf32> to vector<4x2x32xf32>
    %477 = vector.broadcast %8 : vector<1x1x32xf32> to vector<4x2x32xf32>
    %478 = arith.mulf %476, %477 : vector<4x2x32xf32>
    %479 = vector.broadcast %472 : vector<4x2x1xf32> to vector<4x2x32xf32>
    %480 = vector.broadcast %10 : vector<1x1x32xf32> to vector<4x2x32xf32>
    %481 = arith.mulf %479, %480 : vector<4x2x32xf32>
    %482 = arith.addf %478, %481 : vector<4x2x32xf32>
    %483 = vector.broadcast %474 : vector<4x2x1xf32> to vector<4x2x32xf32>
    %484 = vector.broadcast %12 : vector<1x1x32xf32> to vector<4x2x32xf32>
    %485 = arith.mulf %483, %484 : vector<4x2x32xf32>
    %486 = arith.addf %482, %485 : vector<4x2x32xf32>
    %487 = vector.broadcast %475 : vector<4x2x1xf32> to vector<4x2x32xf32>
    %488 = vector.broadcast %14 : vector<1x1x32xf32> to vector<4x2x32xf32>
    %489 = arith.mulf %487, %488 : vector<4x2x32xf32>
    %490 = arith.addf %486, %489 : vector<4x2x32xf32>
    %491 = vector.broadcast %15 : vector<1x1x32xf32> to vector<4x2x32xf32>
    %492 = arith.addf %490, %491 : vector<4x2x32xf32>
    %493 = vector.extract_strided_slice %492 {offsets = [0, 0, 0], sizes = [3, 2, 32], strides = [1, 1, 1]} : vector<4x2x32xf32> to vector<3x2x32xf32>
    %494 = arith.negf %493 : vector<3x2x32xf32>
    %495 = math.exp %494 : vector<3x2x32xf32>
    %cst_56 = arith.constant 1.000000e+00 : f32
    %496 = vector.broadcast %cst_56 : f32 to vector<3x2x32xf32>
    %497 = arith.addf %496, %495 : vector<3x2x32xf32>
    %498 = arith.divf %496, %497 : vector<3x2x32xf32>
    %499 = vector.extract_strided_slice %492 {offsets = [3, 0, 0], sizes = [1, 2, 32], strides = [1, 1, 1]} : vector<4x2x32xf32> to vector<1x2x32xf32>
    %500 = vector.shape_cast %499 : vector<1x2x32xf32> to vector<2x32xf32>
    %501 = math.tanh %500 : vector<2x32xf32>
    %502 = vector.extract_strided_slice %498 {offsets = [0, 0, 0], sizes = [1, 2, 32], strides = [1, 1, 1]} : vector<3x2x32xf32> to vector<1x2x32xf32>
    %503 = vector.shape_cast %502 : vector<1x2x32xf32> to vector<2x32xf32>
    %504 = arith.mulf %503, %446 : vector<2x32xf32>
    %505 = vector.extract_strided_slice %498 {offsets = [1, 0, 0], sizes = [1, 2, 32], strides = [1, 1, 1]} : vector<3x2x32xf32> to vector<1x2x32xf32>
    %506 = vector.shape_cast %505 : vector<1x2x32xf32> to vector<2x32xf32>
    %507 = arith.mulf %506, %501 : vector<2x32xf32>
    %508 = arith.addf %504, %507 : vector<2x32xf32>
    %509 = vector.extract_strided_slice %498 {offsets = [2, 0, 0], sizes = [1, 2, 32], strides = [1, 1, 1]} : vector<3x2x32xf32> to vector<1x2x32xf32>
    %510 = vector.shape_cast %509 : vector<1x2x32xf32> to vector<2x32xf32>
    %511 = math.tanh %508 : vector<2x32xf32>
    %512 = arith.mulf %510, %511 : vector<2x32xf32>
    %c0_57 = arith.constant 0 : index
    %c224 = arith.constant 224 : index
    %513 = vector.load %arg10[%c0_57, %c224] : memref<2x256xf32, #tpu.memory_space<vmem>>, vector<2x32xf32>
    tpu.vector_store %arg10[%c0_57, %c224], %512 {strides = array<i32>} : memref<2x256xf32, #tpu.memory_space<vmem>>, vector<2x32xf32>,
    %c0_58 = arith.constant 0 : index
    %c0_59 = arith.constant 0 : index
    %514 = vector.load %arg13[%c0_58, %c0_59] : memref<2x32xf32, #tpu.memory_space<vmem>>, vector<2x32xf32>
    tpu.vector_store %arg13[%c0_58, %c0_59], %512 {strides = array<i32>} : memref<2x32xf32, #tpu.memory_space<vmem>>, vector<2x32xf32>,
    %c0_60 = arith.constant 0 : index
    %c0_61 = arith.constant 0 : index
    %515 = vector.load %arg14[%c0_60, %c0_61] : memref<2x32xf32, #tpu.memory_space<vmem>>, vector<2x32xf32>
    tpu.vector_store %arg14[%c0_60, %c0_61], %508 {strides = array<i32>} : memref<2x32xf32, #tpu.memory_space<vmem>>, vector<2x32xf32>,
    %c3_i32 = arith.constant 3 : i32
    %516 = arith.cmpi eq, %arg1, %c3_i32 : i32
    %517 = arith.extui %516 : i1 to i32
    %c0_i32_62 = arith.constant 0 : i32
    %518 = arith.cmpi ne, %517, %c0_i32_62 : i32
    scf.if %518 {
      %c0_63 = arith.constant 0 : index
      %c0_64 = arith.constant 0 : index
      %519 = vector.load %arg11[%c0_63, %c0_64] : memref<2x32xf32, #tpu.memory_space<vmem>>, vector<2x32xf32>
      tpu.vector_store %arg11[%c0_63, %c0_64], %512 {strides = array<i32>} : memref<2x32xf32, #tpu.memory_space<vmem>>, vector<2x32xf32>,
      %c0_65 = arith.constant 0 : index
      %c0_66 = arith.constant 0 : index
      %520 = vector.load %arg12[%c0_65, %c0_66] : memref<2x32xf32, #tpu.memory_space<vmem>>, vector<2x32xf32>
      tpu.vector_store %arg12[%c0_65, %c0_66], %508 {strides = array<i32>} : memref<2x32xf32, #tpu.memory_space<vmem>>, vector<2x32xf32>,
    } else {
    }
    return
  }
  func.func @transform_0(%arg0: i32, %arg1: i32) -> (i32, i32, i32) {
    %c0_i32 = arith.constant 0 : i32
    %c0_i32_0 = arith.constant 0 : i32
    return %arg0, %arg1, %c0_i32 : i32, i32, i32
  }
  func.func @transform_1(%arg0: i32, %arg1: i32) -> (i32, i32) {
    %c0_i32 = arith.constant 0 : i32
    %c0_i32_0 = arith.constant 0 : i32
    return %arg0, %c0_i32 : i32, i32
  }
  func.func @transform_2(%arg0: i32, %arg1: i32) -> (i32, i32) {
    %c0_i32 = arith.constant 0 : i32
    %c0_i32_0 = arith.constant 0 : i32
    return %arg0, %c0_i32 : i32, i32
  }
  func.func @transform_3(%arg0: i32, %arg1: i32) -> (i32, i32) {
    %c0_i32 = arith.constant 0 : i32
    %c0_i32_0 = arith.constant 0 : i32
    %c0_i32_1 = arith.constant 0 : i32
    return %c0_i32, %c0_i32_0 : i32, i32
  }
  func.func @transform_4(%arg0: i32, %arg1: i32) -> (i32, i32, i32) {
    %c0_i32 = arith.constant 0 : i32
    %c0_i32_0 = arith.constant 0 : i32
    %c0_i32_1 = arith.constant 0 : i32
    %c0_i32_2 = arith.constant 0 : i32
    return %c0_i32, %c0_i32_0, %c0_i32_1 : i32, i32, i32
  }
  func.func @transform_5(%arg0: i32, %arg1: i32) -> (i32, i32, i32) {
    %c0_i32 = arith.constant 0 : i32
    %c0_i32_0 = arith.constant 0 : i32
    %c0_i32_1 = arith.constant 0 : i32
    %c0_i32_2 = arith.constant 0 : i32
    return %c0_i32, %c0_i32_0, %c0_i32_1 : i32, i32, i32
  }
  func.func @transform_6(%arg0: i32, %arg1: i32) -> (i32, i32) {
    %c0_i32 = arith.constant 0 : i32
    %c0_i32_0 = arith.constant 0 : i32
    %c0_i32_1 = arith.constant 0 : i32
    return %c0_i32, %c0_i32_0 : i32, i32
  }
  func.func @transform_7(%arg0: i32, %arg1: i32) -> (i32, i32, i32) {
    %c0_i32 = arith.constant 0 : i32
    %c0_i32_0 = arith.constant 0 : i32
    %c0_i32_1 = arith.constant 0 : i32
    %c0_i32_2 = arith.constant 0 : i32
    return %c0_i32, %c0_i32_0, %c0_i32_1 : i32, i32, i32
  }
  func.func @transform_8(%arg0: i32, %arg1: i32) -> (i32, i32) {
    %c0_i32 = arith.constant 0 : i32
    return %arg0, %arg1 : i32, i32
  }
  func.func @transform_9(%arg0: i32, %arg1: i32) -> (i32, i32) {
    %c0_i32 = arith.constant 0 : i32
    %c0_i32_0 = arith.constant 0 : i32
    return %arg0, %c0_i32 : i32, i32
  }
  func.func @transform_10(%arg0: i32, %arg1: i32) -> (i32, i32) {
    %c0_i32 = arith.constant 0 : i32
    %c0_i32_0 = arith.constant 0 : i32
    return %arg0, %c0_i32 : i32, i32
  }
}

</mosaic_0001>

<llo_original>
// kernel: tpu_custom_call.1
$region0: #{tpu_custom_call.1}
  #allocation0 [shape = 'u32[]', space=smem, size = 0x4, offset = 0x4, fixed_abs, tag = 'smem constant byte address 0x4 - core index']
  #allocation1 [shape = 'u32[72,128]{1,0:T(1,128)}', space=vmem, size = 0x9000, scoped, tag = 'internal scratch']
  #allocation2 [shape = 'f32[2,32]{1,0:T(2,128)}', space=vmem, size = 0x400, scoped, tag = 'scratch operand']
  #allocation3 [shape = 'f32[2,32]{1,0:T(2,128)}', space=vmem, size = 0x400, scoped, tag = 'scratch operand']
  %s0 = inlined_call_operand.vmem [shape: f32[2,32,4], index: 0, kind: input, shape index: {}]
  %s1 = inlined_call_operand.vmem [shape: f32[2,32], index: 1, kind: input, shape index: {}]
  %s2 = inlined_call_operand.vmem [shape: f32[2,32], index: 2, kind: input, shape index: {}]
  %s3 = inlined_call_operand.vmem [shape: f32[32,4], index: 3, kind: input, shape index: {}]
  %s4 = inlined_call_operand.vmem [shape: f32[4,1,4], index: 4, kind: input, shape index: {}]
  %s5 = inlined_call_operand.vmem [shape: f32[4,1,4], index: 5, kind: input, shape index: {}]
  %s6 = inlined_call_operand.vmem [shape: f32[4,32], index: 6, kind: input, shape index: {}]
  %s7 = inlined_call_operand.vmem [shape: f32[1,1,32], index: 7, kind: input, shape index: {}]
  %s8 = inlined_call_operand.hbm [shape: f32[2,1024], index: 8, kind: output, shape index: {0}]
  %s9 = inlined_call_operand.hbm [shape: f32[2,32], index: 9, kind: output, shape index: {1}]
  %s10 = inlined_call_operand.hbm [shape: f32[2,32], index: 10, kind: output, shape index: {2}]
  %11 = xla_tuple %s8, %s9, %s10
  %s12 = sld [smem:[#allocation0]]
  $region127: #{tpu_custom_call.1} parent=0
    _
  %s14 = ssub.s32 1, %s12
  %s15 = scalar_select 0, %s14, %s12
  $region1: #{tpu_custom_call.1} parent=0
    #allocation4 [shape = 'u8[16384]{0}', space=vmem, size = 0x4000, scoped, tag = 'input window, operand 0']
    #allocation5 [shape = 'u8[4096]{0}', space=vmem, size = 0x1000, scoped, tag = 'output window, operand 0']
    #allocation6 [shape = 's32[2]{0}', space=sflag, size = 0x8, scoped, tag = 'scoped memory for tpu_custom_call.1']
    #allocation7 [shape = 'u8[1024]{0}', space=vmem, size = 0x400, scoped, tag = 'output window, operand 1, single buffered']
    #allocation8 [shape = 's32[1]{0}', space=sflag, size = 0x4, scoped, tag = 'scoped memory for tpu_custom_call.1']
    #allocation9 [shape = 'u8[1024]{0}', space=vmem, size = 0x400, scoped, tag = 'output window, operand 2, single buffered']
    %16 = vsyncpa [#allocation6], 0
    %s17 = scalar_lea.sflag [#allocation6], 1
    %18 = vsyncpa %s17, 0
    %19 = vsyncpa [#allocation8], 0
    loop: start=0, step=1, limit=6
    $region2: #{tpu_custom_call.1} parent=1 // loop_pre_header
      _
    $region3: #{tpu_custom_call.1} parent=1 // loop_header
      %s21 = sphi 0, %s25
      %p22 = scmp.ge.s32.totalorder %s21, 6
      %s28 = sphi 0, %s40
      %s29 = sphi 0, %s36
      %s30 = sphi 0, %s28
      %s31 = sphi 0, %s29
      %s32 = sphi 0, %s30
      %s33 = sphi 0, %s31
      %s45 = sphi 0, %s47
      %s48 = sphi 0, %s45
      %s49 = sphi 0, %s48
      %s65 = sphi 0, %s49
      %s71 = sphi 0, %s73
      %s74 = sphi 0, %s71
      %s75 = sphi 0, %s74
      %s91 = sphi 0, %s75
      %s97 = sphi 0, %s99
      %s100 = sphi 0, %s97
      %s101 = sphi 0, %s100
      %s117 = sphi 0, %s101
      %s121 = sphi 0, %s121
      %s123 = sphi 0, %s121
      %s124 = sphi 0, %s123
      %s138 = sphi 0, %s124
      %s142 = sphi 0, %s142
      %s144 = sphi 0, %s142
      %s145 = sphi 0, %s144
      %s159 = sphi 0, %s145
      %s163 = sphi 0, %s163
      %s165 = sphi 0, %s163
      %s166 = sphi 0, %s165
      %s180 = sphi 0, %s166
      %s184 = sphi 0, %s184
      %s186 = sphi 0, %s184
      %s187 = sphi 0, %s186
      %s201 = sphi 0, %s187
      %s205 = sphi 0, %s205
      %s207 = sphi 0, %s205
      %s208 = sphi 0, %s207
      %s222 = sphi 0, %s208
      %s230 = sphi 0, %s232
      %s233 = sphi 0, %s230
      %s234 = sphi 0, %s233
      %s250 = sphi 0, %s234
      %s256 = sphi 0, %s258
      %s259 = sphi 0, %s256
      %s260 = sphi 0, %s259
      %s276 = sphi 0, %s260
      %s282 = sphi 0, %s284
      %s285 = sphi 0, %s282
      %s286 = sphi 0, %s285
      %s302 = sphi 0, %s286
    $region4: #{tpu_custom_call.1} parent=1 // loop_header_branch
      %24 = sbr.rel (%p22) target = $region8
    $region5: #{tpu_custom_call.1} parent=1 // loop_body
      %s26 = ssub.s32 %s21, 1
      %s27 = ssub.s32 %s21, 2
      %s34 = sadd.s32 1, %s29
      %p35 = scmp.ge.s32.totalorder %s34, 4
      %s36 = scalar_select %p35, 0, %s34
      %s37 = sadd.s32 1, %s28
      %s38 = scalar_select %p35, %s37, %s28
      %p39 = scmp.ge.s32.totalorder %s38, 1
      %s40 = scalar_select %p39, 0, %s38
      %s41 = ssub.s32 %s28, %s40
      %s42 = ssub.s32 %s29, %s36
      %s43 = sor.u32 %s41, %s42
      %p44 = scmp.eq.s32.totalorder %s43, 0
      %s46 = sadd.s32 %s45, 1
      %s47 = scalar_select %p44, %s45, %s46
      %p50 = pneg %p44
      %p51 = scmp.eq.s32.totalorder %s21, 3
      %p52 = por %p50, %p51
      %p53 = scmp.ne.s32.totalorder %s45, %s48
      %p54 = scmp.eq.s32.totalorder %s21, 0
      %p55 = por %p53, %p54
      %p56 = scmp.ne.s32.totalorder %s45, %s48
      %p57 = scmp.eq.s32.totalorder %s26, 3
      %p58 = por %p56, %p57
      %p59 = scmp.ne.s32.totalorder %s48, %s49
      %p60 = scmp.eq.s32.totalorder %s26, 0
      %p61 = por %p59, %p60
      %p62 = scmp.ne.s32.totalorder %s48, %s49
      %p63 = scmp.eq.s32.totalorder %s27, 3
      %p64 = por %p62, %p63
      %p66 = scmp.ne.s32.totalorder %s49, %s65
      %p67 = scmp.eq.s32.totalorder %s27, 0
      %p68 = por %p66, %p67
      %s69 = ssub.s32 %s28, %s40
      %p70 = scmp.eq.s32.totalorder %s69, 0
      %s72 = sadd.s32 %s71, 1
      %s73 = scalar_select %p70, %s71, %s72
      %p76 = pneg %p70
      %p77 = scmp.eq.s32.totalorder %s21, 3
      %p78 = por %p76, %p77
      %p79 = scmp.ne.s32.totalorder %s71, %s74
      %p80 = scmp.eq.s32.totalorder %s21, 0
      %p81 = por %p79, %p80
      %p82 = scmp.ne.s32.totalorder %s71, %s74
      %p83 = scmp.eq.s32.totalorder %s26, 3
      %p84 = por %p82, %p83
      %p85 = scmp.ne.s32.totalorder %s74, %s75
      %p86 = scmp.eq.s32.totalorder %s26, 0
      %p87 = por %p85, %p86
      %p88 = scmp.ne.s32.totalorder %s74, %s75
      %p89 = scmp.eq.s32.totalorder %s27, 3
      %p90 = por %p88, %p89
      %p92 = scmp.ne.s32.totalorder %s75, %s91
      %p93 = scmp.eq.s32.totalorder %s27, 0
      %p94 = por %p92, %p93
      %s95 = ssub.s32 %s28, %s40
      %p96 = scmp.eq.s32.totalorder %s95, 0
      %s98 = sadd.s32 %s97, 1
      %s99 = scalar_select %p96, %s97, %s98
      %p102 = pneg %p96
      %p103 = scmp.eq.s32.totalorder %s21, 3
      %p104 = por %p102, %p103
      %p105 = scmp.ne.s32.totalorder %s97, %s100
      %p106 = scmp.eq.s32.totalorder %s21, 0
      %p107 = por %p105, %p106
      %p108 = scmp.ne.s32.totalorder %s97, %s100
      %p109 = scmp.eq.s32.totalorder %s26, 3
      %p110 = por %p108, %p109
      %p111 = scmp.ne.s32.totalorder %s100, %s101
      %p112 = scmp.eq.s32.totalorder %s26, 0
      %p113 = por %p111, %p112
      %p114 = scmp.ne.s32.totalorder %s100, %s101
      %p115 = scmp.eq.s32.totalorder %s27, 3
      %p116 = por %p114, %p115
      %p118 = scmp.ne.s32.totalorder %s101, %s117
      %p119 = scmp.eq.s32.totalorder %s27, 0
      %p120 = por %p118, %p119
      %s122 = sadd.s32 %s121, 1
      %p125 = scmp.eq.s32.totalorder %s21, 3
      %p126 = scmp.ne.s32.totalorder %s121, %s123
      %p127 = scmp.eq.s32.totalorder %s21, 0
      %p128 = por %p126, %p127
      %p129 = scmp.ne.s32.totalorder %s121, %s123
      %p130 = scmp.eq.s32.totalorder %s26, 3
      %p131 = por %p129, %p130
      %p132 = scmp.ne.s32.totalorder %s123, %s124
      %p133 = scmp.eq.s32.totalorder %s26, 0
      %p134 = por %p132, %p133
      %p135 = scmp.ne.s32.totalorder %s123, %s124
      %p136 = scmp.eq.s32.totalorder %s27, 3
      %p137 = por %p135, %p136
      %p139 = scmp.ne.s32.totalorder %s124, %s138
      %p140 = scmp.eq.s32.totalorder %s27, 0
      %p141 = por %p139, %p140
      %s143 = sadd.s32 %s142, 1
      %p146 = scmp.eq.s32.totalorder %s21, 3
      %p147 = scmp.ne.s32.totalorder %s142, %s144
      %p148 = scmp.eq.s32.totalorder %s21, 0
      %p149 = por %p147, %p148
      %p150 = scmp.ne.s32.totalorder %s142, %s144
      %p151 = scmp.eq.s32.totalorder %s26, 3
      %p152 = por %p150, %p151
      %p153 = scmp.ne.s32.totalorder %s144, %s145
      %p154 = scmp.eq.s32.totalorder %s26, 0
      %p155 = por %p153, %p154
      %p156 = scmp.ne.s32.totalorder %s144, %s145
      %p157 = scmp.eq.s32.totalorder %s27, 3
      %p158 = por %p156, %p157
      %p160 = scmp.ne.s32.totalorder %s145, %s159
      %p161 = scmp.eq.s32.totalorder %s27, 0
      %p162 = por %p160, %p161
      %s164 = sadd.s32 %s163, 1
      %p167 = scmp.eq.s32.totalorder %s21, 3
      %p168 = scmp.ne.s32.totalorder %s163, %s165
      %p169 = scmp.eq.s32.totalorder %s21, 0
      %p170 = por %p168, %p169
      %p171 = scmp.ne.s32.totalorder %s163, %s165
      %p172 = scmp.eq.s32.totalorder %s26, 3
      %p173 = por %p171, %p172
      %p174 = scmp.ne.s32.totalorder %s165, %s166
      %p175 = scmp.eq.s32.totalorder %s26, 0
      %p176 = por %p174, %p175
      %p177 = scmp.ne.s32.totalorder %s165, %s166
      %p178 = scmp.eq.s32.totalorder %s27, 3
      %p179 = por %p177, %p178
      %p181 = scmp.ne.s32.totalorder %s166, %s180
      %p182 = scmp.eq.s32.totalorder %s27, 0
      %p183 = por %p181, %p182
      %s185 = sadd.s32 %s184, 1
      %p188 = scmp.eq.s32.totalorder %s21, 3
      %p189 = scmp.ne.s32.totalorder %s184, %s186
      %p190 = scmp.eq.s32.totalorder %s21, 0
      %p191 = por %p189, %p190
      %p192 = scmp.ne.s32.totalorder %s184, %s186
      %p193 = scmp.eq.s32.totalorder %s26, 3
      %p194 = por %p192, %p193
      %p195 = scmp.ne.s32.totalorder %s186, %s187
      %p196 = scmp.eq.s32.totalorder %s26, 0
      %p197 = por %p195, %p196
      %p198 = scmp.ne.s32.totalorder %s186, %s187
      %p199 = scmp.eq.s32.totalorder %s27, 3
      %p200 = por %p198, %p199
      %p202 = scmp.ne.s32.totalorder %s187, %s201
      %p203 = scmp.eq.s32.totalorder %s27, 0
      %p204 = por %p202, %p203
      %s206 = sadd.s32 %s205, 1
      %p209 = scmp.eq.s32.totalorder %s21, 3
      %p210 = scmp.ne.s32.totalorder %s205, %s207
      %p211 = scmp.eq.s32.totalorder %s21, 0
      %p212 = por %p210, %p211
      %p213 = scmp.ne.s32.totalorder %s205, %s207
      %p214 = scmp.eq.s32.totalorder %s26, 3
      %p215 = por %p213, %p214
      %p216 = scmp.ne.s32.totalorder %s207, %s208
      %p217 = scmp.eq.s32.totalorder %s26, 0
      %p218 = por %p216, %p217
      %p219 = scmp.ne.s32.totalorder %s207, %s208
      %p220 = scmp.eq.s32.totalorder %s27, 3
      %p221 = por %p219, %p220
      %p223 = scmp.ne.s32.totalorder %s208, %s222
      %p224 = scmp.eq.s32.totalorder %s27, 0
      %p225 = por %p223, %p224
      %s226 = ssub.s32 %s28, %s40
      %s227 = ssub.s32 %s29, %s36
      %s228 = sor.u32 %s226, %s227
      %p229 = scmp.eq.s32.totalorder %s228, 0
      %s231 = sadd.s32 %s230, 1
      %s232 = scalar_select %p229, %s230, %s231
      %p235 = pneg %p229
      %p236 = scmp.eq.s32.totalorder %s21, 3
      %p237 = por %p235, %p236
      %p238 = scmp.ne.s32.totalorder %s230, %s233
      %p239 = scmp.eq.s32.totalorder %s21, 0
      %p240 = por %p238, %p239
      %p241 = scmp.ne.s32.totalorder %s230, %s233
      %p242 = scmp.eq.s32.totalorder %s26, 3
      %p243 = por %p241, %p242
      %p244 = scmp.ne.s32.totalorder %s233, %s234
      %p245 = scmp.eq.s32.totalorder %s26, 0
      %p246 = por %p244, %p245
      %p247 = scmp.ne.s32.totalorder %s233, %s234
      %p248 = scmp.eq.s32.totalorder %s27, 3
      %p249 = por %p247, %p248
      %p251 = scmp.ne.s32.totalorder %s234, %s250
      %p252 = scmp.eq.s32.totalorder %s27, 0
      %p253 = por %p251, %p252
      %s254 = ssub.s32 %s28, %s40
      %p255 = scmp.eq.s32.totalorder %s254, 0
      %s257 = sadd.s32 %s256, 1
      %s258 = scalar_select %p255, %s256, %s257
      %p261 = pneg %p255
      %p262 = scmp.eq.s32.totalorder %s21, 3
      %p263 = por %p261, %p262
      %p264 = scmp.ne.s32.totalorder %s256, %s259
      %p265 = scmp.eq.s32.totalorder %s21, 0
      %p266 = por %p264, %p265
      %p267 = scmp.ne.s32.totalorder %s256, %s259
      %p268 = scmp.eq.s32.totalorder %s26, 3
      %p269 = por %p267, %p268
      %p270 = scmp.ne.s32.totalorder %s259, %s260
      %p271 = scmp.eq.s32.totalorder %s26, 0
      %p272 = por %p270, %p271
      %p273 = scmp.ne.s32.totalorder %s259, %s260
      %p274 = scmp.eq.s32.totalorder %s27, 3
      %p275 = por %p273, %p274
      %p277 = scmp.ne.s32.totalorder %s260, %s276
      %p278 = scmp.eq.s32.totalorder %s27, 0
      %p279 = por %p277, %p278
      %s280 = ssub.s32 %s28, %s40
      %p281 = scmp.eq.s32.totalorder %s280, 0
      %s283 = sadd.s32 %s282, 1
      %s284 = scalar_select %p281, %s282, %s283
      %p287 = pneg %p281
      %p288 = scmp.eq.s32.totalorder %s21, 3
      %p289 = por %p287, %p288
      %p290 = scmp.ne.s32.totalorder %s282, %s285
      %p291 = scmp.eq.s32.totalorder %s21, 0
      %p292 = por %p290, %p291
      %p293 = scmp.ne.s32.totalorder %s282, %s285
      %p294 = scmp.eq.s32.totalorder %s26, 3
      %p295 = por %p293, %p294
      %p296 = scmp.ne.s32.totalorder %s285, %s286
      %p297 = scmp.eq.s32.totalorder %s26, 0
      %p298 = por %p296, %p297
      %p299 = scmp.ne.s32.totalorder %s285, %s286
      %p300 = scmp.eq.s32.totalorder %s27, 3
      %p301 = por %p299, %p300
      %p303 = scmp.ne.s32.totalorder %s286, %s302
      %p304 = scmp.eq.s32.totalorder %s27, 0
      %p305 = por %p303, %p304
      %p306 = scmp.le.s32.totalorder 1, %s21
      %p307 = scmp.lt.s32.totalorder %s21, 5
      %p308 = pnand %p306, %p307
      %p309 = pneg %p308
      // Predicated region
      $region9: #{tpu_custom_call.1} parent=5 // pred_check
        _
      $region10: #{tpu_custom_call.1} parent=5 // pred_check_branch
        %311 = sbr.rel (%p308) target = $region12
      $region11: #{tpu_custom_call.1} parent=5 // pred_region
        %s312 = ssub.s32 %s21, 1
        // Predicated region
        $region13: #{tpu_custom_call.1} parent=11 // pred_check
          %p313 = pneg %p87
        $region14: #{tpu_custom_call.1} parent=11 // pred_check_branch
          %315 = sbr.rel (%p313) target = $region16
        $region15: #{tpu_custom_call.1} parent=11 // pred_region
          %p316 = scmp.lt.s32.totalorder %s30, 0
          %s317 = scalar_select %p316, %s30, 0
          %s318 = smul.addr %s317, 2
          %s319 = scalar_lea.vmem %s1, %s318
        $region16: #{tpu_custom_call.1} parent=11 // pred_fallthru
          _
        // Predicated region
        $region17: #{tpu_custom_call.1} parent=11 // pred_check
          %p320 = pneg %p113
        $region18: #{tpu_custom_call.1} parent=11 // pred_check_branch
          %322 = sbr.rel (%p320) target = $region20
        $region19: #{tpu_custom_call.1} parent=11 // pred_region
          %p323 = scmp.lt.s32.totalorder %s30, 0
          %s324 = scalar_select %p323, %s30, 0
          %s325 = smul.addr %s324, 2
          %s326 = scalar_lea.vmem %s2, %s325
        $region20: #{tpu_custom_call.1} parent=11 // pred_fallthru
          _
        // Predicated region
        $region21: #{tpu_custom_call.1} parent=11 // pred_check
          %p327 = pneg %p134
        $region22: #{tpu_custom_call.1} parent=11 // pred_check_branch
          %329 = sbr.rel (%p327) target = $region24
        $region23: #{tpu_custom_call.1} parent=11 // pred_region
          _
        $region24: #{tpu_custom_call.1} parent=11 // pred_fallthru
          _
        // Predicated region
        $region25: #{tpu_custom_call.1} parent=11 // pred_check
          %p330 = pneg %p155
        $region26: #{tpu_custom_call.1} parent=11 // pred_check_branch
          %332 = sbr.rel (%p330) target = $region28
        $region27: #{tpu_custom_call.1} parent=11 // pred_region
          _
        $region28: #{tpu_custom_call.1} parent=11 // pred_fallthru
          _
        // Predicated region
        $region29: #{tpu_custom_call.1} parent=11 // pred_check
          %p333 = pneg %p176
        $region30: #{tpu_custom_call.1} parent=11 // pred_check_branch
          %335 = sbr.rel (%p333) target = $region32
        $region31: #{tpu_custom_call.1} parent=11 // pred_region
          _
        $region32: #{tpu_custom_call.1} parent=11 // pred_fallthru
          _
        // Predicated region
        $region33: #{tpu_custom_call.1} parent=11 // pred_check
          %p336 = pneg %p197
        $region34: #{tpu_custom_call.1} parent=11 // pred_check_branch
          %338 = sbr.rel (%p336) target = $region36
        $region35: #{tpu_custom_call.1} parent=11 // pred_region
          _
        $region36: #{tpu_custom_call.1} parent=11 // pred_fallthru
          _
        // Predicated region
        $region37: #{tpu_custom_call.1} parent=11 // pred_check
          %p339 = pneg %p218
        $region38: #{tpu_custom_call.1} parent=11 // pred_check_branch
          %341 = sbr.rel (%p339) target = $region40
        $region39: #{tpu_custom_call.1} parent=11 // pred_region
          _
        $region40: #{tpu_custom_call.1} parent=11 // pred_fallthru
          _
      $region12: #{tpu_custom_call.1} parent=5 // pred_fallthru
        _
      %p342 = scmp.lt.s32.totalorder %s21, 4
      // Predicated region
      $region41: #{tpu_custom_call.1} parent=5 // pred_check
        %p343 = pneg %p342
      $region42: #{tpu_custom_call.1} parent=5 // pred_check_branch
        %345 = sbr.rel (%p343) target = $region44
      $region43: #{tpu_custom_call.1} parent=5 // pred_region
        // Predicated region
        $region45: #{tpu_custom_call.1} parent=43 // pred_check
          %p346 = pneg %p55
        $region46: #{tpu_custom_call.1} parent=43 // pred_check_branch
          %348 = sbr.rel (%p346) target = $region48
        $region47: #{tpu_custom_call.1} parent=43 // pred_region
          %s349 = sand.u32 %s45, 1
          %s350 = sand.u32 %s45, 1
          %s351 = smul.addr %s350, 16
          %s352 = scalar_lea.vmem [#allocation4], %s351
          %s353 = smul.u32 2, %s28
          %s354 = smul.addr %s353, 4
          %s355 = sadd.s32 %s29, %s354
          %s356 = smul.addr %s355, 8
          %s357 = scalar_lea.vmem %s0, %s356
          // Predicated region
          $region49: #{tpu_custom_call.1} parent=47 // pred_check
            _
          $region50: #{tpu_custom_call.1} parent=47 // pred_check_branch
            %359 = sbr.rel (0) target = $region52
          $region51: #{tpu_custom_call.1} parent=47 // pred_region
            // Predicated region
            $region53: #{tpu_custom_call.1} parent=51 // pred_check
              _
            $region54: #{tpu_custom_call.1} parent=51 // pred_check_branch
              %361 = sbr.rel (0) target = $region56
            $region55: #{tpu_custom_call.1} parent=51 // pred_region
              // Predicated region
              $region68: #{tpu_custom_call.1} parent=55 // pred_check
                _
              $region69: #{tpu_custom_call.1} parent=55 // pred_check_branch
                %379 = sbr.rel (0) target = $region71
              $region70: #{tpu_custom_call.1} parent=55 // pred_region
                loop: start=0, step=1, limit=1
                $region72: #{tpu_custom_call.1} parent=70 // loop_pre_header
                  _
                $region73: #{tpu_custom_call.1} parent=70 // loop_header
                  %s381 = sphi 0, %s385
                  %p382 = scmp.ge.s32.totalorder %s381, 1
                  %s386 = sphi %s357, %s357
                  %s387 = sphi %s352, %s352
                $region74: #{tpu_custom_call.1} parent=70 // loop_header_branch
                  %384 = sbr.rel (%p382) target = $region78
                $region75: #{tpu_custom_call.1} parent=70 // loop_body
                  %v388 = vld [vmem:[%s386] sm:$0xff]
                  %389 = vst [vmem:[%s387] sm:$0xff] %v388
                  %v390 = vld [vmem:[%s386 + $0x20] sm:$0xff]
                  %391 = vst [vmem:[%s387 + $0x8] sm:$0xff] %v390
                $region76: #{tpu_custom_call.1} parent=70 // loop_footer
                  %s385 = sadd.s32 1, %s381
                $region77: #{tpu_custom_call.1} parent=70 // loop_footer_branch
                  %380 = sbr.rel target = $region73
                $region78: #{tpu_custom_call.1} parent=70 // loop_exit
                  _
              $region71: #{tpu_custom_call.1} parent=55 // pred_fallthru
                _
              // Predicated region
              $region79: #{tpu_custom_call.1} parent=55 // pred_check
                _
              $region80: #{tpu_custom_call.1} parent=55 // pred_check_branch
                %393 = sbr.rel target = $region82
              $region81: #{tpu_custom_call.1} parent=55 // pred_region
                _
              $region82: #{tpu_custom_call.1} parent=55 // pred_fallthru
                _
            $region56: #{tpu_custom_call.1} parent=51 // pred_fallthru
              _
            // Predicated region
            $region57: #{tpu_custom_call.1} parent=51 // pred_check
              _
            $region58: #{tpu_custom_call.1} parent=51 // pred_check_branch
              %363 = sbr.rel target = $region60
            $region59: #{tpu_custom_call.1} parent=51 // pred_region
              %s365 = ssub.s32 256, 1
              loop: start=0, step=1, limit=1
              $region61: #{tpu_custom_call.1} parent=59 // loop_pre_header
                _
              $region62: #{tpu_custom_call.1} parent=59 // loop_header
                %s367 = sphi 0, %s371
                %p368 = scmp.ge.s32.totalorder %s367, 1
                %s372 = sphi %s357, %s357
                %s373 = sphi %s352, %s352
              $region63: #{tpu_custom_call.1} parent=59 // loop_header_branch
                %370 = sbr.rel (%p368) target = $region67
              $region64: #{tpu_custom_call.1} parent=59 // loop_body
                %v374 = vld [vmem:[%s372] sm:%s365]
                %375 = vst [vmem:[%s373] sm:%s365] %v374
                %v376 = vld [vmem:[%s372 + $0x20] sm:%s365]
                %377 = vst [vmem:[%s373 + $0x8] sm:%s365] %v376
              $region65: #{tpu_custom_call.1} parent=59 // loop_footer
                %s371 = sadd.s32 1, %s367
              $region66: #{tpu_custom_call.1} parent=59 // loop_footer_branch
                %366 = sbr.rel target = $region62
              $region67: #{tpu_custom_call.1} parent=59 // loop_exit
                _
            $region60: #{tpu_custom_call.1} parent=51 // pred_fallthru
              _
          $region52: #{tpu_custom_call.1} parent=47 // pred_fallthru
            _
          %394 = vnop
        $region48: #{tpu_custom_call.1} parent=43 // pred_fallthru
          _
      $region44: #{tpu_custom_call.1} parent=5 // pred_fallthru
        _
      %p395 = scmp.le.s32.totalorder 1, %s21
      %p396 = scmp.lt.s32.totalorder %s21, 5
      %p397 = pnand %p395, %p396
      %p398 = pneg %p397
      // Predicated region
      $region83: #{tpu_custom_call.1} parent=5 // pred_check
        _
      $region84: #{tpu_custom_call.1} parent=5 // pred_check_branch
        %400 = sbr.rel (%p397) target = $region86
      $region85: #{tpu_custom_call.1} parent=5 // pred_region
        %s401 = ssub.s32 %s21, 1
        %s402 = sand.u32 %s48, 1
        %s403 = sand.u32 %s48, 1
        %s404 = smul.addr %s403, 16
        %s405 = scalar_lea.vmem [#allocation4], %s404
        // Predicated region
        $region87: #{tpu_custom_call.1} parent=85 // pred_check
          %p406 = pneg %p61
        $region88: #{tpu_custom_call.1} parent=85 // pred_check_branch
          %408 = sbr.rel (%p406) target = $region90
        $region89: #{tpu_custom_call.1} parent=85 // pred_region
          _
        $region90: #{tpu_custom_call.1} parent=85 // pred_fallthru
          _
        %s409 = sand.u32 %s48, 1
        %s410 = sand.u32 %s48, 1
        %s411 = smul.addr %s410, 16
        %s412 = scalar_lea.vmem [#allocation4], %s411
        %p413 = pneg %p61
        %p414 = pneg %p58
        %p415 = scmp.lt.s32.totalorder %s30, 0
        %s416 = scalar_select %p415, %s30, 0
        %s417 = smul.addr %s416, 2
        %s418 = scalar_lea.vmem %s1, %s417
        %p419 = pneg %p87
        %p420 = pneg %p84
        %p421 = scmp.lt.s32.totalorder %s30, 0
        %s422 = scalar_select %p421, %s30, 0
        %s423 = smul.addr %s422, 2
        %s424 = scalar_lea.vmem %s2, %s423
        %p425 = pneg %p113
        %p426 = pneg %p110
        %p427 = pneg %p134
        %p428 = pneg %p131
        %p429 = pneg %p155
        %p430 = pneg %p152
        %p431 = pneg %p176
        %p432 = pneg %p173
        %p433 = pneg %p197
        %p434 = pneg %p194
        %p435 = pneg %p218
        %p436 = pneg %p215
        %p437 = pneg %p246
        %p438 = pneg %p243
        %s439 = sand.u32 %s233, 1
        %s440 = scalar_lea.sflag [#allocation6], %s439
        %s441 = sand.u32 %s233, 1
        %s442 = smul.addr %s441, 4
        %s443 = scalar_lea.vmem [#allocation5], %s442
        %p444 = pneg %p272
        %p445 = pneg %p269
        %p446 = pneg %p298
        %p447 = pneg %p295
        %s448 = smul.u32 2, %s30
        %p449 = scmp.lt.s32.totalorder %s30, 0
        %s450 = scalar_select %p449, %s30, 0
        %s451 = smul.addr %s450, 2
        %s452 = scalar_lea.vmem %s1, %s451
        %p453 = scmp.lt.s32.totalorder %s30, 0
        %s454 = scalar_select %p453, %s30, 0
        %s455 = smul.addr %s454, 2
        %s456 = scalar_lea.vmem %s2, %s455
        %s457 = smul.u32 2, %s31
        %p458 = scmp.eq.s32.totalorder %s31, 0
        // Predicated region
        $region91: #{tpu_custom_call.1} parent=85 // pred_check
          %p459 = pneg %p458
        $region92: #{tpu_custom_call.1} parent=85 // pred_check_branch
          %461 = sbr.rel (%p459) target = $region94
        $region93: #{tpu_custom_call.1} parent=85 // pred_region
          %v462 = vld [vmem:[%s452] sm:$0x3]
          %vm463 = vcmask 254976
          %464 = vst.msk [vmem:[#allocation2] sm:$0x3] %vm463, %v462
          %v465 = vld [vmem:[%s456] sm:$0x3]
          %466 = vst.msk [vmem:[#allocation3] sm:$0x3] %vm463, %v465
        $region94: #{tpu_custom_call.1} parent=85 // pred_fallthru
          _
        %v467 = vld [vmem:[%s3] sm:$0xff]
        %v468 = vld [vmem:[%s3 + $0x8] sm:$0xff]
        %v469 = vld [vmem:[%s3 + $0x10] sm:$0xff]
        %v470 = vld [vmem:[%s3 + $0x18] sm:$0xff]
        %v471 = vld [vmem:[%s4] sm:$0x1]
        %v472 = vld [vmem:[%s4 + $0x1] sm:$0x1]
        %v473 = vld [vmem:[%s4 + $0x2] sm:$0x1]
        %v474 = vld [vmem:[%s4 + $0x3] sm:$0x1]
        %v475 = vld [vmem:[%s5] sm:$0x1]
        %v476 = vld [vmem:[%s5 + $0x1] sm:$0x1]
        %v477 = vld [vmem:[%s5 + $0x2] sm:$0x1]
        %v478 = vld [vmem:[%s5 + $0x3] sm:$0x1]
        %v479 = vld [vmem:[%s6] sm:$0xf]
        %v480 = vld [vmem:[%s7] sm:$0x1]
        %v481 = vld [vmem:[#allocation2] sm:$0x3]
        %v482 = vld [vmem:[#allocation3] sm:$0x3]
        %v483 = vld [vmem:[%s405] sm:$0x1]
        %v484 = vld [vmem:[%s405 + $0x8] sm:$0x1]
        %vm485 = vcmask 261120
        %v487 = vsel %vm485, %v481, 0
        %489 = vmatpush.msra.mxu0 0.0
        %490 = vmatpush.msra.mxu0 0.0
        %491 = vmatpush.msra.mxu0 0.0
        %492 = vmatpush.msra.mxu0 0.0
        %493 = vmatpush.msra.mxu0 0.0
        %494 = vmatpush.msra.mxu0 0.0
        %495 = vmatpush.msra.mxu0 0.0
        %496 = vmatpush.msra.mxu0 0.0
        %497 = vmatpush.msra.mxu0 0.0
        %498 = vmatpush.msra.mxu0 0.0
        %499 = vmatpush.msra.mxu0 0.0
        %500 = vmatpush.msra.mxu0 0.0
        %501 = vmatpush.msra.mxu0 %v470
        %502 = vmatpush.msra.mxu0 %v469
        %503 = vmatpush.msra.mxu0 %v468
        %504 = vmatpush.msra.mxu0 %v467
        %505 = vmatmul.f32.gmra.mxu0 %v487
        %v506 = vpop.f32.mrf.mxu0
        %v507 = vadd.f32 0.0, %v506
        %508 = vdwg.mxu0
        %v510 = vrot.slane %v507, 1
        %v513 = vadd.f32 %v483, %v507
        %v514 = vadd.f32 %v484, %v510
        %v515 = vand.u32 2147483647, %v513
        %vm516 = vcmp.le.f32.partialorder %v515, 0.7853982
        %vm517 = vcmp.lt.s32.totalorder %v513, 0
        %v518 = vand.u32 %v513, 2139095040
        %v519 = vshrl.u32 %v518, 23
        %v520 = vsub.s32 %v519, 127
        %v521 = vand.u32 2147483647, %v513
        %v522 = vand.u32 %v521, 8388607
        %v523 = vor.u32 %v522, 8388608
        %v524 = vsub.s32 0, %v523
        %v525 = vadd.s32 %v520, 1
        %vm526 = vcmp.gt.s32.totalorder %v525, 0
        %v527 = vsel %vm526, %v525, 0
        %v528 = vshrl.u32 %v527, 5
        %v529 = vand.u32 %v527, 31
        %v530 = vsub.s32 32, %v529
        %v531 = vshrl.u32 683565275, %v530
        %v532 = vshll.u32 683565275, %v529
        %v533 = vshrl.u32 2475754826, %v530
        %v534 = vor.u32 %v532, %v533
        %v535 = vshll.u32 2475754826, %v529
        %v536 = vshrl.u32 2131351028, %v530
        %v537 = vor.u32 %v535, %v536
        %v538 = vshll.u32 2131351028, %v529
        %v539 = vshrl.u32 2102212464, %v530
        %v540 = vor.u32 %v538, %v539
        %v541 = vshll.u32 2102212464, %v529
        %v542 = vshrl.u32 920167782, %v530
        %v543 = vor.u32 %v541, %v542
        %v544 = vshll.u32 920167782, %v529
        %v545 = vshrl.u32 1326507024, %v530
        %v546 = vor.u32 %v544, %v545
        %vm547 = vcmp.lt.s32.totalorder %v528, 1
        %vm548 = vcmp.lt.s32.totalorder %v528, 2
        %vm549 = vcmp.lt.s32.totalorder %v528, 3
        %vm550 = vcmp.lt.s32.totalorder %v528, 4
        %v551 = vsel %vm547, %v531, %v534
        %v552 = vsel %vm550, %v540, 2102212464
        %v553 = vsel %vm549, %v537, %v552
        %v554 = vsel %vm548, %v551, %v553
        %v555 = vsel %vm547, %v534, %v537
        %v556 = vsel %vm550, %v543, 920167782
        %v557 = vsel %vm549, %v540, %v556
        %v558 = vsel %vm548, %v555, %v557
        %v559 = vsel %vm547, %v537, %v540
        %v560 = vsel %vm550, %v546, 1326507024
        %v561 = vsel %vm549, %v543, %v560
        %v562 = vsel %vm548, %v559, %v561
        %v563 = vshll.u32 %v523, 8
        %v564 = vand.u32 %v563, 65535
        %v565 = vshrl.u32 %v563, 16
        %v566 = vand.u32 %v562, 65535
        %v567 = vshrl.u32 %v562, 16
        %v568 = vmul.u32 %v564, %v566
        %v569 = vmul.u32 %v564, %v567
        %v570 = vmul.u32 %v565, %v566
        %v571 = vmul.u32 %v565, %v567
        %v572 = vshll.u32 %v569, 16
        %v573 = vshrl.u32 %v569, 16
        %v574 = vshll.u32 %v570, 16
        %v575 = vshrl.u32 %v570, 16
        %vm576 = vc.u32 %v568, %v572
        %v577 = vsel %vm576, 1, 0
        %v578 = vadd.s32 %v568, %v572
        %v579 = vadd.s32 %v571, %v577
        %vm580 = vc.u32 %v578, %v574
        %v581 = vsel %vm580, 1, 0
        %v582 = vadd.s32 %v578, %v574
        %v583 = vadd.s32 %v579, %v581
        %v584 = vadd.s32 %v583, %v573
        %v585 = vadd.s32 %v584, %v575
        %v586 = vand.u32 %v563, 65535
        %v587 = vshrl.u32 %v563, 16
        %v588 = vand.u32 %v558, 65535
        %v589 = vshrl.u32 %v558, 16
        %v590 = vmul.u32 %v586, %v588
        %v591 = vmul.u32 %v586, %v589
        %v592 = vmul.u32 %v587, %v588
        %v593 = vmul.u32 %v587, %v589
        %v594 = vshll.u32 %v591, 16
        %v595 = vshrl.u32 %v591, 16
        %v596 = vshll.u32 %v592, 16
        %v597 = vshrl.u32 %v592, 16
        %vm598 = vc.u32 %v590, %v594
        %v599 = vsel %vm598, 1, 0
        %v600 = vadd.s32 %v590, %v594
        %v601 = vadd.s32 %v593, %v599
        %vm602 = vc.u32 %v600, %v596
        %v603 = vsel %vm602, 1, 0
        %v604 = vadd.s32 %v600, %v596
        %v605 = vadd.s32 %v601, %v603
        %v606 = vadd.s32 %v605, %v595
        %v607 = vadd.s32 %v606, %v597
        %v608 = vmul.u32 %v563, %v554
        %v609 = vadd.s32 %v585, %v604
        %vm610 = vc.u32 %v585, %v604
        %v611 = vadd.s32 %v607, 1
        %v612 = vsel %vm610, %v611, %v607
        %v613 = vadd.s32 %v608, %v612
        %v614 = vadd.s32 %v613, 536870912
        %v615 = vshrl.u32 %v614, 30
        %v616 = vshll.u32 %v615, 30
        %v617 = vsub.s32 %v613, %v616
        %vm618 = vcmp.lt.s32.totalorder %v617, 0
        %v619 = vsub.s32 0, %v617
        %v620 = vsel %vm618, %v619, %v617
        %v621 = vclz %v620
        %v622 = vsub.s32 %v621, 2
        %vm623 = vcmp.gt.s32.totalorder 0, %v622
        %v624 = vsel %vm623, 0, %v622
        %v625 = vsub.s32 32, %v624
        %v626 = vshll.u32 %v617, %v624
        %v627 = vshrl.u32 %v609, %v625
        %v628 = vor.u32 %v626, %v627
        %v629 = vsub.s32 4294967266, %v624
        %v630 = vadd.s32 %v629, 127
        %v631 = vshll.u32 %v630, 23
        %v632 = vor.u32 4788187, %v631
        %v633 = vand.u32 2147483647, %v632
        %v635 = vcvt.s32.f32 %v628
        %v636 = vmul.f32 %v635, %v633
        %v637 = vxor.u32 %v636, 2147483648
        %v638 = vsel %vm517, %v637, %v636
        %v639 = vsub.s32 4, %v615
        %v640 = vsel %vm517, %v639, %v615
        %v641 = vsel %vm516, %v513, %v638
        %v642 = vsel %vm516, 0, %v640
        %v643 = vmul.f32 %v641, %v641
        %v644 = vmul.f32 %v643, -0.001358992
        %v645 = vadd.f32 %v644, 0.041655596
        %v646 = vmul.f32 %v643, %v645
        %v647 = vadd.f32 %v646, -0.4999988
        %v648 = vmul.f32 %v643, %v647
        %v649 = vadd.f32 1.0, %v648
        %v650 = vmul.f32 %v641, %v641
        %v651 = vmul.f32 %v650, -0.00019511016
        %v652 = vadd.f32 %v651, 0.008332121
        %v653 = vmul.f32 %v650, %v652
        %v654 = vadd.f32 %v653, -0.16666654
        %v655 = vmul.f32 %v650, %v654
        %v656 = vadd.f32 %v655, 1.0
        %v657 = vmul.f32 %v656, %v641
        %vm658 = vweird.f32 %v513
        %v659 = vand.u32 %v642, 3
        %vm660 = vcmp.lt.s32.totalorder %v659, 2
        %vm661 = vcmp.eq.s32.totalorder %v659, 0
        %v662 = vxor.u32 %v657, 2147483648
        %v663 = vsel %vm661, %v649, %v662
        %vm664 = vcmp.eq.s32.totalorder %v659, 2
        %v665 = vxor.u32 %v649, 2147483648
        %v666 = vsel %vm664, %v665, %v657
        %v667 = vsel %vm660, %v663, %v666
        %v668 = vsel %vm658, nan, %v667
        %v669 = vand.u32 2147483647, %v514
        %vm670 = vcmp.le.f32.partialorder %v669, 0.7853982
        %vm671 = vcmp.lt.s32.totalorder %v514, 0
        %v672 = vand.u32 %v514, 2139095040
        %v673 = vshrl.u32 %v672, 23
        %v674 = vsub.s32 %v673, 127
        %v675 = vand.u32 2147483647, %v514
        %v676 = vand.u32 %v675, 8388607
        %v677 = vor.u32 %v676, 8388608
        %v678 = vsub.s32 0, %v677
        %v679 = vadd.s32 %v674, 1
        %vm680 = vcmp.gt.s32.totalorder %v679, 0
        %v681 = vsel %vm680, %v679, 0
        %v682 = vshrl.u32 %v681, 5
        %v683 = vand.u32 %v681, 31
        %v684 = vsub.s32 32, %v683
        %v685 = vshrl.u32 683565275, %v684
        %v686 = vshll.u32 683565275, %v683
        %v687 = vshrl.u32 2475754826, %v684
        %v688 = vor.u32 %v686, %v687
        %v689 = vshll.u32 2475754826, %v683
        %v690 = vshrl.u32 2131351028, %v684
        %v691 = vor.u32 %v689, %v690
        %v692 = vshll.u32 2131351028, %v683
        %v693 = vshrl.u32 2102212464, %v684
        %v694 = vor.u32 %v692, %v693
        %v695 = vshll.u32 2102212464, %v683
        %v696 = vshrl.u32 920167782, %v684
        %v697 = vor.u32 %v695, %v696
        %v698 = vshll.u32 920167782, %v683
        %v699 = vshrl.u32 1326507024, %v684
        %v700 = vor.u32 %v698, %v699
        %vm701 = vcmp.lt.s32.totalorder %v682, 1
        %vm702 = vcmp.lt.s32.totalorder %v682, 2
        %vm703 = vcmp.lt.s32.totalorder %v682, 3
        %vm704 = vcmp.lt.s32.totalorder %v682, 4
        %v705 = vsel %vm701, %v685, %v688
        %v706 = vsel %vm704, %v694, 2102212464
        %v707 = vsel %vm703, %v691, %v706
        %v708 = vsel %vm702, %v705, %v707
        %v709 = vsel %vm701, %v688, %v691
        %v710 = vsel %vm704, %v697, 920167782
        %v711 = vsel %vm703, %v694, %v710
        %v712 = vsel %vm702, %v709, %v711
        %v713 = vsel %vm701, %v691, %v694
        %v714 = vsel %vm704, %v700, 1326507024
        %v715 = vsel %vm703, %v697, %v714
        %v716 = vsel %vm702, %v713, %v715
        %v717 = vshll.u32 %v677, 8
        %v718 = vand.u32 %v717, 65535
        %v719 = vshrl.u32 %v717, 16
        %v720 = vand.u32 %v716, 65535
        %v721 = vshrl.u32 %v716, 16
        %v722 = vmul.u32 %v718, %v720
        %v723 = vmul.u32 %v718, %v721
        %v724 = vmul.u32 %v719, %v720
        %v725 = vmul.u32 %v719, %v721
        %v726 = vshll.u32 %v723, 16
        %v727 = vshrl.u32 %v723, 16
        %v728 = vshll.u32 %v724, 16
        %v729 = vshrl.u32 %v724, 16
        %vm730 = vc.u32 %v722, %v726
        %v731 = vsel %vm730, 1, 0
        %v732 = vadd.s32 %v722, %v726
        %v733 = vadd.s32 %v725, %v731
        %vm734 = vc.u32 %v732, %v728
        %v735 = vsel %vm734, 1, 0
        %v736 = vadd.s32 %v732, %v728
        %v737 = vadd.s32 %v733, %v735
        %v738 = vadd.s32 %v737, %v727
        %v739 = vadd.s32 %v738, %v729
        %v740 = vand.u32 %v717, 65535
        %v741 = vshrl.u32 %v717, 16
        %v742 = vand.u32 %v712, 65535
        %v743 = vshrl.u32 %v712, 16
        %v744 = vmul.u32 %v740, %v742
        %v745 = vmul.u32 %v740, %v743
        %v746 = vmul.u32 %v741, %v742
        %v747 = vmul.u32 %v741, %v743
        %v748 = vshll.u32 %v745, 16
        %v749 = vshrl.u32 %v745, 16
        %v750 = vshll.u32 %v746, 16
        %v751 = vshrl.u32 %v746, 16
        %vm752 = vc.u32 %v744, %v748
        %v753 = vsel %vm752, 1, 0
        %v754 = vadd.s32 %v744, %v748
        %v755 = vadd.s32 %v747, %v753
        %vm756 = vc.u32 %v754, %v750
        %v757 = vsel %vm756, 1, 0
        %v758 = vadd.s32 %v754, %v750
        %v759 = vadd.s32 %v755, %v757
        %v760 = vadd.s32 %v759, %v749
        %v761 = vadd.s32 %v760, %v751
        %v762 = vmul.u32 %v717, %v708
        %v763 = vadd.s32 %v739, %v758
        %vm764 = vc.u32 %v739, %v758
        %v765 = vadd.s32 %v761, 1
        %v766 = vsel %vm764, %v765, %v761
        %v767 = vadd.s32 %v762, %v766
        %v768 = vadd.s32 %v767, 536870912
        %v769 = vshrl.u32 %v768, 30
        %v770 = vshll.u32 %v769, 30
        %v771 = vsub.s32 %v767, %v770
        %vm772 = vcmp.lt.s32.totalorder %v771, 0
        %v773 = vsub.s32 0, %v771
        %v774 = vsel %vm772, %v773, %v771
        %v775 = vclz %v774
        %v776 = vsub.s32 %v775, 2
        %vm777 = vcmp.gt.s32.totalorder 0, %v776
        %v778 = vsel %vm777, 0, %v776
        %v779 = vsub.s32 32, %v778
        %v780 = vshll.u32 %v771, %v778
        %v781 = vshrl.u32 %v763, %v779
        %v782 = vor.u32 %v780, %v781
        %v783 = vsub.s32 4294967266, %v778
        %v784 = vadd.s32 %v783, 127
        %v785 = vshll.u32 %v784, 23
        %v786 = vor.u32 4788187, %v785
        %v787 = vand.u32 2147483647, %v786
        %v789 = vcvt.s32.f32 %v782
        %v790 = vmul.f32 %v789, %v787
        %v791 = vxor.u32 %v790, 2147483648
        %v792 = vsel %vm671, %v791, %v790
        %v793 = vsub.s32 4, %v769
        %v794 = vsel %vm671, %v793, %v769
        %v795 = vsel %vm670, %v514, %v792
        %v796 = vsel %vm670, 0, %v794
        %v797 = vmul.f32 %v795, %v795
        %v798 = vmul.f32 %v797, -0.001358992
        %v799 = vadd.f32 %v798, 0.041655596
        %v800 = vmul.f32 %v797, %v799
        %v801 = vadd.f32 %v800, -0.4999988
        %v802 = vmul.f32 %v797, %v801
        %v803 = vadd.f32 1.0, %v802
        %v804 = vmul.f32 %v795, %v795
        %v805 = vmul.f32 %v804, -0.00019511016
        %v806 = vadd.f32 %v805, 0.008332121
        %v807 = vmul.f32 %v804, %v806
        %v808 = vadd.f32 %v807, -0.16666654
        %v809 = vmul.f32 %v804, %v808
        %v810 = vadd.f32 %v809, 1.0
        %v811 = vmul.f32 %v810, %v795
        %vm812 = vweird.f32 %v514
        %v813 = vand.u32 %v796, 3
        %vm814 = vcmp.lt.s32.totalorder %v813, 2
        %vm815 = vcmp.eq.s32.totalorder %v813, 0
        %v816 = vxor.u32 %v811, 2147483648
        %v817 = vsel %vm815, %v803, %v816
        %vm818 = vcmp.eq.s32.totalorder %v813, 2
        %v819 = vxor.u32 %v803, 2147483648
        %v820 = vsel %vm818, %v819, %v811
        %v821 = vsel %vm814, %v817, %v820
        %v822 = vsel %vm812, nan, %v821
        %v823 = vand.u32 2147483647, %v513
        %vm824 = vcmp.le.f32.partialorder %v823, 0.7853982
        %vm825 = vcmp.lt.s32.totalorder %v513, 0
        %v826 = vand.u32 %v513, 2139095040
        %v827 = vshrl.u32 %v826, 23
        %v828 = vsub.s32 %v827, 127
        %v829 = vand.u32 2147483647, %v513
        %v830 = vand.u32 %v829, 8388607
        %v831 = vor.u32 %v830, 8388608
        %v832 = vsub.s32 0, %v831
        %v833 = vadd.s32 %v828, 1
        %vm834 = vcmp.gt.s32.totalorder %v833, 0
        %v835 = vsel %vm834, %v833, 0
        %v836 = vshrl.u32 %v835, 5
        %v837 = vand.u32 %v835, 31
        %v838 = vsub.s32 32, %v837
        %v839 = vshrl.u32 683565275, %v838
        %v840 = vshll.u32 683565275, %v837
        %v841 = vshrl.u32 2475754826, %v838
        %v842 = vor.u32 %v840, %v841
        %v843 = vshll.u32 2475754826, %v837
        %v844 = vshrl.u32 2131351028, %v838
        %v845 = vor.u32 %v843, %v844
        %v846 = vshll.u32 2131351028, %v837
        %v847 = vshrl.u32 2102212464, %v838
        %v848 = vor.u32 %v846, %v847
        %v849 = vshll.u32 2102212464, %v837
        %v850 = vshrl.u32 920167782, %v838
        %v851 = vor.u32 %v849, %v850
        %v852 = vshll.u32 920167782, %v837
        %v853 = vshrl.u32 1326507024, %v838
        %v854 = vor.u32 %v852, %v853
        %vm855 = vcmp.lt.s32.totalorder %v836, 1
        %vm856 = vcmp.lt.s32.totalorder %v836, 2
        %vm857 = vcmp.lt.s32.totalorder %v836, 3
        %vm858 = vcmp.lt.s32.totalorder %v836, 4
        %v859 = vsel %vm855, %v839, %v842
        %v860 = vsel %vm858, %v848, 2102212464
        %v861 = vsel %vm857, %v845, %v860
        %v862 = vsel %vm856, %v859, %v861
        %v863 = vsel %vm855, %v842, %v845
        %v864 = vsel %vm858, %v851, 920167782
        %v865 = vsel %vm857, %v848, %v864
        %v866 = vsel %vm856, %v863, %v865
        %v867 = vsel %vm855, %v845, %v848
        %v868 = vsel %vm858, %v854, 1326507024
        %v869 = vsel %vm857, %v851, %v868
        %v870 = vsel %vm856, %v867, %v869
        %v871 = vshll.u32 %v831, 8
        %v872 = vand.u32 %v871, 65535
        %v873 = vshrl.u32 %v871, 16
        %v874 = vand.u32 %v870, 65535
        %v875 = vshrl.u32 %v870, 16
        %v876 = vmul.u32 %v872, %v874
        %v877 = vmul.u32 %v872, %v875
        %v878 = vmul.u32 %v873, %v874
        %v879 = vmul.u32 %v873, %v875
        %v880 = vshll.u32 %v877, 16
        %v881 = vshrl.u32 %v877, 16
        %v882 = vshll.u32 %v878, 16
        %v883 = vshrl.u32 %v878, 16
        %vm884 = vc.u32 %v876, %v880
        %v885 = vsel %vm884, 1, 0
        %v886 = vadd.s32 %v876, %v880
        %v887 = vadd.s32 %v879, %v885
        %vm888 = vc.u32 %v886, %v882
        %v889 = vsel %vm888, 1, 0
        %v890 = vadd.s32 %v886, %v882
        %v891 = vadd.s32 %v887, %v889
        %v892 = vadd.s32 %v891, %v881
        %v893 = vadd.s32 %v892, %v883
        %v894 = vand.u32 %v871, 65535
        %v895 = vshrl.u32 %v871, 16
        %v896 = vand.u32 %v866, 65535
        %v897 = vshrl.u32 %v866, 16
        %v898 = vmul.u32 %v894, %v896
        %v899 = vmul.u32 %v894, %v897
        %v900 = vmul.u32 %v895, %v896
        %v901 = vmul.u32 %v895, %v897
        %v902 = vshll.u32 %v899, 16
        %v903 = vshrl.u32 %v899, 16
        %v904 = vshll.u32 %v900, 16
        %v905 = vshrl.u32 %v900, 16
        %vm906 = vc.u32 %v898, %v902
        %v907 = vsel %vm906, 1, 0
        %v908 = vadd.s32 %v898, %v902
        %v909 = vadd.s32 %v901, %v907
        %vm910 = vc.u32 %v908, %v904
        %v911 = vsel %vm910, 1, 0
        %v912 = vadd.s32 %v908, %v904
        %v913 = vadd.s32 %v909, %v911
        %v914 = vadd.s32 %v913, %v903
        %v915 = vadd.s32 %v914, %v905
        %v916 = vmul.u32 %v871, %v862
        %v917 = vadd.s32 %v893, %v912
        %vm918 = vc.u32 %v893, %v912
        %v919 = vadd.s32 %v915, 1
        %v920 = vsel %vm918, %v919, %v915
        %v921 = vadd.s32 %v916, %v920
        %v922 = vadd.s32 %v921, 536870912
        %v923 = vshrl.u32 %v922, 30
        %v924 = vshll.u32 %v923, 30
        %v925 = vsub.s32 %v921, %v924
        %vm926 = vcmp.lt.s32.totalorder %v925, 0
        %v927 = vsub.s32 0, %v925
        %v928 = vsel %vm926, %v927, %v925
        %v929 = vclz %v928
        %v930 = vsub.s32 %v929, 2
        %vm931 = vcmp.gt.s32.totalorder 0, %v930
        %v932 = vsel %vm931, 0, %v930
        %v933 = vsub.s32 32, %v932
        %v934 = vshll.u32 %v925, %v932
        %v935 = vshrl.u32 %v917, %v933
        %v936 = vor.u32 %v934, %v935
        %v937 = vsub.s32 4294967266, %v932
        %v938 = vadd.s32 %v937, 127
        %v939 = vshll.u32 %v938, 23
        %v940 = vor.u32 4788187, %v939
        %v941 = vand.u32 2147483647, %v940
        %v943 = vcvt.s32.f32 %v936
        %v944 = vmul.f32 %v943, %v941
        %v945 = vxor.u32 %v944, 2147483648
        %v946 = vsel %vm825, %v945, %v944
        %v947 = vsub.s32 4, %v923
        %v948 = vsel %vm825, %v947, %v923
        %v949 = vsel %vm824, %v513, %v946
        %v950 = vsel %vm824, 0, %v948
        %v951 = vmul.f32 %v949, %v949
        %v952 = vmul.f32 %v951, -0.001358992
        %v953 = vadd.f32 %v952, 0.041655596
        %v954 = vmul.f32 %v951, %v953
        %v955 = vadd.f32 %v954, -0.4999988
        %v956 = vmul.f32 %v951, %v955
        %v957 = vadd.f32 1.0, %v956
        %v958 = vmul.f32 %v949, %v949
        %v959 = vmul.f32 %v958, -0.00019511016
        %v960 = vadd.f32 %v959, 0.008332121
        %v961 = vmul.f32 %v958, %v960
        %v962 = vadd.f32 %v961, -0.16666654
        %v963 = vmul.f32 %v958, %v962
        %v964 = vadd.f32 %v963, 1.0
        %v965 = vmul.f32 %v964, %v949
        %vm966 = vweird.f32 %v513
        %v967 = vadd.s32 %v950, 3
        %v968 = vand.u32 %v967, 3
        %vm969 = vcmp.lt.s32.totalorder %v968, 2
        %vm970 = vcmp.eq.s32.totalorder %v968, 0
        %v971 = vxor.u32 %v965, 2147483648
        %v972 = vsel %vm970, %v957, %v971
        %vm973 = vcmp.eq.s32.totalorder %v968, 2
        %v974 = vxor.u32 %v957, 2147483648
        %v975 = vsel %vm973, %v974, %v965
        %v976 = vsel %vm969, %v972, %v975
        %v977 = vsel %vm966, nan, %v976
        %v978 = vand.u32 2147483647, %v514
        %vm979 = vcmp.le.f32.partialorder %v978, 0.7853982
        %vm980 = vcmp.lt.s32.totalorder %v514, 0
        %v981 = vand.u32 %v514, 2139095040
        %v982 = vshrl.u32 %v981, 23
        %v983 = vsub.s32 %v982, 127
        %v984 = vand.u32 2147483647, %v514
        %v985 = vand.u32 %v984, 8388607
        %v986 = vor.u32 %v985, 8388608
        %v987 = vsub.s32 0, %v986
        %v988 = vadd.s32 %v983, 1
        %vm989 = vcmp.gt.s32.totalorder %v988, 0
        %v990 = vsel %vm989, %v988, 0
        %v991 = vshrl.u32 %v990, 5
        %v992 = vand.u32 %v990, 31
        %v993 = vsub.s32 32, %v992
        %v994 = vshrl.u32 683565275, %v993
        %v995 = vshll.u32 683565275, %v992
        %v996 = vshrl.u32 2475754826, %v993
        %v997 = vor.u32 %v995, %v996
        %v998 = vshll.u32 2475754826, %v992
        %v999 = vshrl.u32 2131351028, %v993
        %v1000 = vor.u32 %v998, %v999
        %v1001 = vshll.u32 2131351028, %v992
        %v1002 = vshrl.u32 2102212464, %v993
        %v1003 = vor.u32 %v1001, %v1002
        %v1004 = vshll.u32 2102212464, %v992
        %v1005 = vshrl.u32 920167782, %v993
        %v1006 = vor.u32 %v1004, %v1005
        %v1007 = vshll.u32 920167782, %v992
        %v1008 = vshrl.u32 1326507024, %v993
        %v1009 = vor.u32 %v1007, %v1008
        %vm1010 = vcmp.lt.s32.totalorder %v991, 1
        %vm1011 = vcmp.lt.s32.totalorder %v991, 2
        %vm1012 = vcmp.lt.s32.totalorder %v991, 3
        %vm1013 = vcmp.lt.s32.totalorder %v991, 4
        %v1014 = vsel %vm1010, %v994, %v997
        %v1015 = vsel %vm1013, %v1003, 2102212464
        %v1016 = vsel %vm1012, %v1000, %v1015
        %v1017 = vsel %vm1011, %v1014, %v1016
        %v1018 = vsel %vm1010, %v997, %v1000
        %v1019 = vsel %vm1013, %v1006, 920167782
        %v1020 = vsel %vm1012, %v1003, %v1019
        %v1021 = vsel %vm1011, %v1018, %v1020
        %v1022 = vsel %vm1010, %v1000, %v1003
        %v1023 = vsel %vm1013, %v1009, 1326507024
        %v1024 = vsel %vm1012, %v1006, %v1023
        %v1025 = vsel %vm1011, %v1022, %v1024
        %v1026 = vshll.u32 %v986, 8
        %v1027 = vand.u32 %v1026, 65535
        %v1028 = vshrl.u32 %v1026, 16
        %v1029 = vand.u32 %v1025, 65535
        %v1030 = vshrl.u32 %v1025, 16
        %v1031 = vmul.u32 %v1027, %v1029
        %v1032 = vmul.u32 %v1027, %v1030
        %v1033 = vmul.u32 %v1028, %v1029
        %v1034 = vmul.u32 %v1028, %v1030
        %v1035 = vshll.u32 %v1032, 16
        %v1036 = vshrl.u32 %v1032, 16
        %v1037 = vshll.u32 %v1033, 16
        %v1038 = vshrl.u32 %v1033, 16
        %vm1039 = vc.u32 %v1031, %v1035
        %v1040 = vsel %vm1039, 1, 0
        %v1041 = vadd.s32 %v1031, %v1035
        %v1042 = vadd.s32 %v1034, %v1040
        %vm1043 = vc.u32 %v1041, %v1037
        %v1044 = vsel %vm1043, 1, 0
        %v1045 = vadd.s32 %v1041, %v1037
        %v1046 = vadd.s32 %v1042, %v1044
        %v1047 = vadd.s32 %v1046, %v1036
        %v1048 = vadd.s32 %v1047, %v1038
        %v1049 = vand.u32 %v1026, 65535
        %v1050 = vshrl.u32 %v1026, 16
        %v1051 = vand.u32 %v1021, 65535
        %v1052 = vshrl.u32 %v1021, 16
        %v1053 = vmul.u32 %v1049, %v1051
        %v1054 = vmul.u32 %v1049, %v1052
        %v1055 = vmul.u32 %v1050, %v1051
        %v1056 = vmul.u32 %v1050, %v1052
        %v1057 = vshll.u32 %v1054, 16
        %v1058 = vshrl.u32 %v1054, 16
        %v1059 = vshll.u32 %v1055, 16
        %v1060 = vshrl.u32 %v1055, 16
        %vm1061 = vc.u32 %v1053, %v1057
        %v1062 = vsel %vm1061, 1, 0
        %v1063 = vadd.s32 %v1053, %v1057
        %v1064 = vadd.s32 %v1056, %v1062
        %vm1065 = vc.u32 %v1063, %v1059
        %v1066 = vsel %vm1065, 1, 0
        %v1067 = vadd.s32 %v1063, %v1059
        %v1068 = vadd.s32 %v1064, %v1066
        %v1069 = vadd.s32 %v1068, %v1058
        %v1070 = vadd.s32 %v1069, %v1060
        %v1071 = vmul.u32 %v1026, %v1017
        %v1072 = vadd.s32 %v1048, %v1067
        %vm1073 = vc.u32 %v1048, %v1067
        %v1074 = vadd.s32 %v1070, 1
        %v1075 = vsel %vm1073, %v1074, %v1070
        %v1076 = vadd.s32 %v1071, %v1075
        %v1077 = vadd.s32 %v1076, 536870912
        %v1078 = vshrl.u32 %v1077, 30
        %v1079 = vshll.u32 %v1078, 30
        %v1080 = vsub.s32 %v1076, %v1079
        %vm1081 = vcmp.lt.s32.totalorder %v1080, 0
        %v1082 = vsub.s32 0, %v1080
        %v1083 = vsel %vm1081, %v1082, %v1080
        %v1084 = vclz %v1083
        %v1085 = vsub.s32 %v1084, 2
        %vm1086 = vcmp.gt.s32.totalorder 0, %v1085
        %v1087 = vsel %vm1086, 0, %v1085
        %v1088 = vsub.s32 32, %v1087
        %v1089 = vshll.u32 %v1080, %v1087
        %v1090 = vshrl.u32 %v1072, %v1088
        %v1091 = vor.u32 %v1089, %v1090
        %v1092 = vsub.s32 4294967266, %v1087
        %v1093 = vadd.s32 %v1092, 127
        %v1094 = vshll.u32 %v1093, 23
        %v1095 = vor.u32 4788187, %v1094
        %v1096 = vand.u32 2147483647, %v1095
        %v1098 = vcvt.s32.f32 %v1091
        %v1099 = vmul.f32 %v1098, %v1096
        %v1100 = vxor.u32 %v1099, 2147483648
        %v1101 = vsel %vm980, %v1100, %v1099
        %v1102 = vsub.s32 4, %v1078
        %v1103 = vsel %vm980, %v1102, %v1078
        %v1104 = vsel %vm979, %v514, %v1101
        %v1105 = vsel %vm979, 0, %v1103
        %v1106 = vmul.f32 %v1104, %v1104
        %v1107 = vmul.f32 %v1106, -0.001358992
        %v1108 = vadd.f32 %v1107, 0.041655596
        %v1109 = vmul.f32 %v1106, %v1108
        %v1110 = vadd.f32 %v1109, -0.4999988
        %v1111 = vmul.f32 %v1106, %v1110
        %v1112 = vadd.f32 1.0, %v1111
        %v1113 = vmul.f32 %v1104, %v1104
        %v1114 = vmul.f32 %v1113, -0.00019511016
        %v1115 = vadd.f32 %v1114, 0.008332121
        %v1116 = vmul.f32 %v1113, %v1115
        %v1117 = vadd.f32 %v1116, -0.16666654
        %v1118 = vmul.f32 %v1113, %v1117
        %v1119 = vadd.f32 %v1118, 1.0
        %v1120 = vmul.f32 %v1119, %v1104
        %vm1121 = vweird.f32 %v514
        %v1122 = vadd.s32 %v1105, 3
        %v1123 = vand.u32 %v1122, 3
        %vm1124 = vcmp.lt.s32.totalorder %v1123, 2
        %vm1125 = vcmp.eq.s32.totalorder %v1123, 0
        %v1126 = vxor.u32 %v1120, 2147483648
        %v1127 = vsel %vm1125, %v1112, %v1126
        %vm1128 = vcmp.eq.s32.totalorder %v1123, 2
        %v1129 = vxor.u32 %v1112, 2147483648
        %v1130 = vsel %vm1128, %v1129, %v1120
        %v1131 = vsel %vm1124, %v1127, %v1130
        %v1132 = vsel %vm1121, nan, %v1131
        %v1137 = vperm.slane %v471, 0
        %v1138 = vperm.slane %v472, 0
        %v1139 = vperm.slane %v473, 0
        %v1140 = vperm.slane %v474, 0
        %v1147 = vrot.slane %v822, 7
        %vm1148 = vcmask 1041409
        %v1149 = vsel %vm1148, %v1147, %v668
        %v1151 = vmul.f32 %v1137, %v1149
        %v1152 = vmul.f32 %v1138, %v1149
        %v1153 = vmul.f32 %v1139, %v1149
        %v1154 = vmul.f32 %v1140, %v1149
        %v1159 = vperm.slane %v475, 0
        %v1160 = vperm.slane %v476, 0
        %v1161 = vperm.slane %v477, 0
        %v1162 = vperm.slane %v478, 0
        %v1169 = vrot.slane %v1132, 7
        %v1170 = vsel %vm1148, %v1169, %v977
        %v1172 = vmul.f32 %v1159, %v1170
        %v1173 = vmul.f32 %v1160, %v1170
        %v1174 = vmul.f32 %v1161, %v1170
        %v1175 = vmul.f32 %v1162, %v1170
        %v1176 = vsub.f32 %v1151, %v1172
        %v1177 = vsub.f32 %v1152, %v1173
        %v1178 = vsub.f32 %v1153, %v1174
        %v1179 = vsub.f32 %v1154, %v1175
        %1184 = vrot.lane.b32.xlu0 %v1176, 127
        %v1185 = vpop.permute.xlu0 %1184
        %1186 = vrot.lane.b32.xlu0 %v1177, 127
        %v1187 = vpop.permute.xlu0 %1186
        %1188 = vrot.lane.b32.xlu0 %v1178, 127
        %v1189 = vpop.permute.xlu0 %1188
        %1190 = vrot.lane.b32.xlu0 %v1179, 127
        %v1191 = vpop.permute.xlu0 %1190
        %v1196 = vmul.f32 %v1176, %v1185
        %v1197 = vmul.f32 %v1177, %v1187
        %v1198 = vmul.f32 %v1178, %v1189
        %v1199 = vmul.f32 %v1179, %v1191
        %1204 = vrot.lane.b32.xlu0 %v1196, 127
        %v1205 = vpop.permute.xlu0 %1204
        %1206 = vrot.lane.b32.xlu0 %v1197, 127
        %v1207 = vpop.permute.xlu0 %1206
        %1208 = vrot.lane.b32.xlu0 %v1198, 127
        %v1209 = vpop.permute.xlu0 %1208
        %1210 = vrot.lane.b32.xlu0 %v1199, 127
        %v1211 = vpop.permute.xlu0 %1210
        %v1216 = vmul.f32 %v1176, %v1205
        %v1217 = vmul.f32 %v1177, %v1207
        %v1218 = vmul.f32 %v1178, %v1209
        %v1219 = vmul.f32 %v1179, %v1211
        %1220 = vrot.lane.b32.xlu0 %v1176, 126
        %v1221 = vpop.permute.xlu0 %1220
        %1222 = vrot.lane.b32.xlu0 %v1177, 126
        %v1223 = vpop.permute.xlu0 %1222
        %1224 = vrot.lane.b32.xlu0 %v1178, 126
        %v1225 = vpop.permute.xlu0 %1224
        %1226 = vrot.lane.b32.xlu0 %v1179, 126
        %v1227 = vpop.permute.xlu0 %1226
        %v1232 = vmul.f32 %v1196, %v1221
        %v1233 = vmul.f32 %v1197, %v1223
        %v1234 = vmul.f32 %v1198, %v1225
        %v1235 = vmul.f32 %v1199, %v1227
        %1236 = vrot.lane.b32.xlu0 %v1196, 126
        %v1237 = vpop.permute.xlu0 %1236
        %1238 = vrot.lane.b32.xlu0 %v1197, 126
        %v1239 = vpop.permute.xlu0 %1238
        %1240 = vrot.lane.b32.xlu0 %v1198, 126
        %v1241 = vpop.permute.xlu0 %1240
        %1242 = vrot.lane.b32.xlu0 %v1199, 126
        %v1243 = vpop.permute.xlu0 %1242
        %v1248 = vmul.f32 %v1196, %v1237
        %v1249 = vmul.f32 %v1197, %v1239
        %v1250 = vmul.f32 %v1198, %v1241
        %v1251 = vmul.f32 %v1199, %v1243
        %1253 = vset.pattern.permute.xlu0 1
        %1254 = vperm.xlu0 %1253, %v1216
        %v1255 = vpop.permute.xlu0 %1254
        %1258 = vset.pattern.permute.xlu0 1
        %1259 = vperm.xlu0 %1258, %v1217
        %v1260 = vpop.permute.xlu0 %1259
        %1263 = vset.pattern.permute.xlu0 1
        %1264 = vperm.xlu0 %1263, %v1218
        %v1265 = vpop.permute.xlu0 %1264
        %1268 = vset.pattern.permute.xlu0 1
        %1269 = vperm.xlu0 %1268, %v1219
        %v1270 = vpop.permute.xlu0 %1269
        %v1272 = vperm.slane %v479, 0
        %v1273 = vmul.f32 %v1255, %v1272
        %v1274 = vmul.f32 %v1260, %v1272
        %v1275 = vmul.f32 %v1265, %v1272
        %v1276 = vmul.f32 %v1270, %v1272
        %1277 = vset.pattern.permute.xlu0 0
        %1278 = vperm.xlu0 %1277, %v1196
        %v1279 = vpop.permute.xlu0 %1278
        %1281 = vset.pattern.permute.xlu0 0
        %1282 = vperm.xlu0 %1281, %v1197
        %v1283 = vpop.permute.xlu0 %1282
        %1285 = vset.pattern.permute.xlu0 0
        %1286 = vperm.xlu0 %1285, %v1198
        %v1287 = vpop.permute.xlu0 %1286
        %1289 = vset.pattern.permute.xlu0 0
        %1290 = vperm.xlu0 %1289, %v1199
        %v1291 = vpop.permute.xlu0 %1290
        %v1293 = vperm.slane %v479, 1
        %v1294 = vmul.f32 %v1279, %v1293
        %v1295 = vmul.f32 %v1283, %v1293
        %v1296 = vmul.f32 %v1287, %v1293
        %v1297 = vmul.f32 %v1291, %v1293
        %v1298 = vadd.f32 %v1273, %v1294
        %v1299 = vadd.f32 %v1274, %v1295
        %v1300 = vadd.f32 %v1275, %v1296
        %v1301 = vadd.f32 %v1276, %v1297
        %1303 = vset.pattern.permute.xlu0 0
        %1304 = vperm.xlu0 %1303, %v1232
        %v1305 = vpop.permute.xlu0 %1304
        %1308 = vset.pattern.permute.xlu0 0
        %1309 = vperm.xlu0 %1308, %v1233
        %v1310 = vpop.permute.xlu0 %1309
        %1313 = vset.pattern.permute.xlu0 0
        %1314 = vperm.xlu0 %1313, %v1234
        %v1315 = vpop.permute.xlu0 %1314
        %1318 = vset.pattern.permute.xlu0 0
        %1319 = vperm.xlu0 %1318, %v1235
        %v1320 = vpop.permute.xlu0 %1319
        %v1322 = vperm.slane %v479, 2
        %v1323 = vmul.f32 %v1305, %v1322
        %v1324 = vmul.f32 %v1310, %v1322
        %v1325 = vmul.f32 %v1315, %v1322
        %v1326 = vmul.f32 %v1320, %v1322
        %v1327 = vadd.f32 %v1298, %v1323
        %v1328 = vadd.f32 %v1299, %v1324
        %v1329 = vadd.f32 %v1300, %v1325
        %v1330 = vadd.f32 %v1301, %v1326
        %1332 = vset.pattern.permute.xlu0 0
        %1333 = vperm.xlu0 %1332, %v1248
        %v1334 = vpop.permute.xlu0 %1333
        %1337 = vset.pattern.permute.xlu0 0
        %1338 = vperm.xlu0 %1337, %v1249
        %v1339 = vpop.permute.xlu0 %1338
        %1342 = vset.pattern.permute.xlu0 0
        %1343 = vperm.xlu0 %1342, %v1250
        %v1344 = vpop.permute.xlu0 %1343
        %1347 = vset.pattern.permute.xlu0 0
        %1348 = vperm.xlu0 %1347, %v1251
        %v1349 = vpop.permute.xlu0 %1348
        %v1351 = vperm.slane %v479, 3
        %v1352 = vmul.f32 %v1334, %v1351
        %v1353 = vmul.f32 %v1339, %v1351
        %v1354 = vmul.f32 %v1344, %v1351
        %v1355 = vmul.f32 %v1349, %v1351
        %v1356 = vadd.f32 %v1327, %v1352
        %v1357 = vadd.f32 %v1328, %v1353
        %v1358 = vadd.f32 %v1329, %v1354
        %v1359 = vadd.f32 %v1330, %v1355
        %v1361 = vperm.slane %v480, 0
        %v1363 = vadd.f32 %v1356, %v1361
        %v1364 = vadd.f32 %v1357, %v1361
        %v1365 = vadd.f32 %v1358, %v1361
        %v1366 = vadd.f32 %v1359, %v1361
        %v1367 = vxor.u32 %v1363, 2147483648
        %v1368 = vxor.u32 %v1364, 2147483648
        %v1369 = vxor.u32 %v1365, 2147483648
        %v1370 = vmul.f32 %v1367, 1.442695
        %v1371 = vpow.pop %v1370
        %v1372 = vmul.f32 %v1368, 1.442695
        %v1373 = vpow.pop %v1372
        %v1374 = vmul.f32 %v1369, 1.442695
        %v1375 = vpow.pop %v1374
        %v1376 = vadd.f32 %v1371, 1.0
        %v1377 = vadd.f32 %v1373, 1.0
        %v1378 = vadd.f32 %v1375, 1.0
        %v1379 = vrcp.pop %v1376
        %v1380 = vmul.f32 %v1376, %v1379
        %v1381 = vsub.f32 1.0, %v1380
        %v1382 = vmul.f32 %v1379, %v1381
        %v1383 = vadd.f32 %v1379, %v1382
        %vm1384 = vweird.f32 %v1376
        %vm1385 = vweird.f32 %v1379
        %vm1386 = vmor %vm1384, %vm1385
        %v1387 = vsel %vm1386, %v1379, %v1383
        %v1388 = vand.u32 2147483647, %v1376
        %vm1389 = vcmp.eq.f32.partialorder %v1388, 8.507059e+37
        %v1390 = vand.u32 %v1376, 2147483648
        %v1391 = vor.u32 1.1754944e-38, %v1390
        %v1392 = vsel %vm1389, %v1391, %v1387
        %v1393 = vmul.f32 1.0, %v1392
        %v1394 = vrcp.pop %v1377
        %v1395 = vmul.f32 %v1377, %v1394
        %v1396 = vsub.f32 1.0, %v1395
        %v1397 = vmul.f32 %v1394, %v1396
        %v1398 = vadd.f32 %v1394, %v1397
        %vm1399 = vweird.f32 %v1377
        %vm1400 = vweird.f32 %v1394
        %vm1401 = vmor %vm1399, %vm1400
        %v1402 = vsel %vm1401, %v1394, %v1398
        %v1403 = vand.u32 2147483647, %v1377
        %vm1404 = vcmp.eq.f32.partialorder %v1403, 8.507059e+37
        %v1405 = vand.u32 %v1377, 2147483648
        %v1406 = vor.u32 1.1754944e-38, %v1405
        %v1407 = vsel %vm1404, %v1406, %v1402
        %v1408 = vmul.f32 1.0, %v1407
        %v1409 = vrcp.pop %v1378
        %v1410 = vmul.f32 %v1378, %v1409
        %v1411 = vsub.f32 1.0, %v1410
        %v1412 = vmul.f32 %v1409, %v1411
        %v1413 = vadd.f32 %v1409, %v1412
        %vm1414 = vweird.f32 %v1378
        %vm1415 = vweird.f32 %v1409
        %vm1416 = vmor %vm1414, %vm1415
        %v1417 = vsel %vm1416, %v1409, %v1413
        %v1418 = vand.u32 2147483647, %v1378
        %vm1419 = vcmp.eq.f32.partialorder %v1418, 8.507059e+37
        %v1420 = vand.u32 %v1378, 2147483648
        %v1421 = vor.u32 1.1754944e-38, %v1420
        %v1422 = vsel %vm1419, %v1421, %v1417
        %v1423 = vmul.f32 1.0, %v1422
        %v1424 = vtanh.pop %v1366
        %v1425 = vmul.f32 %v1393, %v482
        %v1426 = vmul.f32 %v1408, %v1424
        %v1427 = vadd.f32 %v1425, %v1426
        %v1428 = vtanh.pop %v1427
        %v1429 = vmul.f32 %v1423, %v1428
        %vm1430 = vcmask 254976
        %1431 = vst.msk [vmem:[%s443] sm:$0x3] %vm1430, %v1429
        %v1432 = vld [vmem:[%s405 + $0x1] sm:$0x1]
        %v1433 = vld [vmem:[%s405 + $0x9] sm:$0x1]
        %v1435 = vsel %vm485, %v1429, 0
        %1437 = vmatpush.msra.mxu0 0.0
        %1438 = vmatpush.msra.mxu0 0.0
        %1439 = vmatpush.msra.mxu0 0.0
        %1440 = vmatpush.msra.mxu0 0.0
        %1441 = vmatpush.msra.mxu0 0.0
        %1442 = vmatpush.msra.mxu0 0.0
        %1443 = vmatpush.msra.mxu0 0.0
        %1444 = vmatpush.msra.mxu0 0.0
        %1445 = vmatpush.msra.mxu0 0.0
        %1446 = vmatpush.msra.mxu0 0.0
        %1447 = vmatpush.msra.mxu0 0.0
        %1448 = vmatpush.msra.mxu0 0.0
        %1449 = vmatpush.msra.mxu0 %v470
        %1450 = vmatpush.msra.mxu0 %v469
        %1451 = vmatpush.msra.mxu0 %v468
        %1452 = vmatpush.msra.mxu0 %v467
        %1453 = vmatmul.f32.gmra.mxu0 %v1435
        %v1454 = vpop.f32.mrf.mxu0
        %v1455 = vadd.f32 0.0, %v1454
        %1456 = vdwg.mxu0
        %v1458 = vrot.slane %v1455, 1
        %v1461 = vadd.f32 %v1432, %v1455
        %v1462 = vadd.f32 %v1433, %v1458
        %v1463 = vand.u32 2147483647, %v1461
        %vm1464 = vcmp.le.f32.partialorder %v1463, 0.7853982
        %vm1465 = vcmp.lt.s32.totalorder %v1461, 0
        %v1466 = vand.u32 %v1461, 2139095040
        %v1467 = vshrl.u32 %v1466, 23
        %v1468 = vsub.s32 %v1467, 127
        %v1469 = vand.u32 2147483647, %v1461
        %v1470 = vand.u32 %v1469, 8388607
        %v1471 = vor.u32 %v1470, 8388608
        %v1472 = vsub.s32 0, %v1471
        %v1473 = vadd.s32 %v1468, 1
        %vm1474 = vcmp.gt.s32.totalorder %v1473, 0
        %v1475 = vsel %vm1474, %v1473, 0
        %v1476 = vshrl.u32 %v1475, 5
        %v1477 = vand.u32 %v1475, 31
        %v1478 = vsub.s32 32, %v1477
        %v1479 = vshrl.u32 683565275, %v1478
        %v1480 = vshll.u32 683565275, %v1477
        %v1481 = vshrl.u32 2475754826, %v1478
        %v1482 = vor.u32 %v1480, %v1481
        %v1483 = vshll.u32 2475754826, %v1477
        %v1484 = vshrl.u32 2131351028, %v1478
        %v1485 = vor.u32 %v1483, %v1484
        %v1486 = vshll.u32 2131351028, %v1477
        %v1487 = vshrl.u32 2102212464, %v1478
        %v1488 = vor.u32 %v1486, %v1487
        %v1489 = vshll.u32 2102212464, %v1477
        %v1490 = vshrl.u32 920167782, %v1478
        %v1491 = vor.u32 %v1489, %v1490
        %v1492 = vshll.u32 920167782, %v1477
        %v1493 = vshrl.u32 1326507024, %v1478
        %v1494 = vor.u32 %v1492, %v1493
        %vm1495 = vcmp.lt.s32.totalorder %v1476, 1
        %vm1496 = vcmp.lt.s32.totalorder %v1476, 2
        %vm1497 = vcmp.lt.s32.totalorder %v1476, 3
        %vm1498 = vcmp.lt.s32.totalorder %v1476, 4
        %v1499 = vsel %vm1495, %v1479, %v1482
        %v1500 = vsel %vm1498, %v1488, 2102212464
        %v1501 = vsel %vm1497, %v1485, %v1500
        %v1502 = vsel %vm1496, %v1499, %v1501
        %v1503 = vsel %vm1495, %v1482, %v1485
        %v1504 = vsel %vm1498, %v1491, 920167782
        %v1505 = vsel %vm1497, %v1488, %v1504
        %v1506 = vsel %vm1496, %v1503, %v1505
        %v1507 = vsel %vm1495, %v1485, %v1488
        %v1508 = vsel %vm1498, %v1494, 1326507024
        %v1509 = vsel %vm1497, %v1491, %v1508
        %v1510 = vsel %vm1496, %v1507, %v1509
        %v1511 = vshll.u32 %v1471, 8
        %v1512 = vand.u32 %v1511, 65535
        %v1513 = vshrl.u32 %v1511, 16
        %v1514 = vand.u32 %v1510, 65535
        %v1515 = vshrl.u32 %v1510, 16
        %v1516 = vmul.u32 %v1512, %v1514
        %v1517 = vmul.u32 %v1512, %v1515
        %v1518 = vmul.u32 %v1513, %v1514
        %v1519 = vmul.u32 %v1513, %v1515
        %v1520 = vshll.u32 %v1517, 16
        %v1521 = vshrl.u32 %v1517, 16
        %v1522 = vshll.u32 %v1518, 16
        %v1523 = vshrl.u32 %v1518, 16
        %vm1524 = vc.u32 %v1516, %v1520
        %v1525 = vsel %vm1524, 1, 0
        %v1526 = vadd.s32 %v1516, %v1520
        %v1527 = vadd.s32 %v1519, %v1525
        %vm1528 = vc.u32 %v1526, %v1522
        %v1529 = vsel %vm1528, 1, 0
        %v1530 = vadd.s32 %v1526, %v1522
        %v1531 = vadd.s32 %v1527, %v1529
        %v1532 = vadd.s32 %v1531, %v1521
        %v1533 = vadd.s32 %v1532, %v1523
        %v1534 = vand.u32 %v1511, 65535
        %v1535 = vshrl.u32 %v1511, 16
        %v1536 = vand.u32 %v1506, 65535
        %v1537 = vshrl.u32 %v1506, 16
        %v1538 = vmul.u32 %v1534, %v1536
        %v1539 = vmul.u32 %v1534, %v1537
        %v1540 = vmul.u32 %v1535, %v1536
        %v1541 = vmul.u32 %v1535, %v1537
        %v1542 = vshll.u32 %v1539, 16
        %v1543 = vshrl.u32 %v1539, 16
        %v1544 = vshll.u32 %v1540, 16
        %v1545 = vshrl.u32 %v1540, 16
        %vm1546 = vc.u32 %v1538, %v1542
        %v1547 = vsel %vm1546, 1, 0
        %v1548 = vadd.s32 %v1538, %v1542
        %v1549 = vadd.s32 %v1541, %v1547
        %vm1550 = vc.u32 %v1548, %v1544
        %v1551 = vsel %vm1550, 1, 0
        %v1552 = vadd.s32 %v1548, %v1544
        %v1553 = vadd.s32 %v1549, %v1551
        %v1554 = vadd.s32 %v1553, %v1543
        %v1555 = vadd.s32 %v1554, %v1545
        %v1556 = vmul.u32 %v1511, %v1502
        %v1557 = vadd.s32 %v1533, %v1552
        %vm1558 = vc.u32 %v1533, %v1552
        %v1559 = vadd.s32 %v1555, 1
        %v1560 = vsel %vm1558, %v1559, %v1555
        %v1561 = vadd.s32 %v1556, %v1560
        %v1562 = vadd.s32 %v1561, 536870912
        %v1563 = vshrl.u32 %v1562, 30
        %v1564 = vshll.u32 %v1563, 30
        %v1565 = vsub.s32 %v1561, %v1564
        %vm1566 = vcmp.lt.s32.totalorder %v1565, 0
        %v1567 = vsub.s32 0, %v1565
        %v1568 = vsel %vm1566, %v1567, %v1565
        %v1569 = vclz %v1568
        %v1570 = vsub.s32 %v1569, 2
        %vm1571 = vcmp.gt.s32.totalorder 0, %v1570
        %v1572 = vsel %vm1571, 0, %v1570
        %v1573 = vsub.s32 32, %v1572
        %v1574 = vshll.u32 %v1565, %v1572
        %v1575 = vshrl.u32 %v1557, %v1573
        %v1576 = vor.u32 %v1574, %v1575
        %v1577 = vsub.s32 4294967266, %v1572
        %v1578 = vadd.s32 %v1577, 127
        %v1579 = vshll.u32 %v1578, 23
        %v1580 = vor.u32 4788187, %v1579
        %v1581 = vand.u32 2147483647, %v1580
        %v1583 = vcvt.s32.f32 %v1576
        %v1584 = vmul.f32 %v1583, %v1581
        %v1585 = vxor.u32 %v1584, 2147483648
        %v1586 = vsel %vm1465, %v1585, %v1584
        %v1587 = vsub.s32 4, %v1563
        %v1588 = vsel %vm1465, %v1587, %v1563
        %v1589 = vsel %vm1464, %v1461, %v1586
        %v1590 = vsel %vm1464, 0, %v1588
        %v1591 = vmul.f32 %v1589, %v1589
        %v1592 = vmul.f32 %v1591, -0.001358992
        %v1593 = vadd.f32 %v1592, 0.041655596
        %v1594 = vmul.f32 %v1591, %v1593
        %v1595 = vadd.f32 %v1594, -0.4999988
        %v1596 = vmul.f32 %v1591, %v1595
        %v1597 = vadd.f32 1.0, %v1596
        %v1598 = vmul.f32 %v1589, %v1589
        %v1599 = vmul.f32 %v1598, -0.00019511016
        %v1600 = vadd.f32 %v1599, 0.008332121
        %v1601 = vmul.f32 %v1598, %v1600
        %v1602 = vadd.f32 %v1601, -0.16666654
        %v1603 = vmul.f32 %v1598, %v1602
        %v1604 = vadd.f32 %v1603, 1.0
        %v1605 = vmul.f32 %v1604, %v1589
        %vm1606 = vweird.f32 %v1461
        %v1607 = vand.u32 %v1590, 3
        %vm1608 = vcmp.lt.s32.totalorder %v1607, 2
        %vm1609 = vcmp.eq.s32.totalorder %v1607, 0
        %v1610 = vxor.u32 %v1605, 2147483648
        %v1611 = vsel %vm1609, %v1597, %v1610
        %vm1612 = vcmp.eq.s32.totalorder %v1607, 2
        %v1613 = vxor.u32 %v1597, 2147483648
        %v1614 = vsel %vm1612, %v1613, %v1605
        %v1615 = vsel %vm1608, %v1611, %v1614
        %v1616 = vsel %vm1606, nan, %v1615
        %v1617 = vand.u32 2147483647, %v1462
        %vm1618 = vcmp.le.f32.partialorder %v1617, 0.7853982
        %vm1619 = vcmp.lt.s32.totalorder %v1462, 0
        %v1620 = vand.u32 %v1462, 2139095040
        %v1621 = vshrl.u32 %v1620, 23
        %v1622 = vsub.s32 %v1621, 127
        %v1623 = vand.u32 2147483647, %v1462
        %v1624 = vand.u32 %v1623, 8388607
        %v1625 = vor.u32 %v1624, 8388608
        %v1626 = vsub.s32 0, %v1625
        %v1627 = vadd.s32 %v1622, 1
        %vm1628 = vcmp.gt.s32.totalorder %v1627, 0
        %v1629 = vsel %vm1628, %v1627, 0
        %v1630 = vshrl.u32 %v1629, 5
        %v1631 = vand.u32 %v1629, 31
        %v1632 = vsub.s32 32, %v1631
        %v1633 = vshrl.u32 683565275, %v1632
        %v1634 = vshll.u32 683565275, %v1631
        %v1635 = vshrl.u32 2475754826, %v1632
        %v1636 = vor.u32 %v1634, %v1635
        %v1637 = vshll.u32 2475754826, %v1631
        %v1638 = vshrl.u32 2131351028, %v1632
        %v1639 = vor.u32 %v1637, %v1638
        %v1640 = vshll.u32 2131351028, %v1631
        %v1641 = vshrl.u32 2102212464, %v1632
        %v1642 = vor.u32 %v1640, %v1641
        %v1643 = vshll.u32 2102212464, %v1631
        %v1644 = vshrl.u32 920167782, %v1632
        %v1645 = vor.u32 %v1643, %v1644
        %v1646 = vshll.u32 920167782, %v1631
        %v1647 = vshrl.u32 1326507024, %v1632
        %v1648 = vor.u32 %v1646, %v1647
        %vm1649 = vcmp.lt.s32.totalorder %v1630, 1
        %vm1650 = vcmp.lt.s32.totalorder %v1630, 2
        %vm1651 = vcmp.lt.s32.totalorder %v1630, 3
        %vm1652 = vcmp.lt.s32.totalorder %v1630, 4
        %v1653 = vsel %vm1649, %v1633, %v1636
        %v1654 = vsel %vm1652, %v1642, 2102212464
        %v1655 = vsel %vm1651, %v1639, %v1654
        %v1656 = vsel %vm1650, %v1653, %v1655
        %v1657 = vsel %vm1649, %v1636, %v1639
        %v1658 = vsel %vm1652, %v1645, 920167782
        %v1659 = vsel %vm1651, %v1642, %v1658
        %v1660 = vsel %vm1650, %v1657, %v1659
        %v1661 = vsel %vm1649, %v1639, %v1642
        %v1662 = vsel %vm1652, %v1648, 1326507024
        %v1663 = vsel %vm1651, %v1645, %v1662
        %v1664 = vsel %vm1650, %v1661, %v1663
        %v1665 = vshll.u32 %v1625, 8
        %v1666 = vand.u32 %v1665, 65535
        %v1667 = vshrl.u32 %v1665, 16
        %v1668 = vand.u32 %v1664, 65535
        %v1669 = vshrl.u32 %v1664, 16
        %v1670 = vmul.u32 %v1666, %v1668
        %v1671 = vmul.u32 %v1666, %v1669
        %v1672 = vmul.u32 %v1667, %v1668
        %v1673 = vmul.u32 %v1667, %v1669
        %v1674 = vshll.u32 %v1671, 16
        %v1675 = vshrl.u32 %v1671, 16
        %v1676 = vshll.u32 %v1672, 16
        %v1677 = vshrl.u32 %v1672, 16
        %vm1678 = vc.u32 %v1670, %v1674
        %v1679 = vsel %vm1678, 1, 0
        %v1680 = vadd.s32 %v1670, %v1674
        %v1681 = vadd.s32 %v1673, %v1679
        %vm1682 = vc.u32 %v1680, %v1676
        %v1683 = vsel %vm1682, 1, 0
        %v1684 = vadd.s32 %v1680, %v1676
        %v1685 = vadd.s32 %v1681, %v1683
        %v1686 = vadd.s32 %v1685, %v1675
        %v1687 = vadd.s32 %v1686, %v1677
        %v1688 = vand.u32 %v1665, 65535
        %v1689 = vshrl.u32 %v1665, 16
        %v1690 = vand.u32 %v1660, 65535
        %v1691 = vshrl.u32 %v1660, 16
        %v1692 = vmul.u32 %v1688, %v1690
        %v1693 = vmul.u32 %v1688, %v1691
        %v1694 = vmul.u32 %v1689, %v1690
        %v1695 = vmul.u32 %v1689, %v1691
        %v1696 = vshll.u32 %v1693, 16
        %v1697 = vshrl.u32 %v1693, 16
        %v1698 = vshll.u32 %v1694, 16
        %v1699 = vshrl.u32 %v1694, 16
        %vm1700 = vc.u32 %v1692, %v1696
        %v1701 = vsel %vm1700, 1, 0
        %v1702 = vadd.s32 %v1692, %v1696
        %v1703 = vadd.s32 %v1695, %v1701
        %vm1704 = vc.u32 %v1702, %v1698
        %v1705 = vsel %vm1704, 1, 0
        %v1706 = vadd.s32 %v1702, %v1698
        %v1707 = vadd.s32 %v1703, %v1705
        %v1708 = vadd.s32 %v1707, %v1697
        %v1709 = vadd.s32 %v1708, %v1699
        %v1710 = vmul.u32 %v1665, %v1656
        %v1711 = vadd.s32 %v1687, %v1706
        %vm1712 = vc.u32 %v1687, %v1706
        %v1713 = vadd.s32 %v1709, 1
        %v1714 = vsel %vm1712, %v1713, %v1709
        %v1715 = vadd.s32 %v1710, %v1714
        %v1716 = vadd.s32 %v1715, 536870912
        %v1717 = vshrl.u32 %v1716, 30
        %v1718 = vshll.u32 %v1717, 30
        %v1719 = vsub.s32 %v1715, %v1718
        %vm1720 = vcmp.lt.s32.totalorder %v1719, 0
        %v1721 = vsub.s32 0, %v1719
        %v1722 = vsel %vm1720, %v1721, %v1719
        %v1723 = vclz %v1722
        %v1724 = vsub.s32 %v1723, 2
        %vm1725 = vcmp.gt.s32.totalorder 0, %v1724
        %v1726 = vsel %vm1725, 0, %v1724
        %v1727 = vsub.s32 32, %v1726
        %v1728 = vshll.u32 %v1719, %v1726
        %v1729 = vshrl.u32 %v1711, %v1727
        %v1730 = vor.u32 %v1728, %v1729
        %v1731 = vsub.s32 4294967266, %v1726
        %v1732 = vadd.s32 %v1731, 127
        %v1733 = vshll.u32 %v1732, 23
        %v1734 = vor.u32 4788187, %v1733
        %v1735 = vand.u32 2147483647, %v1734
        %v1737 = vcvt.s32.f32 %v1730
        %v1738 = vmul.f32 %v1737, %v1735
        %v1739 = vxor.u32 %v1738, 2147483648
        %v1740 = vsel %vm1619, %v1739, %v1738
        %v1741 = vsub.s32 4, %v1717
        %v1742 = vsel %vm1619, %v1741, %v1717
        %v1743 = vsel %vm1618, %v1462, %v1740
        %v1744 = vsel %vm1618, 0, %v1742
        %v1745 = vmul.f32 %v1743, %v1743
        %v1746 = vmul.f32 %v1745, -0.001358992
        %v1747 = vadd.f32 %v1746, 0.041655596
        %v1748 = vmul.f32 %v1745, %v1747
        %v1749 = vadd.f32 %v1748, -0.4999988
        %v1750 = vmul.f32 %v1745, %v1749
        %v1751 = vadd.f32 1.0, %v1750
        %v1752 = vmul.f32 %v1743, %v1743
        %v1753 = vmul.f32 %v1752, -0.00019511016
        %v1754 = vadd.f32 %v1753, 0.008332121
        %v1755 = vmul.f32 %v1752, %v1754
        %v1756 = vadd.f32 %v1755, -0.16666654
        %v1757 = vmul.f32 %v1752, %v1756
        %v1758 = vadd.f32 %v1757, 1.0
        %v1759 = vmul.f32 %v1758, %v1743
        %vm1760 = vweird.f32 %v1462
        %v1761 = vand.u32 %v1744, 3
        %vm1762 = vcmp.lt.s32.totalorder %v1761, 2
        %vm1763 = vcmp.eq.s32.totalorder %v1761, 0
        %v1764 = vxor.u32 %v1759, 2147483648
        %v1765 = vsel %vm1763, %v1751, %v1764
        %vm1766 = vcmp.eq.s32.totalorder %v1761, 2
        %v1767 = vxor.u32 %v1751, 2147483648
        %v1768 = vsel %vm1766, %v1767, %v1759
        %v1769 = vsel %vm1762, %v1765, %v1768
        %v1770 = vsel %vm1760, nan, %v1769
        %v1771 = vand.u32 2147483647, %v1461
        %vm1772 = vcmp.le.f32.partialorder %v1771, 0.7853982
        %vm1773 = vcmp.lt.s32.totalorder %v1461, 0
        %v1774 = vand.u32 %v1461, 2139095040
        %v1775 = vshrl.u32 %v1774, 23
        %v1776 = vsub.s32 %v1775, 127
        %v1777 = vand.u32 2147483647, %v1461
        %v1778 = vand.u32 %v1777, 8388607
        %v1779 = vor.u32 %v1778, 8388608
        %v1780 = vsub.s32 0, %v1779
        %v1781 = vadd.s32 %v1776, 1
        %vm1782 = vcmp.gt.s32.totalorder %v1781, 0
        %v1783 = vsel %vm1782, %v1781, 0
        %v1784 = vshrl.u32 %v1783, 5
        %v1785 = vand.u32 %v1783, 31
        %v1786 = vsub.s32 32, %v1785
        %v1787 = vshrl.u32 683565275, %v1786
        %v1788 = vshll.u32 683565275, %v1785
        %v1789 = vshrl.u32 2475754826, %v1786
        %v1790 = vor.u32 %v1788, %v1789
        %v1791 = vshll.u32 2475754826, %v1785
        %v1792 = vshrl.u32 2131351028, %v1786
        %v1793 = vor.u32 %v1791, %v1792
        %v1794 = vshll.u32 2131351028, %v1785
        %v1795 = vshrl.u32 2102212464, %v1786
        %v1796 = vor.u32 %v1794, %v1795
        %v1797 = vshll.u32 2102212464, %v1785
        %v1798 = vshrl.u32 920167782, %v1786
        %v1799 = vor.u32 %v1797, %v1798
        %v1800 = vshll.u32 920167782, %v1785
        %v1801 = vshrl.u32 1326507024, %v1786
        %v1802 = vor.u32 %v1800, %v1801
        %vm1803 = vcmp.lt.s32.totalorder %v1784, 1
        %vm1804 = vcmp.lt.s32.totalorder %v1784, 2
        %vm1805 = vcmp.lt.s32.totalorder %v1784, 3
        %vm1806 = vcmp.lt.s32.totalorder %v1784, 4
        %v1807 = vsel %vm1803, %v1787, %v1790
        %v1808 = vsel %vm1806, %v1796, 2102212464
        %v1809 = vsel %vm1805, %v1793, %v1808
        %v1810 = vsel %vm1804, %v1807, %v1809
        %v1811 = vsel %vm1803, %v1790, %v1793
        %v1812 = vsel %vm1806, %v1799, 920167782
        %v1813 = vsel %vm1805, %v1796, %v1812
        %v1814 = vsel %vm1804, %v1811, %v1813
        %v1815 = vsel %vm1803, %v1793, %v1796
        %v1816 = vsel %vm1806, %v1802, 1326507024
        %v1817 = vsel %vm1805, %v1799, %v1816
        %v1818 = vsel %vm1804, %v1815, %v1817
        %v1819 = vshll.u32 %v1779, 8
        %v1820 = vand.u32 %v1819, 65535
        %v1821 = vshrl.u32 %v1819, 16
        %v1822 = vand.u32 %v1818, 65535
        %v1823 = vshrl.u32 %v1818, 16
        %v1824 = vmul.u32 %v1820, %v1822
        %v1825 = vmul.u32 %v1820, %v1823
        %v1826 = vmul.u32 %v1821, %v1822
        %v1827 = vmul.u32 %v1821, %v1823
        %v1828 = vshll.u32 %v1825, 16
        %v1829 = vshrl.u32 %v1825, 16
        %v1830 = vshll.u32 %v1826, 16
        %v1831 = vshrl.u32 %v1826, 16
        %vm1832 = vc.u32 %v1824, %v1828
        %v1833 = vsel %vm1832, 1, 0
        %v1834 = vadd.s32 %v1824, %v1828
        %v1835 = vadd.s32 %v1827, %v1833
        %vm1836 = vc.u32 %v1834, %v1830
        %v1837 = vsel %vm1836, 1, 0
        %v1838 = vadd.s32 %v1834, %v1830
        %v1839 = vadd.s32 %v1835, %v1837
        %v1840 = vadd.s32 %v1839, %v1829
        %v1841 = vadd.s32 %v1840, %v1831
        %v1842 = vand.u32 %v1819, 65535
        %v1843 = vshrl.u32 %v1819, 16
        %v1844 = vand.u32 %v1814, 65535
        %v1845 = vshrl.u32 %v1814, 16
        %v1846 = vmul.u32 %v1842, %v1844
        %v1847 = vmul.u32 %v1842, %v1845
        %v1848 = vmul.u32 %v1843, %v1844
        %v1849 = vmul.u32 %v1843, %v1845
        %v1850 = vshll.u32 %v1847, 16
        %v1851 = vshrl.u32 %v1847, 16
        %v1852 = vshll.u32 %v1848, 16
        %v1853 = vshrl.u32 %v1848, 16
        %vm1854 = vc.u32 %v1846, %v1850
        %v1855 = vsel %vm1854, 1, 0
        %v1856 = vadd.s32 %v1846, %v1850
        %v1857 = vadd.s32 %v1849, %v1855
        %vm1858 = vc.u32 %v1856, %v1852
        %v1859 = vsel %vm1858, 1, 0
        %v1860 = vadd.s32 %v1856, %v1852
        %v1861 = vadd.s32 %v1857, %v1859
        %v1862 = vadd.s32 %v1861, %v1851
        %v1863 = vadd.s32 %v1862, %v1853
        %v1864 = vmul.u32 %v1819, %v1810
        %v1865 = vadd.s32 %v1841, %v1860
        %vm1866 = vc.u32 %v1841, %v1860
        %v1867 = vadd.s32 %v1863, 1
        %v1868 = vsel %vm1866, %v1867, %v1863
        %v1869 = vadd.s32 %v1864, %v1868
        %v1870 = vadd.s32 %v1869, 536870912
        %v1871 = vshrl.u32 %v1870, 30
        %v1872 = vshll.u32 %v1871, 30
        %v1873 = vsub.s32 %v1869, %v1872
        %vm1874 = vcmp.lt.s32.totalorder %v1873, 0
        %v1875 = vsub.s32 0, %v1873
        %v1876 = vsel %vm1874, %v1875, %v1873
        %v1877 = vclz %v1876
        %v1878 = vsub.s32 %v1877, 2
        %vm1879 = vcmp.gt.s32.totalorder 0, %v1878
        %v1880 = vsel %vm1879, 0, %v1878
        %v1881 = vsub.s32 32, %v1880
        %v1882 = vshll.u32 %v1873, %v1880
        %v1883 = vshrl.u32 %v1865, %v1881
        %v1884 = vor.u32 %v1882, %v1883
        %v1885 = vsub.s32 4294967266, %v1880
        %v1886 = vadd.s32 %v1885, 127
        %v1887 = vshll.u32 %v1886, 23
        %v1888 = vor.u32 4788187, %v1887
        %v1889 = vand.u32 2147483647, %v1888
        %v1891 = vcvt.s32.f32 %v1884
        %v1892 = vmul.f32 %v1891, %v1889
        %v1893 = vxor.u32 %v1892, 2147483648
        %v1894 = vsel %vm1773, %v1893, %v1892
        %v1895 = vsub.s32 4, %v1871
        %v1896 = vsel %vm1773, %v1895, %v1871
        %v1897 = vsel %vm1772, %v1461, %v1894
        %v1898 = vsel %vm1772, 0, %v1896
        %v1899 = vmul.f32 %v1897, %v1897
        %v1900 = vmul.f32 %v1899, -0.001358992
        %v1901 = vadd.f32 %v1900, 0.041655596
        %v1902 = vmul.f32 %v1899, %v1901
        %v1903 = vadd.f32 %v1902, -0.4999988
        %v1904 = vmul.f32 %v1899, %v1903
        %v1905 = vadd.f32 1.0, %v1904
        %v1906 = vmul.f32 %v1897, %v1897
        %v1907 = vmul.f32 %v1906, -0.00019511016
        %v1908 = vadd.f32 %v1907, 0.008332121
        %v1909 = vmul.f32 %v1906, %v1908
        %v1910 = vadd.f32 %v1909, -0.16666654
        %v1911 = vmul.f32 %v1906, %v1910
        %v1912 = vadd.f32 %v1911, 1.0
        %v1913 = vmul.f32 %v1912, %v1897
        %vm1914 = vweird.f32 %v1461
        %v1915 = vadd.s32 %v1898, 3
        %v1916 = vand.u32 %v1915, 3
        %vm1917 = vcmp.lt.s32.totalorder %v1916, 2
        %vm1918 = vcmp.eq.s32.totalorder %v1916, 0
        %v1919 = vxor.u32 %v1913, 2147483648
        %v1920 = vsel %vm1918, %v1905, %v1919
        %vm1921 = vcmp.eq.s32.totalorder %v1916, 2
        %v1922 = vxor.u32 %v1905, 2147483648
        %v1923 = vsel %vm1921, %v1922, %v1913
        %v1924 = vsel %vm1917, %v1920, %v1923
        %v1925 = vsel %vm1914, nan, %v1924
        %v1926 = vand.u32 2147483647, %v1462
        %vm1927 = vcmp.le.f32.partialorder %v1926, 0.7853982
        %vm1928 = vcmp.lt.s32.totalorder %v1462, 0
        %v1929 = vand.u32 %v1462, 2139095040
        %v1930 = vshrl.u32 %v1929, 23
        %v1931 = vsub.s32 %v1930, 127
        %v1932 = vand.u32 2147483647, %v1462
        %v1933 = vand.u32 %v1932, 8388607
        %v1934 = vor.u32 %v1933, 8388608
        %v1935 = vsub.s32 0, %v1934
        %v1936 = vadd.s32 %v1931, 1
        %vm1937 = vcmp.gt.s32.totalorder %v1936, 0
        %v1938 = vsel %vm1937, %v1936, 0
        %v1939 = vshrl.u32 %v1938, 5
        %v1940 = vand.u32 %v1938, 31
        %v1941 = vsub.s32 32, %v1940
        %v1942 = vshrl.u32 683565275, %v1941
        %v1943 = vshll.u32 683565275, %v1940
        %v1944 = vshrl.u32 2475754826, %v1941
        %v1945 = vor.u32 %v1943, %v1944
        %v1946 = vshll.u32 2475754826, %v1940
        %v1947 = vshrl.u32 2131351028, %v1941
        %v1948 = vor.u32 %v1946, %v1947
        %v1949 = vshll.u32 2131351028, %v1940
        %v1950 = vshrl.u32 2102212464, %v1941
        %v1951 = vor.u32 %v1949, %v1950
        %v1952 = vshll.u32 2102212464, %v1940
        %v1953 = vshrl.u32 920167782, %v1941
        %v1954 = vor.u32 %v1952, %v1953
        %v1955 = vshll.u32 920167782, %v1940
        %v1956 = vshrl.u32 1326507024, %v1941
        %v1957 = vor.u32 %v1955, %v1956
        %vm1958 = vcmp.lt.s32.totalorder %v1939, 1
        %vm1959 = vcmp.lt.s32.totalorder %v1939, 2
        %vm1960 = vcmp.lt.s32.totalorder %v1939, 3
        %vm1961 = vcmp.lt.s32.totalorder %v1939, 4
        %v1962 = vsel %vm1958, %v1942, %v1945
        %v1963 = vsel %vm1961, %v1951, 2102212464
        %v1964 = vsel %vm1960, %v1948, %v1963
        %v1965 = vsel %vm1959, %v1962, %v1964
        %v1966 = vsel %vm1958, %v1945, %v1948
        %v1967 = vsel %vm1961, %v1954, 920167782
        %v1968 = vsel %vm1960, %v1951, %v1967
        %v1969 = vsel %vm1959, %v1966, %v1968
        %v1970 = vsel %vm1958, %v1948, %v1951
        %v1971 = vsel %vm1961, %v1957, 1326507024
        %v1972 = vsel %vm1960, %v1954, %v1971
        %v1973 = vsel %vm1959, %v1970, %v1972
        %v1974 = vshll.u32 %v1934, 8
        %v1975 = vand.u32 %v1974, 65535
        %v1976 = vshrl.u32 %v1974, 16
        %v1977 = vand.u32 %v1973, 65535
        %v1978 = vshrl.u32 %v1973, 16
        %v1979 = vmul.u32 %v1975, %v1977
        %v1980 = vmul.u32 %v1975, %v1978
        %v1981 = vmul.u32 %v1976, %v1977
        %v1982 = vmul.u32 %v1976, %v1978
        %v1983 = vshll.u32 %v1980, 16
        %v1984 = vshrl.u32 %v1980, 16
        %v1985 = vshll.u32 %v1981, 16
        %v1986 = vshrl.u32 %v1981, 16
        %vm1987 = vc.u32 %v1979, %v1983
        %v1988 = vsel %vm1987, 1, 0
        %v1989 = vadd.s32 %v1979, %v1983
        %v1990 = vadd.s32 %v1982, %v1988
        %vm1991 = vc.u32 %v1989, %v1985
        %v1992 = vsel %vm1991, 1, 0
        %v1993 = vadd.s32 %v1989, %v1985
        %v1994 = vadd.s32 %v1990, %v1992
        %v1995 = vadd.s32 %v1994, %v1984
        %v1996 = vadd.s32 %v1995, %v1986
        %v1997 = vand.u32 %v1974, 65535
        %v1998 = vshrl.u32 %v1974, 16
        %v1999 = vand.u32 %v1969, 65535
        %v2000 = vshrl.u32 %v1969, 16
        %v2001 = vmul.u32 %v1997, %v1999
        %v2002 = vmul.u32 %v1997, %v2000
        %v2003 = vmul.u32 %v1998, %v1999
        %v2004 = vmul.u32 %v1998, %v2000
        %v2005 = vshll.u32 %v2002, 16
        %v2006 = vshrl.u32 %v2002, 16
        %v2007 = vshll.u32 %v2003, 16
        %v2008 = vshrl.u32 %v2003, 16
        %vm2009 = vc.u32 %v2001, %v2005
        %v2010 = vsel %vm2009, 1, 0
        %v2011 = vadd.s32 %v2001, %v2005
        %v2012 = vadd.s32 %v2004, %v2010
        %vm2013 = vc.u32 %v2011, %v2007
        %v2014 = vsel %vm2013, 1, 0
        %v2015 = vadd.s32 %v2011, %v2007
        %v2016 = vadd.s32 %v2012, %v2014
        %v2017 = vadd.s32 %v2016, %v2006
        %v2018 = vadd.s32 %v2017, %v2008
        %v2019 = vmul.u32 %v1974, %v1965
        %v2020 = vadd.s32 %v1996, %v2015
        %vm2021 = vc.u32 %v1996, %v2015
        %v2022 = vadd.s32 %v2018, 1
        %v2023 = vsel %vm2021, %v2022, %v2018
        %v2024 = vadd.s32 %v2019, %v2023
        %v2025 = vadd.s32 %v2024, 536870912
        %v2026 = vshrl.u32 %v2025, 30
        %v2027 = vshll.u32 %v2026, 30
        %v2028 = vsub.s32 %v2024, %v2027
        %vm2029 = vcmp.lt.s32.totalorder %v2028, 0
        %v2030 = vsub.s32 0, %v2028
        %v2031 = vsel %vm2029, %v2030, %v2028
        %v2032 = vclz %v2031
        %v2033 = vsub.s32 %v2032, 2
        %vm2034 = vcmp.gt.s32.totalorder 0, %v2033
        %v2035 = vsel %vm2034, 0, %v2033
        %v2036 = vsub.s32 32, %v2035
        %v2037 = vshll.u32 %v2028, %v2035
        %v2038 = vshrl.u32 %v2020, %v2036
        %v2039 = vor.u32 %v2037, %v2038
        %v2040 = vsub.s32 4294967266, %v2035
        %v2041 = vadd.s32 %v2040, 127
        %v2042 = vshll.u32 %v2041, 23
        %v2043 = vor.u32 4788187, %v2042
        %v2044 = vand.u32 2147483647, %v2043
        %v2046 = vcvt.s32.f32 %v2039
        %v2047 = vmul.f32 %v2046, %v2044
        %v2048 = vxor.u32 %v2047, 2147483648
        %v2049 = vsel %vm1928, %v2048, %v2047
        %v2050 = vsub.s32 4, %v2026
        %v2051 = vsel %vm1928, %v2050, %v2026
        %v2052 = vsel %vm1927, %v1462, %v2049
        %v2053 = vsel %vm1927, 0, %v2051
        %v2054 = vmul.f32 %v2052, %v2052
        %v2055 = vmul.f32 %v2054, -0.001358992
        %v2056 = vadd.f32 %v2055, 0.041655596
        %v2057 = vmul.f32 %v2054, %v2056
        %v2058 = vadd.f32 %v2057, -0.4999988
        %v2059 = vmul.f32 %v2054, %v2058
        %v2060 = vadd.f32 1.0, %v2059
        %v2061 = vmul.f32 %v2052, %v2052
        %v2062 = vmul.f32 %v2061, -0.00019511016
        %v2063 = vadd.f32 %v2062, 0.008332121
        %v2064 = vmul.f32 %v2061, %v2063
        %v2065 = vadd.f32 %v2064, -0.16666654
        %v2066 = vmul.f32 %v2061, %v2065
        %v2067 = vadd.f32 %v2066, 1.0
        %v2068 = vmul.f32 %v2067, %v2052
        %vm2069 = vweird.f32 %v1462
        %v2070 = vadd.s32 %v2053, 3
        %v2071 = vand.u32 %v2070, 3
        %vm2072 = vcmp.lt.s32.totalorder %v2071, 2
        %vm2073 = vcmp.eq.s32.totalorder %v2071, 0
        %v2074 = vxor.u32 %v2068, 2147483648
        %v2075 = vsel %vm2073, %v2060, %v2074
        %vm2076 = vcmp.eq.s32.totalorder %v2071, 2
        %v2077 = vxor.u32 %v2060, 2147483648
        %v2078 = vsel %vm2076, %v2077, %v2068
        %v2079 = vsel %vm2072, %v2075, %v2078
        %v2080 = vsel %vm2069, nan, %v2079
        %v2083 = vrot.slane %v1770, 7
        %v2084 = vsel %vm1148, %v2083, %v1616
        %v2086 = vmul.f32 %v1137, %v2084
        %v2087 = vmul.f32 %v1138, %v2084
        %v2088 = vmul.f32 %v1139, %v2084
        %v2089 = vmul.f32 %v1140, %v2084
        %v2092 = vrot.slane %v2080, 7
        %v2093 = vsel %vm1148, %v2092, %v1925
        %v2095 = vmul.f32 %v1159, %v2093
        %v2096 = vmul.f32 %v1160, %v2093
        %v2097 = vmul.f32 %v1161, %v2093
        %v2098 = vmul.f32 %v1162, %v2093
        %v2099 = vsub.f32 %v2086, %v2095
        %v2100 = vsub.f32 %v2087, %v2096
        %v2101 = vsub.f32 %v2088, %v2097
        %v2102 = vsub.f32 %v2089, %v2098
        %2107 = vrot.lane.b32.xlu0 %v2099, 127
        %v2108 = vpop.permute.xlu0 %2107
        %2109 = vrot.lane.b32.xlu0 %v2100, 127
        %v2110 = vpop.permute.xlu0 %2109
        %2111 = vrot.lane.b32.xlu0 %v2101, 127
        %v2112 = vpop.permute.xlu0 %2111
        %2113 = vrot.lane.b32.xlu0 %v2102, 127
        %v2114 = vpop.permute.xlu0 %2113
        %v2119 = vmul.f32 %v2099, %v2108
        %v2120 = vmul.f32 %v2100, %v2110
        %v2121 = vmul.f32 %v2101, %v2112
        %v2122 = vmul.f32 %v2102, %v2114
        %2127 = vrot.lane.b32.xlu0 %v2119, 127
        %v2128 = vpop.permute.xlu0 %2127
        %2129 = vrot.lane.b32.xlu0 %v2120, 127
        %v2130 = vpop.permute.xlu0 %2129
        %2131 = vrot.lane.b32.xlu0 %v2121, 127
        %v2132 = vpop.permute.xlu0 %2131
        %2133 = vrot.lane.b32.xlu0 %v2122, 127
        %v2134 = vpop.permute.xlu0 %2133
        %v2139 = vmul.f32 %v2099, %v2128
        %v2140 = vmul.f32 %v2100, %v2130
        %v2141 = vmul.f32 %v2101, %v2132
        %v2142 = vmul.f32 %v2102, %v2134
        %2143 = vrot.lane.b32.xlu0 %v2099, 126
        %v2144 = vpop.permute.xlu0 %2143
        %2145 = vrot.lane.b32.xlu0 %v2100, 126
        %v2146 = vpop.permute.xlu0 %2145
        %2147 = vrot.lane.b32.xlu0 %v2101, 126
        %v2148 = vpop.permute.xlu0 %2147
        %2149 = vrot.lane.b32.xlu0 %v2102, 126
        %v2150 = vpop.permute.xlu0 %2149
        %v2155 = vmul.f32 %v2119, %v2144
        %v2156 = vmul.f32 %v2120, %v2146
        %v2157 = vmul.f32 %v2121, %v2148
        %v2158 = vmul.f32 %v2122, %v2150
        %2159 = vrot.lane.b32.xlu0 %v2119, 126
        %v2160 = vpop.permute.xlu0 %2159
        %2161 = vrot.lane.b32.xlu0 %v2120, 126
        %v2162 = vpop.permute.xlu0 %2161
        %2163 = vrot.lane.b32.xlu0 %v2121, 126
        %v2164 = vpop.permute.xlu0 %2163
        %2165 = vrot.lane.b32.xlu0 %v2122, 126
        %v2166 = vpop.permute.xlu0 %2165
        %v2171 = vmul.f32 %v2119, %v2160
        %v2172 = vmul.f32 %v2120, %v2162
        %v2173 = vmul.f32 %v2121, %v2164
        %v2174 = vmul.f32 %v2122, %v2166
        %2176 = vset.pattern.permute.xlu0 1
        %2177 = vperm.xlu0 %2176, %v2139
        %v2178 = vpop.permute.xlu0 %2177
        %2181 = vset.pattern.permute.xlu0 1
        %2182 = vperm.xlu0 %2181, %v2140
        %v2183 = vpop.permute.xlu0 %2182
        %2186 = vset.pattern.permute.xlu0 1
        %2187 = vperm.xlu0 %2186, %v2141
        %v2188 = vpop.permute.xlu0 %2187
        %2191 = vset.pattern.permute.xlu0 1
        %2192 = vperm.xlu0 %2191, %v2142
        %v2193 = vpop.permute.xlu0 %2192
        %v2195 = vmul.f32 %v2178, %v1272
        %v2196 = vmul.f32 %v2183, %v1272
        %v2197 = vmul.f32 %v2188, %v1272
        %v2198 = vmul.f32 %v2193, %v1272
        %2199 = vset.pattern.permute.xlu0 0
        %2200 = vperm.xlu0 %2199, %v2119
        %v2201 = vpop.permute.xlu0 %2200
        %2203 = vset.pattern.permute.xlu0 0
        %2204 = vperm.xlu0 %2203, %v2120
        %v2205 = vpop.permute.xlu0 %2204
        %2207 = vset.pattern.permute.xlu0 0
        %2208 = vperm.xlu0 %2207, %v2121
        %v2209 = vpop.permute.xlu0 %2208
        %2211 = vset.pattern.permute.xlu0 0
        %2212 = vperm.xlu0 %2211, %v2122
        %v2213 = vpop.permute.xlu0 %2212
        %v2215 = vmul.f32 %v2201, %v1293
        %v2216 = vmul.f32 %v2205, %v1293
        %v2217 = vmul.f32 %v2209, %v1293
        %v2218 = vmul.f32 %v2213, %v1293
        %v2219 = vadd.f32 %v2195, %v2215
        %v2220 = vadd.f32 %v2196, %v2216
        %v2221 = vadd.f32 %v2197, %v2217
        %v2222 = vadd.f32 %v2198, %v2218
        %2224 = vset.pattern.permute.xlu0 0
        %2225 = vperm.xlu0 %2224, %v2155
        %v2226 = vpop.permute.xlu0 %2225
        %2229 = vset.pattern.permute.xlu0 0
        %2230 = vperm.xlu0 %2229, %v2156
        %v2231 = vpop.permute.xlu0 %2230
        %2234 = vset.pattern.permute.xlu0 0
        %2235 = vperm.xlu0 %2234, %v2157
        %v2236 = vpop.permute.xlu0 %2235
        %2239 = vset.pattern.permute.xlu0 0
        %2240 = vperm.xlu0 %2239, %v2158
        %v2241 = vpop.permute.xlu0 %2240
        %v2243 = vmul.f32 %v2226, %v1322
        %v2244 = vmul.f32 %v2231, %v1322
        %v2245 = vmul.f32 %v2236, %v1322
        %v2246 = vmul.f32 %v2241, %v1322
        %v2247 = vadd.f32 %v2219, %v2243
        %v2248 = vadd.f32 %v2220, %v2244
        %v2249 = vadd.f32 %v2221, %v2245
        %v2250 = vadd.f32 %v2222, %v2246
        %2252 = vset.pattern.permute.xlu0 0
        %2253 = vperm.xlu0 %2252, %v2171
        %v2254 = vpop.permute.xlu0 %2253
        %2257 = vset.pattern.permute.xlu0 0
        %2258 = vperm.xlu0 %2257, %v2172
        %v2259 = vpop.permute.xlu0 %2258
        %2262 = vset.pattern.permute.xlu0 0
        %2263 = vperm.xlu0 %2262, %v2173
        %v2264 = vpop.permute.xlu0 %2263
        %2267 = vset.pattern.permute.xlu0 0
        %2268 = vperm.xlu0 %2267, %v2174
        %v2269 = vpop.permute.xlu0 %2268
        %v2271 = vmul.f32 %v2254, %v1351
        %v2272 = vmul.f32 %v2259, %v1351
        %v2273 = vmul.f32 %v2264, %v1351
        %v2274 = vmul.f32 %v2269, %v1351
        %v2275 = vadd.f32 %v2247, %v2271
        %v2276 = vadd.f32 %v2248, %v2272
        %v2277 = vadd.f32 %v2249, %v2273
        %v2278 = vadd.f32 %v2250, %v2274
        %v2279 = vadd.f32 %v2275, %v1361
        %v2280 = vadd.f32 %v2276, %v1361
        %v2281 = vadd.f32 %v2277, %v1361
        %v2282 = vadd.f32 %v2278, %v1361
        %v2283 = vxor.u32 %v2279, 2147483648
        %v2284 = vxor.u32 %v2280, 2147483648
        %v2285 = vxor.u32 %v2281, 2147483648
        %v2286 = vmul.f32 %v2283, 1.442695
        %v2287 = vpow.pop %v2286
        %v2288 = vmul.f32 %v2284, 1.442695
        %v2289 = vpow.pop %v2288
        %v2290 = vmul.f32 %v2285, 1.442695
        %v2291 = vpow.pop %v2290
        %v2292 = vadd.f32 %v2287, 1.0
        %v2293 = vadd.f32 %v2289, 1.0
        %v2294 = vadd.f32 %v2291, 1.0
        %v2295 = vrcp.pop %v2292
        %v2296 = vmul.f32 %v2292, %v2295
        %v2297 = vsub.f32 1.0, %v2296
        %v2298 = vmul.f32 %v2295, %v2297
        %v2299 = vadd.f32 %v2295, %v2298
        %vm2300 = vweird.f32 %v2292
        %vm2301 = vweird.f32 %v2295
        %vm2302 = vmor %vm2300, %vm2301
        %v2303 = vsel %vm2302, %v2295, %v2299
        %v2304 = vand.u32 2147483647, %v2292
        %vm2305 = vcmp.eq.f32.partialorder %v2304, 8.507059e+37
        %v2306 = vand.u32 %v2292, 2147483648
        %v2307 = vor.u32 1.1754944e-38, %v2306
        %v2308 = vsel %vm2305, %v2307, %v2303
        %v2309 = vmul.f32 1.0, %v2308
        %v2310 = vrcp.pop %v2293
        %v2311 = vmul.f32 %v2293, %v2310
        %v2312 = vsub.f32 1.0, %v2311
        %v2313 = vmul.f32 %v2310, %v2312
        %v2314 = vadd.f32 %v2310, %v2313
        %vm2315 = vweird.f32 %v2293
        %vm2316 = vweird.f32 %v2310
        %vm2317 = vmor %vm2315, %vm2316
        %v2318 = vsel %vm2317, %v2310, %v2314
        %v2319 = vand.u32 2147483647, %v2293
        %vm2320 = vcmp.eq.f32.partialorder %v2319, 8.507059e+37
        %v2321 = vand.u32 %v2293, 2147483648
        %v2322 = vor.u32 1.1754944e-38, %v2321
        %v2323 = vsel %vm2320, %v2322, %v2318
        %v2324 = vmul.f32 1.0, %v2323
        %v2325 = vrcp.pop %v2294
        %v2326 = vmul.f32 %v2294, %v2325
        %v2327 = vsub.f32 1.0, %v2326
        %v2328 = vmul.f32 %v2325, %v2327
        %v2329 = vadd.f32 %v2325, %v2328
        %vm2330 = vweird.f32 %v2294
        %vm2331 = vweird.f32 %v2325
        %vm2332 = vmor %vm2330, %vm2331
        %v2333 = vsel %vm2332, %v2325, %v2329
        %v2334 = vand.u32 2147483647, %v2294
        %vm2335 = vcmp.eq.f32.partialorder %v2334, 8.507059e+37
        %v2336 = vand.u32 %v2294, 2147483648
        %v2337 = vor.u32 1.1754944e-38, %v2336
        %v2338 = vsel %vm2335, %v2337, %v2333
        %v2339 = vmul.f32 1.0, %v2338
        %v2340 = vtanh.pop %v2282
        %v2341 = vmul.f32 %v2309, %v1427
        %v2342 = vmul.f32 %v2324, %v2340
        %v2343 = vadd.f32 %v2341, %v2342
        %v2344 = vtanh.pop %v2343
        %v2345 = vmul.f32 %v2339, %v2344
        %2347 = vrot.lane.b32.xlu0 %v2345, 32
        %v2348 = vpop.permute.xlu0 %2347
        %vm2350 = vcmask 517376
        %2351 = vst.msk [vmem:[%s443] sm:$0x3] %vm2350, %v2348
        %v2352 = vld [vmem:[%s405 + $0x2] sm:$0x1]
        %v2353 = vld [vmem:[%s405 + $0xa] sm:$0x1]
        %v2354 = vsel %vm485, %v2345, 0
        %2356 = vmatpush.msra.mxu0 0.0
        %2357 = vmatpush.msra.mxu0 0.0
        %2358 = vmatpush.msra.mxu0 0.0
        %2359 = vmatpush.msra.mxu0 0.0
        %2360 = vmatpush.msra.mxu0 0.0
        %2361 = vmatpush.msra.mxu0 0.0
        %2362 = vmatpush.msra.mxu0 0.0
        %2363 = vmatpush.msra.mxu0 0.0
        %2364 = vmatpush.msra.mxu0 0.0
        %2365 = vmatpush.msra.mxu0 0.0
        %2366 = vmatpush.msra.mxu0 0.0
        %2367 = vmatpush.msra.mxu0 0.0
        %2368 = vmatpush.msra.mxu0 %v470
        %2369 = vmatpush.msra.mxu0 %v469
        %2370 = vmatpush.msra.mxu0 %v468
        %2371 = vmatpush.msra.mxu0 %v467
        %2372 = vmatmul.f32.gmra.mxu0 %v2354
        %v2373 = vpop.f32.mrf.mxu0
        %v2374 = vadd.f32 0.0, %v2373
        %2375 = vdwg.mxu0
        %v2377 = vrot.slane %v2374, 1
        %v2380 = vadd.f32 %v2352, %v2374
        %v2381 = vadd.f32 %v2353, %v2377
        %v2382 = vand.u32 2147483647, %v2380
        %vm2383 = vcmp.le.f32.partialorder %v2382, 0.7853982
        %vm2384 = vcmp.lt.s32.totalorder %v2380, 0
        %v2385 = vand.u32 %v2380, 2139095040
        %v2386 = vshrl.u32 %v2385, 23
        %v2387 = vsub.s32 %v2386, 127
        %v2388 = vand.u32 2147483647, %v2380
        %v2389 = vand.u32 %v2388, 8388607
        %v2390 = vor.u32 %v2389, 8388608
        %v2391 = vsub.s32 0, %v2390
        %v2392 = vadd.s32 %v2387, 1
        %vm2393 = vcmp.gt.s32.totalorder %v2392, 0
        %v2394 = vsel %vm2393, %v2392, 0
        %v2395 = vshrl.u32 %v2394, 5
        %v2396 = vand.u32 %v2394, 31
        %v2397 = vsub.s32 32, %v2396
        %v2398 = vshrl.u32 683565275, %v2397
        %v2399 = vshll.u32 683565275, %v2396
        %v2400 = vshrl.u32 2475754826, %v2397
        %v2401 = vor.u32 %v2399, %v2400
        %v2402 = vshll.u32 2475754826, %v2396
        %v2403 = vshrl.u32 2131351028, %v2397
        %v2404 = vor.u32 %v2402, %v2403
        %v2405 = vshll.u32 2131351028, %v2396
        %v2406 = vshrl.u32 2102212464, %v2397
        %v2407 = vor.u32 %v2405, %v2406
        %v2408 = vshll.u32 2102212464, %v2396
        %v2409 = vshrl.u32 920167782, %v2397
        %v2410 = vor.u32 %v2408, %v2409
        %v2411 = vshll.u32 920167782, %v2396
        %v2412 = vshrl.u32 1326507024, %v2397
        %v2413 = vor.u32 %v2411, %v2412
        %vm2414 = vcmp.lt.s32.totalorder %v2395, 1
        %vm2415 = vcmp.lt.s32.totalorder %v2395, 2
        %vm2416 = vcmp.lt.s32.totalorder %v2395, 3
        %vm2417 = vcmp.lt.s32.totalorder %v2395, 4
        %v2418 = vsel %vm2414, %v2398, %v2401
        %v2419 = vsel %vm2417, %v2407, 2102212464
        %v2420 = vsel %vm2416, %v2404, %v2419
        %v2421 = vsel %vm2415, %v2418, %v2420
        %v2422 = vsel %vm2414, %v2401, %v2404
        %v2423 = vsel %vm2417, %v2410, 920167782
        %v2424 = vsel %vm2416, %v2407, %v2423
        %v2425 = vsel %vm2415, %v2422, %v2424
        %v2426 = vsel %vm2414, %v2404, %v2407
        %v2427 = vsel %vm2417, %v2413, 1326507024
        %v2428 = vsel %vm2416, %v2410, %v2427
        %v2429 = vsel %vm2415, %v2426, %v2428
        %v2430 = vshll.u32 %v2390, 8
        %v2431 = vand.u32 %v2430, 65535
        %v2432 = vshrl.u32 %v2430, 16
        %v2433 = vand.u32 %v2429, 65535
        %v2434 = vshrl.u32 %v2429, 16
        %v2435 = vmul.u32 %v2431, %v2433
        %v2436 = vmul.u32 %v2431, %v2434
        %v2437 = vmul.u32 %v2432, %v2433
        %v2438 = vmul.u32 %v2432, %v2434
        %v2439 = vshll.u32 %v2436, 16
        %v2440 = vshrl.u32 %v2436, 16
        %v2441 = vshll.u32 %v2437, 16
        %v2442 = vshrl.u32 %v2437, 16
        %vm2443 = vc.u32 %v2435, %v2439
        %v2444 = vsel %vm2443, 1, 0
        %v2445 = vadd.s32 %v2435, %v2439
        %v2446 = vadd.s32 %v2438, %v2444
        %vm2447 = vc.u32 %v2445, %v2441
        %v2448 = vsel %vm2447, 1, 0
        %v2449 = vadd.s32 %v2445, %v2441
        %v2450 = vadd.s32 %v2446, %v2448
        %v2451 = vadd.s32 %v2450, %v2440
        %v2452 = vadd.s32 %v2451, %v2442
        %v2453 = vand.u32 %v2430, 65535
        %v2454 = vshrl.u32 %v2430, 16
        %v2455 = vand.u32 %v2425, 65535
        %v2456 = vshrl.u32 %v2425, 16
        %v2457 = vmul.u32 %v2453, %v2455
        %v2458 = vmul.u32 %v2453, %v2456
        %v2459 = vmul.u32 %v2454, %v2455
        %v2460 = vmul.u32 %v2454, %v2456
        %v2461 = vshll.u32 %v2458, 16
        %v2462 = vshrl.u32 %v2458, 16
        %v2463 = vshll.u32 %v2459, 16
        %v2464 = vshrl.u32 %v2459, 16
        %vm2465 = vc.u32 %v2457, %v2461
        %v2466 = vsel %vm2465, 1, 0
        %v2467 = vadd.s32 %v2457, %v2461
        %v2468 = vadd.s32 %v2460, %v2466
        %vm2469 = vc.u32 %v2467, %v2463
        %v2470 = vsel %vm2469, 1, 0
        %v2471 = vadd.s32 %v2467, %v2463
        %v2472 = vadd.s32 %v2468, %v2470
        %v2473 = vadd.s32 %v2472, %v2462
        %v2474 = vadd.s32 %v2473, %v2464
        %v2475 = vmul.u32 %v2430, %v2421
        %v2476 = vadd.s32 %v2452, %v2471
        %vm2477 = vc.u32 %v2452, %v2471
        %v2478 = vadd.s32 %v2474, 1
        %v2479 = vsel %vm2477, %v2478, %v2474
        %v2480 = vadd.s32 %v2475, %v2479
        %v2481 = vadd.s32 %v2480, 536870912
        %v2482 = vshrl.u32 %v2481, 30
        %v2483 = vshll.u32 %v2482, 30
        %v2484 = vsub.s32 %v2480, %v2483
        %vm2485 = vcmp.lt.s32.totalorder %v2484, 0
        %v2486 = vsub.s32 0, %v2484
        %v2487 = vsel %vm2485, %v2486, %v2484
        %v2488 = vclz %v2487
        %v2489 = vsub.s32 %v2488, 2
        %vm2490 = vcmp.gt.s32.totalorder 0, %v2489
        %v2491 = vsel %vm2490, 0, %v2489
        %v2492 = vsub.s32 32, %v2491
        %v2493 = vshll.u32 %v2484, %v2491
        %v2494 = vshrl.u32 %v2476, %v2492
        %v2495 = vor.u32 %v2493, %v2494
        %v2496 = vsub.s32 4294967266, %v2491
        %v2497 = vadd.s32 %v2496, 127
        %v2498 = vshll.u32 %v2497, 23
        %v2499 = vor.u32 4788187, %v2498
        %v2500 = vand.u32 2147483647, %v2499
        %v2502 = vcvt.s32.f32 %v2495
        %v2503 = vmul.f32 %v2502, %v2500
        %v2504 = vxor.u32 %v2503, 2147483648
        %v2505 = vsel %vm2384, %v2504, %v2503
        %v2506 = vsub.s32 4, %v2482
        %v2507 = vsel %vm2384, %v2506, %v2482
        %v2508 = vsel %vm2383, %v2380, %v2505
        %v2509 = vsel %vm2383, 0, %v2507
        %v2510 = vmul.f32 %v2508, %v2508
        %v2511 = vmul.f32 %v2510, -0.001358992
        %v2512 = vadd.f32 %v2511, 0.041655596
        %v2513 = vmul.f32 %v2510, %v2512
        %v2514 = vadd.f32 %v2513, -0.4999988
        %v2515 = vmul.f32 %v2510, %v2514
        %v2516 = vadd.f32 1.0, %v2515
        %v2517 = vmul.f32 %v2508, %v2508
        %v2518 = vmul.f32 %v2517, -0.00019511016
        %v2519 = vadd.f32 %v2518, 0.008332121
        %v2520 = vmul.f32 %v2517, %v2519
        %v2521 = vadd.f32 %v2520, -0.16666654
        %v2522 = vmul.f32 %v2517, %v2521
        %v2523 = vadd.f32 %v2522, 1.0
        %v2524 = vmul.f32 %v2523, %v2508
        %vm2525 = vweird.f32 %v2380
        %v2526 = vand.u32 %v2509, 3
        %vm2527 = vcmp.lt.s32.totalorder %v2526, 2
        %vm2528 = vcmp.eq.s32.totalorder %v2526, 0
        %v2529 = vxor.u32 %v2524, 2147483648
        %v2530 = vsel %vm2528, %v2516, %v2529
        %vm2531 = vcmp.eq.s32.totalorder %v2526, 2
        %v2532 = vxor.u32 %v2516, 2147483648
        %v2533 = vsel %vm2531, %v2532, %v2524
        %v2534 = vsel %vm2527, %v2530, %v2533
        %v2535 = vsel %vm2525, nan, %v2534
        %v2536 = vand.u32 2147483647, %v2381
        %vm2537 = vcmp.le.f32.partialorder %v2536, 0.7853982
        %vm2538 = vcmp.lt.s32.totalorder %v2381, 0
        %v2539 = vand.u32 %v2381, 2139095040
        %v2540 = vshrl.u32 %v2539, 23
        %v2541 = vsub.s32 %v2540, 127
        %v2542 = vand.u32 2147483647, %v2381
        %v2543 = vand.u32 %v2542, 8388607
        %v2544 = vor.u32 %v2543, 8388608
        %v2545 = vsub.s32 0, %v2544
        %v2546 = vadd.s32 %v2541, 1
        %vm2547 = vcmp.gt.s32.totalorder %v2546, 0
        %v2548 = vsel %vm2547, %v2546, 0
        %v2549 = vshrl.u32 %v2548, 5
        %v2550 = vand.u32 %v2548, 31
        %v2551 = vsub.s32 32, %v2550
        %v2552 = vshrl.u32 683565275, %v2551
        %v2553 = vshll.u32 683565275, %v2550
        %v2554 = vshrl.u32 2475754826, %v2551
        %v2555 = vor.u32 %v2553, %v2554
        %v2556 = vshll.u32 2475754826, %v2550
        %v2557 = vshrl.u32 2131351028, %v2551
        %v2558 = vor.u32 %v2556, %v2557
        %v2559 = vshll.u32 2131351028, %v2550
        %v2560 = vshrl.u32 2102212464, %v2551
        %v2561 = vor.u32 %v2559, %v2560
        %v2562 = vshll.u32 2102212464, %v2550
        %v2563 = vshrl.u32 920167782, %v2551
        %v2564 = vor.u32 %v2562, %v2563
        %v2565 = vshll.u32 920167782, %v2550
        %v2566 = vshrl.u32 1326507024, %v2551
        %v2567 = vor.u32 %v2565, %v2566
        %vm2568 = vcmp.lt.s32.totalorder %v2549, 1
        %vm2569 = vcmp.lt.s32.totalorder %v2549, 2
        %vm2570 = vcmp.lt.s32.totalorder %v2549, 3
        %vm2571 = vcmp.lt.s32.totalorder %v2549, 4
        %v2572 = vsel %vm2568, %v2552, %v2555
        %v2573 = vsel %vm2571, %v2561, 2102212464
        %v2574 = vsel %vm2570, %v2558, %v2573
        %v2575 = vsel %vm2569, %v2572, %v2574
        %v2576 = vsel %vm2568, %v2555, %v2558
        %v2577 = vsel %vm2571, %v2564, 920167782
        %v2578 = vsel %vm2570, %v2561, %v2577
        %v2579 = vsel %vm2569, %v2576, %v2578
        %v2580 = vsel %vm2568, %v2558, %v2561
        %v2581 = vsel %vm2571, %v2567, 1326507024
        %v2582 = vsel %vm2570, %v2564, %v2581
        %v2583 = vsel %vm2569, %v2580, %v2582
        %v2584 = vshll.u32 %v2544, 8
        %v2585 = vand.u32 %v2584, 65535
        %v2586 = vshrl.u32 %v2584, 16
        %v2587 = vand.u32 %v2583, 65535
        %v2588 = vshrl.u32 %v2583, 16
        %v2589 = vmul.u32 %v2585, %v2587
        %v2590 = vmul.u32 %v2585, %v2588
        %v2591 = vmul.u32 %v2586, %v2587
        %v2592 = vmul.u32 %v2586, %v2588
        %v2593 = vshll.u32 %v2590, 16
        %v2594 = vshrl.u32 %v2590, 16
        %v2595 = vshll.u32 %v2591, 16
        %v2596 = vshrl.u32 %v2591, 16
        %vm2597 = vc.u32 %v2589, %v2593
        %v2598 = vsel %vm2597, 1, 0
        %v2599 = vadd.s32 %v2589, %v2593
        %v2600 = vadd.s32 %v2592, %v2598
        %vm2601 = vc.u32 %v2599, %v2595
        %v2602 = vsel %vm2601, 1, 0
        %v2603 = vadd.s32 %v2599, %v2595
        %v2604 = vadd.s32 %v2600, %v2602
        %v2605 = vadd.s32 %v2604, %v2594
        %v2606 = vadd.s32 %v2605, %v2596
        %v2607 = vand.u32 %v2584, 65535
        %v2608 = vshrl.u32 %v2584, 16
        %v2609 = vand.u32 %v2579, 65535
        %v2610 = vshrl.u32 %v2579, 16
        %v2611 = vmul.u32 %v2607, %v2609
        %v2612 = vmul.u32 %v2607, %v2610
        %v2613 = vmul.u32 %v2608, %v2609
        %v2614 = vmul.u32 %v2608, %v2610
        %v2615 = vshll.u32 %v2612, 16
        %v2616 = vshrl.u32 %v2612, 16
        %v2617 = vshll.u32 %v2613, 16
        %v2618 = vshrl.u32 %v2613, 16
        %vm2619 = vc.u32 %v2611, %v2615
        %v2620 = vsel %vm2619, 1, 0
        %v2621 = vadd.s32 %v2611, %v2615
        %v2622 = vadd.s32 %v2614, %v2620
        %vm2623 = vc.u32 %v2621, %v2617
        %v2624 = vsel %vm2623, 1, 0
        %v2625 = vadd.s32 %v2621, %v2617
        %v2626 = vadd.s32 %v2622, %v2624
        %v2627 = vadd.s32 %v2626, %v2616
        %v2628 = vadd.s32 %v2627, %v2618
        %v2629 = vmul.u32 %v2584, %v2575
        %v2630 = vadd.s32 %v2606, %v2625
        %vm2631 = vc.u32 %v2606, %v2625
        %v2632 = vadd.s32 %v2628, 1
        %v2633 = vsel %vm2631, %v2632, %v2628
        %v2634 = vadd.s32 %v2629, %v2633
        %v2635 = vadd.s32 %v2634, 536870912
        %v2636 = vshrl.u32 %v2635, 30
        %v2637 = vshll.u32 %v2636, 30
        %v2638 = vsub.s32 %v2634, %v2637
        %vm2639 = vcmp.lt.s32.totalorder %v2638, 0
        %v2640 = vsub.s32 0, %v2638
        %v2641 = vsel %vm2639, %v2640, %v2638
        %v2642 = vclz %v2641
        %v2643 = vsub.s32 %v2642, 2
        %vm2644 = vcmp.gt.s32.totalorder 0, %v2643
        %v2645 = vsel %vm2644, 0, %v2643
        %v2646 = vsub.s32 32, %v2645
        %v2647 = vshll.u32 %v2638, %v2645
        %v2648 = vshrl.u32 %v2630, %v2646
        %v2649 = vor.u32 %v2647, %v2648
        %v2650 = vsub.s32 4294967266, %v2645
        %v2651 = vadd.s32 %v2650, 127
        %v2652 = vshll.u32 %v2651, 23
        %v2653 = vor.u32 4788187, %v2652
        %v2654 = vand.u32 2147483647, %v2653
        %v2656 = vcvt.s32.f32 %v2649
        %v2657 = vmul.f32 %v2656, %v2654
        %v2658 = vxor.u32 %v2657, 2147483648
        %v2659 = vsel %vm2538, %v2658, %v2657
        %v2660 = vsub.s32 4, %v2636
        %v2661 = vsel %vm2538, %v2660, %v2636
        %v2662 = vsel %vm2537, %v2381, %v2659
        %v2663 = vsel %vm2537, 0, %v2661
        %v2664 = vmul.f32 %v2662, %v2662
        %v2665 = vmul.f32 %v2664, -0.001358992
        %v2666 = vadd.f32 %v2665, 0.041655596
        %v2667 = vmul.f32 %v2664, %v2666
        %v2668 = vadd.f32 %v2667, -0.4999988
        %v2669 = vmul.f32 %v2664, %v2668
        %v2670 = vadd.f32 1.0, %v2669
        %v2671 = vmul.f32 %v2662, %v2662
        %v2672 = vmul.f32 %v2671, -0.00019511016
        %v2673 = vadd.f32 %v2672, 0.008332121
        %v2674 = vmul.f32 %v2671, %v2673
        %v2675 = vadd.f32 %v2674, -0.16666654
        %v2676 = vmul.f32 %v2671, %v2675
        %v2677 = vadd.f32 %v2676, 1.0
        %v2678 = vmul.f32 %v2677, %v2662
        %vm2679 = vweird.f32 %v2381
        %v2680 = vand.u32 %v2663, 3
        %vm2681 = vcmp.lt.s32.totalorder %v2680, 2
        %vm2682 = vcmp.eq.s32.totalorder %v2680, 0
        %v2683 = vxor.u32 %v2678, 2147483648
        %v2684 = vsel %vm2682, %v2670, %v2683
        %vm2685 = vcmp.eq.s32.totalorder %v2680, 2
        %v2686 = vxor.u32 %v2670, 2147483648
        %v2687 = vsel %vm2685, %v2686, %v2678
        %v2688 = vsel %vm2681, %v2684, %v2687
        %v2689 = vsel %vm2679, nan, %v2688
        %v2690 = vand.u32 2147483647, %v2380
        %vm2691 = vcmp.le.f32.partialorder %v2690, 0.7853982
        %vm2692 = vcmp.lt.s32.totalorder %v2380, 0
        %v2693 = vand.u32 %v2380, 2139095040
        %v2694 = vshrl.u32 %v2693, 23
        %v2695 = vsub.s32 %v2694, 127
        %v2696 = vand.u32 2147483647, %v2380
        %v2697 = vand.u32 %v2696, 8388607
        %v2698 = vor.u32 %v2697, 8388608
        %v2699 = vsub.s32 0, %v2698
        %v2700 = vadd.s32 %v2695, 1
        %vm2701 = vcmp.gt.s32.totalorder %v2700, 0
        %v2702 = vsel %vm2701, %v2700, 0
        %v2703 = vshrl.u32 %v2702, 5
        %v2704 = vand.u32 %v2702, 31
        %v2705 = vsub.s32 32, %v2704
        %v2706 = vshrl.u32 683565275, %v2705
        %v2707 = vshll.u32 683565275, %v2704
        %v2708 = vshrl.u32 2475754826, %v2705
        %v2709 = vor.u32 %v2707, %v2708
        %v2710 = vshll.u32 2475754826, %v2704
        %v2711 = vshrl.u32 2131351028, %v2705
        %v2712 = vor.u32 %v2710, %v2711
        %v2713 = vshll.u32 2131351028, %v2704
        %v2714 = vshrl.u32 2102212464, %v2705
        %v2715 = vor.u32 %v2713, %v2714
        %v2716 = vshll.u32 2102212464, %v2704
        %v2717 = vshrl.u32 920167782, %v2705
        %v2718 = vor.u32 %v2716, %v2717
        %v2719 = vshll.u32 920167782, %v2704
        %v2720 = vshrl.u32 1326507024, %v2705
        %v2721 = vor.u32 %v2719, %v2720
        %vm2722 = vcmp.lt.s32.totalorder %v2703, 1
        %vm2723 = vcmp.lt.s32.totalorder %v2703, 2
        %vm2724 = vcmp.lt.s32.totalorder %v2703, 3
        %vm2725 = vcmp.lt.s32.totalorder %v2703, 4
        %v2726 = vsel %vm2722, %v2706, %v2709
        %v2727 = vsel %vm2725, %v2715, 2102212464
        %v2728 = vsel %vm2724, %v2712, %v2727
        %v2729 = vsel %vm2723, %v2726, %v2728
        %v2730 = vsel %vm2722, %v2709, %v2712
        %v2731 = vsel %vm2725, %v2718, 920167782
        %v2732 = vsel %vm2724, %v2715, %v2731
        %v2733 = vsel %vm2723, %v2730, %v2732
        %v2734 = vsel %vm2722, %v2712, %v2715
        %v2735 = vsel %vm2725, %v2721, 1326507024
        %v2736 = vsel %vm2724, %v2718, %v2735
        %v2737 = vsel %vm2723, %v2734, %v2736
        %v2738 = vshll.u32 %v2698, 8
        %v2739 = vand.u32 %v2738, 65535
        %v2740 = vshrl.u32 %v2738, 16
        %v2741 = vand.u32 %v2737, 65535
        %v2742 = vshrl.u32 %v2737, 16
        %v2743 = vmul.u32 %v2739, %v2741
        %v2744 = vmul.u32 %v2739, %v2742
        %v2745 = vmul.u32 %v2740, %v2741
        %v2746 = vmul.u32 %v2740, %v2742
        %v2747 = vshll.u32 %v2744, 16
        %v2748 = vshrl.u32 %v2744, 16
        %v2749 = vshll.u32 %v2745, 16
        %v2750 = vshrl.u32 %v2745, 16
        %vm2751 = vc.u32 %v2743, %v2747
        %v2752 = vsel %vm2751, 1, 0
        %v2753 = vadd.s32 %v2743, %v2747
        %v2754 = vadd.s32 %v2746, %v2752
        %vm2755 = vc.u32 %v2753, %v2749
        %v2756 = vsel %vm2755, 1, 0
        %v2757 = vadd.s32 %v2753, %v2749
        %v2758 = vadd.s32 %v2754, %v2756
        %v2759 = vadd.s32 %v2758, %v2748
        %v2760 = vadd.s32 %v2759, %v2750
        %v2761 = vand.u32 %v2738, 65535
        %v2762 = vshrl.u32 %v2738, 16
        %v2763 = vand.u32 %v2733, 65535
        %v2764 = vshrl.u32 %v2733, 16
        %v2765 = vmul.u32 %v2761, %v2763
        %v2766 = vmul.u32 %v2761, %v2764
        %v2767 = vmul.u32 %v2762, %v2763
        %v2768 = vmul.u32 %v2762, %v2764
        %v2769 = vshll.u32 %v2766, 16
        %v2770 = vshrl.u32 %v2766, 16
        %v2771 = vshll.u32 %v2767, 16
        %v2772 = vshrl.u32 %v2767, 16
        %vm2773 = vc.u32 %v2765, %v2769
        %v2774 = vsel %vm2773, 1, 0
        %v2775 = vadd.s32 %v2765, %v2769
        %v2776 = vadd.s32 %v2768, %v2774
        %vm2777 = vc.u32 %v2775, %v2771
        %v2778 = vsel %vm2777, 1, 0
        %v2779 = vadd.s32 %v2775, %v2771
        %v2780 = vadd.s32 %v2776, %v2778
        %v2781 = vadd.s32 %v2780, %v2770
        %v2782 = vadd.s32 %v2781, %v2772
        %v2783 = vmul.u32 %v2738, %v2729
        %v2784 = vadd.s32 %v2760, %v2779
        %vm2785 = vc.u32 %v2760, %v2779
        %v2786 = vadd.s32 %v2782, 1
        %v2787 = vsel %vm2785, %v2786, %v2782
        %v2788 = vadd.s32 %v2783, %v2787
        %v2789 = vadd.s32 %v2788, 536870912
        %v2790 = vshrl.u32 %v2789, 30
        %v2791 = vshll.u32 %v2790, 30
        %v2792 = vsub.s32 %v2788, %v2791
        %vm2793 = vcmp.lt.s32.totalorder %v2792, 0
        %v2794 = vsub.s32 0, %v2792
        %v2795 = vsel %vm2793, %v2794, %v2792
        %v2796 = vclz %v2795
        %v2797 = vsub.s32 %v2796, 2
        %vm2798 = vcmp.gt.s32.totalorder 0, %v2797
        %v2799 = vsel %vm2798, 0, %v2797
        %v2800 = vsub.s32 32, %v2799
        %v2801 = vshll.u32 %v2792, %v2799
        %v2802 = vshrl.u32 %v2784, %v2800
        %v2803 = vor.u32 %v2801, %v2802
        %v2804 = vsub.s32 4294967266, %v2799
        %v2805 = vadd.s32 %v2804, 127
        %v2806 = vshll.u32 %v2805, 23
        %v2807 = vor.u32 4788187, %v2806
        %v2808 = vand.u32 2147483647, %v2807
        %v2810 = vcvt.s32.f32 %v2803
        %v2811 = vmul.f32 %v2810, %v2808
        %v2812 = vxor.u32 %v2811, 2147483648
        %v2813 = vsel %vm2692, %v2812, %v2811
        %v2814 = vsub.s32 4, %v2790
        %v2815 = vsel %vm2692, %v2814, %v2790
        %v2816 = vsel %vm2691, %v2380, %v2813
        %v2817 = vsel %vm2691, 0, %v2815
        %v2818 = vmul.f32 %v2816, %v2816
        %v2819 = vmul.f32 %v2818, -0.001358992
        %v2820 = vadd.f32 %v2819, 0.041655596
        %v2821 = vmul.f32 %v2818, %v2820
        %v2822 = vadd.f32 %v2821, -0.4999988
        %v2823 = vmul.f32 %v2818, %v2822
        %v2824 = vadd.f32 1.0, %v2823
        %v2825 = vmul.f32 %v2816, %v2816
        %v2826 = vmul.f32 %v2825, -0.00019511016
        %v2827 = vadd.f32 %v2826, 0.008332121
        %v2828 = vmul.f32 %v2825, %v2827
        %v2829 = vadd.f32 %v2828, -0.16666654
        %v2830 = vmul.f32 %v2825, %v2829
        %v2831 = vadd.f32 %v2830, 1.0
        %v2832 = vmul.f32 %v2831, %v2816
        %vm2833 = vweird.f32 %v2380
        %v2834 = vadd.s32 %v2817, 3
        %v2835 = vand.u32 %v2834, 3
        %vm2836 = vcmp.lt.s32.totalorder %v2835, 2
        %vm2837 = vcmp.eq.s32.totalorder %v2835, 0
        %v2838 = vxor.u32 %v2832, 2147483648
        %v2839 = vsel %vm2837, %v2824, %v2838
        %vm2840 = vcmp.eq.s32.totalorder %v2835, 2
        %v2841 = vxor.u32 %v2824, 2147483648
        %v2842 = vsel %vm2840, %v2841, %v2832
        %v2843 = vsel %vm2836, %v2839, %v2842
        %v2844 = vsel %vm2833, nan, %v2843
        %v2845 = vand.u32 2147483647, %v2381
        %vm2846 = vcmp.le.f32.partialorder %v2845, 0.7853982
        %vm2847 = vcmp.lt.s32.totalorder %v2381, 0
        %v2848 = vand.u32 %v2381, 2139095040
        %v2849 = vshrl.u32 %v2848, 23
        %v2850 = vsub.s32 %v2849, 127
        %v2851 = vand.u32 2147483647, %v2381
        %v2852 = vand.u32 %v2851, 8388607
        %v2853 = vor.u32 %v2852, 8388608
        %v2854 = vsub.s32 0, %v2853
        %v2855 = vadd.s32 %v2850, 1
        %vm2856 = vcmp.gt.s32.totalorder %v2855, 0
        %v2857 = vsel %vm2856, %v2855, 0
        %v2858 = vshrl.u32 %v2857, 5
        %v2859 = vand.u32 %v2857, 31
        %v2860 = vsub.s32 32, %v2859
        %v2861 = vshrl.u32 683565275, %v2860
        %v2862 = vshll.u32 683565275, %v2859
        %v2863 = vshrl.u32 2475754826, %v2860
        %v2864 = vor.u32 %v2862, %v2863
        %v2865 = vshll.u32 2475754826, %v2859
        %v2866 = vshrl.u32 2131351028, %v2860
        %v2867 = vor.u32 %v2865, %v2866
        %v2868 = vshll.u32 2131351028, %v2859
        %v2869 = vshrl.u32 2102212464, %v2860
        %v2870 = vor.u32 %v2868, %v2869
        %v2871 = vshll.u32 2102212464, %v2859
        %v2872 = vshrl.u32 920167782, %v2860
        %v2873 = vor.u32 %v2871, %v2872
        %v2874 = vshll.u32 920167782, %v2859
        %v2875 = vshrl.u32 1326507024, %v2860
        %v2876 = vor.u32 %v2874, %v2875
        %vm2877 = vcmp.lt.s32.totalorder %v2858, 1
        %vm2878 = vcmp.lt.s32.totalorder %v2858, 2
        %vm2879 = vcmp.lt.s32.totalorder %v2858, 3
        %vm2880 = vcmp.lt.s32.totalorder %v2858, 4
        %v2881 = vsel %vm2877, %v2861, %v2864
        %v2882 = vsel %vm2880, %v2870, 2102212464
        %v2883 = vsel %vm2879, %v2867, %v2882
        %v2884 = vsel %vm2878, %v2881, %v2883
        %v2885 = vsel %vm2877, %v2864, %v2867
        %v2886 = vsel %vm2880, %v2873, 920167782
        %v2887 = vsel %vm2879, %v2870, %v2886
        %v2888 = vsel %vm2878, %v2885, %v2887
        %v2889 = vsel %vm2877, %v2867, %v2870
        %v2890 = vsel %vm2880, %v2876, 1326507024
        %v2891 = vsel %vm2879, %v2873, %v2890
        %v2892 = vsel %vm2878, %v2889, %v2891
        %v2893 = vshll.u32 %v2853, 8
        %v2894 = vand.u32 %v2893, 65535
        %v2895 = vshrl.u32 %v2893, 16
        %v2896 = vand.u32 %v2892, 65535
        %v2897 = vshrl.u32 %v2892, 16
        %v2898 = vmul.u32 %v2894, %v2896
        %v2899 = vmul.u32 %v2894, %v2897
        %v2900 = vmul.u32 %v2895, %v2896
        %v2901 = vmul.u32 %v2895, %v2897
        %v2902 = vshll.u32 %v2899, 16
        %v2903 = vshrl.u32 %v2899, 16
        %v2904 = vshll.u32 %v2900, 16
        %v2905 = vshrl.u32 %v2900, 16
        %vm2906 = vc.u32 %v2898, %v2902
        %v2907 = vsel %vm2906, 1, 0
        %v2908 = vadd.s32 %v2898, %v2902
        %v2909 = vadd.s32 %v2901, %v2907
        %vm2910 = vc.u32 %v2908, %v2904
        %v2911 = vsel %vm2910, 1, 0
        %v2912 = vadd.s32 %v2908, %v2904
        %v2913 = vadd.s32 %v2909, %v2911
        %v2914 = vadd.s32 %v2913, %v2903
        %v2915 = vadd.s32 %v2914, %v2905
        %v2916 = vand.u32 %v2893, 65535
        %v2917 = vshrl.u32 %v2893, 16
        %v2918 = vand.u32 %v2888, 65535
        %v2919 = vshrl.u32 %v2888, 16
        %v2920 = vmul.u32 %v2916, %v2918
        %v2921 = vmul.u32 %v2916, %v2919
        %v2922 = vmul.u32 %v2917, %v2918
        %v2923 = vmul.u32 %v2917, %v2919
        %v2924 = vshll.u32 %v2921, 16
        %v2925 = vshrl.u32 %v2921, 16
        %v2926 = vshll.u32 %v2922, 16
        %v2927 = vshrl.u32 %v2922, 16
        %vm2928 = vc.u32 %v2920, %v2924
        %v2929 = vsel %vm2928, 1, 0
        %v2930 = vadd.s32 %v2920, %v2924
        %v2931 = vadd.s32 %v2923, %v2929
        %vm2932 = vc.u32 %v2930, %v2926
        %v2933 = vsel %vm2932, 1, 0
        %v2934 = vadd.s32 %v2930, %v2926
        %v2935 = vadd.s32 %v2931, %v2933
        %v2936 = vadd.s32 %v2935, %v2925
        %v2937 = vadd.s32 %v2936, %v2927
        %v2938 = vmul.u32 %v2893, %v2884
        %v2939 = vadd.s32 %v2915, %v2934
        %vm2940 = vc.u32 %v2915, %v2934
        %v2941 = vadd.s32 %v2937, 1
        %v2942 = vsel %vm2940, %v2941, %v2937
        %v2943 = vadd.s32 %v2938, %v2942
        %v2944 = vadd.s32 %v2943, 536870912
        %v2945 = vshrl.u32 %v2944, 30
        %v2946 = vshll.u32 %v2945, 30
        %v2947 = vsub.s32 %v2943, %v2946
        %vm2948 = vcmp.lt.s32.totalorder %v2947, 0
        %v2949 = vsub.s32 0, %v2947
        %v2950 = vsel %vm2948, %v2949, %v2947
        %v2951 = vclz %v2950
        %v2952 = vsub.s32 %v2951, 2
        %vm2953 = vcmp.gt.s32.totalorder 0, %v2952
        %v2954 = vsel %vm2953, 0, %v2952
        %v2955 = vsub.s32 32, %v2954
        %v2956 = vshll.u32 %v2947, %v2954
        %v2957 = vshrl.u32 %v2939, %v2955
        %v2958 = vor.u32 %v2956, %v2957
        %v2959 = vsub.s32 4294967266, %v2954
        %v2960 = vadd.s32 %v2959, 127
        %v2961 = vshll.u32 %v2960, 23
        %v2962 = vor.u32 4788187, %v2961
        %v2963 = vand.u32 2147483647, %v2962
        %v2965 = vcvt.s32.f32 %v2958
        %v2966 = vmul.f32 %v2965, %v2963
        %v2967 = vxor.u32 %v2966, 2147483648
        %v2968 = vsel %vm2847, %v2967, %v2966
        %v2969 = vsub.s32 4, %v2945
        %v2970 = vsel %vm2847, %v2969, %v2945
        %v2971 = vsel %vm2846, %v2381, %v2968
        %v2972 = vsel %vm2846, 0, %v2970
        %v2973 = vmul.f32 %v2971, %v2971
        %v2974 = vmul.f32 %v2973, -0.001358992
        %v2975 = vadd.f32 %v2974, 0.041655596
        %v2976 = vmul.f32 %v2973, %v2975
        %v2977 = vadd.f32 %v2976, -0.4999988
        %v2978 = vmul.f32 %v2973, %v2977
        %v2979 = vadd.f32 1.0, %v2978
        %v2980 = vmul.f32 %v2971, %v2971
        %v2981 = vmul.f32 %v2980, -0.00019511016
        %v2982 = vadd.f32 %v2981, 0.008332121
        %v2983 = vmul.f32 %v2980, %v2982
        %v2984 = vadd.f32 %v2983, -0.16666654
        %v2985 = vmul.f32 %v2980, %v2984
        %v2986 = vadd.f32 %v2985, 1.0
        %v2987 = vmul.f32 %v2986, %v2971
        %vm2988 = vweird.f32 %v2381
        %v2989 = vadd.s32 %v2972, 3
        %v2990 = vand.u32 %v2989, 3
        %vm2991 = vcmp.lt.s32.totalorder %v2990, 2
        %vm2992 = vcmp.eq.s32.totalorder %v2990, 0
        %v2993 = vxor.u32 %v2987, 2147483648
        %v2994 = vsel %vm2992, %v2979, %v2993
        %vm2995 = vcmp.eq.s32.totalorder %v2990, 2
        %v2996 = vxor.u32 %v2979, 2147483648
        %v2997 = vsel %vm2995, %v2996, %v2987
        %v2998 = vsel %vm2991, %v2994, %v2997
        %v2999 = vsel %vm2988, nan, %v2998
        %v3002 = vrot.slane %v2689, 7
        %v3003 = vsel %vm1148, %v3002, %v2535
        %v3005 = vmul.f32 %v1137, %v3003
        %v3006 = vmul.f32 %v1138, %v3003
        %v3007 = vmul.f32 %v1139, %v3003
        %v3008 = vmul.f32 %v1140, %v3003
        %v3011 = vrot.slane %v2999, 7
        %v3012 = vsel %vm1148, %v3011, %v2844
        %v3014 = vmul.f32 %v1159, %v3012
        %v3015 = vmul.f32 %v1160, %v3012
        %v3016 = vmul.f32 %v1161, %v3012
        %v3017 = vmul.f32 %v1162, %v3012
        %v3018 = vsub.f32 %v3005, %v3014
        %v3019 = vsub.f32 %v3006, %v3015
        %v3020 = vsub.f32 %v3007, %v3016
        %v3021 = vsub.f32 %v3008, %v3017
        %3026 = vrot.lane.b32.xlu0 %v3018, 127
        %v3027 = vpop.permute.xlu0 %3026
        %3028 = vrot.lane.b32.xlu0 %v3019, 127
        %v3029 = vpop.permute.xlu0 %3028
        %3030 = vrot.lane.b32.xlu0 %v3020, 127
        %v3031 = vpop.permute.xlu0 %3030
        %3032 = vrot.lane.b32.xlu0 %v3021, 127
        %v3033 = vpop.permute.xlu0 %3032
        %v3038 = vmul.f32 %v3018, %v3027
        %v3039 = vmul.f32 %v3019, %v3029
        %v3040 = vmul.f32 %v3020, %v3031
        %v3041 = vmul.f32 %v3021, %v3033
        %3046 = vrot.lane.b32.xlu0 %v3038, 127
        %v3047 = vpop.permute.xlu0 %3046
        %3048 = vrot.lane.b32.xlu0 %v3039, 127
        %v3049 = vpop.permute.xlu0 %3048
        %3050 = vrot.lane.b32.xlu0 %v3040, 127
        %v3051 = vpop.permute.xlu0 %3050
        %3052 = vrot.lane.b32.xlu0 %v3041, 127
        %v3053 = vpop.permute.xlu0 %3052
        %v3058 = vmul.f32 %v3018, %v3047
        %v3059 = vmul.f32 %v3019, %v3049
        %v3060 = vmul.f32 %v3020, %v3051
        %v3061 = vmul.f32 %v3021, %v3053
        %3062 = vrot.lane.b32.xlu0 %v3018, 126
        %v3063 = vpop.permute.xlu0 %3062
        %3064 = vrot.lane.b32.xlu0 %v3019, 126
        %v3065 = vpop.permute.xlu0 %3064
        %3066 = vrot.lane.b32.xlu0 %v3020, 126
        %v3067 = vpop.permute.xlu0 %3066
        %3068 = vrot.lane.b32.xlu0 %v3021, 126
        %v3069 = vpop.permute.xlu0 %3068
        %v3074 = vmul.f32 %v3038, %v3063
        %v3075 = vmul.f32 %v3039, %v3065
        %v3076 = vmul.f32 %v3040, %v3067
        %v3077 = vmul.f32 %v3041, %v3069
        %3078 = vrot.lane.b32.xlu0 %v3038, 126
        %v3079 = vpop.permute.xlu0 %3078
        %3080 = vrot.lane.b32.xlu0 %v3039, 126
        %v3081 = vpop.permute.xlu0 %3080
        %3082 = vrot.lane.b32.xlu0 %v3040, 126
        %v3083 = vpop.permute.xlu0 %3082
        %3084 = vrot.lane.b32.xlu0 %v3041, 126
        %v3085 = vpop.permute.xlu0 %3084
        %v3090 = vmul.f32 %v3038, %v3079
        %v3091 = vmul.f32 %v3039, %v3081
        %v3092 = vmul.f32 %v3040, %v3083
        %v3093 = vmul.f32 %v3041, %v3085
        %3095 = vset.pattern.permute.xlu0 1
        %3096 = vperm.xlu0 %3095, %v3058
        %v3097 = vpop.permute.xlu0 %3096
        %3100 = vset.pattern.permute.xlu0 1
        %3101 = vperm.xlu0 %3100, %v3059
        %v3102 = vpop.permute.xlu0 %3101
        %3105 = vset.pattern.permute.xlu0 1
        %3106 = vperm.xlu0 %3105, %v3060
        %v3107 = vpop.permute.xlu0 %3106
        %3110 = vset.pattern.permute.xlu0 1
        %3111 = vperm.xlu0 %3110, %v3061
        %v3112 = vpop.permute.xlu0 %3111
        %v3114 = vmul.f32 %v3097, %v1272
        %v3115 = vmul.f32 %v3102, %v1272
        %v3116 = vmul.f32 %v3107, %v1272
        %v3117 = vmul.f32 %v3112, %v1272
        %3118 = vset.pattern.permute.xlu0 0
        %3119 = vperm.xlu0 %3118, %v3038
        %v3120 = vpop.permute.xlu0 %3119
        %3122 = vset.pattern.permute.xlu0 0
        %3123 = vperm.xlu0 %3122, %v3039
        %v3124 = vpop.permute.xlu0 %3123
        %3126 = vset.pattern.permute.xlu0 0
        %3127 = vperm.xlu0 %3126, %v3040
        %v3128 = vpop.permute.xlu0 %3127
        %3130 = vset.pattern.permute.xlu0 0
        %3131 = vperm.xlu0 %3130, %v3041
        %v3132 = vpop.permute.xlu0 %3131
        %v3134 = vmul.f32 %v3120, %v1293
        %v3135 = vmul.f32 %v3124, %v1293
        %v3136 = vmul.f32 %v3128, %v1293
        %v3137 = vmul.f32 %v3132, %v1293
        %v3138 = vadd.f32 %v3114, %v3134
        %v3139 = vadd.f32 %v3115, %v3135
        %v3140 = vadd.f32 %v3116, %v3136
        %v3141 = vadd.f32 %v3117, %v3137
        %3143 = vset.pattern.permute.xlu0 0
        %3144 = vperm.xlu0 %3143, %v3074
        %v3145 = vpop.permute.xlu0 %3144
        %3148 = vset.pattern.permute.xlu0 0
        %3149 = vperm.xlu0 %3148, %v3075
        %v3150 = vpop.permute.xlu0 %3149
        %3153 = vset.pattern.permute.xlu0 0
        %3154 = vperm.xlu0 %3153, %v3076
        %v3155 = vpop.permute.xlu0 %3154
        %3158 = vset.pattern.permute.xlu0 0
        %3159 = vperm.xlu0 %3158, %v3077
        %v3160 = vpop.permute.xlu0 %3159
        %v3162 = vmul.f32 %v3145, %v1322
        %v3163 = vmul.f32 %v3150, %v1322
        %v3164 = vmul.f32 %v3155, %v1322
        %v3165 = vmul.f32 %v3160, %v1322
        %v3166 = vadd.f32 %v3138, %v3162
        %v3167 = vadd.f32 %v3139, %v3163
        %v3168 = vadd.f32 %v3140, %v3164
        %v3169 = vadd.f32 %v3141, %v3165
        %3171 = vset.pattern.permute.xlu0 0
        %3172 = vperm.xlu0 %3171, %v3090
        %v3173 = vpop.permute.xlu0 %3172
        %3176 = vset.pattern.permute.xlu0 0
        %3177 = vperm.xlu0 %3176, %v3091
        %v3178 = vpop.permute.xlu0 %3177
        %3181 = vset.pattern.permute.xlu0 0
        %3182 = vperm.xlu0 %3181, %v3092
        %v3183 = vpop.permute.xlu0 %3182
        %3186 = vset.pattern.permute.xlu0 0
        %3187 = vperm.xlu0 %3186, %v3093
        %v3188 = vpop.permute.xlu0 %3187
        %v3190 = vmul.f32 %v3173, %v1351
        %v3191 = vmul.f32 %v3178, %v1351
        %v3192 = vmul.f32 %v3183, %v1351
        %v3193 = vmul.f32 %v3188, %v1351
        %v3194 = vadd.f32 %v3166, %v3190
        %v3195 = vadd.f32 %v3167, %v3191
        %v3196 = vadd.f32 %v3168, %v3192
        %v3197 = vadd.f32 %v3169, %v3193
        %v3198 = vadd.f32 %v3194, %v1361
        %v3199 = vadd.f32 %v3195, %v1361
        %v3200 = vadd.f32 %v3196, %v1361
        %v3201 = vadd.f32 %v3197, %v1361
        %v3202 = vxor.u32 %v3198, 2147483648
        %v3203 = vxor.u32 %v3199, 2147483648
        %v3204 = vxor.u32 %v3200, 2147483648
        %v3205 = vmul.f32 %v3202, 1.442695
        %v3206 = vpow.pop %v3205
        %v3207 = vmul.f32 %v3203, 1.442695
        %v3208 = vpow.pop %v3207
        %v3209 = vmul.f32 %v3204, 1.442695
        %v3210 = vpow.pop %v3209
        %v3211 = vadd.f32 %v3206, 1.0
        %v3212 = vadd.f32 %v3208, 1.0
        %v3213 = vadd.f32 %v3210, 1.0
        %v3214 = vrcp.pop %v3211
        %v3215 = vmul.f32 %v3211, %v3214
        %v3216 = vsub.f32 1.0, %v3215
        %v3217 = vmul.f32 %v3214, %v3216
        %v3218 = vadd.f32 %v3214, %v3217
        %vm3219 = vweird.f32 %v3211
        %vm3220 = vweird.f32 %v3214
        %vm3221 = vmor %vm3219, %vm3220
        %v3222 = vsel %vm3221, %v3214, %v3218
        %v3223 = vand.u32 2147483647, %v3211
        %vm3224 = vcmp.eq.f32.partialorder %v3223, 8.507059e+37
        %v3225 = vand.u32 %v3211, 2147483648
        %v3226 = vor.u32 1.1754944e-38, %v3225
        %v3227 = vsel %vm3224, %v3226, %v3222
        %v3228 = vmul.f32 1.0, %v3227
        %v3229 = vrcp.pop %v3212
        %v3230 = vmul.f32 %v3212, %v3229
        %v3231 = vsub.f32 1.0, %v3230
        %v3232 = vmul.f32 %v3229, %v3231
        %v3233 = vadd.f32 %v3229, %v3232
        %vm3234 = vweird.f32 %v3212
        %vm3235 = vweird.f32 %v3229
        %vm3236 = vmor %vm3234, %vm3235
        %v3237 = vsel %vm3236, %v3229, %v3233
        %v3238 = vand.u32 2147483647, %v3212
        %vm3239 = vcmp.eq.f32.partialorder %v3238, 8.507059e+37
        %v3240 = vand.u32 %v3212, 2147483648
        %v3241 = vor.u32 1.1754944e-38, %v3240
        %v3242 = vsel %vm3239, %v3241, %v3237
        %v3243 = vmul.f32 1.0, %v3242
        %v3244 = vrcp.pop %v3213
        %v3245 = vmul.f32 %v3213, %v3244
        %v3246 = vsub.f32 1.0, %v3245
        %v3247 = vmul.f32 %v3244, %v3246
        %v3248 = vadd.f32 %v3244, %v3247
        %vm3249 = vweird.f32 %v3213
        %vm3250 = vweird.f32 %v3244
        %vm3251 = vmor %vm3249, %vm3250
        %v3252 = vsel %vm3251, %v3244, %v3248
        %v3253 = vand.u32 2147483647, %v3213
        %vm3254 = vcmp.eq.f32.partialorder %v3253, 8.507059e+37
        %v3255 = vand.u32 %v3213, 2147483648
        %v3256 = vor.u32 1.1754944e-38, %v3255
        %v3257 = vsel %vm3254, %v3256, %v3252
        %v3258 = vmul.f32 1.0, %v3257
        %v3259 = vtanh.pop %v3201
        %v3260 = vmul.f32 %v3228, %v2343
        %v3261 = vmul.f32 %v3243, %v3259
        %v3262 = vadd.f32 %v3260, %v3261
        %v3263 = vtanh.pop %v3262
        %v3264 = vmul.f32 %v3258, %v3263
        %3266 = vrot.lane.b32.xlu0 %v3264, 64
        %v3267 = vpop.permute.xlu0 %3266
        %vm3269 = vcmask 779776
        %3270 = vst.msk [vmem:[%s443] sm:$0x3] %vm3269, %v3267
        %v3271 = vld [vmem:[%s405 + $0x3] sm:$0x1]
        %v3272 = vld [vmem:[%s405 + $0xb] sm:$0x1]
        %v3273 = vsel %vm485, %v3264, 0
        %3275 = vmatpush.msra.mxu0 0.0
        %3276 = vmatpush.msra.mxu0 0.0
        %3277 = vmatpush.msra.mxu0 0.0
        %3278 = vmatpush.msra.mxu0 0.0
        %3279 = vmatpush.msra.mxu0 0.0
        %3280 = vmatpush.msra.mxu0 0.0
        %3281 = vmatpush.msra.mxu0 0.0
        %3282 = vmatpush.msra.mxu0 0.0
        %3283 = vmatpush.msra.mxu0 0.0
        %3284 = vmatpush.msra.mxu0 0.0
        %3285 = vmatpush.msra.mxu0 0.0
        %3286 = vmatpush.msra.mxu0 0.0
        %3287 = vmatpush.msra.mxu0 %v470
        %3288 = vmatpush.msra.mxu0 %v469
        %3289 = vmatpush.msra.mxu0 %v468
        %3290 = vmatpush.msra.mxu0 %v467
        %3291 = vmatmul.f32.gmra.mxu0 %v3273
        %v3292 = vpop.f32.mrf.mxu0
        %v3293 = vadd.f32 0.0, %v3292
        %3294 = vdwg.mxu0
        %v3296 = vrot.slane %v3293, 1
        %v3299 = vadd.f32 %v3271, %v3293
        %v3300 = vadd.f32 %v3272, %v3296
        %v3301 = vand.u32 2147483647, %v3299
        %vm3302 = vcmp.le.f32.partialorder %v3301, 0.7853982
        %vm3303 = vcmp.lt.s32.totalorder %v3299, 0
        %v3304 = vand.u32 %v3299, 2139095040
        %v3305 = vshrl.u32 %v3304, 23
        %v3306 = vsub.s32 %v3305, 127
        %v3307 = vand.u32 2147483647, %v3299
        %v3308 = vand.u32 %v3307, 8388607
        %v3309 = vor.u32 %v3308, 8388608
        %v3310 = vsub.s32 0, %v3309
        %v3311 = vadd.s32 %v3306, 1
        %vm3312 = vcmp.gt.s32.totalorder %v3311, 0
        %v3313 = vsel %vm3312, %v3311, 0
        %v3314 = vshrl.u32 %v3313, 5
        %v3315 = vand.u32 %v3313, 31
        %v3316 = vsub.s32 32, %v3315
        %v3317 = vshrl.u32 683565275, %v3316
        %v3318 = vshll.u32 683565275, %v3315
        %v3319 = vshrl.u32 2475754826, %v3316
        %v3320 = vor.u32 %v3318, %v3319
        %v3321 = vshll.u32 2475754826, %v3315
        %v3322 = vshrl.u32 2131351028, %v3316
        %v3323 = vor.u32 %v3321, %v3322
        %v3324 = vshll.u32 2131351028, %v3315
        %v3325 = vshrl.u32 2102212464, %v3316
        %v3326 = vor.u32 %v3324, %v3325
        %v3327 = vshll.u32 2102212464, %v3315
        %v3328 = vshrl.u32 920167782, %v3316
        %v3329 = vor.u32 %v3327, %v3328
        %v3330 = vshll.u32 920167782, %v3315
        %v3331 = vshrl.u32 1326507024, %v3316
        %v3332 = vor.u32 %v3330, %v3331
        %vm3333 = vcmp.lt.s32.totalorder %v3314, 1
        %vm3334 = vcmp.lt.s32.totalorder %v3314, 2
        %vm3335 = vcmp.lt.s32.totalorder %v3314, 3
        %vm3336 = vcmp.lt.s32.totalorder %v3314, 4
        %v3337 = vsel %vm3333, %v3317, %v3320
        %v3338 = vsel %vm3336, %v3326, 2102212464
        %v3339 = vsel %vm3335, %v3323, %v3338
        %v3340 = vsel %vm3334, %v3337, %v3339
        %v3341 = vsel %vm3333, %v3320, %v3323
        %v3342 = vsel %vm3336, %v3329, 920167782
        %v3343 = vsel %vm3335, %v3326, %v3342
        %v3344 = vsel %vm3334, %v3341, %v3343
        %v3345 = vsel %vm3333, %v3323, %v3326
        %v3346 = vsel %vm3336, %v3332, 1326507024
        %v3347 = vsel %vm3335, %v3329, %v3346
        %v3348 = vsel %vm3334, %v3345, %v3347
        %v3349 = vshll.u32 %v3309, 8
        %v3350 = vand.u32 %v3349, 65535
        %v3351 = vshrl.u32 %v3349, 16
        %v3352 = vand.u32 %v3348, 65535
        %v3353 = vshrl.u32 %v3348, 16
        %v3354 = vmul.u32 %v3350, %v3352
        %v3355 = vmul.u32 %v3350, %v3353
        %v3356 = vmul.u32 %v3351, %v3352
        %v3357 = vmul.u32 %v3351, %v3353
        %v3358 = vshll.u32 %v3355, 16
        %v3359 = vshrl.u32 %v3355, 16
        %v3360 = vshll.u32 %v3356, 16
        %v3361 = vshrl.u32 %v3356, 16
        %vm3362 = vc.u32 %v3354, %v3358
        %v3363 = vsel %vm3362, 1, 0
        %v3364 = vadd.s32 %v3354, %v3358
        %v3365 = vadd.s32 %v3357, %v3363
        %vm3366 = vc.u32 %v3364, %v3360
        %v3367 = vsel %vm3366, 1, 0
        %v3368 = vadd.s32 %v3364, %v3360
        %v3369 = vadd.s32 %v3365, %v3367
        %v3370 = vadd.s32 %v3369, %v3359
        %v3371 = vadd.s32 %v3370, %v3361
        %v3372 = vand.u32 %v3349, 65535
        %v3373 = vshrl.u32 %v3349, 16
        %v3374 = vand.u32 %v3344, 65535
        %v3375 = vshrl.u32 %v3344, 16
        %v3376 = vmul.u32 %v3372, %v3374
        %v3377 = vmul.u32 %v3372, %v3375
        %v3378 = vmul.u32 %v3373, %v3374
        %v3379 = vmul.u32 %v3373, %v3375
        %v3380 = vshll.u32 %v3377, 16
        %v3381 = vshrl.u32 %v3377, 16
        %v3382 = vshll.u32 %v3378, 16
        %v3383 = vshrl.u32 %v3378, 16
        %vm3384 = vc.u32 %v3376, %v3380
        %v3385 = vsel %vm3384, 1, 0
        %v3386 = vadd.s32 %v3376, %v3380
        %v3387 = vadd.s32 %v3379, %v3385
        %vm3388 = vc.u32 %v3386, %v3382
        %v3389 = vsel %vm3388, 1, 0
        %v3390 = vadd.s32 %v3386, %v3382
        %v3391 = vadd.s32 %v3387, %v3389
        %v3392 = vadd.s32 %v3391, %v3381
        %v3393 = vadd.s32 %v3392, %v3383
        %v3394 = vmul.u32 %v3349, %v3340
        %v3395 = vadd.s32 %v3371, %v3390
        %vm3396 = vc.u32 %v3371, %v3390
        %v3397 = vadd.s32 %v3393, 1
        %v3398 = vsel %vm3396, %v3397, %v3393
        %v3399 = vadd.s32 %v3394, %v3398
        %v3400 = vadd.s32 %v3399, 536870912
        %v3401 = vshrl.u32 %v3400, 30
        %v3402 = vshll.u32 %v3401, 30
        %v3403 = vsub.s32 %v3399, %v3402
        %vm3404 = vcmp.lt.s32.totalorder %v3403, 0
        %v3405 = vsub.s32 0, %v3403
        %v3406 = vsel %vm3404, %v3405, %v3403
        %v3407 = vclz %v3406
        %v3408 = vsub.s32 %v3407, 2
        %vm3409 = vcmp.gt.s32.totalorder 0, %v3408
        %v3410 = vsel %vm3409, 0, %v3408
        %v3411 = vsub.s32 32, %v3410
        %v3412 = vshll.u32 %v3403, %v3410
        %v3413 = vshrl.u32 %v3395, %v3411
        %v3414 = vor.u32 %v3412, %v3413
        %v3415 = vsub.s32 4294967266, %v3410
        %v3416 = vadd.s32 %v3415, 127
        %v3417 = vshll.u32 %v3416, 23
        %v3418 = vor.u32 4788187, %v3417
        %v3419 = vand.u32 2147483647, %v3418
        %v3421 = vcvt.s32.f32 %v3414
        %v3422 = vmul.f32 %v3421, %v3419
        %v3423 = vxor.u32 %v3422, 2147483648
        %v3424 = vsel %vm3303, %v3423, %v3422
        %v3425 = vsub.s32 4, %v3401
        %v3426 = vsel %vm3303, %v3425, %v3401
        %v3427 = vsel %vm3302, %v3299, %v3424
        %v3428 = vsel %vm3302, 0, %v3426
        %v3429 = vmul.f32 %v3427, %v3427
        %v3430 = vmul.f32 %v3429, -0.001358992
        %v3431 = vadd.f32 %v3430, 0.041655596
        %v3432 = vmul.f32 %v3429, %v3431
        %v3433 = vadd.f32 %v3432, -0.4999988
        %v3434 = vmul.f32 %v3429, %v3433
        %v3435 = vadd.f32 1.0, %v3434
        %v3436 = vmul.f32 %v3427, %v3427
        %v3437 = vmul.f32 %v3436, -0.00019511016
        %v3438 = vadd.f32 %v3437, 0.008332121
        %v3439 = vmul.f32 %v3436, %v3438
        %v3440 = vadd.f32 %v3439, -0.16666654
        %v3441 = vmul.f32 %v3436, %v3440
        %v3442 = vadd.f32 %v3441, 1.0
        %v3443 = vmul.f32 %v3442, %v3427
        %vm3444 = vweird.f32 %v3299
        %v3445 = vand.u32 %v3428, 3
        %vm3446 = vcmp.lt.s32.totalorder %v3445, 2
        %vm3447 = vcmp.eq.s32.totalorder %v3445, 0
        %v3448 = vxor.u32 %v3443, 2147483648
        %v3449 = vsel %vm3447, %v3435, %v3448
        %vm3450 = vcmp.eq.s32.totalorder %v3445, 2
        %v3451 = vxor.u32 %v3435, 2147483648
        %v3452 = vsel %vm3450, %v3451, %v3443
        %v3453 = vsel %vm3446, %v3449, %v3452
        %v3454 = vsel %vm3444, nan, %v3453
        %v3455 = vand.u32 2147483647, %v3300
        %vm3456 = vcmp.le.f32.partialorder %v3455, 0.7853982
        %vm3457 = vcmp.lt.s32.totalorder %v3300, 0
        %v3458 = vand.u32 %v3300, 2139095040
        %v3459 = vshrl.u32 %v3458, 23
        %v3460 = vsub.s32 %v3459, 127
        %v3461 = vand.u32 2147483647, %v3300
        %v3462 = vand.u32 %v3461, 8388607
        %v3463 = vor.u32 %v3462, 8388608
        %v3464 = vsub.s32 0, %v3463
        %v3465 = vadd.s32 %v3460, 1
        %vm3466 = vcmp.gt.s32.totalorder %v3465, 0
        %v3467 = vsel %vm3466, %v3465, 0
        %v3468 = vshrl.u32 %v3467, 5
        %v3469 = vand.u32 %v3467, 31
        %v3470 = vsub.s32 32, %v3469
        %v3471 = vshrl.u32 683565275, %v3470
        %v3472 = vshll.u32 683565275, %v3469
        %v3473 = vshrl.u32 2475754826, %v3470
        %v3474 = vor.u32 %v3472, %v3473
        %v3475 = vshll.u32 2475754826, %v3469
        %v3476 = vshrl.u32 2131351028, %v3470
        %v3477 = vor.u32 %v3475, %v3476
        %v3478 = vshll.u32 2131351028, %v3469
        %v3479 = vshrl.u32 2102212464, %v3470
        %v3480 = vor.u32 %v3478, %v3479
        %v3481 = vshll.u32 2102212464, %v3469
        %v3482 = vshrl.u32 920167782, %v3470
        %v3483 = vor.u32 %v3481, %v3482
        %v3484 = vshll.u32 920167782, %v3469
        %v3485 = vshrl.u32 1326507024, %v3470
        %v3486 = vor.u32 %v3484, %v3485
        %vm3487 = vcmp.lt.s32.totalorder %v3468, 1
        %vm3488 = vcmp.lt.s32.totalorder %v3468, 2
        %vm3489 = vcmp.lt.s32.totalorder %v3468, 3
        %vm3490 = vcmp.lt.s32.totalorder %v3468, 4
        %v3491 = vsel %vm3487, %v3471, %v3474
        %v3492 = vsel %vm3490, %v3480, 2102212464
        %v3493 = vsel %vm3489, %v3477, %v3492
        %v3494 = vsel %vm3488, %v3491, %v3493
        %v3495 = vsel %vm3487, %v3474, %v3477
        %v3496 = vsel %vm3490, %v3483, 920167782
        %v3497 = vsel %vm3489, %v3480, %v3496
        %v3498 = vsel %vm3488, %v3495, %v3497
        %v3499 = vsel %vm3487, %v3477, %v3480
        %v3500 = vsel %vm3490, %v3486, 1326507024
        %v3501 = vsel %vm3489, %v3483, %v3500
        %v3502 = vsel %vm3488, %v3499, %v3501
        %v3503 = vshll.u32 %v3463, 8
        %v3504 = vand.u32 %v3503, 65535
        %v3505 = vshrl.u32 %v3503, 16
        %v3506 = vand.u32 %v3502, 65535
        %v3507 = vshrl.u32 %v3502, 16
        %v3508 = vmul.u32 %v3504, %v3506
        %v3509 = vmul.u32 %v3504, %v3507
        %v3510 = vmul.u32 %v3505, %v3506
        %v3511 = vmul.u32 %v3505, %v3507
        %v3512 = vshll.u32 %v3509, 16
        %v3513 = vshrl.u32 %v3509, 16
        %v3514 = vshll.u32 %v3510, 16
        %v3515 = vshrl.u32 %v3510, 16
        %vm3516 = vc.u32 %v3508, %v3512
        %v3517 = vsel %vm3516, 1, 0
        %v3518 = vadd.s32 %v3508, %v3512
        %v3519 = vadd.s32 %v3511, %v3517
        %vm3520 = vc.u32 %v3518, %v3514
        %v3521 = vsel %vm3520, 1, 0
        %v3522 = vadd.s32 %v3518, %v3514
        %v3523 = vadd.s32 %v3519, %v3521
        %v3524 = vadd.s32 %v3523, %v3513
        %v3525 = vadd.s32 %v3524, %v3515
        %v3526 = vand.u32 %v3503, 65535
        %v3527 = vshrl.u32 %v3503, 16
        %v3528 = vand.u32 %v3498, 65535
        %v3529 = vshrl.u32 %v3498, 16
        %v3530 = vmul.u32 %v3526, %v3528
        %v3531 = vmul.u32 %v3526, %v3529
        %v3532 = vmul.u32 %v3527, %v3528
        %v3533 = vmul.u32 %v3527, %v3529
        %v3534 = vshll.u32 %v3531, 16
        %v3535 = vshrl.u32 %v3531, 16
        %v3536 = vshll.u32 %v3532, 16
        %v3537 = vshrl.u32 %v3532, 16
        %vm3538 = vc.u32 %v3530, %v3534
        %v3539 = vsel %vm3538, 1, 0
        %v3540 = vadd.s32 %v3530, %v3534
        %v3541 = vadd.s32 %v3533, %v3539
        %vm3542 = vc.u32 %v3540, %v3536
        %v3543 = vsel %vm3542, 1, 0
        %v3544 = vadd.s32 %v3540, %v3536
        %v3545 = vadd.s32 %v3541, %v3543
        %v3546 = vadd.s32 %v3545, %v3535
        %v3547 = vadd.s32 %v3546, %v3537
        %v3548 = vmul.u32 %v3503, %v3494
        %v3549 = vadd.s32 %v3525, %v3544
        %vm3550 = vc.u32 %v3525, %v3544
        %v3551 = vadd.s32 %v3547, 1
        %v3552 = vsel %vm3550, %v3551, %v3547
        %v3553 = vadd.s32 %v3548, %v3552
        %v3554 = vadd.s32 %v3553, 536870912
        %v3555 = vshrl.u32 %v3554, 30
        %v3556 = vshll.u32 %v3555, 30
        %v3557 = vsub.s32 %v3553, %v3556
        %vm3558 = vcmp.lt.s32.totalorder %v3557, 0
        %v3559 = vsub.s32 0, %v3557
        %v3560 = vsel %vm3558, %v3559, %v3557
        %v3561 = vclz %v3560
        %v3562 = vsub.s32 %v3561, 2
        %vm3563 = vcmp.gt.s32.totalorder 0, %v3562
        %v3564 = vsel %vm3563, 0, %v3562
        %v3565 = vsub.s32 32, %v3564
        %v3566 = vshll.u32 %v3557, %v3564
        %v3567 = vshrl.u32 %v3549, %v3565
        %v3568 = vor.u32 %v3566, %v3567
        %v3569 = vsub.s32 4294967266, %v3564
        %v3570 = vadd.s32 %v3569, 127
        %v3571 = vshll.u32 %v3570, 23
        %v3572 = vor.u32 4788187, %v3571
        %v3573 = vand.u32 2147483647, %v3572
        %v3575 = vcvt.s32.f32 %v3568
        %v3576 = vmul.f32 %v3575, %v3573
        %v3577 = vxor.u32 %v3576, 2147483648
        %v3578 = vsel %vm3457, %v3577, %v3576
        %v3579 = vsub.s32 4, %v3555
        %v3580 = vsel %vm3457, %v3579, %v3555
        %v3581 = vsel %vm3456, %v3300, %v3578
        %v3582 = vsel %vm3456, 0, %v3580
        %v3583 = vmul.f32 %v3581, %v3581
        %v3584 = vmul.f32 %v3583, -0.001358992
        %v3585 = vadd.f32 %v3584, 0.041655596
        %v3586 = vmul.f32 %v3583, %v3585
        %v3587 = vadd.f32 %v3586, -0.4999988
        %v3588 = vmul.f32 %v3583, %v3587
        %v3589 = vadd.f32 1.0, %v3588
        %v3590 = vmul.f32 %v3581, %v3581
        %v3591 = vmul.f32 %v3590, -0.00019511016
        %v3592 = vadd.f32 %v3591, 0.008332121
        %v3593 = vmul.f32 %v3590, %v3592
        %v3594 = vadd.f32 %v3593, -0.16666654
        %v3595 = vmul.f32 %v3590, %v3594
        %v3596 = vadd.f32 %v3595, 1.0
        %v3597 = vmul.f32 %v3596, %v3581
        %vm3598 = vweird.f32 %v3300
        %v3599 = vand.u32 %v3582, 3
        %vm3600 = vcmp.lt.s32.totalorder %v3599, 2
        %vm3601 = vcmp.eq.s32.totalorder %v3599, 0
        %v3602 = vxor.u32 %v3597, 2147483648
        %v3603 = vsel %vm3601, %v3589, %v3602
        %vm3604 = vcmp.eq.s32.totalorder %v3599, 2
        %v3605 = vxor.u32 %v3589, 2147483648
        %v3606 = vsel %vm3604, %v3605, %v3597
        %v3607 = vsel %vm3600, %v3603, %v3606
        %v3608 = vsel %vm3598, nan, %v3607
        %v3609 = vand.u32 2147483647, %v3299
        %vm3610 = vcmp.le.f32.partialorder %v3609, 0.7853982
        %vm3611 = vcmp.lt.s32.totalorder %v3299, 0
        %v3612 = vand.u32 %v3299, 2139095040
        %v3613 = vshrl.u32 %v3612, 23
        %v3614 = vsub.s32 %v3613, 127
        %v3615 = vand.u32 2147483647, %v3299
        %v3616 = vand.u32 %v3615, 8388607
        %v3617 = vor.u32 %v3616, 8388608
        %v3618 = vsub.s32 0, %v3617
        %v3619 = vadd.s32 %v3614, 1
        %vm3620 = vcmp.gt.s32.totalorder %v3619, 0
        %v3621 = vsel %vm3620, %v3619, 0
        %v3622 = vshrl.u32 %v3621, 5
        %v3623 = vand.u32 %v3621, 31
        %v3624 = vsub.s32 32, %v3623
        %v3625 = vshrl.u32 683565275, %v3624
        %v3626 = vshll.u32 683565275, %v3623
        %v3627 = vshrl.u32 2475754826, %v3624
        %v3628 = vor.u32 %v3626, %v3627
        %v3629 = vshll.u32 2475754826, %v3623
        %v3630 = vshrl.u32 2131351028, %v3624
        %v3631 = vor.u32 %v3629, %v3630
        %v3632 = vshll.u32 2131351028, %v3623
        %v3633 = vshrl.u32 2102212464, %v3624
        %v3634 = vor.u32 %v3632, %v3633
        %v3635 = vshll.u32 2102212464, %v3623
        %v3636 = vshrl.u32 920167782, %v3624
        %v3637 = vor.u32 %v3635, %v3636
        %v3638 = vshll.u32 920167782, %v3623
        %v3639 = vshrl.u32 1326507024, %v3624
        %v3640 = vor.u32 %v3638, %v3639
        %vm3641 = vcmp.lt.s32.totalorder %v3622, 1
        %vm3642 = vcmp.lt.s32.totalorder %v3622, 2
        %vm3643 = vcmp.lt.s32.totalorder %v3622, 3
        %vm3644 = vcmp.lt.s32.totalorder %v3622, 4
        %v3645 = vsel %vm3641, %v3625, %v3628
        %v3646 = vsel %vm3644, %v3634, 2102212464
        %v3647 = vsel %vm3643, %v3631, %v3646
        %v3648 = vsel %vm3642, %v3645, %v3647
        %v3649 = vsel %vm3641, %v3628, %v3631
        %v3650 = vsel %vm3644, %v3637, 920167782
        %v3651 = vsel %vm3643, %v3634, %v3650
        %v3652 = vsel %vm3642, %v3649, %v3651
        %v3653 = vsel %vm3641, %v3631, %v3634
        %v3654 = vsel %vm3644, %v3640, 1326507024
        %v3655 = vsel %vm3643, %v3637, %v3654
        %v3656 = vsel %vm3642, %v3653, %v3655
        %v3657 = vshll.u32 %v3617, 8
        %v3658 = vand.u32 %v3657, 65535
        %v3659 = vshrl.u32 %v3657, 16
        %v3660 = vand.u32 %v3656, 65535
        %v3661 = vshrl.u32 %v3656, 16
        %v3662 = vmul.u32 %v3658, %v3660
        %v3663 = vmul.u32 %v3658, %v3661
        %v3664 = vmul.u32 %v3659, %v3660
        %v3665 = vmul.u32 %v3659, %v3661
        %v3666 = vshll.u32 %v3663, 16
        %v3667 = vshrl.u32 %v3663, 16
        %v3668 = vshll.u32 %v3664, 16
        %v3669 = vshrl.u32 %v3664, 16
        %vm3670 = vc.u32 %v3662, %v3666
        %v3671 = vsel %vm3670, 1, 0
        %v3672 = vadd.s32 %v3662, %v3666
        %v3673 = vadd.s32 %v3665, %v3671
        %vm3674 = vc.u32 %v3672, %v3668
        %v3675 = vsel %vm3674, 1, 0
        %v3676 = vadd.s32 %v3672, %v3668
        %v3677 = vadd.s32 %v3673, %v3675
        %v3678 = vadd.s32 %v3677, %v3667
        %v3679 = vadd.s32 %v3678, %v3669
        %v3680 = vand.u32 %v3657, 65535
        %v3681 = vshrl.u32 %v3657, 16
        %v3682 = vand.u32 %v3652, 65535
        %v3683 = vshrl.u32 %v3652, 16
        %v3684 = vmul.u32 %v3680, %v3682
        %v3685 = vmul.u32 %v3680, %v3683
        %v3686 = vmul.u32 %v3681, %v3682
        %v3687 = vmul.u32 %v3681, %v3683
        %v3688 = vshll.u32 %v3685, 16
        %v3689 = vshrl.u32 %v3685, 16
        %v3690 = vshll.u32 %v3686, 16
        %v3691 = vshrl.u32 %v3686, 16
        %vm3692 = vc.u32 %v3684, %v3688
        %v3693 = vsel %vm3692, 1, 0
        %v3694 = vadd.s32 %v3684, %v3688
        %v3695 = vadd.s32 %v3687, %v3693
        %vm3696 = vc.u32 %v3694, %v3690
        %v3697 = vsel %vm3696, 1, 0
        %v3698 = vadd.s32 %v3694, %v3690
        %v3699 = vadd.s32 %v3695, %v3697
        %v3700 = vadd.s32 %v3699, %v3689
        %v3701 = vadd.s32 %v3700, %v3691
        %v3702 = vmul.u32 %v3657, %v3648
        %v3703 = vadd.s32 %v3679, %v3698
        %vm3704 = vc.u32 %v3679, %v3698
        %v3705 = vadd.s32 %v3701, 1
        %v3706 = vsel %vm3704, %v3705, %v3701
        %v3707 = vadd.s32 %v3702, %v3706
        %v3708 = vadd.s32 %v3707, 536870912
        %v3709 = vshrl.u32 %v3708, 30
        %v3710 = vshll.u32 %v3709, 30
        %v3711 = vsub.s32 %v3707, %v3710
        %vm3712 = vcmp.lt.s32.totalorder %v3711, 0
        %v3713 = vsub.s32 0, %v3711
        %v3714 = vsel %vm3712, %v3713, %v3711
        %v3715 = vclz %v3714
        %v3716 = vsub.s32 %v3715, 2
        %vm3717 = vcmp.gt.s32.totalorder 0, %v3716
        %v3718 = vsel %vm3717, 0, %v3716
        %v3719 = vsub.s32 32, %v3718
        %v3720 = vshll.u32 %v3711, %v3718
        %v3721 = vshrl.u32 %v3703, %v3719
        %v3722 = vor.u32 %v3720, %v3721
        %v3723 = vsub.s32 4294967266, %v3718
        %v3724 = vadd.s32 %v3723, 127
        %v3725 = vshll.u32 %v3724, 23
        %v3726 = vor.u32 4788187, %v3725
        %v3727 = vand.u32 2147483647, %v3726
        %v3729 = vcvt.s32.f32 %v3722
        %v3730 = vmul.f32 %v3729, %v3727
        %v3731 = vxor.u32 %v3730, 2147483648
        %v3732 = vsel %vm3611, %v3731, %v3730
        %v3733 = vsub.s32 4, %v3709
        %v3734 = vsel %vm3611, %v3733, %v3709
        %v3735 = vsel %vm3610, %v3299, %v3732
        %v3736 = vsel %vm3610, 0, %v3734
        %v3737 = vmul.f32 %v3735, %v3735
        %v3738 = vmul.f32 %v3737, -0.001358992
        %v3739 = vadd.f32 %v3738, 0.041655596
        %v3740 = vmul.f32 %v3737, %v3739
        %v3741 = vadd.f32 %v3740, -0.4999988
        %v3742 = vmul.f32 %v3737, %v3741
        %v3743 = vadd.f32 1.0, %v3742
        %v3744 = vmul.f32 %v3735, %v3735
        %v3745 = vmul.f32 %v3744, -0.00019511016
        %v3746 = vadd.f32 %v3745, 0.008332121
        %v3747 = vmul.f32 %v3744, %v3746
        %v3748 = vadd.f32 %v3747, -0.16666654
        %v3749 = vmul.f32 %v3744, %v3748
        %v3750 = vadd.f32 %v3749, 1.0
        %v3751 = vmul.f32 %v3750, %v3735
        %vm3752 = vweird.f32 %v3299
        %v3753 = vadd.s32 %v3736, 3
        %v3754 = vand.u32 %v3753, 3
        %vm3755 = vcmp.lt.s32.totalorder %v3754, 2
        %vm3756 = vcmp.eq.s32.totalorder %v3754, 0
        %v3757 = vxor.u32 %v3751, 2147483648
        %v3758 = vsel %vm3756, %v3743, %v3757
        %vm3759 = vcmp.eq.s32.totalorder %v3754, 2
        %v3760 = vxor.u32 %v3743, 2147483648
        %v3761 = vsel %vm3759, %v3760, %v3751
        %v3762 = vsel %vm3755, %v3758, %v3761
        %v3763 = vsel %vm3752, nan, %v3762
        %v3764 = vand.u32 2147483647, %v3300
        %vm3765 = vcmp.le.f32.partialorder %v3764, 0.7853982
        %vm3766 = vcmp.lt.s32.totalorder %v3300, 0
        %v3767 = vand.u32 %v3300, 2139095040
        %v3768 = vshrl.u32 %v3767, 23
        %v3769 = vsub.s32 %v3768, 127
        %v3770 = vand.u32 2147483647, %v3300
        %v3771 = vand.u32 %v3770, 8388607
        %v3772 = vor.u32 %v3771, 8388608
        %v3773 = vsub.s32 0, %v3772
        %v3774 = vadd.s32 %v3769, 1
        %vm3775 = vcmp.gt.s32.totalorder %v3774, 0
        %v3776 = vsel %vm3775, %v3774, 0
        %v3777 = vshrl.u32 %v3776, 5
        %v3778 = vand.u32 %v3776, 31
        %v3779 = vsub.s32 32, %v3778
        %v3780 = vshrl.u32 683565275, %v3779
        %v3781 = vshll.u32 683565275, %v3778
        %v3782 = vshrl.u32 2475754826, %v3779
        %v3783 = vor.u32 %v3781, %v3782
        %v3784 = vshll.u32 2475754826, %v3778
        %v3785 = vshrl.u32 2131351028, %v3779
        %v3786 = vor.u32 %v3784, %v3785
        %v3787 = vshll.u32 2131351028, %v3778
        %v3788 = vshrl.u32 2102212464, %v3779
        %v3789 = vor.u32 %v3787, %v3788
        %v3790 = vshll.u32 2102212464, %v3778
        %v3791 = vshrl.u32 920167782, %v3779
        %v3792 = vor.u32 %v3790, %v3791
        %v3793 = vshll.u32 920167782, %v3778
        %v3794 = vshrl.u32 1326507024, %v3779
        %v3795 = vor.u32 %v3793, %v3794
        %vm3796 = vcmp.lt.s32.totalorder %v3777, 1
        %vm3797 = vcmp.lt.s32.totalorder %v3777, 2
        %vm3798 = vcmp.lt.s32.totalorder %v3777, 3
        %vm3799 = vcmp.lt.s32.totalorder %v3777, 4
        %v3800 = vsel %vm3796, %v3780, %v3783
        %v3801 = vsel %vm3799, %v3789, 2102212464
        %v3802 = vsel %vm3798, %v3786, %v3801
        %v3803 = vsel %vm3797, %v3800, %v3802
        %v3804 = vsel %vm3796, %v3783, %v3786
        %v3805 = vsel %vm3799, %v3792, 920167782
        %v3806 = vsel %vm3798, %v3789, %v3805
        %v3807 = vsel %vm3797, %v3804, %v3806
        %v3808 = vsel %vm3796, %v3786, %v3789
        %v3809 = vsel %vm3799, %v3795, 1326507024
        %v3810 = vsel %vm3798, %v3792, %v3809
        %v3811 = vsel %vm3797, %v3808, %v3810
        %v3812 = vshll.u32 %v3772, 8
        %v3813 = vand.u32 %v3812, 65535
        %v3814 = vshrl.u32 %v3812, 16
        %v3815 = vand.u32 %v3811, 65535
        %v3816 = vshrl.u32 %v3811, 16
        %v3817 = vmul.u32 %v3813, %v3815
        %v3818 = vmul.u32 %v3813, %v3816
        %v3819 = vmul.u32 %v3814, %v3815
        %v3820 = vmul.u32 %v3814, %v3816
        %v3821 = vshll.u32 %v3818, 16
        %v3822 = vshrl.u32 %v3818, 16
        %v3823 = vshll.u32 %v3819, 16
        %v3824 = vshrl.u32 %v3819, 16
        %vm3825 = vc.u32 %v3817, %v3821
        %v3826 = vsel %vm3825, 1, 0
        %v3827 = vadd.s32 %v3817, %v3821
        %v3828 = vadd.s32 %v3820, %v3826
        %vm3829 = vc.u32 %v3827, %v3823
        %v3830 = vsel %vm3829, 1, 0
        %v3831 = vadd.s32 %v3827, %v3823
        %v3832 = vadd.s32 %v3828, %v3830
        %v3833 = vadd.s32 %v3832, %v3822
        %v3834 = vadd.s32 %v3833, %v3824
        %v3835 = vand.u32 %v3812, 65535
        %v3836 = vshrl.u32 %v3812, 16
        %v3837 = vand.u32 %v3807, 65535
        %v3838 = vshrl.u32 %v3807, 16
        %v3839 = vmul.u32 %v3835, %v3837
        %v3840 = vmul.u32 %v3835, %v3838
        %v3841 = vmul.u32 %v3836, %v3837
        %v3842 = vmul.u32 %v3836, %v3838
        %v3843 = vshll.u32 %v3840, 16
        %v3844 = vshrl.u32 %v3840, 16
        %v3845 = vshll.u32 %v3841, 16
        %v3846 = vshrl.u32 %v3841, 16
        %vm3847 = vc.u32 %v3839, %v3843
        %v3848 = vsel %vm3847, 1, 0
        %v3849 = vadd.s32 %v3839, %v3843
        %v3850 = vadd.s32 %v3842, %v3848
        %vm3851 = vc.u32 %v3849, %v3845
        %v3852 = vsel %vm3851, 1, 0
        %v3853 = vadd.s32 %v3849, %v3845
        %v3854 = vadd.s32 %v3850, %v3852
        %v3855 = vadd.s32 %v3854, %v3844
        %v3856 = vadd.s32 %v3855, %v3846
        %v3857 = vmul.u32 %v3812, %v3803
        %v3858 = vadd.s32 %v3834, %v3853
        %vm3859 = vc.u32 %v3834, %v3853
        %v3860 = vadd.s32 %v3856, 1
        %v3861 = vsel %vm3859, %v3860, %v3856
        %v3862 = vadd.s32 %v3857, %v3861
        %v3863 = vadd.s32 %v3862, 536870912
        %v3864 = vshrl.u32 %v3863, 30
        %v3865 = vshll.u32 %v3864, 30
        %v3866 = vsub.s32 %v3862, %v3865
        %vm3867 = vcmp.lt.s32.totalorder %v3866, 0
        %v3868 = vsub.s32 0, %v3866
        %v3869 = vsel %vm3867, %v3868, %v3866
        %v3870 = vclz %v3869
        %v3871 = vsub.s32 %v3870, 2
        %vm3872 = vcmp.gt.s32.totalorder 0, %v3871
        %v3873 = vsel %vm3872, 0, %v3871
        %v3874 = vsub.s32 32, %v3873
        %v3875 = vshll.u32 %v3866, %v3873
        %v3876 = vshrl.u32 %v3858, %v3874
        %v3877 = vor.u32 %v3875, %v3876
        %v3878 = vsub.s32 4294967266, %v3873
        %v3879 = vadd.s32 %v3878, 127
        %v3880 = vshll.u32 %v3879, 23
        %v3881 = vor.u32 4788187, %v3880
        %v3882 = vand.u32 2147483647, %v3881
        %v3884 = vcvt.s32.f32 %v3877
        %v3885 = vmul.f32 %v3884, %v3882
        %v3886 = vxor.u32 %v3885, 2147483648
        %v3887 = vsel %vm3766, %v3886, %v3885
        %v3888 = vsub.s32 4, %v3864
        %v3889 = vsel %vm3766, %v3888, %v3864
        %v3890 = vsel %vm3765, %v3300, %v3887
        %v3891 = vsel %vm3765, 0, %v3889
        %v3892 = vmul.f32 %v3890, %v3890
        %v3893 = vmul.f32 %v3892, -0.001358992
        %v3894 = vadd.f32 %v3893, 0.041655596
        %v3895 = vmul.f32 %v3892, %v3894
        %v3896 = vadd.f32 %v3895, -0.4999988
        %v3897 = vmul.f32 %v3892, %v3896
        %v3898 = vadd.f32 1.0, %v3897
        %v3899 = vmul.f32 %v3890, %v3890
        %v3900 = vmul.f32 %v3899, -0.00019511016
        %v3901 = vadd.f32 %v3900, 0.008332121
        %v3902 = vmul.f32 %v3899, %v3901
        %v3903 = vadd.f32 %v3902, -0.16666654
        %v3904 = vmul.f32 %v3899, %v3903
        %v3905 = vadd.f32 %v3904, 1.0
        %v3906 = vmul.f32 %v3905, %v3890
        %vm3907 = vweird.f32 %v3300
        %v3908 = vadd.s32 %v3891, 3
        %v3909 = vand.u32 %v3908, 3
        %vm3910 = vcmp.lt.s32.totalorder %v3909, 2
        %vm3911 = vcmp.eq.s32.totalorder %v3909, 0
        %v3912 = vxor.u32 %v3906, 2147483648
        %v3913 = vsel %vm3911, %v3898, %v3912
        %vm3914 = vcmp.eq.s32.totalorder %v3909, 2
        %v3915 = vxor.u32 %v3898, 2147483648
        %v3916 = vsel %vm3914, %v3915, %v3906
        %v3917 = vsel %vm3910, %v3913, %v3916
        %v3918 = vsel %vm3907, nan, %v3917
        %v3921 = vrot.slane %v3608, 7
        %v3922 = vsel %vm1148, %v3921, %v3454
        %v3924 = vmul.f32 %v1137, %v3922
        %v3925 = vmul.f32 %v1138, %v3922
        %v3926 = vmul.f32 %v1139, %v3922
        %v3927 = vmul.f32 %v1140, %v3922
        %v3930 = vrot.slane %v3918, 7
        %v3931 = vsel %vm1148, %v3930, %v3763
        %v3933 = vmul.f32 %v1159, %v3931
        %v3934 = vmul.f32 %v1160, %v3931
        %v3935 = vmul.f32 %v1161, %v3931
        %v3936 = vmul.f32 %v1162, %v3931
        %v3937 = vsub.f32 %v3924, %v3933
        %v3938 = vsub.f32 %v3925, %v3934
        %v3939 = vsub.f32 %v3926, %v3935
        %v3940 = vsub.f32 %v3927, %v3936
        %3945 = vrot.lane.b32.xlu0 %v3937, 127
        %v3946 = vpop.permute.xlu0 %3945
        %3947 = vrot.lane.b32.xlu0 %v3938, 127
        %v3948 = vpop.permute.xlu0 %3947
        %3949 = vrot.lane.b32.xlu0 %v3939, 127
        %v3950 = vpop.permute.xlu0 %3949
        %3951 = vrot.lane.b32.xlu0 %v3940, 127
        %v3952 = vpop.permute.xlu0 %3951
        %v3957 = vmul.f32 %v3937, %v3946
        %v3958 = vmul.f32 %v3938, %v3948
        %v3959 = vmul.f32 %v3939, %v3950
        %v3960 = vmul.f32 %v3940, %v3952
        %3965 = vrot.lane.b32.xlu0 %v3957, 127
        %v3966 = vpop.permute.xlu0 %3965
        %3967 = vrot.lane.b32.xlu0 %v3958, 127
        %v3968 = vpop.permute.xlu0 %3967
        %3969 = vrot.lane.b32.xlu0 %v3959, 127
        %v3970 = vpop.permute.xlu0 %3969
        %3971 = vrot.lane.b32.xlu0 %v3960, 127
        %v3972 = vpop.permute.xlu0 %3971
        %v3977 = vmul.f32 %v3937, %v3966
        %v3978 = vmul.f32 %v3938, %v3968
        %v3979 = vmul.f32 %v3939, %v3970
        %v3980 = vmul.f32 %v3940, %v3972
        %3981 = vrot.lane.b32.xlu0 %v3937, 126
        %v3982 = vpop.permute.xlu0 %3981
        %3983 = vrot.lane.b32.xlu0 %v3938, 126
        %v3984 = vpop.permute.xlu0 %3983
        %3985 = vrot.lane.b32.xlu0 %v3939, 126
        %v3986 = vpop.permute.xlu0 %3985
        %3987 = vrot.lane.b32.xlu0 %v3940, 126
        %v3988 = vpop.permute.xlu0 %3987
        %v3993 = vmul.f32 %v3957, %v3982
        %v3994 = vmul.f32 %v3958, %v3984
        %v3995 = vmul.f32 %v3959, %v3986
        %v3996 = vmul.f32 %v3960, %v3988
        %3997 = vrot.lane.b32.xlu0 %v3957, 126
        %v3998 = vpop.permute.xlu0 %3997
        %3999 = vrot.lane.b32.xlu0 %v3958, 126
        %v4000 = vpop.permute.xlu0 %3999
        %4001 = vrot.lane.b32.xlu0 %v3959, 126
        %v4002 = vpop.permute.xlu0 %4001
        %4003 = vrot.lane.b32.xlu0 %v3960, 126
        %v4004 = vpop.permute.xlu0 %4003
        %v4009 = vmul.f32 %v3957, %v3998
        %v4010 = vmul.f32 %v3958, %v4000
        %v4011 = vmul.f32 %v3959, %v4002
        %v4012 = vmul.f32 %v3960, %v4004
        %4014 = vset.pattern.permute.xlu0 1
        %4015 = vperm.xlu0 %4014, %v3977
        %v4016 = vpop.permute.xlu0 %4015
        %4019 = vset.pattern.permute.xlu0 1
        %4020 = vperm.xlu0 %4019, %v3978
        %v4021 = vpop.permute.xlu0 %4020
        %4024 = vset.pattern.permute.xlu0 1
        %4025 = vperm.xlu0 %4024, %v3979
        %v4026 = vpop.permute.xlu0 %4025
        %4029 = vset.pattern.permute.xlu0 1
        %4030 = vperm.xlu0 %4029, %v3980
        %v4031 = vpop.permute.xlu0 %4030
        %v4033 = vmul.f32 %v4016, %v1272
        %v4034 = vmul.f32 %v4021, %v1272
        %v4035 = vmul.f32 %v4026, %v1272
        %v4036 = vmul.f32 %v4031, %v1272
        %4037 = vset.pattern.permute.xlu0 0
        %4038 = vperm.xlu0 %4037, %v3957
        %v4039 = vpop.permute.xlu0 %4038
        %4041 = vset.pattern.permute.xlu0 0
        %4042 = vperm.xlu0 %4041, %v3958
        %v4043 = vpop.permute.xlu0 %4042
        %4045 = vset.pattern.permute.xlu0 0
        %4046 = vperm.xlu0 %4045, %v3959
        %v4047 = vpop.permute.xlu0 %4046
        %4049 = vset.pattern.permute.xlu0 0
        %4050 = vperm.xlu0 %4049, %v3960
        %v4051 = vpop.permute.xlu0 %4050
        %v4053 = vmul.f32 %v4039, %v1293
        %v4054 = vmul.f32 %v4043, %v1293
        %v4055 = vmul.f32 %v4047, %v1293
        %v4056 = vmul.f32 %v4051, %v1293
        %v4057 = vadd.f32 %v4033, %v4053
        %v4058 = vadd.f32 %v4034, %v4054
        %v4059 = vadd.f32 %v4035, %v4055
        %v4060 = vadd.f32 %v4036, %v4056
        %4062 = vset.pattern.permute.xlu0 0
        %4063 = vperm.xlu0 %4062, %v3993
        %v4064 = vpop.permute.xlu0 %4063
        %4067 = vset.pattern.permute.xlu0 0
        %4068 = vperm.xlu0 %4067, %v3994
        %v4069 = vpop.permute.xlu0 %4068
        %4072 = vset.pattern.permute.xlu0 0
        %4073 = vperm.xlu0 %4072, %v3995
        %v4074 = vpop.permute.xlu0 %4073
        %4077 = vset.pattern.permute.xlu0 0
        %4078 = vperm.xlu0 %4077, %v3996
        %v4079 = vpop.permute.xlu0 %4078
        %v4081 = vmul.f32 %v4064, %v1322
        %v4082 = vmul.f32 %v4069, %v1322
        %v4083 = vmul.f32 %v4074, %v1322
        %v4084 = vmul.f32 %v4079, %v1322
        %v4085 = vadd.f32 %v4057, %v4081
        %v4086 = vadd.f32 %v4058, %v4082
        %v4087 = vadd.f32 %v4059, %v4083
        %v4088 = vadd.f32 %v4060, %v4084
        %4090 = vset.pattern.permute.xlu0 0
        %4091 = vperm.xlu0 %4090, %v4009
        %v4092 = vpop.permute.xlu0 %4091
        %4095 = vset.pattern.permute.xlu0 0
        %4096 = vperm.xlu0 %4095, %v4010
        %v4097 = vpop.permute.xlu0 %4096
        %4100 = vset.pattern.permute.xlu0 0
        %4101 = vperm.xlu0 %4100, %v4011
        %v4102 = vpop.permute.xlu0 %4101
        %4105 = vset.pattern.permute.xlu0 0
        %4106 = vperm.xlu0 %4105, %v4012
        %v4107 = vpop.permute.xlu0 %4106
        %v4109 = vmul.f32 %v4092, %v1351
        %v4110 = vmul.f32 %v4097, %v1351
        %v4111 = vmul.f32 %v4102, %v1351
        %v4112 = vmul.f32 %v4107, %v1351
        %v4113 = vadd.f32 %v4085, %v4109
        %v4114 = vadd.f32 %v4086, %v4110
        %v4115 = vadd.f32 %v4087, %v4111
        %v4116 = vadd.f32 %v4088, %v4112
        %v4117 = vadd.f32 %v4113, %v1361
        %v4118 = vadd.f32 %v4114, %v1361
        %v4119 = vadd.f32 %v4115, %v1361
        %v4120 = vadd.f32 %v4116, %v1361
        %v4121 = vxor.u32 %v4117, 2147483648
        %v4122 = vxor.u32 %v4118, 2147483648
        %v4123 = vxor.u32 %v4119, 2147483648
        %v4124 = vmul.f32 %v4121, 1.442695
        %v4125 = vpow.pop %v4124
        %v4126 = vmul.f32 %v4122, 1.442695
        %v4127 = vpow.pop %v4126
        %v4128 = vmul.f32 %v4123, 1.442695
        %v4129 = vpow.pop %v4128
        %v4130 = vadd.f32 %v4125, 1.0
        %v4131 = vadd.f32 %v4127, 1.0
        %v4132 = vadd.f32 %v4129, 1.0
        %v4133 = vrcp.pop %v4130
        %v4134 = vmul.f32 %v4130, %v4133
        %v4135 = vsub.f32 1.0, %v4134
        %v4136 = vmul.f32 %v4133, %v4135
        %v4137 = vadd.f32 %v4133, %v4136
        %vm4138 = vweird.f32 %v4130
        %vm4139 = vweird.f32 %v4133
        %vm4140 = vmor %vm4138, %vm4139
        %v4141 = vsel %vm4140, %v4133, %v4137
        %v4142 = vand.u32 2147483647, %v4130
        %vm4143 = vcmp.eq.f32.partialorder %v4142, 8.507059e+37
        %v4144 = vand.u32 %v4130, 2147483648
        %v4145 = vor.u32 1.1754944e-38, %v4144
        %v4146 = vsel %vm4143, %v4145, %v4141
        %v4147 = vmul.f32 1.0, %v4146
        %v4148 = vrcp.pop %v4131
        %v4149 = vmul.f32 %v4131, %v4148
        %v4150 = vsub.f32 1.0, %v4149
        %v4151 = vmul.f32 %v4148, %v4150
        %v4152 = vadd.f32 %v4148, %v4151
        %vm4153 = vweird.f32 %v4131
        %vm4154 = vweird.f32 %v4148
        %vm4155 = vmor %vm4153, %vm4154
        %v4156 = vsel %vm4155, %v4148, %v4152
        %v4157 = vand.u32 2147483647, %v4131
        %vm4158 = vcmp.eq.f32.partialorder %v4157, 8.507059e+37
        %v4159 = vand.u32 %v4131, 2147483648
        %v4160 = vor.u32 1.1754944e-38, %v4159
        %v4161 = vsel %vm4158, %v4160, %v4156
        %v4162 = vmul.f32 1.0, %v4161
        %v4163 = vrcp.pop %v4132
        %v4164 = vmul.f32 %v4132, %v4163
        %v4165 = vsub.f32 1.0, %v4164
        %v4166 = vmul.f32 %v4163, %v4165
        %v4167 = vadd.f32 %v4163, %v4166
        %vm4168 = vweird.f32 %v4132
        %vm4169 = vweird.f32 %v4163
        %vm4170 = vmor %vm4168, %vm4169
        %v4171 = vsel %vm4170, %v4163, %v4167
        %v4172 = vand.u32 2147483647, %v4132
        %vm4173 = vcmp.eq.f32.partialorder %v4172, 8.507059e+37
        %v4174 = vand.u32 %v4132, 2147483648
        %v4175 = vor.u32 1.1754944e-38, %v4174
        %v4176 = vsel %vm4173, %v4175, %v4171
        %v4177 = vmul.f32 1.0, %v4176
        %v4178 = vtanh.pop %v4120
        %v4179 = vmul.f32 %v4147, %v3262
        %v4180 = vmul.f32 %v4162, %v4178
        %v4181 = vadd.f32 %v4179, %v4180
        %v4182 = vtanh.pop %v4181
        %v4183 = vmul.f32 %v4177, %v4182
        %4185 = vrot.lane.b32.xlu0 %v4183, 96
        %v4186 = vpop.permute.xlu0 %4185
        %vm4188 = vcmask 1042176
        %4189 = vst.msk [vmem:[%s443] sm:$0x3] %vm4188, %v4186
        %v4190 = vld [vmem:[%s405 + $0x4] sm:$0x1]
        %v4191 = vld [vmem:[%s405 + $0xc] sm:$0x1]
        %v4192 = vsel %vm485, %v4183, 0
        %4194 = vmatpush.msra.mxu0 0.0
        %4195 = vmatpush.msra.mxu0 0.0
        %4196 = vmatpush.msra.mxu0 0.0
        %4197 = vmatpush.msra.mxu0 0.0
        %4198 = vmatpush.msra.mxu0 0.0
        %4199 = vmatpush.msra.mxu0 0.0
        %4200 = vmatpush.msra.mxu0 0.0
        %4201 = vmatpush.msra.mxu0 0.0
        %4202 = vmatpush.msra.mxu0 0.0
        %4203 = vmatpush.msra.mxu0 0.0
        %4204 = vmatpush.msra.mxu0 0.0
        %4205 = vmatpush.msra.mxu0 0.0
        %4206 = vmatpush.msra.mxu0 %v470
        %4207 = vmatpush.msra.mxu0 %v469
        %4208 = vmatpush.msra.mxu0 %v468
        %4209 = vmatpush.msra.mxu0 %v467
        %4210 = vmatmul.f32.gmra.mxu0 %v4192
        %v4211 = vpop.f32.mrf.mxu0
        %v4212 = vadd.f32 0.0, %v4211
        %4213 = vdwg.mxu0
        %v4215 = vrot.slane %v4212, 1
        %v4218 = vadd.f32 %v4190, %v4212
        %v4219 = vadd.f32 %v4191, %v4215
        %v4220 = vand.u32 2147483647, %v4218
        %vm4221 = vcmp.le.f32.partialorder %v4220, 0.7853982
        %vm4222 = vcmp.lt.s32.totalorder %v4218, 0
        %v4223 = vand.u32 %v4218, 2139095040
        %v4224 = vshrl.u32 %v4223, 23
        %v4225 = vsub.s32 %v4224, 127
        %v4226 = vand.u32 2147483647, %v4218
        %v4227 = vand.u32 %v4226, 8388607
        %v4228 = vor.u32 %v4227, 8388608
        %v4229 = vsub.s32 0, %v4228
        %v4230 = vadd.s32 %v4225, 1
        %vm4231 = vcmp.gt.s32.totalorder %v4230, 0
        %v4232 = vsel %vm4231, %v4230, 0
        %v4233 = vshrl.u32 %v4232, 5
        %v4234 = vand.u32 %v4232, 31
        %v4235 = vsub.s32 32, %v4234
        %v4236 = vshrl.u32 683565275, %v4235
        %v4237 = vshll.u32 683565275, %v4234
        %v4238 = vshrl.u32 2475754826, %v4235
        %v4239 = vor.u32 %v4237, %v4238
        %v4240 = vshll.u32 2475754826, %v4234
        %v4241 = vshrl.u32 2131351028, %v4235
        %v4242 = vor.u32 %v4240, %v4241
        %v4243 = vshll.u32 2131351028, %v4234
        %v4244 = vshrl.u32 2102212464, %v4235
        %v4245 = vor.u32 %v4243, %v4244
        %v4246 = vshll.u32 2102212464, %v4234
        %v4247 = vshrl.u32 920167782, %v4235
        %v4248 = vor.u32 %v4246, %v4247
        %v4249 = vshll.u32 920167782, %v4234
        %v4250 = vshrl.u32 1326507024, %v4235
        %v4251 = vor.u32 %v4249, %v4250
        %vm4252 = vcmp.lt.s32.totalorder %v4233, 1
        %vm4253 = vcmp.lt.s32.totalorder %v4233, 2
        %vm4254 = vcmp.lt.s32.totalorder %v4233, 3
        %vm4255 = vcmp.lt.s32.totalorder %v4233, 4
        %v4256 = vsel %vm4252, %v4236, %v4239
        %v4257 = vsel %vm4255, %v4245, 2102212464
        %v4258 = vsel %vm4254, %v4242, %v4257
        %v4259 = vsel %vm4253, %v4256, %v4258
        %v4260 = vsel %vm4252, %v4239, %v4242
        %v4261 = vsel %vm4255, %v4248, 920167782
        %v4262 = vsel %vm4254, %v4245, %v4261
        %v4263 = vsel %vm4253, %v4260, %v4262
        %v4264 = vsel %vm4252, %v4242, %v4245
        %v4265 = vsel %vm4255, %v4251, 1326507024
        %v4266 = vsel %vm4254, %v4248, %v4265
        %v4267 = vsel %vm4253, %v4264, %v4266
        %v4268 = vshll.u32 %v4228, 8
        %v4269 = vand.u32 %v4268, 65535
        %v4270 = vshrl.u32 %v4268, 16
        %v4271 = vand.u32 %v4267, 65535
        %v4272 = vshrl.u32 %v4267, 16
        %v4273 = vmul.u32 %v4269, %v4271
        %v4274 = vmul.u32 %v4269, %v4272
        %v4275 = vmul.u32 %v4270, %v4271
        %v4276 = vmul.u32 %v4270, %v4272
        %v4277 = vshll.u32 %v4274, 16
        %v4278 = vshrl.u32 %v4274, 16
        %v4279 = vshll.u32 %v4275, 16
        %v4280 = vshrl.u32 %v4275, 16
        %vm4281 = vc.u32 %v4273, %v4277
        %v4282 = vsel %vm4281, 1, 0
        %v4283 = vadd.s32 %v4273, %v4277
        %v4284 = vadd.s32 %v4276, %v4282
        %vm4285 = vc.u32 %v4283, %v4279
        %v4286 = vsel %vm4285, 1, 0
        %v4287 = vadd.s32 %v4283, %v4279
        %v4288 = vadd.s32 %v4284, %v4286
        %v4289 = vadd.s32 %v4288, %v4278
        %v4290 = vadd.s32 %v4289, %v4280
        %v4291 = vand.u32 %v4268, 65535
        %v4292 = vshrl.u32 %v4268, 16
        %v4293 = vand.u32 %v4263, 65535
        %v4294 = vshrl.u32 %v4263, 16
        %v4295 = vmul.u32 %v4291, %v4293
        %v4296 = vmul.u32 %v4291, %v4294
        %v4297 = vmul.u32 %v4292, %v4293
        %v4298 = vmul.u32 %v4292, %v4294
        %v4299 = vshll.u32 %v4296, 16
        %v4300 = vshrl.u32 %v4296, 16
        %v4301 = vshll.u32 %v4297, 16
        %v4302 = vshrl.u32 %v4297, 16
        %vm4303 = vc.u32 %v4295, %v4299
        %v4304 = vsel %vm4303, 1, 0
        %v4305 = vadd.s32 %v4295, %v4299
        %v4306 = vadd.s32 %v4298, %v4304
        %vm4307 = vc.u32 %v4305, %v4301
        %v4308 = vsel %vm4307, 1, 0
        %v4309 = vadd.s32 %v4305, %v4301
        %v4310 = vadd.s32 %v4306, %v4308
        %v4311 = vadd.s32 %v4310, %v4300
        %v4312 = vadd.s32 %v4311, %v4302
        %v4313 = vmul.u32 %v4268, %v4259
        %v4314 = vadd.s32 %v4290, %v4309
        %vm4315 = vc.u32 %v4290, %v4309
        %v4316 = vadd.s32 %v4312, 1
        %v4317 = vsel %vm4315, %v4316, %v4312
        %v4318 = vadd.s32 %v4313, %v4317
        %v4319 = vadd.s32 %v4318, 536870912
        %v4320 = vshrl.u32 %v4319, 30
        %v4321 = vshll.u32 %v4320, 30
        %v4322 = vsub.s32 %v4318, %v4321
        %vm4323 = vcmp.lt.s32.totalorder %v4322, 0
        %v4324 = vsub.s32 0, %v4322
        %v4325 = vsel %vm4323, %v4324, %v4322
        %v4326 = vclz %v4325
        %v4327 = vsub.s32 %v4326, 2
        %vm4328 = vcmp.gt.s32.totalorder 0, %v4327
        %v4329 = vsel %vm4328, 0, %v4327
        %v4330 = vsub.s32 32, %v4329
        %v4331 = vshll.u32 %v4322, %v4329
        %v4332 = vshrl.u32 %v4314, %v4330
        %v4333 = vor.u32 %v4331, %v4332
        %v4334 = vsub.s32 4294967266, %v4329
        %v4335 = vadd.s32 %v4334, 127
        %v4336 = vshll.u32 %v4335, 23
        %v4337 = vor.u32 4788187, %v4336
        %v4338 = vand.u32 2147483647, %v4337
        %v4340 = vcvt.s32.f32 %v4333
        %v4341 = vmul.f32 %v4340, %v4338
        %v4342 = vxor.u32 %v4341, 2147483648
        %v4343 = vsel %vm4222, %v4342, %v4341
        %v4344 = vsub.s32 4, %v4320
        %v4345 = vsel %vm4222, %v4344, %v4320
        %v4346 = vsel %vm4221, %v4218, %v4343
        %v4347 = vsel %vm4221, 0, %v4345
        %v4348 = vmul.f32 %v4346, %v4346
        %v4349 = vmul.f32 %v4348, -0.001358992
        %v4350 = vadd.f32 %v4349, 0.041655596
        %v4351 = vmul.f32 %v4348, %v4350
        %v4352 = vadd.f32 %v4351, -0.4999988
        %v4353 = vmul.f32 %v4348, %v4352
        %v4354 = vadd.f32 1.0, %v4353
        %v4355 = vmul.f32 %v4346, %v4346
        %v4356 = vmul.f32 %v4355, -0.00019511016
        %v4357 = vadd.f32 %v4356, 0.008332121
        %v4358 = vmul.f32 %v4355, %v4357
        %v4359 = vadd.f32 %v4358, -0.16666654
        %v4360 = vmul.f32 %v4355, %v4359
        %v4361 = vadd.f32 %v4360, 1.0
        %v4362 = vmul.f32 %v4361, %v4346
        %vm4363 = vweird.f32 %v4218
        %v4364 = vand.u32 %v4347, 3
        %vm4365 = vcmp.lt.s32.totalorder %v4364, 2
        %vm4366 = vcmp.eq.s32.totalorder %v4364, 0
        %v4367 = vxor.u32 %v4362, 2147483648
        %v4368 = vsel %vm4366, %v4354, %v4367
        %vm4369 = vcmp.eq.s32.totalorder %v4364, 2
        %v4370 = vxor.u32 %v4354, 2147483648
        %v4371 = vsel %vm4369, %v4370, %v4362
        %v4372 = vsel %vm4365, %v4368, %v4371
        %v4373 = vsel %vm4363, nan, %v4372
        %v4374 = vand.u32 2147483647, %v4219
        %vm4375 = vcmp.le.f32.partialorder %v4374, 0.7853982
        %vm4376 = vcmp.lt.s32.totalorder %v4219, 0
        %v4377 = vand.u32 %v4219, 2139095040
        %v4378 = vshrl.u32 %v4377, 23
        %v4379 = vsub.s32 %v4378, 127
        %v4380 = vand.u32 2147483647, %v4219
        %v4381 = vand.u32 %v4380, 8388607
        %v4382 = vor.u32 %v4381, 8388608
        %v4383 = vsub.s32 0, %v4382
        %v4384 = vadd.s32 %v4379, 1
        %vm4385 = vcmp.gt.s32.totalorder %v4384, 0
        %v4386 = vsel %vm4385, %v4384, 0
        %v4387 = vshrl.u32 %v4386, 5
        %v4388 = vand.u32 %v4386, 31
        %v4389 = vsub.s32 32, %v4388
        %v4390 = vshrl.u32 683565275, %v4389
        %v4391 = vshll.u32 683565275, %v4388
        %v4392 = vshrl.u32 2475754826, %v4389
        %v4393 = vor.u32 %v4391, %v4392
        %v4394 = vshll.u32 2475754826, %v4388
        %v4395 = vshrl.u32 2131351028, %v4389
        %v4396 = vor.u32 %v4394, %v4395
        %v4397 = vshll.u32 2131351028, %v4388
        %v4398 = vshrl.u32 2102212464, %v4389
        %v4399 = vor.u32 %v4397, %v4398
        %v4400 = vshll.u32 2102212464, %v4388
        %v4401 = vshrl.u32 920167782, %v4389
        %v4402 = vor.u32 %v4400, %v4401
        %v4403 = vshll.u32 920167782, %v4388
        %v4404 = vshrl.u32 1326507024, %v4389
        %v4405 = vor.u32 %v4403, %v4404
        %vm4406 = vcmp.lt.s32.totalorder %v4387, 1
        %vm4407 = vcmp.lt.s32.totalorder %v4387, 2
        %vm4408 = vcmp.lt.s32.totalorder %v4387, 3
        %vm4409 = vcmp.lt.s32.totalorder %v4387, 4
        %v4410 = vsel %vm4406, %v4390, %v4393
        %v4411 = vsel %vm4409, %v4399, 2102212464
        %v4412 = vsel %vm4408, %v4396, %v4411
        %v4413 = vsel %vm4407, %v4410, %v4412
        %v4414 = vsel %vm4406, %v4393, %v4396
        %v4415 = vsel %vm4409, %v4402, 920167782
        %v4416 = vsel %vm4408, %v4399, %v4415
        %v4417 = vsel %vm4407, %v4414, %v4416
        %v4418 = vsel %vm4406, %v4396, %v4399
        %v4419 = vsel %vm4409, %v4405, 1326507024
        %v4420 = vsel %vm4408, %v4402, %v4419
        %v4421 = vsel %vm4407, %v4418, %v4420
        %v4422 = vshll.u32 %v4382, 8
        %v4423 = vand.u32 %v4422, 65535
        %v4424 = vshrl.u32 %v4422, 16
        %v4425 = vand.u32 %v4421, 65535
        %v4426 = vshrl.u32 %v4421, 16
        %v4427 = vmul.u32 %v4423, %v4425
        %v4428 = vmul.u32 %v4423, %v4426
        %v4429 = vmul.u32 %v4424, %v4425
        %v4430 = vmul.u32 %v4424, %v4426
        %v4431 = vshll.u32 %v4428, 16
        %v4432 = vshrl.u32 %v4428, 16
        %v4433 = vshll.u32 %v4429, 16
        %v4434 = vshrl.u32 %v4429, 16
        %vm4435 = vc.u32 %v4427, %v4431
        %v4436 = vsel %vm4435, 1, 0
        %v4437 = vadd.s32 %v4427, %v4431
        %v4438 = vadd.s32 %v4430, %v4436
        %vm4439 = vc.u32 %v4437, %v4433
        %v4440 = vsel %vm4439, 1, 0
        %v4441 = vadd.s32 %v4437, %v4433
        %v4442 = vadd.s32 %v4438, %v4440
        %v4443 = vadd.s32 %v4442, %v4432
        %v4444 = vadd.s32 %v4443, %v4434
        %v4445 = vand.u32 %v4422, 65535
        %v4446 = vshrl.u32 %v4422, 16
        %v4447 = vand.u32 %v4417, 65535
        %v4448 = vshrl.u32 %v4417, 16
        %v4449 = vmul.u32 %v4445, %v4447
        %v4450 = vmul.u32 %v4445, %v4448
        %v4451 = vmul.u32 %v4446, %v4447
        %v4452 = vmul.u32 %v4446, %v4448
        %v4453 = vshll.u32 %v4450, 16
        %v4454 = vshrl.u32 %v4450, 16
        %v4455 = vshll.u32 %v4451, 16
        %v4456 = vshrl.u32 %v4451, 16
        %vm4457 = vc.u32 %v4449, %v4453
        %v4458 = vsel %vm4457, 1, 0
        %v4459 = vadd.s32 %v4449, %v4453
        %v4460 = vadd.s32 %v4452, %v4458
        %vm4461 = vc.u32 %v4459, %v4455
        %v4462 = vsel %vm4461, 1, 0
        %v4463 = vadd.s32 %v4459, %v4455
        %v4464 = vadd.s32 %v4460, %v4462
        %v4465 = vadd.s32 %v4464, %v4454
        %v4466 = vadd.s32 %v4465, %v4456
        %v4467 = vmul.u32 %v4422, %v4413
        %v4468 = vadd.s32 %v4444, %v4463
        %vm4469 = vc.u32 %v4444, %v4463
        %v4470 = vadd.s32 %v4466, 1
        %v4471 = vsel %vm4469, %v4470, %v4466
        %v4472 = vadd.s32 %v4467, %v4471
        %v4473 = vadd.s32 %v4472, 536870912
        %v4474 = vshrl.u32 %v4473, 30
        %v4475 = vshll.u32 %v4474, 30
        %v4476 = vsub.s32 %v4472, %v4475
        %vm4477 = vcmp.lt.s32.totalorder %v4476, 0
        %v4478 = vsub.s32 0, %v4476
        %v4479 = vsel %vm4477, %v4478, %v4476
        %v4480 = vclz %v4479
        %v4481 = vsub.s32 %v4480, 2
        %vm4482 = vcmp.gt.s32.totalorder 0, %v4481
        %v4483 = vsel %vm4482, 0, %v4481
        %v4484 = vsub.s32 32, %v4483
        %v4485 = vshll.u32 %v4476, %v4483
        %v4486 = vshrl.u32 %v4468, %v4484
        %v4487 = vor.u32 %v4485, %v4486
        %v4488 = vsub.s32 4294967266, %v4483
        %v4489 = vadd.s32 %v4488, 127
        %v4490 = vshll.u32 %v4489, 23
        %v4491 = vor.u32 4788187, %v4490
        %v4492 = vand.u32 2147483647, %v4491
        %v4494 = vcvt.s32.f32 %v4487
        %v4495 = vmul.f32 %v4494, %v4492
        %v4496 = vxor.u32 %v4495, 2147483648
        %v4497 = vsel %vm4376, %v4496, %v4495
        %v4498 = vsub.s32 4, %v4474
        %v4499 = vsel %vm4376, %v4498, %v4474
        %v4500 = vsel %vm4375, %v4219, %v4497
        %v4501 = vsel %vm4375, 0, %v4499
        %v4502 = vmul.f32 %v4500, %v4500
        %v4503 = vmul.f32 %v4502, -0.001358992
        %v4504 = vadd.f32 %v4503, 0.041655596
        %v4505 = vmul.f32 %v4502, %v4504
        %v4506 = vadd.f32 %v4505, -0.4999988
        %v4507 = vmul.f32 %v4502, %v4506
        %v4508 = vadd.f32 1.0, %v4507
        %v4509 = vmul.f32 %v4500, %v4500
        %v4510 = vmul.f32 %v4509, -0.00019511016
        %v4511 = vadd.f32 %v4510, 0.008332121
        %v4512 = vmul.f32 %v4509, %v4511
        %v4513 = vadd.f32 %v4512, -0.16666654
        %v4514 = vmul.f32 %v4509, %v4513
        %v4515 = vadd.f32 %v4514, 1.0
        %v4516 = vmul.f32 %v4515, %v4500
        %vm4517 = vweird.f32 %v4219
        %v4518 = vand.u32 %v4501, 3
        %vm4519 = vcmp.lt.s32.totalorder %v4518, 2
        %vm4520 = vcmp.eq.s32.totalorder %v4518, 0
        %v4521 = vxor.u32 %v4516, 2147483648
        %v4522 = vsel %vm4520, %v4508, %v4521
        %vm4523 = vcmp.eq.s32.totalorder %v4518, 2
        %v4524 = vxor.u32 %v4508, 2147483648
        %v4525 = vsel %vm4523, %v4524, %v4516
        %v4526 = vsel %vm4519, %v4522, %v4525
        %v4527 = vsel %vm4517, nan, %v4526
        %v4528 = vand.u32 2147483647, %v4218
        %vm4529 = vcmp.le.f32.partialorder %v4528, 0.7853982
        %vm4530 = vcmp.lt.s32.totalorder %v4218, 0
        %v4531 = vand.u32 %v4218, 2139095040
        %v4532 = vshrl.u32 %v4531, 23
        %v4533 = vsub.s32 %v4532, 127
        %v4534 = vand.u32 2147483647, %v4218
        %v4535 = vand.u32 %v4534, 8388607
        %v4536 = vor.u32 %v4535, 8388608
        %v4537 = vsub.s32 0, %v4536
        %v4538 = vadd.s32 %v4533, 1
        %vm4539 = vcmp.gt.s32.totalorder %v4538, 0
        %v4540 = vsel %vm4539, %v4538, 0
        %v4541 = vshrl.u32 %v4540, 5
        %v4542 = vand.u32 %v4540, 31
        %v4543 = vsub.s32 32, %v4542
        %v4544 = vshrl.u32 683565275, %v4543
        %v4545 = vshll.u32 683565275, %v4542
        %v4546 = vshrl.u32 2475754826, %v4543
        %v4547 = vor.u32 %v4545, %v4546
        %v4548 = vshll.u32 2475754826, %v4542
        %v4549 = vshrl.u32 2131351028, %v4543
        %v4550 = vor.u32 %v4548, %v4549
        %v4551 = vshll.u32 2131351028, %v4542
        %v4552 = vshrl.u32 2102212464, %v4543
        %v4553 = vor.u32 %v4551, %v4552
        %v4554 = vshll.u32 2102212464, %v4542
        %v4555 = vshrl.u32 920167782, %v4543
        %v4556 = vor.u32 %v4554, %v4555
        %v4557 = vshll.u32 920167782, %v4542
        %v4558 = vshrl.u32 1326507024, %v4543
        %v4559 = vor.u32 %v4557, %v4558
        %vm4560 = vcmp.lt.s32.totalorder %v4541, 1
        %vm4561 = vcmp.lt.s32.totalorder %v4541, 2
        %vm4562 = vcmp.lt.s32.totalorder %v4541, 3
        %vm4563 = vcmp.lt.s32.totalorder %v4541, 4
        %v4564 = vsel %vm4560, %v4544, %v4547
        %v4565 = vsel %vm4563, %v4553, 2102212464
        %v4566 = vsel %vm4562, %v4550, %v4565
        %v4567 = vsel %vm4561, %v4564, %v4566
        %v4568 = vsel %vm4560, %v4547, %v4550
        %v4569 = vsel %vm4563, %v4556, 920167782
        %v4570 = vsel %vm4562, %v4553, %v4569
        %v4571 = vsel %vm4561, %v4568, %v4570
        %v4572 = vsel %vm4560, %v4550, %v4553
        %v4573 = vsel %vm4563, %v4559, 1326507024
        %v4574 = vsel %vm4562, %v4556, %v4573
        %v4575 = vsel %vm4561, %v4572, %v4574
        %v4576 = vshll.u32 %v4536, 8
        %v4577 = vand.u32 %v4576, 65535
        %v4578 = vshrl.u32 %v4576, 16
        %v4579 = vand.u32 %v4575, 65535
        %v4580 = vshrl.u32 %v4575, 16
        %v4581 = vmul.u32 %v4577, %v4579
        %v4582 = vmul.u32 %v4577, %v4580
        %v4583 = vmul.u32 %v4578, %v4579
        %v4584 = vmul.u32 %v4578, %v4580
        %v4585 = vshll.u32 %v4582, 16
        %v4586 = vshrl.u32 %v4582, 16
        %v4587 = vshll.u32 %v4583, 16
        %v4588 = vshrl.u32 %v4583, 16
        %vm4589 = vc.u32 %v4581, %v4585
        %v4590 = vsel %vm4589, 1, 0
        %v4591 = vadd.s32 %v4581, %v4585
        %v4592 = vadd.s32 %v4584, %v4590
        %vm4593 = vc.u32 %v4591, %v4587
        %v4594 = vsel %vm4593, 1, 0
        %v4595 = vadd.s32 %v4591, %v4587
        %v4596 = vadd.s32 %v4592, %v4594
        %v4597 = vadd.s32 %v4596, %v4586
        %v4598 = vadd.s32 %v4597, %v4588
        %v4599 = vand.u32 %v4576, 65535
        %v4600 = vshrl.u32 %v4576, 16
        %v4601 = vand.u32 %v4571, 65535
        %v4602 = vshrl.u32 %v4571, 16
        %v4603 = vmul.u32 %v4599, %v4601
        %v4604 = vmul.u32 %v4599, %v4602
        %v4605 = vmul.u32 %v4600, %v4601
        %v4606 = vmul.u32 %v4600, %v4602
        %v4607 = vshll.u32 %v4604, 16
        %v4608 = vshrl.u32 %v4604, 16
        %v4609 = vshll.u32 %v4605, 16
        %v4610 = vshrl.u32 %v4605, 16
        %vm4611 = vc.u32 %v4603, %v4607
        %v4612 = vsel %vm4611, 1, 0
        %v4613 = vadd.s32 %v4603, %v4607
        %v4614 = vadd.s32 %v4606, %v4612
        %vm4615 = vc.u32 %v4613, %v4609
        %v4616 = vsel %vm4615, 1, 0
        %v4617 = vadd.s32 %v4613, %v4609
        %v4618 = vadd.s32 %v4614, %v4616
        %v4619 = vadd.s32 %v4618, %v4608
        %v4620 = vadd.s32 %v4619, %v4610
        %v4621 = vmul.u32 %v4576, %v4567
        %v4622 = vadd.s32 %v4598, %v4617
        %vm4623 = vc.u32 %v4598, %v4617
        %v4624 = vadd.s32 %v4620, 1
        %v4625 = vsel %vm4623, %v4624, %v4620
        %v4626 = vadd.s32 %v4621, %v4625
        %v4627 = vadd.s32 %v4626, 536870912
        %v4628 = vshrl.u32 %v4627, 30
        %v4629 = vshll.u32 %v4628, 30
        %v4630 = vsub.s32 %v4626, %v4629
        %vm4631 = vcmp.lt.s32.totalorder %v4630, 0
        %v4632 = vsub.s32 0, %v4630
        %v4633 = vsel %vm4631, %v4632, %v4630
        %v4634 = vclz %v4633
        %v4635 = vsub.s32 %v4634, 2
        %vm4636 = vcmp.gt.s32.totalorder 0, %v4635
        %v4637 = vsel %vm4636, 0, %v4635
        %v4638 = vsub.s32 32, %v4637
        %v4639 = vshll.u32 %v4630, %v4637
        %v4640 = vshrl.u32 %v4622, %v4638
        %v4641 = vor.u32 %v4639, %v4640
        %v4642 = vsub.s32 4294967266, %v4637
        %v4643 = vadd.s32 %v4642, 127
        %v4644 = vshll.u32 %v4643, 23
        %v4645 = vor.u32 4788187, %v4644
        %v4646 = vand.u32 2147483647, %v4645
        %v4648 = vcvt.s32.f32 %v4641
        %v4649 = vmul.f32 %v4648, %v4646
        %v4650 = vxor.u32 %v4649, 2147483648
        %v4651 = vsel %vm4530, %v4650, %v4649
        %v4652 = vsub.s32 4, %v4628
        %v4653 = vsel %vm4530, %v4652, %v4628
        %v4654 = vsel %vm4529, %v4218, %v4651
        %v4655 = vsel %vm4529, 0, %v4653
        %v4656 = vmul.f32 %v4654, %v4654
        %v4657 = vmul.f32 %v4656, -0.001358992
        %v4658 = vadd.f32 %v4657, 0.041655596
        %v4659 = vmul.f32 %v4656, %v4658
        %v4660 = vadd.f32 %v4659, -0.4999988
        %v4661 = vmul.f32 %v4656, %v4660
        %v4662 = vadd.f32 1.0, %v4661
        %v4663 = vmul.f32 %v4654, %v4654
        %v4664 = vmul.f32 %v4663, -0.00019511016
        %v4665 = vadd.f32 %v4664, 0.008332121
        %v4666 = vmul.f32 %v4663, %v4665
        %v4667 = vadd.f32 %v4666, -0.16666654
        %v4668 = vmul.f32 %v4663, %v4667
        %v4669 = vadd.f32 %v4668, 1.0
        %v4670 = vmul.f32 %v4669, %v4654
        %vm4671 = vweird.f32 %v4218
        %v4672 = vadd.s32 %v4655, 3
        %v4673 = vand.u32 %v4672, 3
        %vm4674 = vcmp.lt.s32.totalorder %v4673, 2
        %vm4675 = vcmp.eq.s32.totalorder %v4673, 0
        %v4676 = vxor.u32 %v4670, 2147483648
        %v4677 = vsel %vm4675, %v4662, %v4676
        %vm4678 = vcmp.eq.s32.totalorder %v4673, 2
        %v4679 = vxor.u32 %v4662, 2147483648
        %v4680 = vsel %vm4678, %v4679, %v4670
        %v4681 = vsel %vm4674, %v4677, %v4680
        %v4682 = vsel %vm4671, nan, %v4681
        %v4683 = vand.u32 2147483647, %v4219
        %vm4684 = vcmp.le.f32.partialorder %v4683, 0.7853982
        %vm4685 = vcmp.lt.s32.totalorder %v4219, 0
        %v4686 = vand.u32 %v4219, 2139095040
        %v4687 = vshrl.u32 %v4686, 23
        %v4688 = vsub.s32 %v4687, 127
        %v4689 = vand.u32 2147483647, %v4219
        %v4690 = vand.u32 %v4689, 8388607
        %v4691 = vor.u32 %v4690, 8388608
        %v4692 = vsub.s32 0, %v4691
        %v4693 = vadd.s32 %v4688, 1
        %vm4694 = vcmp.gt.s32.totalorder %v4693, 0
        %v4695 = vsel %vm4694, %v4693, 0
        %v4696 = vshrl.u32 %v4695, 5
        %v4697 = vand.u32 %v4695, 31
        %v4698 = vsub.s32 32, %v4697
        %v4699 = vshrl.u32 683565275, %v4698
        %v4700 = vshll.u32 683565275, %v4697
        %v4701 = vshrl.u32 2475754826, %v4698
        %v4702 = vor.u32 %v4700, %v4701
        %v4703 = vshll.u32 2475754826, %v4697
        %v4704 = vshrl.u32 2131351028, %v4698
        %v4705 = vor.u32 %v4703, %v4704
        %v4706 = vshll.u32 2131351028, %v4697
        %v4707 = vshrl.u32 2102212464, %v4698
        %v4708 = vor.u32 %v4706, %v4707
        %v4709 = vshll.u32 2102212464, %v4697
        %v4710 = vshrl.u32 920167782, %v4698
        %v4711 = vor.u32 %v4709, %v4710
        %v4712 = vshll.u32 920167782, %v4697
        %v4713 = vshrl.u32 1326507024, %v4698
        %v4714 = vor.u32 %v4712, %v4713
        %vm4715 = vcmp.lt.s32.totalorder %v4696, 1
        %vm4716 = vcmp.lt.s32.totalorder %v4696, 2
        %vm4717 = vcmp.lt.s32.totalorder %v4696, 3
        %vm4718 = vcmp.lt.s32.totalorder %v4696, 4
        %v4719 = vsel %vm4715, %v4699, %v4702
        %v4720 = vsel %vm4718, %v4708, 2102212464
        %v4721 = vsel %vm4717, %v4705, %v4720
        %v4722 = vsel %vm4716, %v4719, %v4721
        %v4723 = vsel %vm4715, %v4702, %v4705
        %v4724 = vsel %vm4718, %v4711, 920167782
        %v4725 = vsel %vm4717, %v4708, %v4724
        %v4726 = vsel %vm4716, %v4723, %v4725
        %v4727 = vsel %vm4715, %v4705, %v4708
        %v4728 = vsel %vm4718, %v4714, 1326507024
        %v4729 = vsel %vm4717, %v4711, %v4728
        %v4730 = vsel %vm4716, %v4727, %v4729
        %v4731 = vshll.u32 %v4691, 8
        %v4732 = vand.u32 %v4731, 65535
        %v4733 = vshrl.u32 %v4731, 16
        %v4734 = vand.u32 %v4730, 65535
        %v4735 = vshrl.u32 %v4730, 16
        %v4736 = vmul.u32 %v4732, %v4734
        %v4737 = vmul.u32 %v4732, %v4735
        %v4738 = vmul.u32 %v4733, %v4734
        %v4739 = vmul.u32 %v4733, %v4735
        %v4740 = vshll.u32 %v4737, 16
        %v4741 = vshrl.u32 %v4737, 16
        %v4742 = vshll.u32 %v4738, 16
        %v4743 = vshrl.u32 %v4738, 16
        %vm4744 = vc.u32 %v4736, %v4740
        %v4745 = vsel %vm4744, 1, 0
        %v4746 = vadd.s32 %v4736, %v4740
        %v4747 = vadd.s32 %v4739, %v4745
        %vm4748 = vc.u32 %v4746, %v4742
        %v4749 = vsel %vm4748, 1, 0
        %v4750 = vadd.s32 %v4746, %v4742
        %v4751 = vadd.s32 %v4747, %v4749
        %v4752 = vadd.s32 %v4751, %v4741
        %v4753 = vadd.s32 %v4752, %v4743
        %v4754 = vand.u32 %v4731, 65535
        %v4755 = vshrl.u32 %v4731, 16
        %v4756 = vand.u32 %v4726, 65535
        %v4757 = vshrl.u32 %v4726, 16
        %v4758 = vmul.u32 %v4754, %v4756
        %v4759 = vmul.u32 %v4754, %v4757
        %v4760 = vmul.u32 %v4755, %v4756
        %v4761 = vmul.u32 %v4755, %v4757
        %v4762 = vshll.u32 %v4759, 16
        %v4763 = vshrl.u32 %v4759, 16
        %v4764 = vshll.u32 %v4760, 16
        %v4765 = vshrl.u32 %v4760, 16
        %vm4766 = vc.u32 %v4758, %v4762
        %v4767 = vsel %vm4766, 1, 0
        %v4768 = vadd.s32 %v4758, %v4762
        %v4769 = vadd.s32 %v4761, %v4767
        %vm4770 = vc.u32 %v4768, %v4764
        %v4771 = vsel %vm4770, 1, 0
        %v4772 = vadd.s32 %v4768, %v4764
        %v4773 = vadd.s32 %v4769, %v4771
        %v4774 = vadd.s32 %v4773, %v4763
        %v4775 = vadd.s32 %v4774, %v4765
        %v4776 = vmul.u32 %v4731, %v4722
        %v4777 = vadd.s32 %v4753, %v4772
        %vm4778 = vc.u32 %v4753, %v4772
        %v4779 = vadd.s32 %v4775, 1
        %v4780 = vsel %vm4778, %v4779, %v4775
        %v4781 = vadd.s32 %v4776, %v4780
        %v4782 = vadd.s32 %v4781, 536870912
        %v4783 = vshrl.u32 %v4782, 30
        %v4784 = vshll.u32 %v4783, 30
        %v4785 = vsub.s32 %v4781, %v4784
        %vm4786 = vcmp.lt.s32.totalorder %v4785, 0
        %v4787 = vsub.s32 0, %v4785
        %v4788 = vsel %vm4786, %v4787, %v4785
        %v4789 = vclz %v4788
        %v4790 = vsub.s32 %v4789, 2
        %vm4791 = vcmp.gt.s32.totalorder 0, %v4790
        %v4792 = vsel %vm4791, 0, %v4790
        %v4793 = vsub.s32 32, %v4792
        %v4794 = vshll.u32 %v4785, %v4792
        %v4795 = vshrl.u32 %v4777, %v4793
        %v4796 = vor.u32 %v4794, %v4795
        %v4797 = vsub.s32 4294967266, %v4792
        %v4798 = vadd.s32 %v4797, 127
        %v4799 = vshll.u32 %v4798, 23
        %v4800 = vor.u32 4788187, %v4799
        %v4801 = vand.u32 2147483647, %v4800
        %v4803 = vcvt.s32.f32 %v4796
        %v4804 = vmul.f32 %v4803, %v4801
        %v4805 = vxor.u32 %v4804, 2147483648
        %v4806 = vsel %vm4685, %v4805, %v4804
        %v4807 = vsub.s32 4, %v4783
        %v4808 = vsel %vm4685, %v4807, %v4783
        %v4809 = vsel %vm4684, %v4219, %v4806
        %v4810 = vsel %vm4684, 0, %v4808
        %v4811 = vmul.f32 %v4809, %v4809
        %v4812 = vmul.f32 %v4811, -0.001358992
        %v4813 = vadd.f32 %v4812, 0.041655596
        %v4814 = vmul.f32 %v4811, %v4813
        %v4815 = vadd.f32 %v4814, -0.4999988
        %v4816 = vmul.f32 %v4811, %v4815
        %v4817 = vadd.f32 1.0, %v4816
        %v4818 = vmul.f32 %v4809, %v4809
        %v4819 = vmul.f32 %v4818, -0.00019511016
        %v4820 = vadd.f32 %v4819, 0.008332121
        %v4821 = vmul.f32 %v4818, %v4820
        %v4822 = vadd.f32 %v4821, -0.16666654
        %v4823 = vmul.f32 %v4818, %v4822
        %v4824 = vadd.f32 %v4823, 1.0
        %v4825 = vmul.f32 %v4824, %v4809
        %vm4826 = vweird.f32 %v4219
        %v4827 = vadd.s32 %v4810, 3
        %v4828 = vand.u32 %v4827, 3
        %vm4829 = vcmp.lt.s32.totalorder %v4828, 2
        %vm4830 = vcmp.eq.s32.totalorder %v4828, 0
        %v4831 = vxor.u32 %v4825, 2147483648
        %v4832 = vsel %vm4830, %v4817, %v4831
        %vm4833 = vcmp.eq.s32.totalorder %v4828, 2
        %v4834 = vxor.u32 %v4817, 2147483648
        %v4835 = vsel %vm4833, %v4834, %v4825
        %v4836 = vsel %vm4829, %v4832, %v4835
        %v4837 = vsel %vm4826, nan, %v4836
        %v4840 = vrot.slane %v4527, 7
        %v4841 = vsel %vm1148, %v4840, %v4373
        %v4843 = vmul.f32 %v1137, %v4841
        %v4844 = vmul.f32 %v1138, %v4841
        %v4845 = vmul.f32 %v1139, %v4841
        %v4846 = vmul.f32 %v1140, %v4841
        %v4849 = vrot.slane %v4837, 7
        %v4850 = vsel %vm1148, %v4849, %v4682
        %v4852 = vmul.f32 %v1159, %v4850
        %v4853 = vmul.f32 %v1160, %v4850
        %v4854 = vmul.f32 %v1161, %v4850
        %v4855 = vmul.f32 %v1162, %v4850
        %v4856 = vsub.f32 %v4843, %v4852
        %v4857 = vsub.f32 %v4844, %v4853
        %v4858 = vsub.f32 %v4845, %v4854
        %v4859 = vsub.f32 %v4846, %v4855
        %4864 = vrot.lane.b32.xlu0 %v4856, 127
        %v4865 = vpop.permute.xlu0 %4864
        %4866 = vrot.lane.b32.xlu0 %v4857, 127
        %v4867 = vpop.permute.xlu0 %4866
        %4868 = vrot.lane.b32.xlu0 %v4858, 127
        %v4869 = vpop.permute.xlu0 %4868
        %4870 = vrot.lane.b32.xlu0 %v4859, 127
        %v4871 = vpop.permute.xlu0 %4870
        %v4876 = vmul.f32 %v4856, %v4865
        %v4877 = vmul.f32 %v4857, %v4867
        %v4878 = vmul.f32 %v4858, %v4869
        %v4879 = vmul.f32 %v4859, %v4871
        %4884 = vrot.lane.b32.xlu0 %v4876, 127
        %v4885 = vpop.permute.xlu0 %4884
        %4886 = vrot.lane.b32.xlu0 %v4877, 127
        %v4887 = vpop.permute.xlu0 %4886
        %4888 = vrot.lane.b32.xlu0 %v4878, 127
        %v4889 = vpop.permute.xlu0 %4888
        %4890 = vrot.lane.b32.xlu0 %v4879, 127
        %v4891 = vpop.permute.xlu0 %4890
        %v4896 = vmul.f32 %v4856, %v4885
        %v4897 = vmul.f32 %v4857, %v4887
        %v4898 = vmul.f32 %v4858, %v4889
        %v4899 = vmul.f32 %v4859, %v4891
        %4900 = vrot.lane.b32.xlu0 %v4856, 126
        %v4901 = vpop.permute.xlu0 %4900
        %4902 = vrot.lane.b32.xlu0 %v4857, 126
        %v4903 = vpop.permute.xlu0 %4902
        %4904 = vrot.lane.b32.xlu0 %v4858, 126
        %v4905 = vpop.permute.xlu0 %4904
        %4906 = vrot.lane.b32.xlu0 %v4859, 126
        %v4907 = vpop.permute.xlu0 %4906
        %v4912 = vmul.f32 %v4876, %v4901
        %v4913 = vmul.f32 %v4877, %v4903
        %v4914 = vmul.f32 %v4878, %v4905
        %v4915 = vmul.f32 %v4879, %v4907
        %4916 = vrot.lane.b32.xlu0 %v4876, 126
        %v4917 = vpop.permute.xlu0 %4916
        %4918 = vrot.lane.b32.xlu0 %v4877, 126
        %v4919 = vpop.permute.xlu0 %4918
        %4920 = vrot.lane.b32.xlu0 %v4878, 126
        %v4921 = vpop.permute.xlu0 %4920
        %4922 = vrot.lane.b32.xlu0 %v4879, 126
        %v4923 = vpop.permute.xlu0 %4922
        %v4928 = vmul.f32 %v4876, %v4917
        %v4929 = vmul.f32 %v4877, %v4919
        %v4930 = vmul.f32 %v4878, %v4921
        %v4931 = vmul.f32 %v4879, %v4923
        %4933 = vset.pattern.permute.xlu0 1
        %4934 = vperm.xlu0 %4933, %v4896
        %v4935 = vpop.permute.xlu0 %4934
        %4938 = vset.pattern.permute.xlu0 1
        %4939 = vperm.xlu0 %4938, %v4897
        %v4940 = vpop.permute.xlu0 %4939
        %4943 = vset.pattern.permute.xlu0 1
        %4944 = vperm.xlu0 %4943, %v4898
        %v4945 = vpop.permute.xlu0 %4944
        %4948 = vset.pattern.permute.xlu0 1
        %4949 = vperm.xlu0 %4948, %v4899
        %v4950 = vpop.permute.xlu0 %4949
        %v4952 = vmul.f32 %v4935, %v1272
        %v4953 = vmul.f32 %v4940, %v1272
        %v4954 = vmul.f32 %v4945, %v1272
        %v4955 = vmul.f32 %v4950, %v1272
        %4956 = vset.pattern.permute.xlu0 0
        %4957 = vperm.xlu0 %4956, %v4876
        %v4958 = vpop.permute.xlu0 %4957
        %4960 = vset.pattern.permute.xlu0 0
        %4961 = vperm.xlu0 %4960, %v4877
        %v4962 = vpop.permute.xlu0 %4961
        %4964 = vset.pattern.permute.xlu0 0
        %4965 = vperm.xlu0 %4964, %v4878
        %v4966 = vpop.permute.xlu0 %4965
        %4968 = vset.pattern.permute.xlu0 0
        %4969 = vperm.xlu0 %4968, %v4879
        %v4970 = vpop.permute.xlu0 %4969
        %v4972 = vmul.f32 %v4958, %v1293
        %v4973 = vmul.f32 %v4962, %v1293
        %v4974 = vmul.f32 %v4966, %v1293
        %v4975 = vmul.f32 %v4970, %v1293
        %v4976 = vadd.f32 %v4952, %v4972
        %v4977 = vadd.f32 %v4953, %v4973
        %v4978 = vadd.f32 %v4954, %v4974
        %v4979 = vadd.f32 %v4955, %v4975
        %4981 = vset.pattern.permute.xlu0 0
        %4982 = vperm.xlu0 %4981, %v4912
        %v4983 = vpop.permute.xlu0 %4982
        %4986 = vset.pattern.permute.xlu0 0
        %4987 = vperm.xlu0 %4986, %v4913
        %v4988 = vpop.permute.xlu0 %4987
        %4991 = vset.pattern.permute.xlu0 0
        %4992 = vperm.xlu0 %4991, %v4914
        %v4993 = vpop.permute.xlu0 %4992
        %4996 = vset.pattern.permute.xlu0 0
        %4997 = vperm.xlu0 %4996, %v4915
        %v4998 = vpop.permute.xlu0 %4997
        %v5000 = vmul.f32 %v4983, %v1322
        %v5001 = vmul.f32 %v4988, %v1322
        %v5002 = vmul.f32 %v4993, %v1322
        %v5003 = vmul.f32 %v4998, %v1322
        %v5004 = vadd.f32 %v4976, %v5000
        %v5005 = vadd.f32 %v4977, %v5001
        %v5006 = vadd.f32 %v4978, %v5002
        %v5007 = vadd.f32 %v4979, %v5003
        %5009 = vset.pattern.permute.xlu0 0
        %5010 = vperm.xlu0 %5009, %v4928
        %v5011 = vpop.permute.xlu0 %5010
        %5014 = vset.pattern.permute.xlu0 0
        %5015 = vperm.xlu0 %5014, %v4929
        %v5016 = vpop.permute.xlu0 %5015
        %5019 = vset.pattern.permute.xlu0 0
        %5020 = vperm.xlu0 %5019, %v4930
        %v5021 = vpop.permute.xlu0 %5020
        %5024 = vset.pattern.permute.xlu0 0
        %5025 = vperm.xlu0 %5024, %v4931
        %v5026 = vpop.permute.xlu0 %5025
        %v5028 = vmul.f32 %v5011, %v1351
        %v5029 = vmul.f32 %v5016, %v1351
        %v5030 = vmul.f32 %v5021, %v1351
        %v5031 = vmul.f32 %v5026, %v1351
        %v5032 = vadd.f32 %v5004, %v5028
        %v5033 = vadd.f32 %v5005, %v5029
        %v5034 = vadd.f32 %v5006, %v5030
        %v5035 = vadd.f32 %v5007, %v5031
        %v5036 = vadd.f32 %v5032, %v1361
        %v5037 = vadd.f32 %v5033, %v1361
        %v5038 = vadd.f32 %v5034, %v1361
        %v5039 = vadd.f32 %v5035, %v1361
        %v5040 = vxor.u32 %v5036, 2147483648
        %v5041 = vxor.u32 %v5037, 2147483648
        %v5042 = vxor.u32 %v5038, 2147483648
        %v5043 = vmul.f32 %v5040, 1.442695
        %v5044 = vpow.pop %v5043
        %v5045 = vmul.f32 %v5041, 1.442695
        %v5046 = vpow.pop %v5045
        %v5047 = vmul.f32 %v5042, 1.442695
        %v5048 = vpow.pop %v5047
        %v5049 = vadd.f32 %v5044, 1.0
        %v5050 = vadd.f32 %v5046, 1.0
        %v5051 = vadd.f32 %v5048, 1.0
        %v5052 = vrcp.pop %v5049
        %v5053 = vmul.f32 %v5049, %v5052
        %v5054 = vsub.f32 1.0, %v5053
        %v5055 = vmul.f32 %v5052, %v5054
        %v5056 = vadd.f32 %v5052, %v5055
        %vm5057 = vweird.f32 %v5049
        %vm5058 = vweird.f32 %v5052
        %vm5059 = vmor %vm5057, %vm5058
        %v5060 = vsel %vm5059, %v5052, %v5056
        %v5061 = vand.u32 2147483647, %v5049
        %vm5062 = vcmp.eq.f32.partialorder %v5061, 8.507059e+37
        %v5063 = vand.u32 %v5049, 2147483648
        %v5064 = vor.u32 1.1754944e-38, %v5063
        %v5065 = vsel %vm5062, %v5064, %v5060
        %v5066 = vmul.f32 1.0, %v5065
        %v5067 = vrcp.pop %v5050
        %v5068 = vmul.f32 %v5050, %v5067
        %v5069 = vsub.f32 1.0, %v5068
        %v5070 = vmul.f32 %v5067, %v5069
        %v5071 = vadd.f32 %v5067, %v5070
        %vm5072 = vweird.f32 %v5050
        %vm5073 = vweird.f32 %v5067
        %vm5074 = vmor %vm5072, %vm5073
        %v5075 = vsel %vm5074, %v5067, %v5071
        %v5076 = vand.u32 2147483647, %v5050
        %vm5077 = vcmp.eq.f32.partialorder %v5076, 8.507059e+37
        %v5078 = vand.u32 %v5050, 2147483648
        %v5079 = vor.u32 1.1754944e-38, %v5078
        %v5080 = vsel %vm5077, %v5079, %v5075
        %v5081 = vmul.f32 1.0, %v5080
        %v5082 = vrcp.pop %v5051
        %v5083 = vmul.f32 %v5051, %v5082
        %v5084 = vsub.f32 1.0, %v5083
        %v5085 = vmul.f32 %v5082, %v5084
        %v5086 = vadd.f32 %v5082, %v5085
        %vm5087 = vweird.f32 %v5051
        %vm5088 = vweird.f32 %v5082
        %vm5089 = vmor %vm5087, %vm5088
        %v5090 = vsel %vm5089, %v5082, %v5086
        %v5091 = vand.u32 2147483647, %v5051
        %vm5092 = vcmp.eq.f32.partialorder %v5091, 8.507059e+37
        %v5093 = vand.u32 %v5051, 2147483648
        %v5094 = vor.u32 1.1754944e-38, %v5093
        %v5095 = vsel %vm5092, %v5094, %v5090
        %v5096 = vmul.f32 1.0, %v5095
        %v5097 = vtanh.pop %v5039
        %v5098 = vmul.f32 %v5066, %v4181
        %v5099 = vmul.f32 %v5081, %v5097
        %v5100 = vadd.f32 %v5098, %v5099
        %v5101 = vtanh.pop %v5100
        %v5102 = vmul.f32 %v5096, %v5101
        %5103 = vst.msk [vmem:[%s443 + $0x2] sm:$0x3] %vm1430, %v5102
        %v5104 = vld [vmem:[%s405 + $0x5] sm:$0x1]
        %v5105 = vld [vmem:[%s405 + $0xd] sm:$0x1]
        %v5107 = vsel %vm485, %v5102, 0
        %5109 = vmatpush.msra.mxu0 0.0
        %5110 = vmatpush.msra.mxu0 0.0
        %5111 = vmatpush.msra.mxu0 0.0
        %5112 = vmatpush.msra.mxu0 0.0
        %5113 = vmatpush.msra.mxu0 0.0
        %5114 = vmatpush.msra.mxu0 0.0
        %5115 = vmatpush.msra.mxu0 0.0
        %5116 = vmatpush.msra.mxu0 0.0
        %5117 = vmatpush.msra.mxu0 0.0
        %5118 = vmatpush.msra.mxu0 0.0
        %5119 = vmatpush.msra.mxu0 0.0
        %5120 = vmatpush.msra.mxu0 0.0
        %5121 = vmatpush.msra.mxu0 %v470
        %5122 = vmatpush.msra.mxu0 %v469
        %5123 = vmatpush.msra.mxu0 %v468
        %5124 = vmatpush.msra.mxu0 %v467
        %5125 = vmatmul.f32.gmra.mxu0 %v5107
        %v5126 = vpop.f32.mrf.mxu0
        %v5127 = vadd.f32 0.0, %v5126
        %5128 = vdwg.mxu0
        %v5130 = vrot.slane %v5127, 1
        %v5133 = vadd.f32 %v5104, %v5127
        %v5134 = vadd.f32 %v5105, %v5130
        %v5135 = vand.u32 2147483647, %v5133
        %vm5136 = vcmp.le.f32.partialorder %v5135, 0.7853982
        %vm5137 = vcmp.lt.s32.totalorder %v5133, 0
        %v5138 = vand.u32 %v5133, 2139095040
        %v5139 = vshrl.u32 %v5138, 23
        %v5140 = vsub.s32 %v5139, 127
        %v5141 = vand.u32 2147483647, %v5133
        %v5142 = vand.u32 %v5141, 8388607
        %v5143 = vor.u32 %v5142, 8388608
        %v5144 = vsub.s32 0, %v5143
        %v5145 = vadd.s32 %v5140, 1
        %vm5146 = vcmp.gt.s32.totalorder %v5145, 0
        %v5147 = vsel %vm5146, %v5145, 0
        %v5148 = vshrl.u32 %v5147, 5
        %v5149 = vand.u32 %v5147, 31
        %v5150 = vsub.s32 32, %v5149
        %v5151 = vshrl.u32 683565275, %v5150
        %v5152 = vshll.u32 683565275, %v5149
        %v5153 = vshrl.u32 2475754826, %v5150
        %v5154 = vor.u32 %v5152, %v5153
        %v5155 = vshll.u32 2475754826, %v5149
        %v5156 = vshrl.u32 2131351028, %v5150
        %v5157 = vor.u32 %v5155, %v5156
        %v5158 = vshll.u32 2131351028, %v5149
        %v5159 = vshrl.u32 2102212464, %v5150
        %v5160 = vor.u32 %v5158, %v5159
        %v5161 = vshll.u32 2102212464, %v5149
        %v5162 = vshrl.u32 920167782, %v5150
        %v5163 = vor.u32 %v5161, %v5162
        %v5164 = vshll.u32 920167782, %v5149
        %v5165 = vshrl.u32 1326507024, %v5150
        %v5166 = vor.u32 %v5164, %v5165
        %vm5167 = vcmp.lt.s32.totalorder %v5148, 1
        %vm5168 = vcmp.lt.s32.totalorder %v5148, 2
        %vm5169 = vcmp.lt.s32.totalorder %v5148, 3
        %vm5170 = vcmp.lt.s32.totalorder %v5148, 4
        %v5171 = vsel %vm5167, %v5151, %v5154
        %v5172 = vsel %vm5170, %v5160, 2102212464
        %v5173 = vsel %vm5169, %v5157, %v5172
        %v5174 = vsel %vm5168, %v5171, %v5173
        %v5175 = vsel %vm5167, %v5154, %v5157
        %v5176 = vsel %vm5170, %v5163, 920167782
        %v5177 = vsel %vm5169, %v5160, %v5176
        %v5178 = vsel %vm5168, %v5175, %v5177
        %v5179 = vsel %vm5167, %v5157, %v5160
        %v5180 = vsel %vm5170, %v5166, 1326507024
        %v5181 = vsel %vm5169, %v5163, %v5180
        %v5182 = vsel %vm5168, %v5179, %v5181
        %v5183 = vshll.u32 %v5143, 8
        %v5184 = vand.u32 %v5183, 65535
        %v5185 = vshrl.u32 %v5183, 16
        %v5186 = vand.u32 %v5182, 65535
        %v5187 = vshrl.u32 %v5182, 16
        %v5188 = vmul.u32 %v5184, %v5186
        %v5189 = vmul.u32 %v5184, %v5187
        %v5190 = vmul.u32 %v5185, %v5186
        %v5191 = vmul.u32 %v5185, %v5187
        %v5192 = vshll.u32 %v5189, 16
        %v5193 = vshrl.u32 %v5189, 16
        %v5194 = vshll.u32 %v5190, 16
        %v5195 = vshrl.u32 %v5190, 16
        %vm5196 = vc.u32 %v5188, %v5192
        %v5197 = vsel %vm5196, 1, 0
        %v5198 = vadd.s32 %v5188, %v5192
        %v5199 = vadd.s32 %v5191, %v5197
        %vm5200 = vc.u32 %v5198, %v5194
        %v5201 = vsel %vm5200, 1, 0
        %v5202 = vadd.s32 %v5198, %v5194
        %v5203 = vadd.s32 %v5199, %v5201
        %v5204 = vadd.s32 %v5203, %v5193
        %v5205 = vadd.s32 %v5204, %v5195
        %v5206 = vand.u32 %v5183, 65535
        %v5207 = vshrl.u32 %v5183, 16
        %v5208 = vand.u32 %v5178, 65535
        %v5209 = vshrl.u32 %v5178, 16
        %v5210 = vmul.u32 %v5206, %v5208
        %v5211 = vmul.u32 %v5206, %v5209
        %v5212 = vmul.u32 %v5207, %v5208
        %v5213 = vmul.u32 %v5207, %v5209
        %v5214 = vshll.u32 %v5211, 16
        %v5215 = vshrl.u32 %v5211, 16
        %v5216 = vshll.u32 %v5212, 16
        %v5217 = vshrl.u32 %v5212, 16
        %vm5218 = vc.u32 %v5210, %v5214
        %v5219 = vsel %vm5218, 1, 0
        %v5220 = vadd.s32 %v5210, %v5214
        %v5221 = vadd.s32 %v5213, %v5219
        %vm5222 = vc.u32 %v5220, %v5216
        %v5223 = vsel %vm5222, 1, 0
        %v5224 = vadd.s32 %v5220, %v5216
        %v5225 = vadd.s32 %v5221, %v5223
        %v5226 = vadd.s32 %v5225, %v5215
        %v5227 = vadd.s32 %v5226, %v5217
        %v5228 = vmul.u32 %v5183, %v5174
        %v5229 = vadd.s32 %v5205, %v5224
        %vm5230 = vc.u32 %v5205, %v5224
        %v5231 = vadd.s32 %v5227, 1
        %v5232 = vsel %vm5230, %v5231, %v5227
        %v5233 = vadd.s32 %v5228, %v5232
        %v5234 = vadd.s32 %v5233, 536870912
        %v5235 = vshrl.u32 %v5234, 30
        %v5236 = vshll.u32 %v5235, 30
        %v5237 = vsub.s32 %v5233, %v5236
        %vm5238 = vcmp.lt.s32.totalorder %v5237, 0
        %v5239 = vsub.s32 0, %v5237
        %v5240 = vsel %vm5238, %v5239, %v5237
        %v5241 = vclz %v5240
        %v5242 = vsub.s32 %v5241, 2
        %vm5243 = vcmp.gt.s32.totalorder 0, %v5242
        %v5244 = vsel %vm5243, 0, %v5242
        %v5245 = vsub.s32 32, %v5244
        %v5246 = vshll.u32 %v5237, %v5244
        %v5247 = vshrl.u32 %v5229, %v5245
        %v5248 = vor.u32 %v5246, %v5247
        %v5249 = vsub.s32 4294967266, %v5244
        %v5250 = vadd.s32 %v5249, 127
        %v5251 = vshll.u32 %v5250, 23
        %v5252 = vor.u32 4788187, %v5251
        %v5253 = vand.u32 2147483647, %v5252
        %v5255 = vcvt.s32.f32 %v5248
        %v5256 = vmul.f32 %v5255, %v5253
        %v5257 = vxor.u32 %v5256, 2147483648
        %v5258 = vsel %vm5137, %v5257, %v5256
        %v5259 = vsub.s32 4, %v5235
        %v5260 = vsel %vm5137, %v5259, %v5235
        %v5261 = vsel %vm5136, %v5133, %v5258
        %v5262 = vsel %vm5136, 0, %v5260
        %v5263 = vmul.f32 %v5261, %v5261
        %v5264 = vmul.f32 %v5263, -0.001358992
        %v5265 = vadd.f32 %v5264, 0.041655596
        %v5266 = vmul.f32 %v5263, %v5265
        %v5267 = vadd.f32 %v5266, -0.4999988
        %v5268 = vmul.f32 %v5263, %v5267
        %v5269 = vadd.f32 1.0, %v5268
        %v5270 = vmul.f32 %v5261, %v5261
        %v5271 = vmul.f32 %v5270, -0.00019511016
        %v5272 = vadd.f32 %v5271, 0.008332121
        %v5273 = vmul.f32 %v5270, %v5272
        %v5274 = vadd.f32 %v5273, -0.16666654
        %v5275 = vmul.f32 %v5270, %v5274
        %v5276 = vadd.f32 %v5275, 1.0
        %v5277 = vmul.f32 %v5276, %v5261
        %vm5278 = vweird.f32 %v5133
        %v5279 = vand.u32 %v5262, 3
        %vm5280 = vcmp.lt.s32.totalorder %v5279, 2
        %vm5281 = vcmp.eq.s32.totalorder %v5279, 0
        %v5282 = vxor.u32 %v5277, 2147483648
        %v5283 = vsel %vm5281, %v5269, %v5282
        %vm5284 = vcmp.eq.s32.totalorder %v5279, 2
        %v5285 = vxor.u32 %v5269, 2147483648
        %v5286 = vsel %vm5284, %v5285, %v5277
        %v5287 = vsel %vm5280, %v5283, %v5286
        %v5288 = vsel %vm5278, nan, %v5287
        %v5289 = vand.u32 2147483647, %v5134
        %vm5290 = vcmp.le.f32.partialorder %v5289, 0.7853982
        %vm5291 = vcmp.lt.s32.totalorder %v5134, 0
        %v5292 = vand.u32 %v5134, 2139095040
        %v5293 = vshrl.u32 %v5292, 23
        %v5294 = vsub.s32 %v5293, 127
        %v5295 = vand.u32 2147483647, %v5134
        %v5296 = vand.u32 %v5295, 8388607
        %v5297 = vor.u32 %v5296, 8388608
        %v5298 = vsub.s32 0, %v5297
        %v5299 = vadd.s32 %v5294, 1
        %vm5300 = vcmp.gt.s32.totalorder %v5299, 0
        %v5301 = vsel %vm5300, %v5299, 0
        %v5302 = vshrl.u32 %v5301, 5
        %v5303 = vand.u32 %v5301, 31
        %v5304 = vsub.s32 32, %v5303
        %v5305 = vshrl.u32 683565275, %v5304
        %v5306 = vshll.u32 683565275, %v5303
        %v5307 = vshrl.u32 2475754826, %v5304
        %v5308 = vor.u32 %v5306, %v5307
        %v5309 = vshll.u32 2475754826, %v5303
        %v5310 = vshrl.u32 2131351028, %v5304
        %v5311 = vor.u32 %v5309, %v5310
        %v5312 = vshll.u32 2131351028, %v5303
        %v5313 = vshrl.u32 2102212464, %v5304
        %v5314 = vor.u32 %v5312, %v5313
        %v5315 = vshll.u32 2102212464, %v5303
        %v5316 = vshrl.u32 920167782, %v5304
        %v5317 = vor.u32 %v5315, %v5316
        %v5318 = vshll.u32 920167782, %v5303
        %v5319 = vshrl.u32 1326507024, %v5304
        %v5320 = vor.u32 %v5318, %v5319
        %vm5321 = vcmp.lt.s32.totalorder %v5302, 1
        %vm5322 = vcmp.lt.s32.totalorder %v5302, 2
        %vm5323 = vcmp.lt.s32.totalorder %v5302, 3
        %vm5324 = vcmp.lt.s32.totalorder %v5302, 4
        %v5325 = vsel %vm5321, %v5305, %v5308
        %v5326 = vsel %vm5324, %v5314, 2102212464
        %v5327 = vsel %vm5323, %v5311, %v5326
        %v5328 = vsel %vm5322, %v5325, %v5327
        %v5329 = vsel %vm5321, %v5308, %v5311
        %v5330 = vsel %vm5324, %v5317, 920167782
        %v5331 = vsel %vm5323, %v5314, %v5330
        %v5332 = vsel %vm5322, %v5329, %v5331
        %v5333 = vsel %vm5321, %v5311, %v5314
        %v5334 = vsel %vm5324, %v5320, 1326507024
        %v5335 = vsel %vm5323, %v5317, %v5334
        %v5336 = vsel %vm5322, %v5333, %v5335
        %v5337 = vshll.u32 %v5297, 8
        %v5338 = vand.u32 %v5337, 65535
        %v5339 = vshrl.u32 %v5337, 16
        %v5340 = vand.u32 %v5336, 65535
        %v5341 = vshrl.u32 %v5336, 16
        %v5342 = vmul.u32 %v5338, %v5340
        %v5343 = vmul.u32 %v5338, %v5341
        %v5344 = vmul.u32 %v5339, %v5340
        %v5345 = vmul.u32 %v5339, %v5341
        %v5346 = vshll.u32 %v5343, 16
        %v5347 = vshrl.u32 %v5343, 16
        %v5348 = vshll.u32 %v5344, 16
        %v5349 = vshrl.u32 %v5344, 16
        %vm5350 = vc.u32 %v5342, %v5346
        %v5351 = vsel %vm5350, 1, 0
        %v5352 = vadd.s32 %v5342, %v5346
        %v5353 = vadd.s32 %v5345, %v5351
        %vm5354 = vc.u32 %v5352, %v5348
        %v5355 = vsel %vm5354, 1, 0
        %v5356 = vadd.s32 %v5352, %v5348
        %v5357 = vadd.s32 %v5353, %v5355
        %v5358 = vadd.s32 %v5357, %v5347
        %v5359 = vadd.s32 %v5358, %v5349
        %v5360 = vand.u32 %v5337, 65535
        %v5361 = vshrl.u32 %v5337, 16
        %v5362 = vand.u32 %v5332, 65535
        %v5363 = vshrl.u32 %v5332, 16
        %v5364 = vmul.u32 %v5360, %v5362
        %v5365 = vmul.u32 %v5360, %v5363
        %v5366 = vmul.u32 %v5361, %v5362
        %v5367 = vmul.u32 %v5361, %v5363
        %v5368 = vshll.u32 %v5365, 16
        %v5369 = vshrl.u32 %v5365, 16
        %v5370 = vshll.u32 %v5366, 16
        %v5371 = vshrl.u32 %v5366, 16
        %vm5372 = vc.u32 %v5364, %v5368
        %v5373 = vsel %vm5372, 1, 0
        %v5374 = vadd.s32 %v5364, %v5368
        %v5375 = vadd.s32 %v5367, %v5373
        %vm5376 = vc.u32 %v5374, %v5370
        %v5377 = vsel %vm5376, 1, 0
        %v5378 = vadd.s32 %v5374, %v5370
        %v5379 = vadd.s32 %v5375, %v5377
        %v5380 = vadd.s32 %v5379, %v5369
        %v5381 = vadd.s32 %v5380, %v5371
        %v5382 = vmul.u32 %v5337, %v5328
        %v5383 = vadd.s32 %v5359, %v5378
        %vm5384 = vc.u32 %v5359, %v5378
        %v5385 = vadd.s32 %v5381, 1
        %v5386 = vsel %vm5384, %v5385, %v5381
        %v5387 = vadd.s32 %v5382, %v5386
        %v5388 = vadd.s32 %v5387, 536870912
        %v5389 = vshrl.u32 %v5388, 30
        %v5390 = vshll.u32 %v5389, 30
        %v5391 = vsub.s32 %v5387, %v5390
        %vm5392 = vcmp.lt.s32.totalorder %v5391, 0
        %v5393 = vsub.s32 0, %v5391
        %v5394 = vsel %vm5392, %v5393, %v5391
        %v5395 = vclz %v5394
        %v5396 = vsub.s32 %v5395, 2
        %vm5397 = vcmp.gt.s32.totalorder 0, %v5396
        %v5398 = vsel %vm5397, 0, %v5396
        %v5399 = vsub.s32 32, %v5398
        %v5400 = vshll.u32 %v5391, %v5398
        %v5401 = vshrl.u32 %v5383, %v5399
        %v5402 = vor.u32 %v5400, %v5401
        %v5403 = vsub.s32 4294967266, %v5398
        %v5404 = vadd.s32 %v5403, 127
        %v5405 = vshll.u32 %v5404, 23
        %v5406 = vor.u32 4788187, %v5405
        %v5407 = vand.u32 2147483647, %v5406
        %v5409 = vcvt.s32.f32 %v5402
        %v5410 = vmul.f32 %v5409, %v5407
        %v5411 = vxor.u32 %v5410, 2147483648
        %v5412 = vsel %vm5291, %v5411, %v5410
        %v5413 = vsub.s32 4, %v5389
        %v5414 = vsel %vm5291, %v5413, %v5389
        %v5415 = vsel %vm5290, %v5134, %v5412
        %v5416 = vsel %vm5290, 0, %v5414
        %v5417 = vmul.f32 %v5415, %v5415
        %v5418 = vmul.f32 %v5417, -0.001358992
        %v5419 = vadd.f32 %v5418, 0.041655596
        %v5420 = vmul.f32 %v5417, %v5419
        %v5421 = vadd.f32 %v5420, -0.4999988
        %v5422 = vmul.f32 %v5417, %v5421
        %v5423 = vadd.f32 1.0, %v5422
        %v5424 = vmul.f32 %v5415, %v5415
        %v5425 = vmul.f32 %v5424, -0.00019511016
        %v5426 = vadd.f32 %v5425, 0.008332121
        %v5427 = vmul.f32 %v5424, %v5426
        %v5428 = vadd.f32 %v5427, -0.16666654
        %v5429 = vmul.f32 %v5424, %v5428
        %v5430 = vadd.f32 %v5429, 1.0
        %v5431 = vmul.f32 %v5430, %v5415
        %vm5432 = vweird.f32 %v5134
        %v5433 = vand.u32 %v5416, 3
        %vm5434 = vcmp.lt.s32.totalorder %v5433, 2
        %vm5435 = vcmp.eq.s32.totalorder %v5433, 0
        %v5436 = vxor.u32 %v5431, 2147483648
        %v5437 = vsel %vm5435, %v5423, %v5436
        %vm5438 = vcmp.eq.s32.totalorder %v5433, 2
        %v5439 = vxor.u32 %v5423, 2147483648
        %v5440 = vsel %vm5438, %v5439, %v5431
        %v5441 = vsel %vm5434, %v5437, %v5440
        %v5442 = vsel %vm5432, nan, %v5441
        %v5443 = vand.u32 2147483647, %v5133
        %vm5444 = vcmp.le.f32.partialorder %v5443, 0.7853982
        %vm5445 = vcmp.lt.s32.totalorder %v5133, 0
        %v5446 = vand.u32 %v5133, 2139095040
        %v5447 = vshrl.u32 %v5446, 23
        %v5448 = vsub.s32 %v5447, 127
        %v5449 = vand.u32 2147483647, %v5133
        %v5450 = vand.u32 %v5449, 8388607
        %v5451 = vor.u32 %v5450, 8388608
        %v5452 = vsub.s32 0, %v5451
        %v5453 = vadd.s32 %v5448, 1
        %vm5454 = vcmp.gt.s32.totalorder %v5453, 0
        %v5455 = vsel %vm5454, %v5453, 0
        %v5456 = vshrl.u32 %v5455, 5
        %v5457 = vand.u32 %v5455, 31
        %v5458 = vsub.s32 32, %v5457
        %v5459 = vshrl.u32 683565275, %v5458
        %v5460 = vshll.u32 683565275, %v5457
        %v5461 = vshrl.u32 2475754826, %v5458
        %v5462 = vor.u32 %v5460, %v5461
        %v5463 = vshll.u32 2475754826, %v5457
        %v5464 = vshrl.u32 2131351028, %v5458
        %v5465 = vor.u32 %v5463, %v5464
        %v5466 = vshll.u32 2131351028, %v5457
        %v5467 = vshrl.u32 2102212464, %v5458
        %v5468 = vor.u32 %v5466, %v5467
        %v5469 = vshll.u32 2102212464, %v5457
        %v5470 = vshrl.u32 920167782, %v5458
        %v5471 = vor.u32 %v5469, %v5470
        %v5472 = vshll.u32 920167782, %v5457
        %v5473 = vshrl.u32 1326507024, %v5458
        %v5474 = vor.u32 %v5472, %v5473
        %vm5475 = vcmp.lt.s32.totalorder %v5456, 1
        %vm5476 = vcmp.lt.s32.totalorder %v5456, 2
        %vm5477 = vcmp.lt.s32.totalorder %v5456, 3
        %vm5478 = vcmp.lt.s32.totalorder %v5456, 4
        %v5479 = vsel %vm5475, %v5459, %v5462
        %v5480 = vsel %vm5478, %v5468, 2102212464
        %v5481 = vsel %vm5477, %v5465, %v5480
        %v5482 = vsel %vm5476, %v5479, %v5481
        %v5483 = vsel %vm5475, %v5462, %v5465
        %v5484 = vsel %vm5478, %v5471, 920167782
        %v5485 = vsel %vm5477, %v5468, %v5484
        %v5486 = vsel %vm5476, %v5483, %v5485
        %v5487 = vsel %vm5475, %v5465, %v5468
        %v5488 = vsel %vm5478, %v5474, 1326507024
        %v5489 = vsel %vm5477, %v5471, %v5488
        %v5490 = vsel %vm5476, %v5487, %v5489
        %v5491 = vshll.u32 %v5451, 8
        %v5492 = vand.u32 %v5491, 65535
        %v5493 = vshrl.u32 %v5491, 16
        %v5494 = vand.u32 %v5490, 65535
        %v5495 = vshrl.u32 %v5490, 16
        %v5496 = vmul.u32 %v5492, %v5494
        %v5497 = vmul.u32 %v5492, %v5495
        %v5498 = vmul.u32 %v5493, %v5494
        %v5499 = vmul.u32 %v5493, %v5495
        %v5500 = vshll.u32 %v5497, 16
        %v5501 = vshrl.u32 %v5497, 16
        %v5502 = vshll.u32 %v5498, 16
        %v5503 = vshrl.u32 %v5498, 16
        %vm5504 = vc.u32 %v5496, %v5500
        %v5505 = vsel %vm5504, 1, 0
        %v5506 = vadd.s32 %v5496, %v5500
        %v5507 = vadd.s32 %v5499, %v5505
        %vm5508 = vc.u32 %v5506, %v5502
        %v5509 = vsel %vm5508, 1, 0
        %v5510 = vadd.s32 %v5506, %v5502
        %v5511 = vadd.s32 %v5507, %v5509
        %v5512 = vadd.s32 %v5511, %v5501
        %v5513 = vadd.s32 %v5512, %v5503
        %v5514 = vand.u32 %v5491, 65535
        %v5515 = vshrl.u32 %v5491, 16
        %v5516 = vand.u32 %v5486, 65535
        %v5517 = vshrl.u32 %v5486, 16
        %v5518 = vmul.u32 %v5514, %v5516
        %v5519 = vmul.u32 %v5514, %v5517
        %v5520 = vmul.u32 %v5515, %v5516
        %v5521 = vmul.u32 %v5515, %v5517
        %v5522 = vshll.u32 %v5519, 16
        %v5523 = vshrl.u32 %v5519, 16
        %v5524 = vshll.u32 %v5520, 16
        %v5525 = vshrl.u32 %v5520, 16
        %vm5526 = vc.u32 %v5518, %v5522
        %v5527 = vsel %vm5526, 1, 0
        %v5528 = vadd.s32 %v5518, %v5522
        %v5529 = vadd.s32 %v5521, %v5527
        %vm5530 = vc.u32 %v5528, %v5524
        %v5531 = vsel %vm5530, 1, 0
        %v5532 = vadd.s32 %v5528, %v5524
        %v5533 = vadd.s32 %v5529, %v5531
        %v5534 = vadd.s32 %v5533, %v5523
        %v5535 = vadd.s32 %v5534, %v5525
        %v5536 = vmul.u32 %v5491, %v5482
        %v5537 = vadd.s32 %v5513, %v5532
        %vm5538 = vc.u32 %v5513, %v5532
        %v5539 = vadd.s32 %v5535, 1
        %v5540 = vsel %vm5538, %v5539, %v5535
        %v5541 = vadd.s32 %v5536, %v5540
        %v5542 = vadd.s32 %v5541, 536870912
        %v5543 = vshrl.u32 %v5542, 30
        %v5544 = vshll.u32 %v5543, 30
        %v5545 = vsub.s32 %v5541, %v5544
        %vm5546 = vcmp.lt.s32.totalorder %v5545, 0
        %v5547 = vsub.s32 0, %v5545
        %v5548 = vsel %vm5546, %v5547, %v5545
        %v5549 = vclz %v5548
        %v5550 = vsub.s32 %v5549, 2
        %vm5551 = vcmp.gt.s32.totalorder 0, %v5550
        %v5552 = vsel %vm5551, 0, %v5550
        %v5553 = vsub.s32 32, %v5552
        %v5554 = vshll.u32 %v5545, %v5552
        %v5555 = vshrl.u32 %v5537, %v5553
        %v5556 = vor.u32 %v5554, %v5555
        %v5557 = vsub.s32 4294967266, %v5552
        %v5558 = vadd.s32 %v5557, 127
        %v5559 = vshll.u32 %v5558, 23
        %v5560 = vor.u32 4788187, %v5559
        %v5561 = vand.u32 2147483647, %v5560
        %v5563 = vcvt.s32.f32 %v5556
        %v5564 = vmul.f32 %v5563, %v5561
        %v5565 = vxor.u32 %v5564, 2147483648
        %v5566 = vsel %vm5445, %v5565, %v5564
        %v5567 = vsub.s32 4, %v5543
        %v5568 = vsel %vm5445, %v5567, %v5543
        %v5569 = vsel %vm5444, %v5133, %v5566
        %v5570 = vsel %vm5444, 0, %v5568
        %v5571 = vmul.f32 %v5569, %v5569
        %v5572 = vmul.f32 %v5571, -0.001358992
        %v5573 = vadd.f32 %v5572, 0.041655596
        %v5574 = vmul.f32 %v5571, %v5573
        %v5575 = vadd.f32 %v5574, -0.4999988
        %v5576 = vmul.f32 %v5571, %v5575
        %v5577 = vadd.f32 1.0, %v5576
        %v5578 = vmul.f32 %v5569, %v5569
        %v5579 = vmul.f32 %v5578, -0.00019511016
        %v5580 = vadd.f32 %v5579, 0.008332121
        %v5581 = vmul.f32 %v5578, %v5580
        %v5582 = vadd.f32 %v5581, -0.16666654
        %v5583 = vmul.f32 %v5578, %v5582
        %v5584 = vadd.f32 %v5583, 1.0
        %v5585 = vmul.f32 %v5584, %v5569
        %vm5586 = vweird.f32 %v5133
        %v5587 = vadd.s32 %v5570, 3
        %v5588 = vand.u32 %v5587, 3
        %vm5589 = vcmp.lt.s32.totalorder %v5588, 2
        %vm5590 = vcmp.eq.s32.totalorder %v5588, 0
        %v5591 = vxor.u32 %v5585, 2147483648
        %v5592 = vsel %vm5590, %v5577, %v5591
        %vm5593 = vcmp.eq.s32.totalorder %v5588, 2
        %v5594 = vxor.u32 %v5577, 2147483648
        %v5595 = vsel %vm5593, %v5594, %v5585
        %v5596 = vsel %vm5589, %v5592, %v5595
        %v5597 = vsel %vm5586, nan, %v5596
        %v5598 = vand.u32 2147483647, %v5134
        %vm5599 = vcmp.le.f32.partialorder %v5598, 0.7853982
        %vm5600 = vcmp.lt.s32.totalorder %v5134, 0
        %v5601 = vand.u32 %v5134, 2139095040
        %v5602 = vshrl.u32 %v5601, 23
        %v5603 = vsub.s32 %v5602, 127
        %v5604 = vand.u32 2147483647, %v5134
        %v5605 = vand.u32 %v5604, 8388607
        %v5606 = vor.u32 %v5605, 8388608
        %v5607 = vsub.s32 0, %v5606
        %v5608 = vadd.s32 %v5603, 1
        %vm5609 = vcmp.gt.s32.totalorder %v5608, 0
        %v5610 = vsel %vm5609, %v5608, 0
        %v5611 = vshrl.u32 %v5610, 5
        %v5612 = vand.u32 %v5610, 31
        %v5613 = vsub.s32 32, %v5612
        %v5614 = vshrl.u32 683565275, %v5613
        %v5615 = vshll.u32 683565275, %v5612
        %v5616 = vshrl.u32 2475754826, %v5613
        %v5617 = vor.u32 %v5615, %v5616
        %v5618 = vshll.u32 2475754826, %v5612
        %v5619 = vshrl.u32 2131351028, %v5613
        %v5620 = vor.u32 %v5618, %v5619
        %v5621 = vshll.u32 2131351028, %v5612
        %v5622 = vshrl.u32 2102212464, %v5613
        %v5623 = vor.u32 %v5621, %v5622
        %v5624 = vshll.u32 2102212464, %v5612
        %v5625 = vshrl.u32 920167782, %v5613
        %v5626 = vor.u32 %v5624, %v5625
        %v5627 = vshll.u32 920167782, %v5612
        %v5628 = vshrl.u32 1326507024, %v5613
        %v5629 = vor.u32 %v5627, %v5628
        %vm5630 = vcmp.lt.s32.totalorder %v5611, 1
        %vm5631 = vcmp.lt.s32.totalorder %v5611, 2
        %vm5632 = vcmp.lt.s32.totalorder %v5611, 3
        %vm5633 = vcmp.lt.s32.totalorder %v5611, 4
        %v5634 = vsel %vm5630, %v5614, %v5617
        %v5635 = vsel %vm5633, %v5623, 2102212464
        %v5636 = vsel %vm5632, %v5620, %v5635
        %v5637 = vsel %vm5631, %v5634, %v5636
        %v5638 = vsel %vm5630, %v5617, %v5620
        %v5639 = vsel %vm5633, %v5626, 920167782
        %v5640 = vsel %vm5632, %v5623, %v5639
        %v5641 = vsel %vm5631, %v5638, %v5640
        %v5642 = vsel %vm5630, %v5620, %v5623
        %v5643 = vsel %vm5633, %v5629, 1326507024
        %v5644 = vsel %vm5632, %v5626, %v5643
        %v5645 = vsel %vm5631, %v5642, %v5644
        %v5646 = vshll.u32 %v5606, 8
        %v5647 = vand.u32 %v5646, 65535
        %v5648 = vshrl.u32 %v5646, 16
        %v5649 = vand.u32 %v5645, 65535
        %v5650 = vshrl.u32 %v5645, 16
        %v5651 = vmul.u32 %v5647, %v5649
        %v5652 = vmul.u32 %v5647, %v5650
        %v5653 = vmul.u32 %v5648, %v5649
        %v5654 = vmul.u32 %v5648, %v5650
        %v5655 = vshll.u32 %v5652, 16
        %v5656 = vshrl.u32 %v5652, 16
        %v5657 = vshll.u32 %v5653, 16
        %v5658 = vshrl.u32 %v5653, 16
        %vm5659 = vc.u32 %v5651, %v5655
        %v5660 = vsel %vm5659, 1, 0
        %v5661 = vadd.s32 %v5651, %v5655
        %v5662 = vadd.s32 %v5654, %v5660
        %vm5663 = vc.u32 %v5661, %v5657
        %v5664 = vsel %vm5663, 1, 0
        %v5665 = vadd.s32 %v5661, %v5657
        %v5666 = vadd.s32 %v5662, %v5664
        %v5667 = vadd.s32 %v5666, %v5656
        %v5668 = vadd.s32 %v5667, %v5658
        %v5669 = vand.u32 %v5646, 65535
        %v5670 = vshrl.u32 %v5646, 16
        %v5671 = vand.u32 %v5641, 65535
        %v5672 = vshrl.u32 %v5641, 16
        %v5673 = vmul.u32 %v5669, %v5671
        %v5674 = vmul.u32 %v5669, %v5672
        %v5675 = vmul.u32 %v5670, %v5671
        %v5676 = vmul.u32 %v5670, %v5672
        %v5677 = vshll.u32 %v5674, 16
        %v5678 = vshrl.u32 %v5674, 16
        %v5679 = vshll.u32 %v5675, 16
        %v5680 = vshrl.u32 %v5675, 16
        %vm5681 = vc.u32 %v5673, %v5677
        %v5682 = vsel %vm5681, 1, 0
        %v5683 = vadd.s32 %v5673, %v5677
        %v5684 = vadd.s32 %v5676, %v5682
        %vm5685 = vc.u32 %v5683, %v5679
        %v5686 = vsel %vm5685, 1, 0
        %v5687 = vadd.s32 %v5683, %v5679
        %v5688 = vadd.s32 %v5684, %v5686
        %v5689 = vadd.s32 %v5688, %v5678
        %v5690 = vadd.s32 %v5689, %v5680
        %v5691 = vmul.u32 %v5646, %v5637
        %v5692 = vadd.s32 %v5668, %v5687
        %vm5693 = vc.u32 %v5668, %v5687
        %v5694 = vadd.s32 %v5690, 1
        %v5695 = vsel %vm5693, %v5694, %v5690
        %v5696 = vadd.s32 %v5691, %v5695
        %v5697 = vadd.s32 %v5696, 536870912
        %v5698 = vshrl.u32 %v5697, 30
        %v5699 = vshll.u32 %v5698, 30
        %v5700 = vsub.s32 %v5696, %v5699
        %vm5701 = vcmp.lt.s32.totalorder %v5700, 0
        %v5702 = vsub.s32 0, %v5700
        %v5703 = vsel %vm5701, %v5702, %v5700
        %v5704 = vclz %v5703
        %v5705 = vsub.s32 %v5704, 2
        %vm5706 = vcmp.gt.s32.totalorder 0, %v5705
        %v5707 = vsel %vm5706, 0, %v5705
        %v5708 = vsub.s32 32, %v5707
        %v5709 = vshll.u32 %v5700, %v5707
        %v5710 = vshrl.u32 %v5692, %v5708
        %v5711 = vor.u32 %v5709, %v5710
        %v5712 = vsub.s32 4294967266, %v5707
        %v5713 = vadd.s32 %v5712, 127
        %v5714 = vshll.u32 %v5713, 23
        %v5715 = vor.u32 4788187, %v5714
        %v5716 = vand.u32 2147483647, %v5715
        %v5718 = vcvt.s32.f32 %v5711
        %v5719 = vmul.f32 %v5718, %v5716
        %v5720 = vxor.u32 %v5719, 2147483648
        %v5721 = vsel %vm5600, %v5720, %v5719
        %v5722 = vsub.s32 4, %v5698
        %v5723 = vsel %vm5600, %v5722, %v5698
        %v5724 = vsel %vm5599, %v5134, %v5721
        %v5725 = vsel %vm5599, 0, %v5723
        %v5726 = vmul.f32 %v5724, %v5724
        %v5727 = vmul.f32 %v5726, -0.001358992
        %v5728 = vadd.f32 %v5727, 0.041655596
        %v5729 = vmul.f32 %v5726, %v5728
        %v5730 = vadd.f32 %v5729, -0.4999988
        %v5731 = vmul.f32 %v5726, %v5730
        %v5732 = vadd.f32 1.0, %v5731
        %v5733 = vmul.f32 %v5724, %v5724
        %v5734 = vmul.f32 %v5733, -0.00019511016
        %v5735 = vadd.f32 %v5734, 0.008332121
        %v5736 = vmul.f32 %v5733, %v5735
        %v5737 = vadd.f32 %v5736, -0.16666654
        %v5738 = vmul.f32 %v5733, %v5737
        %v5739 = vadd.f32 %v5738, 1.0
        %v5740 = vmul.f32 %v5739, %v5724
        %vm5741 = vweird.f32 %v5134
        %v5742 = vadd.s32 %v5725, 3
        %v5743 = vand.u32 %v5742, 3
        %vm5744 = vcmp.lt.s32.totalorder %v5743, 2
        %vm5745 = vcmp.eq.s32.totalorder %v5743, 0
        %v5746 = vxor.u32 %v5740, 2147483648
        %v5747 = vsel %vm5745, %v5732, %v5746
        %vm5748 = vcmp.eq.s32.totalorder %v5743, 2
        %v5749 = vxor.u32 %v5732, 2147483648
        %v5750 = vsel %vm5748, %v5749, %v5740
        %v5751 = vsel %vm5744, %v5747, %v5750
        %v5752 = vsel %vm5741, nan, %v5751
        %v5755 = vrot.slane %v5442, 7
        %v5756 = vsel %vm1148, %v5755, %v5288
        %v5758 = vmul.f32 %v1137, %v5756
        %v5759 = vmul.f32 %v1138, %v5756
        %v5760 = vmul.f32 %v1139, %v5756
        %v5761 = vmul.f32 %v1140, %v5756
        %v5764 = vrot.slane %v5752, 7
        %v5765 = vsel %vm1148, %v5764, %v5597
        %v5767 = vmul.f32 %v1159, %v5765
        %v5768 = vmul.f32 %v1160, %v5765
        %v5769 = vmul.f32 %v1161, %v5765
        %v5770 = vmul.f32 %v1162, %v5765
        %v5771 = vsub.f32 %v5758, %v5767
        %v5772 = vsub.f32 %v5759, %v5768
        %v5773 = vsub.f32 %v5760, %v5769
        %v5774 = vsub.f32 %v5761, %v5770
        %5779 = vrot.lane.b32.xlu0 %v5771, 127
        %v5780 = vpop.permute.xlu0 %5779
        %5781 = vrot.lane.b32.xlu0 %v5772, 127
        %v5782 = vpop.permute.xlu0 %5781
        %5783 = vrot.lane.b32.xlu0 %v5773, 127
        %v5784 = vpop.permute.xlu0 %5783
        %5785 = vrot.lane.b32.xlu0 %v5774, 127
        %v5786 = vpop.permute.xlu0 %5785
        %v5791 = vmul.f32 %v5771, %v5780
        %v5792 = vmul.f32 %v5772, %v5782
        %v5793 = vmul.f32 %v5773, %v5784
        %v5794 = vmul.f32 %v5774, %v5786
        %5799 = vrot.lane.b32.xlu0 %v5791, 127
        %v5800 = vpop.permute.xlu0 %5799
        %5801 = vrot.lane.b32.xlu0 %v5792, 127
        %v5802 = vpop.permute.xlu0 %5801
        %5803 = vrot.lane.b32.xlu0 %v5793, 127
        %v5804 = vpop.permute.xlu0 %5803
        %5805 = vrot.lane.b32.xlu0 %v5794, 127
        %v5806 = vpop.permute.xlu0 %5805
        %v5811 = vmul.f32 %v5771, %v5800
        %v5812 = vmul.f32 %v5772, %v5802
        %v5813 = vmul.f32 %v5773, %v5804
        %v5814 = vmul.f32 %v5774, %v5806
        %5815 = vrot.lane.b32.xlu0 %v5771, 126
        %v5816 = vpop.permute.xlu0 %5815
        %5817 = vrot.lane.b32.xlu0 %v5772, 126
        %v5818 = vpop.permute.xlu0 %5817
        %5819 = vrot.lane.b32.xlu0 %v5773, 126
        %v5820 = vpop.permute.xlu0 %5819
        %5821 = vrot.lane.b32.xlu0 %v5774, 126
        %v5822 = vpop.permute.xlu0 %5821
        %v5827 = vmul.f32 %v5791, %v5816
        %v5828 = vmul.f32 %v5792, %v5818
        %v5829 = vmul.f32 %v5793, %v5820
        %v5830 = vmul.f32 %v5794, %v5822
        %5831 = vrot.lane.b32.xlu0 %v5791, 126
        %v5832 = vpop.permute.xlu0 %5831
        %5833 = vrot.lane.b32.xlu0 %v5792, 126
        %v5834 = vpop.permute.xlu0 %5833
        %5835 = vrot.lane.b32.xlu0 %v5793, 126
        %v5836 = vpop.permute.xlu0 %5835
        %5837 = vrot.lane.b32.xlu0 %v5794, 126
        %v5838 = vpop.permute.xlu0 %5837
        %v5843 = vmul.f32 %v5791, %v5832
        %v5844 = vmul.f32 %v5792, %v5834
        %v5845 = vmul.f32 %v5793, %v5836
        %v5846 = vmul.f32 %v5794, %v5838
        %5848 = vset.pattern.permute.xlu0 1
        %5849 = vperm.xlu0 %5848, %v5811
        %v5850 = vpop.permute.xlu0 %5849
        %5853 = vset.pattern.permute.xlu0 1
        %5854 = vperm.xlu0 %5853, %v5812
        %v5855 = vpop.permute.xlu0 %5854
        %5858 = vset.pattern.permute.xlu0 1
        %5859 = vperm.xlu0 %5858, %v5813
        %v5860 = vpop.permute.xlu0 %5859
        %5863 = vset.pattern.permute.xlu0 1
        %5864 = vperm.xlu0 %5863, %v5814
        %v5865 = vpop.permute.xlu0 %5864
        %v5867 = vmul.f32 %v5850, %v1272
        %v5868 = vmul.f32 %v5855, %v1272
        %v5869 = vmul.f32 %v5860, %v1272
        %v5870 = vmul.f32 %v5865, %v1272
        %5871 = vset.pattern.permute.xlu0 0
        %5872 = vperm.xlu0 %5871, %v5791
        %v5873 = vpop.permute.xlu0 %5872
        %5875 = vset.pattern.permute.xlu0 0
        %5876 = vperm.xlu0 %5875, %v5792
        %v5877 = vpop.permute.xlu0 %5876
        %5879 = vset.pattern.permute.xlu0 0
        %5880 = vperm.xlu0 %5879, %v5793
        %v5881 = vpop.permute.xlu0 %5880
        %5883 = vset.pattern.permute.xlu0 0
        %5884 = vperm.xlu0 %5883, %v5794
        %v5885 = vpop.permute.xlu0 %5884
        %v5887 = vmul.f32 %v5873, %v1293
        %v5888 = vmul.f32 %v5877, %v1293
        %v5889 = vmul.f32 %v5881, %v1293
        %v5890 = vmul.f32 %v5885, %v1293
        %v5891 = vadd.f32 %v5867, %v5887
        %v5892 = vadd.f32 %v5868, %v5888
        %v5893 = vadd.f32 %v5869, %v5889
        %v5894 = vadd.f32 %v5870, %v5890
        %5896 = vset.pattern.permute.xlu0 0
        %5897 = vperm.xlu0 %5896, %v5827
        %v5898 = vpop.permute.xlu0 %5897
        %5901 = vset.pattern.permute.xlu0 0
        %5902 = vperm.xlu0 %5901, %v5828
        %v5903 = vpop.permute.xlu0 %5902
        %5906 = vset.pattern.permute.xlu0 0
        %5907 = vperm.xlu0 %5906, %v5829
        %v5908 = vpop.permute.xlu0 %5907
        %5911 = vset.pattern.permute.xlu0 0
        %5912 = vperm.xlu0 %5911, %v5830
        %v5913 = vpop.permute.xlu0 %5912
        %v5915 = vmul.f32 %v5898, %v1322
        %v5916 = vmul.f32 %v5903, %v1322
        %v5917 = vmul.f32 %v5908, %v1322
        %v5918 = vmul.f32 %v5913, %v1322
        %v5919 = vadd.f32 %v5891, %v5915
        %v5920 = vadd.f32 %v5892, %v5916
        %v5921 = vadd.f32 %v5893, %v5917
        %v5922 = vadd.f32 %v5894, %v5918
        %5924 = vset.pattern.permute.xlu0 0
        %5925 = vperm.xlu0 %5924, %v5843
        %v5926 = vpop.permute.xlu0 %5925
        %5929 = vset.pattern.permute.xlu0 0
        %5930 = vperm.xlu0 %5929, %v5844
        %v5931 = vpop.permute.xlu0 %5930
        %5934 = vset.pattern.permute.xlu0 0
        %5935 = vperm.xlu0 %5934, %v5845
        %v5936 = vpop.permute.xlu0 %5935
        %5939 = vset.pattern.permute.xlu0 0
        %5940 = vperm.xlu0 %5939, %v5846
        %v5941 = vpop.permute.xlu0 %5940
        %v5943 = vmul.f32 %v5926, %v1351
        %v5944 = vmul.f32 %v5931, %v1351
        %v5945 = vmul.f32 %v5936, %v1351
        %v5946 = vmul.f32 %v5941, %v1351
        %v5947 = vadd.f32 %v5919, %v5943
        %v5948 = vadd.f32 %v5920, %v5944
        %v5949 = vadd.f32 %v5921, %v5945
        %v5950 = vadd.f32 %v5922, %v5946
        %v5951 = vadd.f32 %v5947, %v1361
        %v5952 = vadd.f32 %v5948, %v1361
        %v5953 = vadd.f32 %v5949, %v1361
        %v5954 = vadd.f32 %v5950, %v1361
        %v5955 = vxor.u32 %v5951, 2147483648
        %v5956 = vxor.u32 %v5952, 2147483648
        %v5957 = vxor.u32 %v5953, 2147483648
        %v5958 = vmul.f32 %v5955, 1.442695
        %v5959 = vpow.pop %v5958
        %v5960 = vmul.f32 %v5956, 1.442695
        %v5961 = vpow.pop %v5960
        %v5962 = vmul.f32 %v5957, 1.442695
        %v5963 = vpow.pop %v5962
        %v5964 = vadd.f32 %v5959, 1.0
        %v5965 = vadd.f32 %v5961, 1.0
        %v5966 = vadd.f32 %v5963, 1.0
        %v5967 = vrcp.pop %v5964
        %v5968 = vmul.f32 %v5964, %v5967
        %v5969 = vsub.f32 1.0, %v5968
        %v5970 = vmul.f32 %v5967, %v5969
        %v5971 = vadd.f32 %v5967, %v5970
        %vm5972 = vweird.f32 %v5964
        %vm5973 = vweird.f32 %v5967
        %vm5974 = vmor %vm5972, %vm5973
        %v5975 = vsel %vm5974, %v5967, %v5971
        %v5976 = vand.u32 2147483647, %v5964
        %vm5977 = vcmp.eq.f32.partialorder %v5976, 8.507059e+37
        %v5978 = vand.u32 %v5964, 2147483648
        %v5979 = vor.u32 1.1754944e-38, %v5978
        %v5980 = vsel %vm5977, %v5979, %v5975
        %v5981 = vmul.f32 1.0, %v5980
        %v5982 = vrcp.pop %v5965
        %v5983 = vmul.f32 %v5965, %v5982
        %v5984 = vsub.f32 1.0, %v5983
        %v5985 = vmul.f32 %v5982, %v5984
        %v5986 = vadd.f32 %v5982, %v5985
        %vm5987 = vweird.f32 %v5965
        %vm5988 = vweird.f32 %v5982
        %vm5989 = vmor %vm5987, %vm5988
        %v5990 = vsel %vm5989, %v5982, %v5986
        %v5991 = vand.u32 2147483647, %v5965
        %vm5992 = vcmp.eq.f32.partialorder %v5991, 8.507059e+37
        %v5993 = vand.u32 %v5965, 2147483648
        %v5994 = vor.u32 1.1754944e-38, %v5993
        %v5995 = vsel %vm5992, %v5994, %v5990
        %v5996 = vmul.f32 1.0, %v5995
        %v5997 = vrcp.pop %v5966
        %v5998 = vmul.f32 %v5966, %v5997
        %v5999 = vsub.f32 1.0, %v5998
        %v6000 = vmul.f32 %v5997, %v5999
        %v6001 = vadd.f32 %v5997, %v6000
        %vm6002 = vweird.f32 %v5966
        %vm6003 = vweird.f32 %v5997
        %vm6004 = vmor %vm6002, %vm6003
        %v6005 = vsel %vm6004, %v5997, %v6001
        %v6006 = vand.u32 2147483647, %v5966
        %vm6007 = vcmp.eq.f32.partialorder %v6006, 8.507059e+37
        %v6008 = vand.u32 %v5966, 2147483648
        %v6009 = vor.u32 1.1754944e-38, %v6008
        %v6010 = vsel %vm6007, %v6009, %v6005
        %v6011 = vmul.f32 1.0, %v6010
        %v6012 = vtanh.pop %v5954
        %v6013 = vmul.f32 %v5981, %v5100
        %v6014 = vmul.f32 %v5996, %v6012
        %v6015 = vadd.f32 %v6013, %v6014
        %v6016 = vtanh.pop %v6015
        %v6017 = vmul.f32 %v6011, %v6016
        %6019 = vrot.lane.b32.xlu0 %v6017, 32
        %v6020 = vpop.permute.xlu0 %6019
        %6022 = vst.msk [vmem:[%s443 + $0x2] sm:$0x3] %vm2350, %v6020
        %v6023 = vld [vmem:[%s405 + $0x6] sm:$0x1]
        %v6024 = vld [vmem:[%s405 + $0xe] sm:$0x1]
        %v6025 = vsel %vm485, %v6017, 0
        %6027 = vmatpush.msra.mxu0 0.0
        %6028 = vmatpush.msra.mxu0 0.0
        %6029 = vmatpush.msra.mxu0 0.0
        %6030 = vmatpush.msra.mxu0 0.0
        %6031 = vmatpush.msra.mxu0 0.0
        %6032 = vmatpush.msra.mxu0 0.0
        %6033 = vmatpush.msra.mxu0 0.0
        %6034 = vmatpush.msra.mxu0 0.0
        %6035 = vmatpush.msra.mxu0 0.0
        %6036 = vmatpush.msra.mxu0 0.0
        %6037 = vmatpush.msra.mxu0 0.0
        %6038 = vmatpush.msra.mxu0 0.0
        %6039 = vmatpush.msra.mxu0 %v470
        %6040 = vmatpush.msra.mxu0 %v469
        %6041 = vmatpush.msra.mxu0 %v468
        %6042 = vmatpush.msra.mxu0 %v467
        %6043 = vmatmul.f32.gmra.mxu0 %v6025
        %v6044 = vpop.f32.mrf.mxu0
        %v6045 = vadd.f32 0.0, %v6044
        %6046 = vdwg.mxu0
        %v6048 = vrot.slane %v6045, 1
        %v6051 = vadd.f32 %v6023, %v6045
        %v6052 = vadd.f32 %v6024, %v6048
        %v6053 = vand.u32 2147483647, %v6051
        %vm6054 = vcmp.le.f32.partialorder %v6053, 0.7853982
        %vm6055 = vcmp.lt.s32.totalorder %v6051, 0
        %v6056 = vand.u32 %v6051, 2139095040
        %v6057 = vshrl.u32 %v6056, 23
        %v6058 = vsub.s32 %v6057, 127
        %v6059 = vand.u32 2147483647, %v6051
        %v6060 = vand.u32 %v6059, 8388607
        %v6061 = vor.u32 %v6060, 8388608
        %v6062 = vsub.s32 0, %v6061
        %v6063 = vadd.s32 %v6058, 1
        %vm6064 = vcmp.gt.s32.totalorder %v6063, 0
        %v6065 = vsel %vm6064, %v6063, 0
        %v6066 = vshrl.u32 %v6065, 5
        %v6067 = vand.u32 %v6065, 31
        %v6068 = vsub.s32 32, %v6067
        %v6069 = vshrl.u32 683565275, %v6068
        %v6070 = vshll.u32 683565275, %v6067
        %v6071 = vshrl.u32 2475754826, %v6068
        %v6072 = vor.u32 %v6070, %v6071
        %v6073 = vshll.u32 2475754826, %v6067
        %v6074 = vshrl.u32 2131351028, %v6068
        %v6075 = vor.u32 %v6073, %v6074
        %v6076 = vshll.u32 2131351028, %v6067
        %v6077 = vshrl.u32 2102212464, %v6068
        %v6078 = vor.u32 %v6076, %v6077
        %v6079 = vshll.u32 2102212464, %v6067
        %v6080 = vshrl.u32 920167782, %v6068
        %v6081 = vor.u32 %v6079, %v6080
        %v6082 = vshll.u32 920167782, %v6067
        %v6083 = vshrl.u32 1326507024, %v6068
        %v6084 = vor.u32 %v6082, %v6083
        %vm6085 = vcmp.lt.s32.totalorder %v6066, 1
        %vm6086 = vcmp.lt.s32.totalorder %v6066, 2
        %vm6087 = vcmp.lt.s32.totalorder %v6066, 3
        %vm6088 = vcmp.lt.s32.totalorder %v6066, 4
        %v6089 = vsel %vm6085, %v6069, %v6072
        %v6090 = vsel %vm6088, %v6078, 2102212464
        %v6091 = vsel %vm6087, %v6075, %v6090
        %v6092 = vsel %vm6086, %v6089, %v6091
        %v6093 = vsel %vm6085, %v6072, %v6075
        %v6094 = vsel %vm6088, %v6081, 920167782
        %v6095 = vsel %vm6087, %v6078, %v6094
        %v6096 = vsel %vm6086, %v6093, %v6095
        %v6097 = vsel %vm6085, %v6075, %v6078
        %v6098 = vsel %vm6088, %v6084, 1326507024
        %v6099 = vsel %vm6087, %v6081, %v6098
        %v6100 = vsel %vm6086, %v6097, %v6099
        %v6101 = vshll.u32 %v6061, 8
        %v6102 = vand.u32 %v6101, 65535
        %v6103 = vshrl.u32 %v6101, 16
        %v6104 = vand.u32 %v6100, 65535
        %v6105 = vshrl.u32 %v6100, 16
        %v6106 = vmul.u32 %v6102, %v6104
        %v6107 = vmul.u32 %v6102, %v6105
        %v6108 = vmul.u32 %v6103, %v6104
        %v6109 = vmul.u32 %v6103, %v6105
        %v6110 = vshll.u32 %v6107, 16
        %v6111 = vshrl.u32 %v6107, 16
        %v6112 = vshll.u32 %v6108, 16
        %v6113 = vshrl.u32 %v6108, 16
        %vm6114 = vc.u32 %v6106, %v6110
        %v6115 = vsel %vm6114, 1, 0
        %v6116 = vadd.s32 %v6106, %v6110
        %v6117 = vadd.s32 %v6109, %v6115
        %vm6118 = vc.u32 %v6116, %v6112
        %v6119 = vsel %vm6118, 1, 0
        %v6120 = vadd.s32 %v6116, %v6112
        %v6121 = vadd.s32 %v6117, %v6119
        %v6122 = vadd.s32 %v6121, %v6111
        %v6123 = vadd.s32 %v6122, %v6113
        %v6124 = vand.u32 %v6101, 65535
        %v6125 = vshrl.u32 %v6101, 16
        %v6126 = vand.u32 %v6096, 65535
        %v6127 = vshrl.u32 %v6096, 16
        %v6128 = vmul.u32 %v6124, %v6126
        %v6129 = vmul.u32 %v6124, %v6127
        %v6130 = vmul.u32 %v6125, %v6126
        %v6131 = vmul.u32 %v6125, %v6127
        %v6132 = vshll.u32 %v6129, 16
        %v6133 = vshrl.u32 %v6129, 16
        %v6134 = vshll.u32 %v6130, 16
        %v6135 = vshrl.u32 %v6130, 16
        %vm6136 = vc.u32 %v6128, %v6132
        %v6137 = vsel %vm6136, 1, 0
        %v6138 = vadd.s32 %v6128, %v6132
        %v6139 = vadd.s32 %v6131, %v6137
        %vm6140 = vc.u32 %v6138, %v6134
        %v6141 = vsel %vm6140, 1, 0
        %v6142 = vadd.s32 %v6138, %v6134
        %v6143 = vadd.s32 %v6139, %v6141
        %v6144 = vadd.s32 %v6143, %v6133
        %v6145 = vadd.s32 %v6144, %v6135
        %v6146 = vmul.u32 %v6101, %v6092
        %v6147 = vadd.s32 %v6123, %v6142
        %vm6148 = vc.u32 %v6123, %v6142
        %v6149 = vadd.s32 %v6145, 1
        %v6150 = vsel %vm6148, %v6149, %v6145
        %v6151 = vadd.s32 %v6146, %v6150
        %v6152 = vadd.s32 %v6151, 536870912
        %v6153 = vshrl.u32 %v6152, 30
        %v6154 = vshll.u32 %v6153, 30
        %v6155 = vsub.s32 %v6151, %v6154
        %vm6156 = vcmp.lt.s32.totalorder %v6155, 0
        %v6157 = vsub.s32 0, %v6155
        %v6158 = vsel %vm6156, %v6157, %v6155
        %v6159 = vclz %v6158
        %v6160 = vsub.s32 %v6159, 2
        %vm6161 = vcmp.gt.s32.totalorder 0, %v6160
        %v6162 = vsel %vm6161, 0, %v6160
        %v6163 = vsub.s32 32, %v6162
        %v6164 = vshll.u32 %v6155, %v6162
        %v6165 = vshrl.u32 %v6147, %v6163
        %v6166 = vor.u32 %v6164, %v6165
        %v6167 = vsub.s32 4294967266, %v6162
        %v6168 = vadd.s32 %v6167, 127
        %v6169 = vshll.u32 %v6168, 23
        %v6170 = vor.u32 4788187, %v6169
        %v6171 = vand.u32 2147483647, %v6170
        %v6173 = vcvt.s32.f32 %v6166
        %v6174 = vmul.f32 %v6173, %v6171
        %v6175 = vxor.u32 %v6174, 2147483648
        %v6176 = vsel %vm6055, %v6175, %v6174
        %v6177 = vsub.s32 4, %v6153
        %v6178 = vsel %vm6055, %v6177, %v6153
        %v6179 = vsel %vm6054, %v6051, %v6176
        %v6180 = vsel %vm6054, 0, %v6178
        %v6181 = vmul.f32 %v6179, %v6179
        %v6182 = vmul.f32 %v6181, -0.001358992
        %v6183 = vadd.f32 %v6182, 0.041655596
        %v6184 = vmul.f32 %v6181, %v6183
        %v6185 = vadd.f32 %v6184, -0.4999988
        %v6186 = vmul.f32 %v6181, %v6185
        %v6187 = vadd.f32 1.0, %v6186
        %v6188 = vmul.f32 %v6179, %v6179
        %v6189 = vmul.f32 %v6188, -0.00019511016
        %v6190 = vadd.f32 %v6189, 0.008332121
        %v6191 = vmul.f32 %v6188, %v6190
        %v6192 = vadd.f32 %v6191, -0.16666654
        %v6193 = vmul.f32 %v6188, %v6192
        %v6194 = vadd.f32 %v6193, 1.0
        %v6195 = vmul.f32 %v6194, %v6179
        %vm6196 = vweird.f32 %v6051
        %v6197 = vand.u32 %v6180, 3
        %vm6198 = vcmp.lt.s32.totalorder %v6197, 2
        %vm6199 = vcmp.eq.s32.totalorder %v6197, 0
        %v6200 = vxor.u32 %v6195, 2147483648
        %v6201 = vsel %vm6199, %v6187, %v6200
        %vm6202 = vcmp.eq.s32.totalorder %v6197, 2
        %v6203 = vxor.u32 %v6187, 2147483648
        %v6204 = vsel %vm6202, %v6203, %v6195
        %v6205 = vsel %vm6198, %v6201, %v6204
        %v6206 = vsel %vm6196, nan, %v6205
        %v6207 = vand.u32 2147483647, %v6052
        %vm6208 = vcmp.le.f32.partialorder %v6207, 0.7853982
        %vm6209 = vcmp.lt.s32.totalorder %v6052, 0
        %v6210 = vand.u32 %v6052, 2139095040
        %v6211 = vshrl.u32 %v6210, 23
        %v6212 = vsub.s32 %v6211, 127
        %v6213 = vand.u32 2147483647, %v6052
        %v6214 = vand.u32 %v6213, 8388607
        %v6215 = vor.u32 %v6214, 8388608
        %v6216 = vsub.s32 0, %v6215
        %v6217 = vadd.s32 %v6212, 1
        %vm6218 = vcmp.gt.s32.totalorder %v6217, 0
        %v6219 = vsel %vm6218, %v6217, 0
        %v6220 = vshrl.u32 %v6219, 5
        %v6221 = vand.u32 %v6219, 31
        %v6222 = vsub.s32 32, %v6221
        %v6223 = vshrl.u32 683565275, %v6222
        %v6224 = vshll.u32 683565275, %v6221
        %v6225 = vshrl.u32 2475754826, %v6222
        %v6226 = vor.u32 %v6224, %v6225
        %v6227 = vshll.u32 2475754826, %v6221
        %v6228 = vshrl.u32 2131351028, %v6222
        %v6229 = vor.u32 %v6227, %v6228
        %v6230 = vshll.u32 2131351028, %v6221
        %v6231 = vshrl.u32 2102212464, %v6222
        %v6232 = vor.u32 %v6230, %v6231
        %v6233 = vshll.u32 2102212464, %v6221
        %v6234 = vshrl.u32 920167782, %v6222
        %v6235 = vor.u32 %v6233, %v6234
        %v6236 = vshll.u32 920167782, %v6221
        %v6237 = vshrl.u32 1326507024, %v6222
        %v6238 = vor.u32 %v6236, %v6237
        %vm6239 = vcmp.lt.s32.totalorder %v6220, 1
        %vm6240 = vcmp.lt.s32.totalorder %v6220, 2
        %vm6241 = vcmp.lt.s32.totalorder %v6220, 3
        %vm6242 = vcmp.lt.s32.totalorder %v6220, 4
        %v6243 = vsel %vm6239, %v6223, %v6226
        %v6244 = vsel %vm6242, %v6232, 2102212464
        %v6245 = vsel %vm6241, %v6229, %v6244
        %v6246 = vsel %vm6240, %v6243, %v6245
        %v6247 = vsel %vm6239, %v6226, %v6229
        %v6248 = vsel %vm6242, %v6235, 920167782
        %v6249 = vsel %vm6241, %v6232, %v6248
        %v6250 = vsel %vm6240, %v6247, %v6249
        %v6251 = vsel %vm6239, %v6229, %v6232
        %v6252 = vsel %vm6242, %v6238, 1326507024
        %v6253 = vsel %vm6241, %v6235, %v6252
        %v6254 = vsel %vm6240, %v6251, %v6253
        %v6255 = vshll.u32 %v6215, 8
        %v6256 = vand.u32 %v6255, 65535
        %v6257 = vshrl.u32 %v6255, 16
        %v6258 = vand.u32 %v6254, 65535
        %v6259 = vshrl.u32 %v6254, 16
        %v6260 = vmul.u32 %v6256, %v6258
        %v6261 = vmul.u32 %v6256, %v6259
        %v6262 = vmul.u32 %v6257, %v6258
        %v6263 = vmul.u32 %v6257, %v6259
        %v6264 = vshll.u32 %v6261, 16
        %v6265 = vshrl.u32 %v6261, 16
        %v6266 = vshll.u32 %v6262, 16
        %v6267 = vshrl.u32 %v6262, 16
        %vm6268 = vc.u32 %v6260, %v6264
        %v6269 = vsel %vm6268, 1, 0
        %v6270 = vadd.s32 %v6260, %v6264
        %v6271 = vadd.s32 %v6263, %v6269
        %vm6272 = vc.u32 %v6270, %v6266
        %v6273 = vsel %vm6272, 1, 0
        %v6274 = vadd.s32 %v6270, %v6266
        %v6275 = vadd.s32 %v6271, %v6273
        %v6276 = vadd.s32 %v6275, %v6265
        %v6277 = vadd.s32 %v6276, %v6267
        %v6278 = vand.u32 %v6255, 65535
        %v6279 = vshrl.u32 %v6255, 16
        %v6280 = vand.u32 %v6250, 65535
        %v6281 = vshrl.u32 %v6250, 16
        %v6282 = vmul.u32 %v6278, %v6280
        %v6283 = vmul.u32 %v6278, %v6281
        %v6284 = vmul.u32 %v6279, %v6280
        %v6285 = vmul.u32 %v6279, %v6281
        %v6286 = vshll.u32 %v6283, 16
        %v6287 = vshrl.u32 %v6283, 16
        %v6288 = vshll.u32 %v6284, 16
        %v6289 = vshrl.u32 %v6284, 16
        %vm6290 = vc.u32 %v6282, %v6286
        %v6291 = vsel %vm6290, 1, 0
        %v6292 = vadd.s32 %v6282, %v6286
        %v6293 = vadd.s32 %v6285, %v6291
        %vm6294 = vc.u32 %v6292, %v6288
        %v6295 = vsel %vm6294, 1, 0
        %v6296 = vadd.s32 %v6292, %v6288
        %v6297 = vadd.s32 %v6293, %v6295
        %v6298 = vadd.s32 %v6297, %v6287
        %v6299 = vadd.s32 %v6298, %v6289
        %v6300 = vmul.u32 %v6255, %v6246
        %v6301 = vadd.s32 %v6277, %v6296
        %vm6302 = vc.u32 %v6277, %v6296
        %v6303 = vadd.s32 %v6299, 1
        %v6304 = vsel %vm6302, %v6303, %v6299
        %v6305 = vadd.s32 %v6300, %v6304
        %v6306 = vadd.s32 %v6305, 536870912
        %v6307 = vshrl.u32 %v6306, 30
        %v6308 = vshll.u32 %v6307, 30
        %v6309 = vsub.s32 %v6305, %v6308
        %vm6310 = vcmp.lt.s32.totalorder %v6309, 0
        %v6311 = vsub.s32 0, %v6309
        %v6312 = vsel %vm6310, %v6311, %v6309
        %v6313 = vclz %v6312
        %v6314 = vsub.s32 %v6313, 2
        %vm6315 = vcmp.gt.s32.totalorder 0, %v6314
        %v6316 = vsel %vm6315, 0, %v6314
        %v6317 = vsub.s32 32, %v6316
        %v6318 = vshll.u32 %v6309, %v6316
        %v6319 = vshrl.u32 %v6301, %v6317
        %v6320 = vor.u32 %v6318, %v6319
        %v6321 = vsub.s32 4294967266, %v6316
        %v6322 = vadd.s32 %v6321, 127
        %v6323 = vshll.u32 %v6322, 23
        %v6324 = vor.u32 4788187, %v6323
        %v6325 = vand.u32 2147483647, %v6324
        %v6327 = vcvt.s32.f32 %v6320
        %v6328 = vmul.f32 %v6327, %v6325
        %v6329 = vxor.u32 %v6328, 2147483648
        %v6330 = vsel %vm6209, %v6329, %v6328
        %v6331 = vsub.s32 4, %v6307
        %v6332 = vsel %vm6209, %v6331, %v6307
        %v6333 = vsel %vm6208, %v6052, %v6330
        %v6334 = vsel %vm6208, 0, %v6332
        %v6335 = vmul.f32 %v6333, %v6333
        %v6336 = vmul.f32 %v6335, -0.001358992
        %v6337 = vadd.f32 %v6336, 0.041655596
        %v6338 = vmul.f32 %v6335, %v6337
        %v6339 = vadd.f32 %v6338, -0.4999988
        %v6340 = vmul.f32 %v6335, %v6339
        %v6341 = vadd.f32 1.0, %v6340
        %v6342 = vmul.f32 %v6333, %v6333
        %v6343 = vmul.f32 %v6342, -0.00019511016
        %v6344 = vadd.f32 %v6343, 0.008332121
        %v6345 = vmul.f32 %v6342, %v6344
        %v6346 = vadd.f32 %v6345, -0.16666654
        %v6347 = vmul.f32 %v6342, %v6346
        %v6348 = vadd.f32 %v6347, 1.0
        %v6349 = vmul.f32 %v6348, %v6333
        %vm6350 = vweird.f32 %v6052
        %v6351 = vand.u32 %v6334, 3
        %vm6352 = vcmp.lt.s32.totalorder %v6351, 2
        %vm6353 = vcmp.eq.s32.totalorder %v6351, 0
        %v6354 = vxor.u32 %v6349, 2147483648
        %v6355 = vsel %vm6353, %v6341, %v6354
        %vm6356 = vcmp.eq.s32.totalorder %v6351, 2
        %v6357 = vxor.u32 %v6341, 2147483648
        %v6358 = vsel %vm6356, %v6357, %v6349
        %v6359 = vsel %vm6352, %v6355, %v6358
        %v6360 = vsel %vm6350, nan, %v6359
        %v6361 = vand.u32 2147483647, %v6051
        %vm6362 = vcmp.le.f32.partialorder %v6361, 0.7853982
        %vm6363 = vcmp.lt.s32.totalorder %v6051, 0
        %v6364 = vand.u32 %v6051, 2139095040
        %v6365 = vshrl.u32 %v6364, 23
        %v6366 = vsub.s32 %v6365, 127
        %v6367 = vand.u32 2147483647, %v6051
        %v6368 = vand.u32 %v6367, 8388607
        %v6369 = vor.u32 %v6368, 8388608
        %v6370 = vsub.s32 0, %v6369
        %v6371 = vadd.s32 %v6366, 1
        %vm6372 = vcmp.gt.s32.totalorder %v6371, 0
        %v6373 = vsel %vm6372, %v6371, 0
        %v6374 = vshrl.u32 %v6373, 5
        %v6375 = vand.u32 %v6373, 31
        %v6376 = vsub.s32 32, %v6375
        %v6377 = vshrl.u32 683565275, %v6376
        %v6378 = vshll.u32 683565275, %v6375
        %v6379 = vshrl.u32 2475754826, %v6376
        %v6380 = vor.u32 %v6378, %v6379
        %v6381 = vshll.u32 2475754826, %v6375
        %v6382 = vshrl.u32 2131351028, %v6376
        %v6383 = vor.u32 %v6381, %v6382
        %v6384 = vshll.u32 2131351028, %v6375
        %v6385 = vshrl.u32 2102212464, %v6376
        %v6386 = vor.u32 %v6384, %v6385
        %v6387 = vshll.u32 2102212464, %v6375
        %v6388 = vshrl.u32 920167782, %v6376
        %v6389 = vor.u32 %v6387, %v6388
        %v6390 = vshll.u32 920167782, %v6375
        %v6391 = vshrl.u32 1326507024, %v6376
        %v6392 = vor.u32 %v6390, %v6391
        %vm6393 = vcmp.lt.s32.totalorder %v6374, 1
        %vm6394 = vcmp.lt.s32.totalorder %v6374, 2
        %vm6395 = vcmp.lt.s32.totalorder %v6374, 3
        %vm6396 = vcmp.lt.s32.totalorder %v6374, 4
        %v6397 = vsel %vm6393, %v6377, %v6380
        %v6398 = vsel %vm6396, %v6386, 2102212464
        %v6399 = vsel %vm6395, %v6383, %v6398
        %v6400 = vsel %vm6394, %v6397, %v6399
        %v6401 = vsel %vm6393, %v6380, %v6383
        %v6402 = vsel %vm6396, %v6389, 920167782
        %v6403 = vsel %vm6395, %v6386, %v6402
        %v6404 = vsel %vm6394, %v6401, %v6403
        %v6405 = vsel %vm6393, %v6383, %v6386
        %v6406 = vsel %vm6396, %v6392, 1326507024
        %v6407 = vsel %vm6395, %v6389, %v6406
        %v6408 = vsel %vm6394, %v6405, %v6407
        %v6409 = vshll.u32 %v6369, 8
        %v6410 = vand.u32 %v6409, 65535
        %v6411 = vshrl.u32 %v6409, 16
        %v6412 = vand.u32 %v6408, 65535
        %v6413 = vshrl.u32 %v6408, 16
        %v6414 = vmul.u32 %v6410, %v6412
        %v6415 = vmul.u32 %v6410, %v6413
        %v6416 = vmul.u32 %v6411, %v6412
        %v6417 = vmul.u32 %v6411, %v6413
        %v6418 = vshll.u32 %v6415, 16
        %v6419 = vshrl.u32 %v6415, 16
        %v6420 = vshll.u32 %v6416, 16
        %v6421 = vshrl.u32 %v6416, 16
        %vm6422 = vc.u32 %v6414, %v6418
        %v6423 = vsel %vm6422, 1, 0
        %v6424 = vadd.s32 %v6414, %v6418
        %v6425 = vadd.s32 %v6417, %v6423
        %vm6426 = vc.u32 %v6424, %v6420
        %v6427 = vsel %vm6426, 1, 0
        %v6428 = vadd.s32 %v6424, %v6420
        %v6429 = vadd.s32 %v6425, %v6427
        %v6430 = vadd.s32 %v6429, %v6419
        %v6431 = vadd.s32 %v6430, %v6421
        %v6432 = vand.u32 %v6409, 65535
        %v6433 = vshrl.u32 %v6409, 16
        %v6434 = vand.u32 %v6404, 65535
        %v6435 = vshrl.u32 %v6404, 16
        %v6436 = vmul.u32 %v6432, %v6434
        %v6437 = vmul.u32 %v6432, %v6435
        %v6438 = vmul.u32 %v6433, %v6434
        %v6439 = vmul.u32 %v6433, %v6435
        %v6440 = vshll.u32 %v6437, 16
        %v6441 = vshrl.u32 %v6437, 16
        %v6442 = vshll.u32 %v6438, 16
        %v6443 = vshrl.u32 %v6438, 16
        %vm6444 = vc.u32 %v6436, %v6440
        %v6445 = vsel %vm6444, 1, 0
        %v6446 = vadd.s32 %v6436, %v6440
        %v6447 = vadd.s32 %v6439, %v6445
        %vm6448 = vc.u32 %v6446, %v6442
        %v6449 = vsel %vm6448, 1, 0
        %v6450 = vadd.s32 %v6446, %v6442
        %v6451 = vadd.s32 %v6447, %v6449
        %v6452 = vadd.s32 %v6451, %v6441
        %v6453 = vadd.s32 %v6452, %v6443
        %v6454 = vmul.u32 %v6409, %v6400
        %v6455 = vadd.s32 %v6431, %v6450
        %vm6456 = vc.u32 %v6431, %v6450
        %v6457 = vadd.s32 %v6453, 1
        %v6458 = vsel %vm6456, %v6457, %v6453
        %v6459 = vadd.s32 %v6454, %v6458
        %v6460 = vadd.s32 %v6459, 536870912
        %v6461 = vshrl.u32 %v6460, 30
        %v6462 = vshll.u32 %v6461, 30
        %v6463 = vsub.s32 %v6459, %v6462
        %vm6464 = vcmp.lt.s32.totalorder %v6463, 0
        %v6465 = vsub.s32 0, %v6463
        %v6466 = vsel %vm6464, %v6465, %v6463
        %v6467 = vclz %v6466
        %v6468 = vsub.s32 %v6467, 2
        %vm6469 = vcmp.gt.s32.totalorder 0, %v6468
        %v6470 = vsel %vm6469, 0, %v6468
        %v6471 = vsub.s32 32, %v6470
        %v6472 = vshll.u32 %v6463, %v6470
        %v6473 = vshrl.u32 %v6455, %v6471
        %v6474 = vor.u32 %v6472, %v6473
        %v6475 = vsub.s32 4294967266, %v6470
        %v6476 = vadd.s32 %v6475, 127
        %v6477 = vshll.u32 %v6476, 23
        %v6478 = vor.u32 4788187, %v6477
        %v6479 = vand.u32 2147483647, %v6478
        %v6481 = vcvt.s32.f32 %v6474
        %v6482 = vmul.f32 %v6481, %v6479
        %v6483 = vxor.u32 %v6482, 2147483648
        %v6484 = vsel %vm6363, %v6483, %v6482
        %v6485 = vsub.s32 4, %v6461
        %v6486 = vsel %vm6363, %v6485, %v6461
        %v6487 = vsel %vm6362, %v6051, %v6484
        %v6488 = vsel %vm6362, 0, %v6486
        %v6489 = vmul.f32 %v6487, %v6487
        %v6490 = vmul.f32 %v6489, -0.001358992
        %v6491 = vadd.f32 %v6490, 0.041655596
        %v6492 = vmul.f32 %v6489, %v6491
        %v6493 = vadd.f32 %v6492, -0.4999988
        %v6494 = vmul.f32 %v6489, %v6493
        %v6495 = vadd.f32 1.0, %v6494
        %v6496 = vmul.f32 %v6487, %v6487
        %v6497 = vmul.f32 %v6496, -0.00019511016
        %v6498 = vadd.f32 %v6497, 0.008332121
        %v6499 = vmul.f32 %v6496, %v6498
        %v6500 = vadd.f32 %v6499, -0.16666654
        %v6501 = vmul.f32 %v6496, %v6500
        %v6502 = vadd.f32 %v6501, 1.0
        %v6503 = vmul.f32 %v6502, %v6487
        %vm6504 = vweird.f32 %v6051
        %v6505 = vadd.s32 %v6488, 3
        %v6506 = vand.u32 %v6505, 3
        %vm6507 = vcmp.lt.s32.totalorder %v6506, 2
        %vm6508 = vcmp.eq.s32.totalorder %v6506, 0
        %v6509 = vxor.u32 %v6503, 2147483648
        %v6510 = vsel %vm6508, %v6495, %v6509
        %vm6511 = vcmp.eq.s32.totalorder %v6506, 2
        %v6512 = vxor.u32 %v6495, 2147483648
        %v6513 = vsel %vm6511, %v6512, %v6503
        %v6514 = vsel %vm6507, %v6510, %v6513
        %v6515 = vsel %vm6504, nan, %v6514
        %v6516 = vand.u32 2147483647, %v6052
        %vm6517 = vcmp.le.f32.partialorder %v6516, 0.7853982
        %vm6518 = vcmp.lt.s32.totalorder %v6052, 0
        %v6519 = vand.u32 %v6052, 2139095040
        %v6520 = vshrl.u32 %v6519, 23
        %v6521 = vsub.s32 %v6520, 127
        %v6522 = vand.u32 2147483647, %v6052
        %v6523 = vand.u32 %v6522, 8388607
        %v6524 = vor.u32 %v6523, 8388608
        %v6525 = vsub.s32 0, %v6524
        %v6526 = vadd.s32 %v6521, 1
        %vm6527 = vcmp.gt.s32.totalorder %v6526, 0
        %v6528 = vsel %vm6527, %v6526, 0
        %v6529 = vshrl.u32 %v6528, 5
        %v6530 = vand.u32 %v6528, 31
        %v6531 = vsub.s32 32, %v6530
        %v6532 = vshrl.u32 683565275, %v6531
        %v6533 = vshll.u32 683565275, %v6530
        %v6534 = vshrl.u32 2475754826, %v6531
        %v6535 = vor.u32 %v6533, %v6534
        %v6536 = vshll.u32 2475754826, %v6530
        %v6537 = vshrl.u32 2131351028, %v6531
        %v6538 = vor.u32 %v6536, %v6537
        %v6539 = vshll.u32 2131351028, %v6530
        %v6540 = vshrl.u32 2102212464, %v6531
        %v6541 = vor.u32 %v6539, %v6540
        %v6542 = vshll.u32 2102212464, %v6530
        %v6543 = vshrl.u32 920167782, %v6531
        %v6544 = vor.u32 %v6542, %v6543
        %v6545 = vshll.u32 920167782, %v6530
        %v6546 = vshrl.u32 1326507024, %v6531
        %v6547 = vor.u32 %v6545, %v6546
        %vm6548 = vcmp.lt.s32.totalorder %v6529, 1
        %vm6549 = vcmp.lt.s32.totalorder %v6529, 2
        %vm6550 = vcmp.lt.s32.totalorder %v6529, 3
        %vm6551 = vcmp.lt.s32.totalorder %v6529, 4
        %v6552 = vsel %vm6548, %v6532, %v6535
        %v6553 = vsel %vm6551, %v6541, 2102212464
        %v6554 = vsel %vm6550, %v6538, %v6553
        %v6555 = vsel %vm6549, %v6552, %v6554
        %v6556 = vsel %vm6548, %v6535, %v6538
        %v6557 = vsel %vm6551, %v6544, 920167782
        %v6558 = vsel %vm6550, %v6541, %v6557
        %v6559 = vsel %vm6549, %v6556, %v6558
        %v6560 = vsel %vm6548, %v6538, %v6541
        %v6561 = vsel %vm6551, %v6547, 1326507024
        %v6562 = vsel %vm6550, %v6544, %v6561
        %v6563 = vsel %vm6549, %v6560, %v6562
        %v6564 = vshll.u32 %v6524, 8
        %v6565 = vand.u32 %v6564, 65535
        %v6566 = vshrl.u32 %v6564, 16
        %v6567 = vand.u32 %v6563, 65535
        %v6568 = vshrl.u32 %v6563, 16
        %v6569 = vmul.u32 %v6565, %v6567
        %v6570 = vmul.u32 %v6565, %v6568
        %v6571 = vmul.u32 %v6566, %v6567
        %v6572 = vmul.u32 %v6566, %v6568
        %v6573 = vshll.u32 %v6570, 16
        %v6574 = vshrl.u32 %v6570, 16
        %v6575 = vshll.u32 %v6571, 16
        %v6576 = vshrl.u32 %v6571, 16
        %vm6577 = vc.u32 %v6569, %v6573
        %v6578 = vsel %vm6577, 1, 0
        %v6579 = vadd.s32 %v6569, %v6573
        %v6580 = vadd.s32 %v6572, %v6578
        %vm6581 = vc.u32 %v6579, %v6575
        %v6582 = vsel %vm6581, 1, 0
        %v6583 = vadd.s32 %v6579, %v6575
        %v6584 = vadd.s32 %v6580, %v6582
        %v6585 = vadd.s32 %v6584, %v6574
        %v6586 = vadd.s32 %v6585, %v6576
        %v6587 = vand.u32 %v6564, 65535
        %v6588 = vshrl.u32 %v6564, 16
        %v6589 = vand.u32 %v6559, 65535
        %v6590 = vshrl.u32 %v6559, 16
        %v6591 = vmul.u32 %v6587, %v6589
        %v6592 = vmul.u32 %v6587, %v6590
        %v6593 = vmul.u32 %v6588, %v6589
        %v6594 = vmul.u32 %v6588, %v6590
        %v6595 = vshll.u32 %v6592, 16
        %v6596 = vshrl.u32 %v6592, 16
        %v6597 = vshll.u32 %v6593, 16
        %v6598 = vshrl.u32 %v6593, 16
        %vm6599 = vc.u32 %v6591, %v6595
        %v6600 = vsel %vm6599, 1, 0
        %v6601 = vadd.s32 %v6591, %v6595
        %v6602 = vadd.s32 %v6594, %v6600
        %vm6603 = vc.u32 %v6601, %v6597
        %v6604 = vsel %vm6603, 1, 0
        %v6605 = vadd.s32 %v6601, %v6597
        %v6606 = vadd.s32 %v6602, %v6604
        %v6607 = vadd.s32 %v6606, %v6596
        %v6608 = vadd.s32 %v6607, %v6598
        %v6609 = vmul.u32 %v6564, %v6555
        %v6610 = vadd.s32 %v6586, %v6605
        %vm6611 = vc.u32 %v6586, %v6605
        %v6612 = vadd.s32 %v6608, 1
        %v6613 = vsel %vm6611, %v6612, %v6608
        %v6614 = vadd.s32 %v6609, %v6613
        %v6615 = vadd.s32 %v6614, 536870912
        %v6616 = vshrl.u32 %v6615, 30
        %v6617 = vshll.u32 %v6616, 30
        %v6618 = vsub.s32 %v6614, %v6617
        %vm6619 = vcmp.lt.s32.totalorder %v6618, 0
        %v6620 = vsub.s32 0, %v6618
        %v6621 = vsel %vm6619, %v6620, %v6618
        %v6622 = vclz %v6621
        %v6623 = vsub.s32 %v6622, 2
        %vm6624 = vcmp.gt.s32.totalorder 0, %v6623
        %v6625 = vsel %vm6624, 0, %v6623
        %v6626 = vsub.s32 32, %v6625
        %v6627 = vshll.u32 %v6618, %v6625
        %v6628 = vshrl.u32 %v6610, %v6626
        %v6629 = vor.u32 %v6627, %v6628
        %v6630 = vsub.s32 4294967266, %v6625
        %v6631 = vadd.s32 %v6630, 127
        %v6632 = vshll.u32 %v6631, 23
        %v6633 = vor.u32 4788187, %v6632
        %v6634 = vand.u32 2147483647, %v6633
        %v6636 = vcvt.s32.f32 %v6629
        %v6637 = vmul.f32 %v6636, %v6634
        %v6638 = vxor.u32 %v6637, 2147483648
        %v6639 = vsel %vm6518, %v6638, %v6637
        %v6640 = vsub.s32 4, %v6616
        %v6641 = vsel %vm6518, %v6640, %v6616
        %v6642 = vsel %vm6517, %v6052, %v6639
        %v6643 = vsel %vm6517, 0, %v6641
        %v6644 = vmul.f32 %v6642, %v6642
        %v6645 = vmul.f32 %v6644, -0.001358992
        %v6646 = vadd.f32 %v6645, 0.041655596
        %v6647 = vmul.f32 %v6644, %v6646
        %v6648 = vadd.f32 %v6647, -0.4999988
        %v6649 = vmul.f32 %v6644, %v6648
        %v6650 = vadd.f32 1.0, %v6649
        %v6651 = vmul.f32 %v6642, %v6642
        %v6652 = vmul.f32 %v6651, -0.00019511016
        %v6653 = vadd.f32 %v6652, 0.008332121
        %v6654 = vmul.f32 %v6651, %v6653
        %v6655 = vadd.f32 %v6654, -0.16666654
        %v6656 = vmul.f32 %v6651, %v6655
        %v6657 = vadd.f32 %v6656, 1.0
        %v6658 = vmul.f32 %v6657, %v6642
        %vm6659 = vweird.f32 %v6052
        %v6660 = vadd.s32 %v6643, 3
        %v6661 = vand.u32 %v6660, 3
        %vm6662 = vcmp.lt.s32.totalorder %v6661, 2
        %vm6663 = vcmp.eq.s32.totalorder %v6661, 0
        %v6664 = vxor.u32 %v6658, 2147483648
        %v6665 = vsel %vm6663, %v6650, %v6664
        %vm6666 = vcmp.eq.s32.totalorder %v6661, 2
        %v6667 = vxor.u32 %v6650, 2147483648
        %v6668 = vsel %vm6666, %v6667, %v6658
        %v6669 = vsel %vm6662, %v6665, %v6668
        %v6670 = vsel %vm6659, nan, %v6669
        %v6673 = vrot.slane %v6360, 7
        %v6674 = vsel %vm1148, %v6673, %v6206
        %v6676 = vmul.f32 %v1137, %v6674
        %v6677 = vmul.f32 %v1138, %v6674
        %v6678 = vmul.f32 %v1139, %v6674
        %v6679 = vmul.f32 %v1140, %v6674
        %v6682 = vrot.slane %v6670, 7
        %v6683 = vsel %vm1148, %v6682, %v6515
        %v6685 = vmul.f32 %v1159, %v6683
        %v6686 = vmul.f32 %v1160, %v6683
        %v6687 = vmul.f32 %v1161, %v6683
        %v6688 = vmul.f32 %v1162, %v6683
        %v6689 = vsub.f32 %v6676, %v6685
        %v6690 = vsub.f32 %v6677, %v6686
        %v6691 = vsub.f32 %v6678, %v6687
        %v6692 = vsub.f32 %v6679, %v6688
        %6697 = vrot.lane.b32.xlu0 %v6689, 127
        %v6698 = vpop.permute.xlu0 %6697
        %6699 = vrot.lane.b32.xlu0 %v6690, 127
        %v6700 = vpop.permute.xlu0 %6699
        %6701 = vrot.lane.b32.xlu0 %v6691, 127
        %v6702 = vpop.permute.xlu0 %6701
        %6703 = vrot.lane.b32.xlu0 %v6692, 127
        %v6704 = vpop.permute.xlu0 %6703
        %v6709 = vmul.f32 %v6689, %v6698
        %v6710 = vmul.f32 %v6690, %v6700
        %v6711 = vmul.f32 %v6691, %v6702
        %v6712 = vmul.f32 %v6692, %v6704
        %6717 = vrot.lane.b32.xlu0 %v6709, 127
        %v6718 = vpop.permute.xlu0 %6717
        %6719 = vrot.lane.b32.xlu0 %v6710, 127
        %v6720 = vpop.permute.xlu0 %6719
        %6721 = vrot.lane.b32.xlu0 %v6711, 127
        %v6722 = vpop.permute.xlu0 %6721
        %6723 = vrot.lane.b32.xlu0 %v6712, 127
        %v6724 = vpop.permute.xlu0 %6723
        %v6729 = vmul.f32 %v6689, %v6718
        %v6730 = vmul.f32 %v6690, %v6720
        %v6731 = vmul.f32 %v6691, %v6722
        %v6732 = vmul.f32 %v6692, %v6724
        %6733 = vrot.lane.b32.xlu0 %v6689, 126
        %v6734 = vpop.permute.xlu0 %6733
        %6735 = vrot.lane.b32.xlu0 %v6690, 126
        %v6736 = vpop.permute.xlu0 %6735
        %6737 = vrot.lane.b32.xlu0 %v6691, 126
        %v6738 = vpop.permute.xlu0 %6737
        %6739 = vrot.lane.b32.xlu0 %v6692, 126
        %v6740 = vpop.permute.xlu0 %6739
        %v6745 = vmul.f32 %v6709, %v6734
        %v6746 = vmul.f32 %v6710, %v6736
        %v6747 = vmul.f32 %v6711, %v6738
        %v6748 = vmul.f32 %v6712, %v6740
        %6749 = vrot.lane.b32.xlu0 %v6709, 126
        %v6750 = vpop.permute.xlu0 %6749
        %6751 = vrot.lane.b32.xlu0 %v6710, 126
        %v6752 = vpop.permute.xlu0 %6751
        %6753 = vrot.lane.b32.xlu0 %v6711, 126
        %v6754 = vpop.permute.xlu0 %6753
        %6755 = vrot.lane.b32.xlu0 %v6712, 126
        %v6756 = vpop.permute.xlu0 %6755
        %v6761 = vmul.f32 %v6709, %v6750
        %v6762 = vmul.f32 %v6710, %v6752
        %v6763 = vmul.f32 %v6711, %v6754
        %v6764 = vmul.f32 %v6712, %v6756
        %6766 = vset.pattern.permute.xlu0 1
        %6767 = vperm.xlu0 %6766, %v6729
        %v6768 = vpop.permute.xlu0 %6767
        %6771 = vset.pattern.permute.xlu0 1
        %6772 = vperm.xlu0 %6771, %v6730
        %v6773 = vpop.permute.xlu0 %6772
        %6776 = vset.pattern.permute.xlu0 1
        %6777 = vperm.xlu0 %6776, %v6731
        %v6778 = vpop.permute.xlu0 %6777
        %6781 = vset.pattern.permute.xlu0 1
        %6782 = vperm.xlu0 %6781, %v6732
        %v6783 = vpop.permute.xlu0 %6782
        %v6785 = vmul.f32 %v6768, %v1272
        %v6786 = vmul.f32 %v6773, %v1272
        %v6787 = vmul.f32 %v6778, %v1272
        %v6788 = vmul.f32 %v6783, %v1272
        %6789 = vset.pattern.permute.xlu0 0
        %6790 = vperm.xlu0 %6789, %v6709
        %v6791 = vpop.permute.xlu0 %6790
        %6793 = vset.pattern.permute.xlu0 0
        %6794 = vperm.xlu0 %6793, %v6710
        %v6795 = vpop.permute.xlu0 %6794
        %6797 = vset.pattern.permute.xlu0 0
        %6798 = vperm.xlu0 %6797, %v6711
        %v6799 = vpop.permute.xlu0 %6798
        %6801 = vset.pattern.permute.xlu0 0
        %6802 = vperm.xlu0 %6801, %v6712
        %v6803 = vpop.permute.xlu0 %6802
        %v6805 = vmul.f32 %v6791, %v1293
        %v6806 = vmul.f32 %v6795, %v1293
        %v6807 = vmul.f32 %v6799, %v1293
        %v6808 = vmul.f32 %v6803, %v1293
        %v6809 = vadd.f32 %v6785, %v6805
        %v6810 = vadd.f32 %v6786, %v6806
        %v6811 = vadd.f32 %v6787, %v6807
        %v6812 = vadd.f32 %v6788, %v6808
        %6814 = vset.pattern.permute.xlu0 0
        %6815 = vperm.xlu0 %6814, %v6745
        %v6816 = vpop.permute.xlu0 %6815
        %6819 = vset.pattern.permute.xlu0 0
        %6820 = vperm.xlu0 %6819, %v6746
        %v6821 = vpop.permute.xlu0 %6820
        %6824 = vset.pattern.permute.xlu0 0
        %6825 = vperm.xlu0 %6824, %v6747
        %v6826 = vpop.permute.xlu0 %6825
        %6829 = vset.pattern.permute.xlu0 0
        %6830 = vperm.xlu0 %6829, %v6748
        %v6831 = vpop.permute.xlu0 %6830
        %v6833 = vmul.f32 %v6816, %v1322
        %v6834 = vmul.f32 %v6821, %v1322
        %v6835 = vmul.f32 %v6826, %v1322
        %v6836 = vmul.f32 %v6831, %v1322
        %v6837 = vadd.f32 %v6809, %v6833
        %v6838 = vadd.f32 %v6810, %v6834
        %v6839 = vadd.f32 %v6811, %v6835
        %v6840 = vadd.f32 %v6812, %v6836
        %6842 = vset.pattern.permute.xlu0 0
        %6843 = vperm.xlu0 %6842, %v6761
        %v6844 = vpop.permute.xlu0 %6843
        %6847 = vset.pattern.permute.xlu0 0
        %6848 = vperm.xlu0 %6847, %v6762
        %v6849 = vpop.permute.xlu0 %6848
        %6852 = vset.pattern.permute.xlu0 0
        %6853 = vperm.xlu0 %6852, %v6763
        %v6854 = vpop.permute.xlu0 %6853
        %6857 = vset.pattern.permute.xlu0 0
        %6858 = vperm.xlu0 %6857, %v6764
        %v6859 = vpop.permute.xlu0 %6858
        %v6861 = vmul.f32 %v6844, %v1351
        %v6862 = vmul.f32 %v6849, %v1351
        %v6863 = vmul.f32 %v6854, %v1351
        %v6864 = vmul.f32 %v6859, %v1351
        %v6865 = vadd.f32 %v6837, %v6861
        %v6866 = vadd.f32 %v6838, %v6862
        %v6867 = vadd.f32 %v6839, %v6863
        %v6868 = vadd.f32 %v6840, %v6864
        %v6869 = vadd.f32 %v6865, %v1361
        %v6870 = vadd.f32 %v6866, %v1361
        %v6871 = vadd.f32 %v6867, %v1361
        %v6872 = vadd.f32 %v6868, %v1361
        %v6873 = vxor.u32 %v6869, 2147483648
        %v6874 = vxor.u32 %v6870, 2147483648
        %v6875 = vxor.u32 %v6871, 2147483648
        %v6876 = vmul.f32 %v6873, 1.442695
        %v6877 = vpow.pop %v6876
        %v6878 = vmul.f32 %v6874, 1.442695
        %v6879 = vpow.pop %v6878
        %v6880 = vmul.f32 %v6875, 1.442695
        %v6881 = vpow.pop %v6880
        %v6882 = vadd.f32 %v6877, 1.0
        %v6883 = vadd.f32 %v6879, 1.0
        %v6884 = vadd.f32 %v6881, 1.0
        %v6885 = vrcp.pop %v6882
        %v6886 = vmul.f32 %v6882, %v6885
        %v6887 = vsub.f32 1.0, %v6886
        %v6888 = vmul.f32 %v6885, %v6887
        %v6889 = vadd.f32 %v6885, %v6888
        %vm6890 = vweird.f32 %v6882
        %vm6891 = vweird.f32 %v6885
        %vm6892 = vmor %vm6890, %vm6891
        %v6893 = vsel %vm6892, %v6885, %v6889
        %v6894 = vand.u32 2147483647, %v6882
        %vm6895 = vcmp.eq.f32.partialorder %v6894, 8.507059e+37
        %v6896 = vand.u32 %v6882, 2147483648
        %v6897 = vor.u32 1.1754944e-38, %v6896
        %v6898 = vsel %vm6895, %v6897, %v6893
        %v6899 = vmul.f32 1.0, %v6898
        %v6900 = vrcp.pop %v6883
        %v6901 = vmul.f32 %v6883, %v6900
        %v6902 = vsub.f32 1.0, %v6901
        %v6903 = vmul.f32 %v6900, %v6902
        %v6904 = vadd.f32 %v6900, %v6903
        %vm6905 = vweird.f32 %v6883
        %vm6906 = vweird.f32 %v6900
        %vm6907 = vmor %vm6905, %vm6906
        %v6908 = vsel %vm6907, %v6900, %v6904
        %v6909 = vand.u32 2147483647, %v6883
        %vm6910 = vcmp.eq.f32.partialorder %v6909, 8.507059e+37
        %v6911 = vand.u32 %v6883, 2147483648
        %v6912 = vor.u32 1.1754944e-38, %v6911
        %v6913 = vsel %vm6910, %v6912, %v6908
        %v6914 = vmul.f32 1.0, %v6913
        %v6915 = vrcp.pop %v6884
        %v6916 = vmul.f32 %v6884, %v6915
        %v6917 = vsub.f32 1.0, %v6916
        %v6918 = vmul.f32 %v6915, %v6917
        %v6919 = vadd.f32 %v6915, %v6918
        %vm6920 = vweird.f32 %v6884
        %vm6921 = vweird.f32 %v6915
        %vm6922 = vmor %vm6920, %vm6921
        %v6923 = vsel %vm6922, %v6915, %v6919
        %v6924 = vand.u32 2147483647, %v6884
        %vm6925 = vcmp.eq.f32.partialorder %v6924, 8.507059e+37
        %v6926 = vand.u32 %v6884, 2147483648
        %v6927 = vor.u32 1.1754944e-38, %v6926
        %v6928 = vsel %vm6925, %v6927, %v6923
        %v6929 = vmul.f32 1.0, %v6928
        %v6930 = vtanh.pop %v6872
        %v6931 = vmul.f32 %v6899, %v6015
        %v6932 = vmul.f32 %v6914, %v6930
        %v6933 = vadd.f32 %v6931, %v6932
        %v6934 = vtanh.pop %v6933
        %v6935 = vmul.f32 %v6929, %v6934
        %6937 = vrot.lane.b32.xlu0 %v6935, 64
        %v6938 = vpop.permute.xlu0 %6937
        %6940 = vst.msk [vmem:[%s443 + $0x2] sm:$0x3] %vm3269, %v6938
        %v6941 = vld [vmem:[%s405 + $0x7] sm:$0x1]
        %v6942 = vld [vmem:[%s405 + $0xf] sm:$0x1]
        %v6943 = vsel %vm485, %v6935, 0
        %6945 = vmatpush.msra.mxu0 0.0
        %6946 = vmatpush.msra.mxu0 0.0
        %6947 = vmatpush.msra.mxu0 0.0
        %6948 = vmatpush.msra.mxu0 0.0
        %6949 = vmatpush.msra.mxu0 0.0
        %6950 = vmatpush.msra.mxu0 0.0
        %6951 = vmatpush.msra.mxu0 0.0
        %6952 = vmatpush.msra.mxu0 0.0
        %6953 = vmatpush.msra.mxu0 0.0
        %6954 = vmatpush.msra.mxu0 0.0
        %6955 = vmatpush.msra.mxu0 0.0
        %6956 = vmatpush.msra.mxu0 0.0
        %6957 = vmatpush.msra.mxu0 %v470
        %6958 = vmatpush.msra.mxu0 %v469
        %6959 = vmatpush.msra.mxu0 %v468
        %6960 = vmatpush.msra.mxu0 %v467
        %6961 = vmatmul.f32.gmra.mxu0 %v6943
        %v6962 = vpop.f32.mrf.mxu0
        %v6963 = vadd.f32 0.0, %v6962
        %6964 = vdwg.mxu0
        %v6966 = vrot.slane %v6963, 1
        %v6969 = vadd.f32 %v6941, %v6963
        %v6970 = vadd.f32 %v6942, %v6966
        %v6971 = vand.u32 2147483647, %v6969
        %vm6972 = vcmp.le.f32.partialorder %v6971, 0.7853982
        %vm6973 = vcmp.lt.s32.totalorder %v6969, 0
        %v6974 = vand.u32 %v6969, 2139095040
        %v6975 = vshrl.u32 %v6974, 23
        %v6976 = vsub.s32 %v6975, 127
        %v6977 = vand.u32 2147483647, %v6969
        %v6978 = vand.u32 %v6977, 8388607
        %v6979 = vor.u32 %v6978, 8388608
        %v6980 = vsub.s32 0, %v6979
        %v6981 = vadd.s32 %v6976, 1
        %vm6982 = vcmp.gt.s32.totalorder %v6981, 0
        %v6983 = vsel %vm6982, %v6981, 0
        %v6984 = vshrl.u32 %v6983, 5
        %v6985 = vand.u32 %v6983, 31
        %v6986 = vsub.s32 32, %v6985
        %v6987 = vshrl.u32 683565275, %v6986
        %v6988 = vshll.u32 683565275, %v6985
        %v6989 = vshrl.u32 2475754826, %v6986
        %v6990 = vor.u32 %v6988, %v6989
        %v6991 = vshll.u32 2475754826, %v6985
        %v6992 = vshrl.u32 2131351028, %v6986
        %v6993 = vor.u32 %v6991, %v6992
        %v6994 = vshll.u32 2131351028, %v6985
        %v6995 = vshrl.u32 2102212464, %v6986
        %v6996 = vor.u32 %v6994, %v6995
        %v6997 = vshll.u32 2102212464, %v6985
        %v6998 = vshrl.u32 920167782, %v6986
        %v6999 = vor.u32 %v6997, %v6998
        %v7000 = vshll.u32 920167782, %v6985
        %v7001 = vshrl.u32 1326507024, %v6986
        %v7002 = vor.u32 %v7000, %v7001
        %vm7003 = vcmp.lt.s32.totalorder %v6984, 1
        %vm7004 = vcmp.lt.s32.totalorder %v6984, 2
        %vm7005 = vcmp.lt.s32.totalorder %v6984, 3
        %vm7006 = vcmp.lt.s32.totalorder %v6984, 4
        %v7007 = vsel %vm7003, %v6987, %v6990
        %v7008 = vsel %vm7006, %v6996, 2102212464
        %v7009 = vsel %vm7005, %v6993, %v7008
        %v7010 = vsel %vm7004, %v7007, %v7009
        %v7011 = vsel %vm7003, %v6990, %v6993
        %v7012 = vsel %vm7006, %v6999, 920167782
        %v7013 = vsel %vm7005, %v6996, %v7012
        %v7014 = vsel %vm7004, %v7011, %v7013
        %v7015 = vsel %vm7003, %v6993, %v6996
        %v7016 = vsel %vm7006, %v7002, 1326507024
        %v7017 = vsel %vm7005, %v6999, %v7016
        %v7018 = vsel %vm7004, %v7015, %v7017
        %v7019 = vshll.u32 %v6979, 8
        %v7020 = vand.u32 %v7019, 65535
        %v7021 = vshrl.u32 %v7019, 16
        %v7022 = vand.u32 %v7018, 65535
        %v7023 = vshrl.u32 %v7018, 16
        %v7024 = vmul.u32 %v7020, %v7022
        %v7025 = vmul.u32 %v7020, %v7023
        %v7026 = vmul.u32 %v7021, %v7022
        %v7027 = vmul.u32 %v7021, %v7023
        %v7028 = vshll.u32 %v7025, 16
        %v7029 = vshrl.u32 %v7025, 16
        %v7030 = vshll.u32 %v7026, 16
        %v7031 = vshrl.u32 %v7026, 16
        %vm7032 = vc.u32 %v7024, %v7028
        %v7033 = vsel %vm7032, 1, 0
        %v7034 = vadd.s32 %v7024, %v7028
        %v7035 = vadd.s32 %v7027, %v7033
        %vm7036 = vc.u32 %v7034, %v7030
        %v7037 = vsel %vm7036, 1, 0
        %v7038 = vadd.s32 %v7034, %v7030
        %v7039 = vadd.s32 %v7035, %v7037
        %v7040 = vadd.s32 %v7039, %v7029
        %v7041 = vadd.s32 %v7040, %v7031
        %v7042 = vand.u32 %v7019, 65535
        %v7043 = vshrl.u32 %v7019, 16
        %v7044 = vand.u32 %v7014, 65535
        %v7045 = vshrl.u32 %v7014, 16
        %v7046 = vmul.u32 %v7042, %v7044
        %v7047 = vmul.u32 %v7042, %v7045
        %v7048 = vmul.u32 %v7043, %v7044
        %v7049 = vmul.u32 %v7043, %v7045
        %v7050 = vshll.u32 %v7047, 16
        %v7051 = vshrl.u32 %v7047, 16
        %v7052 = vshll.u32 %v7048, 16
        %v7053 = vshrl.u32 %v7048, 16
        %vm7054 = vc.u32 %v7046, %v7050
        %v7055 = vsel %vm7054, 1, 0
        %v7056 = vadd.s32 %v7046, %v7050
        %v7057 = vadd.s32 %v7049, %v7055
        %vm7058 = vc.u32 %v7056, %v7052
        %v7059 = vsel %vm7058, 1, 0
        %v7060 = vadd.s32 %v7056, %v7052
        %v7061 = vadd.s32 %v7057, %v7059
        %v7062 = vadd.s32 %v7061, %v7051
        %v7063 = vadd.s32 %v7062, %v7053
        %v7064 = vmul.u32 %v7019, %v7010
        %v7065 = vadd.s32 %v7041, %v7060
        %vm7066 = vc.u32 %v7041, %v7060
        %v7067 = vadd.s32 %v7063, 1
        %v7068 = vsel %vm7066, %v7067, %v7063
        %v7069 = vadd.s32 %v7064, %v7068
        %v7070 = vadd.s32 %v7069, 536870912
        %v7071 = vshrl.u32 %v7070, 30
        %v7072 = vshll.u32 %v7071, 30
        %v7073 = vsub.s32 %v7069, %v7072
        %vm7074 = vcmp.lt.s32.totalorder %v7073, 0
        %v7075 = vsub.s32 0, %v7073
        %v7076 = vsel %vm7074, %v7075, %v7073
        %v7077 = vclz %v7076
        %v7078 = vsub.s32 %v7077, 2
        %vm7079 = vcmp.gt.s32.totalorder 0, %v7078
        %v7080 = vsel %vm7079, 0, %v7078
        %v7081 = vsub.s32 32, %v7080
        %v7082 = vshll.u32 %v7073, %v7080
        %v7083 = vshrl.u32 %v7065, %v7081
        %v7084 = vor.u32 %v7082, %v7083
        %v7085 = vsub.s32 4294967266, %v7080
        %v7086 = vadd.s32 %v7085, 127
        %v7087 = vshll.u32 %v7086, 23
        %v7088 = vor.u32 4788187, %v7087
        %v7089 = vand.u32 2147483647, %v7088
        %v7091 = vcvt.s32.f32 %v7084
        %v7092 = vmul.f32 %v7091, %v7089
        %v7093 = vxor.u32 %v7092, 2147483648
        %v7094 = vsel %vm6973, %v7093, %v7092
        %v7095 = vsub.s32 4, %v7071
        %v7096 = vsel %vm6973, %v7095, %v7071
        %v7097 = vsel %vm6972, %v6969, %v7094
        %v7098 = vsel %vm6972, 0, %v7096
        %v7099 = vmul.f32 %v7097, %v7097
        %v7100 = vmul.f32 %v7099, -0.001358992
        %v7101 = vadd.f32 %v7100, 0.041655596
        %v7102 = vmul.f32 %v7099, %v7101
        %v7103 = vadd.f32 %v7102, -0.4999988
        %v7104 = vmul.f32 %v7099, %v7103
        %v7105 = vadd.f32 1.0, %v7104
        %v7106 = vmul.f32 %v7097, %v7097
        %v7107 = vmul.f32 %v7106, -0.00019511016
        %v7108 = vadd.f32 %v7107, 0.008332121
        %v7109 = vmul.f32 %v7106, %v7108
        %v7110 = vadd.f32 %v7109, -0.16666654
        %v7111 = vmul.f32 %v7106, %v7110
        %v7112 = vadd.f32 %v7111, 1.0
        %v7113 = vmul.f32 %v7112, %v7097
        %vm7114 = vweird.f32 %v6969
        %v7115 = vand.u32 %v7098, 3
        %vm7116 = vcmp.lt.s32.totalorder %v7115, 2
        %vm7117 = vcmp.eq.s32.totalorder %v7115, 0
        %v7118 = vxor.u32 %v7113, 2147483648
        %v7119 = vsel %vm7117, %v7105, %v7118
        %vm7120 = vcmp.eq.s32.totalorder %v7115, 2
        %v7121 = vxor.u32 %v7105, 2147483648
        %v7122 = vsel %vm7120, %v7121, %v7113
        %v7123 = vsel %vm7116, %v7119, %v7122
        %v7124 = vsel %vm7114, nan, %v7123
        %v7125 = vand.u32 2147483647, %v6970
        %vm7126 = vcmp.le.f32.partialorder %v7125, 0.7853982
        %vm7127 = vcmp.lt.s32.totalorder %v6970, 0
        %v7128 = vand.u32 %v6970, 2139095040
        %v7129 = vshrl.u32 %v7128, 23
        %v7130 = vsub.s32 %v7129, 127
        %v7131 = vand.u32 2147483647, %v6970
        %v7132 = vand.u32 %v7131, 8388607
        %v7133 = vor.u32 %v7132, 8388608
        %v7134 = vsub.s32 0, %v7133
        %v7135 = vadd.s32 %v7130, 1
        %vm7136 = vcmp.gt.s32.totalorder %v7135, 0
        %v7137 = vsel %vm7136, %v7135, 0
        %v7138 = vshrl.u32 %v7137, 5
        %v7139 = vand.u32 %v7137, 31
        %v7140 = vsub.s32 32, %v7139
        %v7141 = vshrl.u32 683565275, %v7140
        %v7142 = vshll.u32 683565275, %v7139
        %v7143 = vshrl.u32 2475754826, %v7140
        %v7144 = vor.u32 %v7142, %v7143
        %v7145 = vshll.u32 2475754826, %v7139
        %v7146 = vshrl.u32 2131351028, %v7140
        %v7147 = vor.u32 %v7145, %v7146
        %v7148 = vshll.u32 2131351028, %v7139
        %v7149 = vshrl.u32 2102212464, %v7140
        %v7150 = vor.u32 %v7148, %v7149
        %v7151 = vshll.u32 2102212464, %v7139
        %v7152 = vshrl.u32 920167782, %v7140
        %v7153 = vor.u32 %v7151, %v7152
        %v7154 = vshll.u32 920167782, %v7139
        %v7155 = vshrl.u32 1326507024, %v7140
        %v7156 = vor.u32 %v7154, %v7155
        %vm7157 = vcmp.lt.s32.totalorder %v7138, 1
        %vm7158 = vcmp.lt.s32.totalorder %v7138, 2
        %vm7159 = vcmp.lt.s32.totalorder %v7138, 3
        %vm7160 = vcmp.lt.s32.totalorder %v7138, 4
        %v7161 = vsel %vm7157, %v7141, %v7144
        %v7162 = vsel %vm7160, %v7150, 2102212464
        %v7163 = vsel %vm7159, %v7147, %v7162
        %v7164 = vsel %vm7158, %v7161, %v7163
        %v7165 = vsel %vm7157, %v7144, %v7147
        %v7166 = vsel %vm7160, %v7153, 920167782
        %v7167 = vsel %vm7159, %v7150, %v7166
        %v7168 = vsel %vm7158, %v7165, %v7167
        %v7169 = vsel %vm7157, %v7147, %v7150
        %v7170 = vsel %vm7160, %v7156, 1326507024
        %v7171 = vsel %vm7159, %v7153, %v7170
        %v7172 = vsel %vm7158, %v7169, %v7171
        %v7173 = vshll.u32 %v7133, 8
        %v7174 = vand.u32 %v7173, 65535
        %v7175 = vshrl.u32 %v7173, 16
        %v7176 = vand.u32 %v7172, 65535
        %v7177 = vshrl.u32 %v7172, 16
        %v7178 = vmul.u32 %v7174, %v7176
        %v7179 = vmul.u32 %v7174, %v7177
        %v7180 = vmul.u32 %v7175, %v7176
        %v7181 = vmul.u32 %v7175, %v7177
        %v7182 = vshll.u32 %v7179, 16
        %v7183 = vshrl.u32 %v7179, 16
        %v7184 = vshll.u32 %v7180, 16
        %v7185 = vshrl.u32 %v7180, 16
        %vm7186 = vc.u32 %v7178, %v7182
        %v7187 = vsel %vm7186, 1, 0
        %v7188 = vadd.s32 %v7178, %v7182
        %v7189 = vadd.s32 %v7181, %v7187
        %vm7190 = vc.u32 %v7188, %v7184
        %v7191 = vsel %vm7190, 1, 0
        %v7192 = vadd.s32 %v7188, %v7184
        %v7193 = vadd.s32 %v7189, %v7191
        %v7194 = vadd.s32 %v7193, %v7183
        %v7195 = vadd.s32 %v7194, %v7185
        %v7196 = vand.u32 %v7173, 65535
        %v7197 = vshrl.u32 %v7173, 16
        %v7198 = vand.u32 %v7168, 65535
        %v7199 = vshrl.u32 %v7168, 16
        %v7200 = vmul.u32 %v7196, %v7198
        %v7201 = vmul.u32 %v7196, %v7199
        %v7202 = vmul.u32 %v7197, %v7198
        %v7203 = vmul.u32 %v7197, %v7199
        %v7204 = vshll.u32 %v7201, 16
        %v7205 = vshrl.u32 %v7201, 16
        %v7206 = vshll.u32 %v7202, 16
        %v7207 = vshrl.u32 %v7202, 16
        %vm7208 = vc.u32 %v7200, %v7204
        %v7209 = vsel %vm7208, 1, 0
        %v7210 = vadd.s32 %v7200, %v7204
        %v7211 = vadd.s32 %v7203, %v7209
        %vm7212 = vc.u32 %v7210, %v7206
        %v7213 = vsel %vm7212, 1, 0
        %v7214 = vadd.s32 %v7210, %v7206
        %v7215 = vadd.s32 %v7211, %v7213
        %v7216 = vadd.s32 %v7215, %v7205
        %v7217 = vadd.s32 %v7216, %v7207
        %v7218 = vmul.u32 %v7173, %v7164
        %v7219 = vadd.s32 %v7195, %v7214
        %vm7220 = vc.u32 %v7195, %v7214
        %v7221 = vadd.s32 %v7217, 1
        %v7222 = vsel %vm7220, %v7221, %v7217
        %v7223 = vadd.s32 %v7218, %v7222
        %v7224 = vadd.s32 %v7223, 536870912
        %v7225 = vshrl.u32 %v7224, 30
        %v7226 = vshll.u32 %v7225, 30
        %v7227 = vsub.s32 %v7223, %v7226
        %vm7228 = vcmp.lt.s32.totalorder %v7227, 0
        %v7229 = vsub.s32 0, %v7227
        %v7230 = vsel %vm7228, %v7229, %v7227
        %v7231 = vclz %v7230
        %v7232 = vsub.s32 %v7231, 2
        %vm7233 = vcmp.gt.s32.totalorder 0, %v7232
        %v7234 = vsel %vm7233, 0, %v7232
        %v7235 = vsub.s32 32, %v7234
        %v7236 = vshll.u32 %v7227, %v7234
        %v7237 = vshrl.u32 %v7219, %v7235
        %v7238 = vor.u32 %v7236, %v7237
        %v7239 = vsub.s32 4294967266, %v7234
        %v7240 = vadd.s32 %v7239, 127
        %v7241 = vshll.u32 %v7240, 23
        %v7242 = vor.u32 4788187, %v7241
        %v7243 = vand.u32 2147483647, %v7242
        %v7245 = vcvt.s32.f32 %v7238
        %v7246 = vmul.f32 %v7245, %v7243
        %v7247 = vxor.u32 %v7246, 2147483648
        %v7248 = vsel %vm7127, %v7247, %v7246
        %v7249 = vsub.s32 4, %v7225
        %v7250 = vsel %vm7127, %v7249, %v7225
        %v7251 = vsel %vm7126, %v6970, %v7248
        %v7252 = vsel %vm7126, 0, %v7250
        %v7253 = vmul.f32 %v7251, %v7251
        %v7254 = vmul.f32 %v7253, -0.001358992
        %v7255 = vadd.f32 %v7254, 0.041655596
        %v7256 = vmul.f32 %v7253, %v7255
        %v7257 = vadd.f32 %v7256, -0.4999988
        %v7258 = vmul.f32 %v7253, %v7257
        %v7259 = vadd.f32 1.0, %v7258
        %v7260 = vmul.f32 %v7251, %v7251
        %v7261 = vmul.f32 %v7260, -0.00019511016
        %v7262 = vadd.f32 %v7261, 0.008332121
        %v7263 = vmul.f32 %v7260, %v7262
        %v7264 = vadd.f32 %v7263, -0.16666654
        %v7265 = vmul.f32 %v7260, %v7264
        %v7266 = vadd.f32 %v7265, 1.0
        %v7267 = vmul.f32 %v7266, %v7251
        %vm7268 = vweird.f32 %v6970
        %v7269 = vand.u32 %v7252, 3
        %vm7270 = vcmp.lt.s32.totalorder %v7269, 2
        %vm7271 = vcmp.eq.s32.totalorder %v7269, 0
        %v7272 = vxor.u32 %v7267, 2147483648
        %v7273 = vsel %vm7271, %v7259, %v7272
        %vm7274 = vcmp.eq.s32.totalorder %v7269, 2
        %v7275 = vxor.u32 %v7259, 2147483648
        %v7276 = vsel %vm7274, %v7275, %v7267
        %v7277 = vsel %vm7270, %v7273, %v7276
        %v7278 = vsel %vm7268, nan, %v7277
        %v7279 = vand.u32 2147483647, %v6969
        %vm7280 = vcmp.le.f32.partialorder %v7279, 0.7853982
        %vm7281 = vcmp.lt.s32.totalorder %v6969, 0
        %v7282 = vand.u32 %v6969, 2139095040
        %v7283 = vshrl.u32 %v7282, 23
        %v7284 = vsub.s32 %v7283, 127
        %v7285 = vand.u32 2147483647, %v6969
        %v7286 = vand.u32 %v7285, 8388607
        %v7287 = vor.u32 %v7286, 8388608
        %v7288 = vsub.s32 0, %v7287
        %v7289 = vadd.s32 %v7284, 1
        %vm7290 = vcmp.gt.s32.totalorder %v7289, 0
        %v7291 = vsel %vm7290, %v7289, 0
        %v7292 = vshrl.u32 %v7291, 5
        %v7293 = vand.u32 %v7291, 31
        %v7294 = vsub.s32 32, %v7293
        %v7295 = vshrl.u32 683565275, %v7294
        %v7296 = vshll.u32 683565275, %v7293
        %v7297 = vshrl.u32 2475754826, %v7294
        %v7298 = vor.u32 %v7296, %v7297
        %v7299 = vshll.u32 2475754826, %v7293
        %v7300 = vshrl.u32 2131351028, %v7294
        %v7301 = vor.u32 %v7299, %v7300
        %v7302 = vshll.u32 2131351028, %v7293
        %v7303 = vshrl.u32 2102212464, %v7294
        %v7304 = vor.u32 %v7302, %v7303
        %v7305 = vshll.u32 2102212464, %v7293
        %v7306 = vshrl.u32 920167782, %v7294
        %v7307 = vor.u32 %v7305, %v7306
        %v7308 = vshll.u32 920167782, %v7293
        %v7309 = vshrl.u32 1326507024, %v7294
        %v7310 = vor.u32 %v7308, %v7309
        %vm7311 = vcmp.lt.s32.totalorder %v7292, 1
        %vm7312 = vcmp.lt.s32.totalorder %v7292, 2
        %vm7313 = vcmp.lt.s32.totalorder %v7292, 3
        %vm7314 = vcmp.lt.s32.totalorder %v7292, 4
        %v7315 = vsel %vm7311, %v7295, %v7298
        %v7316 = vsel %vm7314, %v7304, 2102212464
        %v7317 = vsel %vm7313, %v7301, %v7316
        %v7318 = vsel %vm7312, %v7315, %v7317
        %v7319 = vsel %vm7311, %v7298, %v7301
        %v7320 = vsel %vm7314, %v7307, 920167782
        %v7321 = vsel %vm7313, %v7304, %v7320
        %v7322 = vsel %vm7312, %v7319, %v7321
        %v7323 = vsel %vm7311, %v7301, %v7304
        %v7324 = vsel %vm7314, %v7310, 1326507024
        %v7325 = vsel %vm7313, %v7307, %v7324
        %v7326 = vsel %vm7312, %v7323, %v7325
        %v7327 = vshll.u32 %v7287, 8
        %v7328 = vand.u32 %v7327, 65535
        %v7329 = vshrl.u32 %v7327, 16
        %v7330 = vand.u32 %v7326, 65535
        %v7331 = vshrl.u32 %v7326, 16
        %v7332 = vmul.u32 %v7328, %v7330
        %v7333 = vmul.u32 %v7328, %v7331
        %v7334 = vmul.u32 %v7329, %v7330
        %v7335 = vmul.u32 %v7329, %v7331
        %v7336 = vshll.u32 %v7333, 16
        %v7337 = vshrl.u32 %v7333, 16
        %v7338 = vshll.u32 %v7334, 16
        %v7339 = vshrl.u32 %v7334, 16
        %vm7340 = vc.u32 %v7332, %v7336
        %v7341 = vsel %vm7340, 1, 0
        %v7342 = vadd.s32 %v7332, %v7336
        %v7343 = vadd.s32 %v7335, %v7341
        %vm7344 = vc.u32 %v7342, %v7338
        %v7345 = vsel %vm7344, 1, 0
        %v7346 = vadd.s32 %v7342, %v7338
        %v7347 = vadd.s32 %v7343, %v7345
        %v7348 = vadd.s32 %v7347, %v7337
        %v7349 = vadd.s32 %v7348, %v7339
        %v7350 = vand.u32 %v7327, 65535
        %v7351 = vshrl.u32 %v7327, 16
        %v7352 = vand.u32 %v7322, 65535
        %v7353 = vshrl.u32 %v7322, 16
        %v7354 = vmul.u32 %v7350, %v7352
        %v7355 = vmul.u32 %v7350, %v7353
        %v7356 = vmul.u32 %v7351, %v7352
        %v7357 = vmul.u32 %v7351, %v7353
        %v7358 = vshll.u32 %v7355, 16
        %v7359 = vshrl.u32 %v7355, 16
        %v7360 = vshll.u32 %v7356, 16
        %v7361 = vshrl.u32 %v7356, 16
        %vm7362 = vc.u32 %v7354, %v7358
        %v7363 = vsel %vm7362, 1, 0
        %v7364 = vadd.s32 %v7354, %v7358
        %v7365 = vadd.s32 %v7357, %v7363
        %vm7366 = vc.u32 %v7364, %v7360
        %v7367 = vsel %vm7366, 1, 0
        %v7368 = vadd.s32 %v7364, %v7360
        %v7369 = vadd.s32 %v7365, %v7367
        %v7370 = vadd.s32 %v7369, %v7359
        %v7371 = vadd.s32 %v7370, %v7361
        %v7372 = vmul.u32 %v7327, %v7318
        %v7373 = vadd.s32 %v7349, %v7368
        %vm7374 = vc.u32 %v7349, %v7368
        %v7375 = vadd.s32 %v7371, 1
        %v7376 = vsel %vm7374, %v7375, %v7371
        %v7377 = vadd.s32 %v7372, %v7376
        %v7378 = vadd.s32 %v7377, 536870912
        %v7379 = vshrl.u32 %v7378, 30
        %v7380 = vshll.u32 %v7379, 30
        %v7381 = vsub.s32 %v7377, %v7380
        %vm7382 = vcmp.lt.s32.totalorder %v7381, 0
        %v7383 = vsub.s32 0, %v7381
        %v7384 = vsel %vm7382, %v7383, %v7381
        %v7385 = vclz %v7384
        %v7386 = vsub.s32 %v7385, 2
        %vm7387 = vcmp.gt.s32.totalorder 0, %v7386
        %v7388 = vsel %vm7387, 0, %v7386
        %v7389 = vsub.s32 32, %v7388
        %v7390 = vshll.u32 %v7381, %v7388
        %v7391 = vshrl.u32 %v7373, %v7389
        %v7392 = vor.u32 %v7390, %v7391
        %v7393 = vsub.s32 4294967266, %v7388
        %v7394 = vadd.s32 %v7393, 127
        %v7395 = vshll.u32 %v7394, 23
        %v7396 = vor.u32 4788187, %v7395
        %v7397 = vand.u32 2147483647, %v7396
        %v7399 = vcvt.s32.f32 %v7392
        %v7400 = vmul.f32 %v7399, %v7397
        %v7401 = vxor.u32 %v7400, 2147483648
        %v7402 = vsel %vm7281, %v7401, %v7400
        %v7403 = vsub.s32 4, %v7379
        %v7404 = vsel %vm7281, %v7403, %v7379
        %v7405 = vsel %vm7280, %v6969, %v7402
        %v7406 = vsel %vm7280, 0, %v7404
        %v7407 = vmul.f32 %v7405, %v7405
        %v7408 = vmul.f32 %v7407, -0.001358992
        %v7409 = vadd.f32 %v7408, 0.041655596
        %v7410 = vmul.f32 %v7407, %v7409
        %v7411 = vadd.f32 %v7410, -0.4999988
        %v7412 = vmul.f32 %v7407, %v7411
        %v7413 = vadd.f32 1.0, %v7412
        %v7414 = vmul.f32 %v7405, %v7405
        %v7415 = vmul.f32 %v7414, -0.00019511016
        %v7416 = vadd.f32 %v7415, 0.008332121
        %v7417 = vmul.f32 %v7414, %v7416
        %v7418 = vadd.f32 %v7417, -0.16666654
        %v7419 = vmul.f32 %v7414, %v7418
        %v7420 = vadd.f32 %v7419, 1.0
        %v7421 = vmul.f32 %v7420, %v7405
        %vm7422 = vweird.f32 %v6969
        %v7423 = vadd.s32 %v7406, 3
        %v7424 = vand.u32 %v7423, 3
        %vm7425 = vcmp.lt.s32.totalorder %v7424, 2
        %vm7426 = vcmp.eq.s32.totalorder %v7424, 0
        %v7427 = vxor.u32 %v7421, 2147483648
        %v7428 = vsel %vm7426, %v7413, %v7427
        %vm7429 = vcmp.eq.s32.totalorder %v7424, 2
        %v7430 = vxor.u32 %v7413, 2147483648
        %v7431 = vsel %vm7429, %v7430, %v7421
        %v7432 = vsel %vm7425, %v7428, %v7431
        %v7433 = vsel %vm7422, nan, %v7432
        %v7434 = vand.u32 2147483647, %v6970
        %vm7435 = vcmp.le.f32.partialorder %v7434, 0.7853982
        %vm7436 = vcmp.lt.s32.totalorder %v6970, 0
        %v7437 = vand.u32 %v6970, 2139095040
        %v7438 = vshrl.u32 %v7437, 23
        %v7439 = vsub.s32 %v7438, 127
        %v7440 = vand.u32 2147483647, %v6970
        %v7441 = vand.u32 %v7440, 8388607
        %v7442 = vor.u32 %v7441, 8388608
        %v7443 = vsub.s32 0, %v7442
        %v7444 = vadd.s32 %v7439, 1
        %vm7445 = vcmp.gt.s32.totalorder %v7444, 0
        %v7446 = vsel %vm7445, %v7444, 0
        %v7447 = vshrl.u32 %v7446, 5
        %v7448 = vand.u32 %v7446, 31
        %v7449 = vsub.s32 32, %v7448
        %v7450 = vshrl.u32 683565275, %v7449
        %v7451 = vshll.u32 683565275, %v7448
        %v7452 = vshrl.u32 2475754826, %v7449
        %v7453 = vor.u32 %v7451, %v7452
        %v7454 = vshll.u32 2475754826, %v7448
        %v7455 = vshrl.u32 2131351028, %v7449
        %v7456 = vor.u32 %v7454, %v7455
        %v7457 = vshll.u32 2131351028, %v7448
        %v7458 = vshrl.u32 2102212464, %v7449
        %v7459 = vor.u32 %v7457, %v7458
        %v7460 = vshll.u32 2102212464, %v7448
        %v7461 = vshrl.u32 920167782, %v7449
        %v7462 = vor.u32 %v7460, %v7461
        %v7463 = vshll.u32 920167782, %v7448
        %v7464 = vshrl.u32 1326507024, %v7449
        %v7465 = vor.u32 %v7463, %v7464
        %vm7466 = vcmp.lt.s32.totalorder %v7447, 1
        %vm7467 = vcmp.lt.s32.totalorder %v7447, 2
        %vm7468 = vcmp.lt.s32.totalorder %v7447, 3
        %vm7469 = vcmp.lt.s32.totalorder %v7447, 4
        %v7470 = vsel %vm7466, %v7450, %v7453
        %v7471 = vsel %vm7469, %v7459, 2102212464
        %v7472 = vsel %vm7468, %v7456, %v7471
        %v7473 = vsel %vm7467, %v7470, %v7472
        %v7474 = vsel %vm7466, %v7453, %v7456
        %v7475 = vsel %vm7469, %v7462, 920167782
        %v7476 = vsel %vm7468, %v7459, %v7475
        %v7477 = vsel %vm7467, %v7474, %v7476
        %v7478 = vsel %vm7466, %v7456, %v7459
        %v7479 = vsel %vm7469, %v7465, 1326507024
        %v7480 = vsel %vm7468, %v7462, %v7479
        %v7481 = vsel %vm7467, %v7478, %v7480
        %v7482 = vshll.u32 %v7442, 8
        %v7483 = vand.u32 %v7482, 65535
        %v7484 = vshrl.u32 %v7482, 16
        %v7485 = vand.u32 %v7481, 65535
        %v7486 = vshrl.u32 %v7481, 16
        %v7487 = vmul.u32 %v7483, %v7485
        %v7488 = vmul.u32 %v7483, %v7486
        %v7489 = vmul.u32 %v7484, %v7485
        %v7490 = vmul.u32 %v7484, %v7486
        %v7491 = vshll.u32 %v7488, 16
        %v7492 = vshrl.u32 %v7488, 16
        %v7493 = vshll.u32 %v7489, 16
        %v7494 = vshrl.u32 %v7489, 16
        %vm7495 = vc.u32 %v7487, %v7491
        %v7496 = vsel %vm7495, 1, 0
        %v7497 = vadd.s32 %v7487, %v7491
        %v7498 = vadd.s32 %v7490, %v7496
        %vm7499 = vc.u32 %v7497, %v7493
        %v7500 = vsel %vm7499, 1, 0
        %v7501 = vadd.s32 %v7497, %v7493
        %v7502 = vadd.s32 %v7498, %v7500
        %v7503 = vadd.s32 %v7502, %v7492
        %v7504 = vadd.s32 %v7503, %v7494
        %v7505 = vand.u32 %v7482, 65535
        %v7506 = vshrl.u32 %v7482, 16
        %v7507 = vand.u32 %v7477, 65535
        %v7508 = vshrl.u32 %v7477, 16
        %v7509 = vmul.u32 %v7505, %v7507
        %v7510 = vmul.u32 %v7505, %v7508
        %v7511 = vmul.u32 %v7506, %v7507
        %v7512 = vmul.u32 %v7506, %v7508
        %v7513 = vshll.u32 %v7510, 16
        %v7514 = vshrl.u32 %v7510, 16
        %v7515 = vshll.u32 %v7511, 16
        %v7516 = vshrl.u32 %v7511, 16
        %vm7517 = vc.u32 %v7509, %v7513
        %v7518 = vsel %vm7517, 1, 0
        %v7519 = vadd.s32 %v7509, %v7513
        %v7520 = vadd.s32 %v7512, %v7518
        %vm7521 = vc.u32 %v7519, %v7515
        %v7522 = vsel %vm7521, 1, 0
        %v7523 = vadd.s32 %v7519, %v7515
        %v7524 = vadd.s32 %v7520, %v7522
        %v7525 = vadd.s32 %v7524, %v7514
        %v7526 = vadd.s32 %v7525, %v7516
        %v7527 = vmul.u32 %v7482, %v7473
        %v7528 = vadd.s32 %v7504, %v7523
        %vm7529 = vc.u32 %v7504, %v7523
        %v7530 = vadd.s32 %v7526, 1
        %v7531 = vsel %vm7529, %v7530, %v7526
        %v7532 = vadd.s32 %v7527, %v7531
        %v7533 = vadd.s32 %v7532, 536870912
        %v7534 = vshrl.u32 %v7533, 30
        %v7535 = vshll.u32 %v7534, 30
        %v7536 = vsub.s32 %v7532, %v7535
        %vm7537 = vcmp.lt.s32.totalorder %v7536, 0
        %v7538 = vsub.s32 0, %v7536
        %v7539 = vsel %vm7537, %v7538, %v7536
        %v7540 = vclz %v7539
        %v7541 = vsub.s32 %v7540, 2
        %vm7542 = vcmp.gt.s32.totalorder 0, %v7541
        %v7543 = vsel %vm7542, 0, %v7541
        %v7544 = vsub.s32 32, %v7543
        %v7545 = vshll.u32 %v7536, %v7543
        %v7546 = vshrl.u32 %v7528, %v7544
        %v7547 = vor.u32 %v7545, %v7546
        %v7548 = vsub.s32 4294967266, %v7543
        %v7549 = vadd.s32 %v7548, 127
        %v7550 = vshll.u32 %v7549, 23
        %v7551 = vor.u32 4788187, %v7550
        %v7552 = vand.u32 2147483647, %v7551
        %v7554 = vcvt.s32.f32 %v7547
        %v7555 = vmul.f32 %v7554, %v7552
        %v7556 = vxor.u32 %v7555, 2147483648
        %v7557 = vsel %vm7436, %v7556, %v7555
        %v7558 = vsub.s32 4, %v7534
        %v7559 = vsel %vm7436, %v7558, %v7534
        %v7560 = vsel %vm7435, %v6970, %v7557
        %v7561 = vsel %vm7435, 0, %v7559
        %v7562 = vmul.f32 %v7560, %v7560
        %v7563 = vmul.f32 %v7562, -0.001358992
        %v7564 = vadd.f32 %v7563, 0.041655596
        %v7565 = vmul.f32 %v7562, %v7564
        %v7566 = vadd.f32 %v7565, -0.4999988
        %v7567 = vmul.f32 %v7562, %v7566
        %v7568 = vadd.f32 1.0, %v7567
        %v7569 = vmul.f32 %v7560, %v7560
        %v7570 = vmul.f32 %v7569, -0.00019511016
        %v7571 = vadd.f32 %v7570, 0.008332121
        %v7572 = vmul.f32 %v7569, %v7571
        %v7573 = vadd.f32 %v7572, -0.16666654
        %v7574 = vmul.f32 %v7569, %v7573
        %v7575 = vadd.f32 %v7574, 1.0
        %v7576 = vmul.f32 %v7575, %v7560
        %vm7577 = vweird.f32 %v6970
        %v7578 = vadd.s32 %v7561, 3
        %v7579 = vand.u32 %v7578, 3
        %vm7580 = vcmp.lt.s32.totalorder %v7579, 2
        %vm7581 = vcmp.eq.s32.totalorder %v7579, 0
        %v7582 = vxor.u32 %v7576, 2147483648
        %v7583 = vsel %vm7581, %v7568, %v7582
        %vm7584 = vcmp.eq.s32.totalorder %v7579, 2
        %v7585 = vxor.u32 %v7568, 2147483648
        %v7586 = vsel %vm7584, %v7585, %v7576
        %v7587 = vsel %vm7580, %v7583, %v7586
        %v7588 = vsel %vm7577, nan, %v7587
        %v7591 = vrot.slane %v7278, 7
        %v7592 = vsel %vm1148, %v7591, %v7124
        %v7594 = vmul.f32 %v1137, %v7592
        %v7595 = vmul.f32 %v1138, %v7592
        %v7596 = vmul.f32 %v1139, %v7592
        %v7597 = vmul.f32 %v1140, %v7592
        %v7600 = vrot.slane %v7588, 7
        %v7601 = vsel %vm1148, %v7600, %v7433
        %v7603 = vmul.f32 %v1159, %v7601
        %v7604 = vmul.f32 %v1160, %v7601
        %v7605 = vmul.f32 %v1161, %v7601
        %v7606 = vmul.f32 %v1162, %v7601
        %v7607 = vsub.f32 %v7594, %v7603
        %v7608 = vsub.f32 %v7595, %v7604
        %v7609 = vsub.f32 %v7596, %v7605
        %v7610 = vsub.f32 %v7597, %v7606
        %7615 = vrot.lane.b32.xlu0 %v7607, 127
        %v7616 = vpop.permute.xlu0 %7615
        %7617 = vrot.lane.b32.xlu0 %v7608, 127
        %v7618 = vpop.permute.xlu0 %7617
        %7619 = vrot.lane.b32.xlu0 %v7609, 127
        %v7620 = vpop.permute.xlu0 %7619
        %7621 = vrot.lane.b32.xlu0 %v7610, 127
        %v7622 = vpop.permute.xlu0 %7621
        %v7627 = vmul.f32 %v7607, %v7616
        %v7628 = vmul.f32 %v7608, %v7618
        %v7629 = vmul.f32 %v7609, %v7620
        %v7630 = vmul.f32 %v7610, %v7622
        %7635 = vrot.lane.b32.xlu0 %v7627, 127
        %v7636 = vpop.permute.xlu0 %7635
        %7637 = vrot.lane.b32.xlu0 %v7628, 127
        %v7638 = vpop.permute.xlu0 %7637
        %7639 = vrot.lane.b32.xlu0 %v7629, 127
        %v7640 = vpop.permute.xlu0 %7639
        %7641 = vrot.lane.b32.xlu0 %v7630, 127
        %v7642 = vpop.permute.xlu0 %7641
        %v7647 = vmul.f32 %v7607, %v7636
        %v7648 = vmul.f32 %v7608, %v7638
        %v7649 = vmul.f32 %v7609, %v7640
        %v7650 = vmul.f32 %v7610, %v7642
        %7651 = vrot.lane.b32.xlu0 %v7607, 126
        %v7652 = vpop.permute.xlu0 %7651
        %7653 = vrot.lane.b32.xlu0 %v7608, 126
        %v7654 = vpop.permute.xlu0 %7653
        %7655 = vrot.lane.b32.xlu0 %v7609, 126
        %v7656 = vpop.permute.xlu0 %7655
        %7657 = vrot.lane.b32.xlu0 %v7610, 126
        %v7658 = vpop.permute.xlu0 %7657
        %v7663 = vmul.f32 %v7627, %v7652
        %v7664 = vmul.f32 %v7628, %v7654
        %v7665 = vmul.f32 %v7629, %v7656
        %v7666 = vmul.f32 %v7630, %v7658
        %7667 = vrot.lane.b32.xlu0 %v7627, 126
        %v7668 = vpop.permute.xlu0 %7667
        %7669 = vrot.lane.b32.xlu0 %v7628, 126
        %v7670 = vpop.permute.xlu0 %7669
        %7671 = vrot.lane.b32.xlu0 %v7629, 126
        %v7672 = vpop.permute.xlu0 %7671
        %7673 = vrot.lane.b32.xlu0 %v7630, 126
        %v7674 = vpop.permute.xlu0 %7673
        %v7679 = vmul.f32 %v7627, %v7668
        %v7680 = vmul.f32 %v7628, %v7670
        %v7681 = vmul.f32 %v7629, %v7672
        %v7682 = vmul.f32 %v7630, %v7674
        %7684 = vset.pattern.permute.xlu0 1
        %7685 = vperm.xlu0 %7684, %v7647
        %v7686 = vpop.permute.xlu0 %7685
        %7689 = vset.pattern.permute.xlu0 1
        %7690 = vperm.xlu0 %7689, %v7648
        %v7691 = vpop.permute.xlu0 %7690
        %7694 = vset.pattern.permute.xlu0 1
        %7695 = vperm.xlu0 %7694, %v7649
        %v7696 = vpop.permute.xlu0 %7695
        %7699 = vset.pattern.permute.xlu0 1
        %7700 = vperm.xlu0 %7699, %v7650
        %v7701 = vpop.permute.xlu0 %7700
        %v7703 = vmul.f32 %v7686, %v1272
        %v7704 = vmul.f32 %v7691, %v1272
        %v7705 = vmul.f32 %v7696, %v1272
        %v7706 = vmul.f32 %v7701, %v1272
        %7707 = vset.pattern.permute.xlu0 0
        %7708 = vperm.xlu0 %7707, %v7627
        %v7709 = vpop.permute.xlu0 %7708
        %7711 = vset.pattern.permute.xlu0 0
        %7712 = vperm.xlu0 %7711, %v7628
        %v7713 = vpop.permute.xlu0 %7712
        %7715 = vset.pattern.permute.xlu0 0
        %7716 = vperm.xlu0 %7715, %v7629
        %v7717 = vpop.permute.xlu0 %7716
        %7719 = vset.pattern.permute.xlu0 0
        %7720 = vperm.xlu0 %7719, %v7630
        %v7721 = vpop.permute.xlu0 %7720
        %v7723 = vmul.f32 %v7709, %v1293
        %v7724 = vmul.f32 %v7713, %v1293
        %v7725 = vmul.f32 %v7717, %v1293
        %v7726 = vmul.f32 %v7721, %v1293
        %v7727 = vadd.f32 %v7703, %v7723
        %v7728 = vadd.f32 %v7704, %v7724
        %v7729 = vadd.f32 %v7705, %v7725
        %v7730 = vadd.f32 %v7706, %v7726
        %7732 = vset.pattern.permute.xlu0 0
        %7733 = vperm.xlu0 %7732, %v7663
        %v7734 = vpop.permute.xlu0 %7733
        %7737 = vset.pattern.permute.xlu0 0
        %7738 = vperm.xlu0 %7737, %v7664
        %v7739 = vpop.permute.xlu0 %7738
        %7742 = vset.pattern.permute.xlu0 0
        %7743 = vperm.xlu0 %7742, %v7665
        %v7744 = vpop.permute.xlu0 %7743
        %7747 = vset.pattern.permute.xlu0 0
        %7748 = vperm.xlu0 %7747, %v7666
        %v7749 = vpop.permute.xlu0 %7748
        %v7751 = vmul.f32 %v7734, %v1322
        %v7752 = vmul.f32 %v7739, %v1322
        %v7753 = vmul.f32 %v7744, %v1322
        %v7754 = vmul.f32 %v7749, %v1322
        %v7755 = vadd.f32 %v7727, %v7751
        %v7756 = vadd.f32 %v7728, %v7752
        %v7757 = vadd.f32 %v7729, %v7753
        %v7758 = vadd.f32 %v7730, %v7754
        %7760 = vset.pattern.permute.xlu0 0
        %7761 = vperm.xlu0 %7760, %v7679
        %v7762 = vpop.permute.xlu0 %7761
        %7765 = vset.pattern.permute.xlu0 0
        %7766 = vperm.xlu0 %7765, %v7680
        %v7767 = vpop.permute.xlu0 %7766
        %7770 = vset.pattern.permute.xlu0 0
        %7771 = vperm.xlu0 %7770, %v7681
        %v7772 = vpop.permute.xlu0 %7771
        %7775 = vset.pattern.permute.xlu0 0
        %7776 = vperm.xlu0 %7775, %v7682
        %v7777 = vpop.permute.xlu0 %7776
        %v7779 = vmul.f32 %v7762, %v1351
        %v7780 = vmul.f32 %v7767, %v1351
        %v7781 = vmul.f32 %v7772, %v1351
        %v7782 = vmul.f32 %v7777, %v1351
        %v7783 = vadd.f32 %v7755, %v7779
        %v7784 = vadd.f32 %v7756, %v7780
        %v7785 = vadd.f32 %v7757, %v7781
        %v7786 = vadd.f32 %v7758, %v7782
        %v7787 = vadd.f32 %v7783, %v1361
        %v7788 = vadd.f32 %v7784, %v1361
        %v7789 = vadd.f32 %v7785, %v1361
        %v7790 = vadd.f32 %v7786, %v1361
        %v7791 = vxor.u32 %v7787, 2147483648
        %v7792 = vxor.u32 %v7788, 2147483648
        %v7793 = vxor.u32 %v7789, 2147483648
        %v7794 = vmul.f32 %v7791, 1.442695
        %v7795 = vpow.pop %v7794
        %v7796 = vmul.f32 %v7792, 1.442695
        %v7797 = vpow.pop %v7796
        %v7798 = vmul.f32 %v7793, 1.442695
        %v7799 = vpow.pop %v7798
        %v7800 = vadd.f32 %v7795, 1.0
        %v7801 = vadd.f32 %v7797, 1.0
        %v7802 = vadd.f32 %v7799, 1.0
        %v7803 = vrcp.pop %v7800
        %v7804 = vmul.f32 %v7800, %v7803
        %v7805 = vsub.f32 1.0, %v7804
        %v7806 = vmul.f32 %v7803, %v7805
        %v7807 = vadd.f32 %v7803, %v7806
        %vm7808 = vweird.f32 %v7800
        %vm7809 = vweird.f32 %v7803
        %vm7810 = vmor %vm7808, %vm7809
        %v7811 = vsel %vm7810, %v7803, %v7807
        %v7812 = vand.u32 2147483647, %v7800
        %vm7813 = vcmp.eq.f32.partialorder %v7812, 8.507059e+37
        %v7814 = vand.u32 %v7800, 2147483648
        %v7815 = vor.u32 1.1754944e-38, %v7814
        %v7816 = vsel %vm7813, %v7815, %v7811
        %v7817 = vmul.f32 1.0, %v7816
        %v7818 = vrcp.pop %v7801
        %v7819 = vmul.f32 %v7801, %v7818
        %v7820 = vsub.f32 1.0, %v7819
        %v7821 = vmul.f32 %v7818, %v7820
        %v7822 = vadd.f32 %v7818, %v7821
        %vm7823 = vweird.f32 %v7801
        %vm7824 = vweird.f32 %v7818
        %vm7825 = vmor %vm7823, %vm7824
        %v7826 = vsel %vm7825, %v7818, %v7822
        %v7827 = vand.u32 2147483647, %v7801
        %vm7828 = vcmp.eq.f32.partialorder %v7827, 8.507059e+37
        %v7829 = vand.u32 %v7801, 2147483648
        %v7830 = vor.u32 1.1754944e-38, %v7829
        %v7831 = vsel %vm7828, %v7830, %v7826
        %v7832 = vmul.f32 1.0, %v7831
        %v7833 = vrcp.pop %v7802
        %v7834 = vmul.f32 %v7802, %v7833
        %v7835 = vsub.f32 1.0, %v7834
        %v7836 = vmul.f32 %v7833, %v7835
        %v7837 = vadd.f32 %v7833, %v7836
        %vm7838 = vweird.f32 %v7802
        %vm7839 = vweird.f32 %v7833
        %vm7840 = vmor %vm7838, %vm7839
        %v7841 = vsel %vm7840, %v7833, %v7837
        %v7842 = vand.u32 2147483647, %v7802
        %vm7843 = vcmp.eq.f32.partialorder %v7842, 8.507059e+37
        %v7844 = vand.u32 %v7802, 2147483648
        %v7845 = vor.u32 1.1754944e-38, %v7844
        %v7846 = vsel %vm7843, %v7845, %v7841
        %v7847 = vmul.f32 1.0, %v7846
        %v7848 = vtanh.pop %v7790
        %v7849 = vmul.f32 %v7817, %v6933
        %v7850 = vmul.f32 %v7832, %v7848
        %v7851 = vadd.f32 %v7849, %v7850
        %v7852 = vtanh.pop %v7851
        %v7853 = vmul.f32 %v7847, %v7852
        %7855 = vrot.lane.b32.xlu0 %v7853, 96
        %v7856 = vpop.permute.xlu0 %7855
        %7858 = vst.msk [vmem:[%s443 + $0x2] sm:$0x3] %vm4188, %v7856
        %7859 = vst.msk [vmem:[#allocation2] sm:$0x3] %vm1430, %v7853
        %7860 = vst.msk [vmem:[#allocation3] sm:$0x3] %vm1430, %v7851
        %p7861 = scmp.eq.s32.totalorder %s31, 3
        // Predicated region
        $region95: #{tpu_custom_call.1} parent=85 // pred_check
          %p7862 = pneg %p7861
        $region96: #{tpu_custom_call.1} parent=85 // pred_check_branch
          %7864 = sbr.rel (%p7862) target = $region98
        $region97: #{tpu_custom_call.1} parent=85 // pred_region
          %7865 = vst.msk [vmem:[#allocation7] sm:$0x3] %vm1430, %v7853
          %7866 = vst.msk [vmem:[#allocation9] sm:$0x3] %vm1430, %v7851
        $region98: #{tpu_custom_call.1} parent=85 // pred_fallthru
          _
        %s7867 = sand.u32 %s233, 1
        %s7868 = scalar_lea.sflag [#allocation6], %s7867
        %s7869 = sand.u32 %s233, 1
        %s7870 = smul.addr %s7869, 4
        %s7871 = scalar_lea.vmem [#allocation5], %s7870
        // Predicated region
        $region99: #{tpu_custom_call.1} parent=85 // pred_check
          %p7872 = pneg %p243
        $region100: #{tpu_custom_call.1} parent=85 // pred_check_branch
          %7874 = sbr.rel (%p7872) target = $region102
        $region101: #{tpu_custom_call.1} parent=85 // pred_region
          %s7875 = smul.u32 2, %s31
          %7877 = vsyncadd %s7868, 0
          %s7878 = smul.addr %s30, 8
          %s7879 = sadd.s32 %s7875, %s7878
          %s7880 = smul.addr %s7879, 2
          %s7881 = scalar_lea.hbm %s8, %s7880
          %s7883 = sshll.u32 %s7871, 4
          %s7884 = int_to_ptr.vmem [resolvable:$true] %s7883
          %s7885 = sshll.u32 %s7881, 4
          %s7886 = int_to_ptr.hbm [resolvable:$true] %s7885
          %7888 = dma.vmem_to_hbm [thread:$0]  %s7884, 64, %s7886, %s7868
        $region102: #{tpu_custom_call.1} parent=85 // pred_fallthru
          _
        // Predicated region
        $region103: #{tpu_custom_call.1} parent=85 // pred_check
          %p7889 = pneg %p269
        $region104: #{tpu_custom_call.1} parent=85 // pred_check_branch
          %7891 = sbr.rel (%p7889) target = $region106
        $region105: #{tpu_custom_call.1} parent=85 // pred_region
          %7893 = vsyncadd [#allocation8], 0
          %s7894 = smul.addr %s30, 2
          %s7895 = scalar_lea.hbm %s9, %s7894
          %s7897 = sshll.u32 [#allocation7], 4
          %s7898 = int_to_ptr.vmem [resolvable:$true] %s7897
          %s7899 = sshll.u32 %s7895, 4
          %s7900 = int_to_ptr.hbm [resolvable:$true] %s7899
          %7902 = dma.vmem_to_hbm [thread:$0]  %s7898, 32, %s7900, [#allocation8]
        $region106: #{tpu_custom_call.1} parent=85 // pred_fallthru
          _
        // Predicated region
        $region107: #{tpu_custom_call.1} parent=85 // pred_check
          %p7903 = pneg %p295
        $region108: #{tpu_custom_call.1} parent=85 // pred_check_branch
          %7905 = sbr.rel (%p7903) target = $region110
        $region109: #{tpu_custom_call.1} parent=85 // pred_region
          %7907 = vsyncadd [#allocation8], 0
          %s7908 = smul.addr %s30, 2
          %s7909 = scalar_lea.hbm %s10, %s7908
          %s7911 = sshll.u32 [#allocation9], 4
          %s7912 = int_to_ptr.vmem [resolvable:$true] %s7911
          %s7913 = sshll.u32 %s7909, 4
          %s7914 = int_to_ptr.hbm [resolvable:$true] %s7913
          %7916 = dma.vmem_to_hbm [thread:$0]  %s7912, 32, %s7914, [#allocation8]
        $region110: #{tpu_custom_call.1} parent=85 // pred_fallthru
          _
        // Predicated region
        $region111: #{tpu_custom_call.1} parent=85 // pred_check
          %p7917 = pneg %p269
        $region112: #{tpu_custom_call.1} parent=85 // pred_check_branch
          %7919 = sbr.rel (%p7917) target = $region114
        $region113: #{tpu_custom_call.1} parent=85 // pred_region
          %7921 = dma.done [#allocation8], 32
        $region114: #{tpu_custom_call.1} parent=85 // pred_fallthru
          _
        // Predicated region
        $region115: #{tpu_custom_call.1} parent=85 // pred_check
          %p7922 = pneg %p295
        $region116: #{tpu_custom_call.1} parent=85 // pred_check_branch
          %7924 = sbr.rel (%p7922) target = $region118
        $region117: #{tpu_custom_call.1} parent=85 // pred_region
          %7926 = dma.done [#allocation8], 32
        $region118: #{tpu_custom_call.1} parent=85 // pred_fallthru
          _
      $region86: #{tpu_custom_call.1} parent=5 // pred_fallthru
        _
      %p7927 = scmp.le.s32.totalorder 2, %s21
      // Predicated region
      $region119: #{tpu_custom_call.1} parent=5 // pred_check
        %p7928 = pneg %p7927
      $region120: #{tpu_custom_call.1} parent=5 // pred_check_branch
        %7930 = sbr.rel (%p7928) target = $region122
      $region121: #{tpu_custom_call.1} parent=5 // pred_region
        %s7931 = ssub.s32 %s21, 2
        // Predicated region
        $region123: #{tpu_custom_call.1} parent=121 // pred_check
          %p7932 = pneg %p249
        $region124: #{tpu_custom_call.1} parent=121 // pred_check_branch
          %7934 = sbr.rel (%p7932) target = $region126
        $region125: #{tpu_custom_call.1} parent=121 // pred_region
          %s7935 = sand.u32 %s234, 1
          %s7936 = scalar_lea.sflag [#allocation6], %s7935
          %s7937 = sand.u32 %s234, 1
          %s7938 = smul.addr %s7937, 4
          %s7939 = scalar_lea.vmem [#allocation5], %s7938
          %7941 = dma.done %s7936, 64
        $region126: #{tpu_custom_call.1} parent=121 // pred_fallthru
          _
      $region122: #{tpu_custom_call.1} parent=5 // pred_fallthru
        _
    $region6: #{tpu_custom_call.1} parent=1 // loop_footer
      %s25 = sadd.s32 1, %s21
    $region7: #{tpu_custom_call.1} parent=1 // loop_footer_branch
      %20 = sbr.rel target = $region3
    $region8: #{tpu_custom_call.1} parent=1 // loop_exit
      _
    %7942 = vsyncpa [#allocation6], 1
    %s7943 = scalar_lea.sflag [#allocation6], 1
    %7944 = vsyncpa %s7943, 1
    %7945 = vsyncpa [#allocation8], 1

</llo_original>
